<compile_context>
chip_gen: v7x
topology: tpu7x:2x2x1
jax: 0.10.0
libtpu: 0.0.40
codegen_flags: <defaults>
</compile_context>

<pallas_src>
import math
from functools import partial

import jax
import jax.numpy as jnp
from jax import lax
from jax.experimental import pallas as pl
from jax.experimental.pallas import tpu as pltpu

# -------------------- configuration (small synthetic shapes) --------------------
BATCH = 2
MEM_LEN = 32          # memory sequence length (S)
CAP_LEN = 8           # encoded-caption length (L)
FEATURE_DIM = 256     # PCDRETransformer feature_dim == embed_dim
D_MODEL = 256         # hard-coded to 256 in the reference module
N_HEAD = 2
N_LAYERS = 2
FF_DIM = D_MODEL * 4
VOCAB_SIZE = 64
LN_EPS = 1e-5


def _full_spec(shape):
    zeros = (0,) * len(shape)
    return pl.BlockSpec(shape, lambda i, z=zeros: z)


# ============================ in-kernel helpers ============================

def _layernorm_f32(x, gamma, beta, eps):
    mu = jnp.mean(x, axis=-1, keepdims=True)
    xc = x - mu
    var = jnp.mean(xc * xc, axis=-1, keepdims=True)
    return xc * lax.rsqrt(var + eps) * gamma + beta


def _sdpa(q3, k3, v3, nhead):
    """q3: (B, Tq, E) f32 (1/sqrt(dh) already folded into Wq); k3/v3: (B, Tk, E) f32."""
    E = q3.shape[-1]
    dh = E // nhead
    outs = []
    for h in range(nhead):                       # tiny static unroll over heads
        qh = q3[:, :, h * dh:(h + 1) * dh].astype(jnp.bfloat16)
        kh = k3[:, :, h * dh:(h + 1) * dh].astype(jnp.bfloat16)
        vh = v3[:, :, h * dh:(h + 1) * dh].astype(jnp.bfloat16)
        s = jnp.einsum('bqd,bkd->bqk', qh, kh,
                       preferred_element_type=jnp.float32)          # batched over B
        s = s - jnp.max(s, axis=-1, keepdims=True)
        p = jnp.exp(s)
        p = p * pl.reciprocal(jnp.sum(p, axis=-1, keepdims=True), approx=True)
        outs.append(jnp.einsum('bqk,bkd->bqd', p.astype(jnp.bfloat16), vh,
                               preferred_element_type=jnp.float32))
    return jnp.concatenate(outs, axis=-1)        # lane-axis concat -> (B, Tq, E)


# ============================ fused forward kernel ============================

def _pcdre_fused_kernel(emb_raw_ref, mem_ref, pw_ref, pb_ref,
                        wq_ref, bq_ref, wkv_ref, bkv_ref, wo_ref, bo_ref,
                        g1_ref, be1_ref, w1_ref, b1_ref, w2_ref, b2_ref,
                        g2_ref, be2_ref, out_ref, *,
                        nhead, n_layers, eps, batch, cap_len, mem_len):
    E = mem_ref.shape[-1]
    B, L, S = batch, cap_len, mem_len
    n_emb = B * L
    n_mem = B * S

    # ---- prologue: caption-embedding projection (dropout1 = identity in eval) ----
    emb = jnp.dot(emb_raw_ref[...].astype(jnp.bfloat16), pw_ref[...],
                  preferred_element_type=jnp.float32) + pb_ref[...]     # (B*L, E)

    mem0 = mem_ref[...]                          # original memory == temp_memory
    memf = mem0.reshape(n_mem, E)                # (B*S, E)

    for l in range(n_layers):                    # static unroll; weights VMEM-resident
        wq, bq = wq_ref[l], bq_ref[l]
        wkv, bkv = wkv_ref[l], bkv_ref[l]
        wo, bo = wo_ref[l], bo_ref[l]
        g1, be1 = g1_ref[l], be1_ref[l]
        w1, b1 = w1_ref[l], b1_ref[l]
        w2, b2 = w2_ref[l], b2_ref[l]
        g2, be2 = g2_ref[l], be2_ref[l]

        # Both directions read the OLD emb/mem (simultaneous tuple update in the
        # reference) and share weights -> single M = B*(L+S) = 80 row block.
        z = jnp.concatenate([emb, memf], axis=0)                 # (M, E) f32
        zb = z.astype(jnp.bfloat16)
        q = jnp.dot(zb, wq, preferred_element_type=jnp.float32) + bq     # scaled Q
        kv = jnp.dot(zb, wkv, preferred_element_type=jnp.float32) + bkv
        k = kv[:, :E]
        v = kv[:, E:]

        q_e = q[:n_emb].reshape(B, L, E)
        q_m = q[n_emb:].reshape(B, S, E)
        k_e = k[:n_emb].reshape(B, L, E)
        k_m = k[n_emb:].reshape(B, S, E)
        v_e = v[:n_emb].reshape(B, L, E)
        v_m = v[n_emb:].reshape(B, S, E)

        attn_e = _sdpa(q_e, k_m, v_m, nhead)     # direction 1: emb attends to mem
        attn_m = _sdpa(q_m, k_e, v_e, nhead)     # direction 2: mem attends to emb
        attn = jnp.concatenate([attn_e.reshape(n_emb, E),
                                attn_m.reshape(n_mem, E)], axis=0)        # (M, E)

        # out-projection + residual + LayerNorm1 (once for both directions)
        o = jnp.dot(attn.astype(jnp.bfloat16), wo,
                    preferred_element_type=jnp.float32) + bo
        h1 = _layernorm_f32(z + o, g1, be1, eps)

        # fused FFN (hidden never leaves VMEM) + residual + LayerNorm2
        f = jnp.dot(h1.astype(jnp.bfloat16), w1,
                    preferred_element_type=jnp.float32) + b1
        f = jnp.maximum(f, 0.0)
        f = jnp.dot(f.astype(jnp.bfloat16), w2,
                    preferred_element_type=jnp.float32) + b2
        h2 = _layernorm_f32(h1 + f, g2, be2, eps)

        emb = h2[:n_emb]
        memf = h2[n_emb:]

    # ---- epilogue: memory + temp_memory ----
    out_ref[...] = memf.reshape(B, S, E) + mem0


def pcdre_forward(params, memory, encoded_captions):
    """memory: (S, B, d_model) float32 ; encoded_captions: (B, L) int32."""
    S, B, E = memory.shape
    mem = jnp.transpose(memory, (1, 0, 2))                    # (B, S, E) lane-dense
    enc = encoded_captions.reshape(B, -1)                     # view(batch_size, -1)
    L = enc.shape[1]

    # vocab embedding: tiny XLA gather; projection happens inside the fused kernel
    emb_raw = jnp.take(params["vocab_emb"], enc, axis=0).reshape(B * L, FEATURE_DIM)

    lw = params["layers"]
    NL = lw["wq"].shape[0]

    in_arrays = (emb_raw, mem, params["proj_w"], params["proj_b"],
                 lw["wq"], lw["bq"], lw["wkv"], lw["bkv"], lw["wo"], lw["bo"],
                 lw["g1"], lw["be1"], lw["w1"], lw["b1"], lw["w2"], lw["b2"],
                 lw["g2"], lw["be2"])
    in_specs = [_full_spec(a.shape) for a in in_arrays]

    out = pl.pallas_call(
        partial(_pcdre_fused_kernel, nhead=N_HEAD, n_layers=NL, eps=LN_EPS,
                batch=B, cap_len=L, mem_len=S),
        out_shape=jax.ShapeDtypeStruct((B, S, E), jnp.float32),
        grid=(1,),
        in_specs=in_specs,
        out_specs=_full_spec((B, S, E)),
        compiler_params=pltpu.CompilerParams(
            dimension_semantics=("arbitrary",),
            vmem_limit_bytes=32 * 1024 * 1024),
    )(*in_arrays)
    return jnp.transpose(out, (1, 0, 2))                      # back to (S, B, E)


# ============================ parameters (arrays only) ============================

def _uniform(key, shape, bound):
    return jax.random.uniform(key, shape, jnp.float32, -bound, bound)


def init_params(key):
    keys = iter(jax.random.split(key, 128))
    nk = lambda: next(keys)
    bnd_e = 1.0 / math.sqrt(D_MODEL)
    bnd_ff = 1.0 / math.sqrt(FF_DIM)
    scale = 1.0 / math.sqrt(D_MODEL // N_HEAD)   # softmax 1/sqrt(dh), folded into Wq/bq

    def stack(fn):
        return jnp.stack([fn() for _ in range(N_LAYERS)], axis=0)

    layers = {
        "wq": stack(lambda: (_uniform(nk(), (D_MODEL, D_MODEL), bnd_e) * scale)
                    .astype(jnp.bfloat16)),
        "bq": stack(lambda: _uniform(nk(), (1, D_MODEL), bnd_e) * scale),
        "wkv": stack(lambda: _uniform(nk(), (D_MODEL, 2 * D_MODEL), bnd_e)
                     .astype(jnp.bfloat16)),
        "bkv": stack(lambda: _uniform(nk(), (1, 2 * D_MODEL), bnd_e)),
        "wo": stack(lambda: _uniform(nk(), (D_MODEL, D_MODEL), bnd_e)
                    .astype(jnp.bfloat16)),
        "bo": stack(lambda: _uniform(nk(), (1, D_MODEL), bnd_e)),
        "g1": jnp.ones((N_LAYERS, 1, D_MODEL), jnp.float32),
        "be1": jnp.zeros((N_LAYERS, 1, D_MODEL), jnp.float32),
        "w1": stack(lambda: _uniform(nk(), (D_MODEL, FF_DIM), bnd_e)
                    .astype(jnp.bfloat16)),
        "b1": stack(lambda: _uniform(nk(), (1, FF_DIM), bnd_e)),
        "w2": stack(lambda: _uniform(nk(), (FF_DIM, D_MODEL), bnd_ff)
                    .astype(jnp.bfloat16)),
        "b2": stack(lambda: _uniform(nk(), (1, D_MODEL), bnd_ff)),
        "g2": jnp.ones((N_LAYERS, 1, D_MODEL), jnp.float32),
        "be2": jnp.zeros((N_LAYERS, 1, D_MODEL), jnp.float32),
    }
    return {
        "vocab_emb": _uniform(nk(), (VOCAB_SIZE, FEATURE_DIM), 0.1),   # init_weights()
        "proj_w": _uniform(nk(), (FEATURE_DIM, D_MODEL),
                           1.0 / math.sqrt(FEATURE_DIM)).astype(jnp.bfloat16),
        "proj_b": _uniform(nk(), (1, D_MODEL), 1.0 / math.sqrt(FEATURE_DIM)),
        "layers": layers,
    }


# ============================ main ============================

if __name__ == "__main__":
    key = jax.random.PRNGKey(0)
    kp, kmem, kcap = jax.random.split(key, 3)
    params = init_params(kp)
    memory = jax.random.normal(kmem, (MEM_LEN, BATCH, D_MODEL), jnp.float32)
    encoded_captions = jax.random.randint(kcap, (BATCH, CAP_LEN), 0, VOCAB_SIZE,
                                          dtype=jnp.int32)
    fwd = jax.jit(pcdre_forward)
    out = fwd(params, memory, encoded_captions)
    jax.block_until_ready(out)
    assert out.shape == (MEM_LEN, BATCH, D_MODEL)
    print("KERNEL_OK")
</pallas_src>

<mosaic_0001>
module attributes {stable_mosaic.version = 11 : i64} {
  func.func @_pcdre_fused_kernel(%arg0: i32, %arg1: memref<16x256xf32, #tpu.memory_space<vmem>>, %arg2: memref<2x32x256xf32, #tpu.memory_space<vmem>>, %arg3: memref<256x256xbf16, #tpu.memory_space<vmem>>, %arg4: memref<1x256xf32, #tpu.memory_space<vmem>>, %arg5: memref<2x256x256xbf16, #tpu.memory_space<vmem>>, %arg6: memref<2x1x256xf32, #tpu.memory_space<vmem>>, %arg7: memref<2x256x512xbf16, #tpu.memory_space<vmem>>, %arg8: memref<2x1x512xf32, #tpu.memory_space<vmem>>, %arg9: memref<2x256x256xbf16, #tpu.memory_space<vmem>>, %arg10: memref<2x1x256xf32, #tpu.memory_space<vmem>>, %arg11: memref<2x1x256xf32, #tpu.memory_space<vmem>>, %arg12: memref<2x1x256xf32, #tpu.memory_space<vmem>>, %arg13: memref<2x256x1024xbf16, #tpu.memory_space<vmem>>, %arg14: memref<2x1x1024xf32, #tpu.memory_space<vmem>>, %arg15: memref<2x1024x256xbf16, #tpu.memory_space<vmem>>, %arg16: memref<2x1x256xf32, #tpu.memory_space<vmem>>, %arg17: memref<2x1x256xf32, #tpu.memory_space<vmem>>, %arg18: memref<2x1x256xf32, #tpu.memory_space<vmem>>, %arg19: memref<2x32x256xf32, #tpu.memory_space<vmem>>) attributes {dimension_semantics = [#tpu.dimension_semantics<arbitrary>], iteration_bounds = array<i64: 1>, scalar_prefetch = 0 : i64, scratch_operands = 0 : i64, tpu.core_type = #tpu.core_type<tc>, window_params = [{pipeline_mode = #tpu.pipeline_mode<synchronous>, transform_indices = @transform_0, window_bounds = array<i64: 16, 256>}, {pipeline_mode = #tpu.pipeline_mode<synchronous>, transform_indices = @transform_1, window_bounds = array<i64: 2, 32, 256>}, {pipeline_mode = #tpu.pipeline_mode<synchronous>, transform_indices = @transform_2, window_bounds = array<i64: 256, 256>}, {pipeline_mode = #tpu.pipeline_mode<synchronous>, transform_indices = @transform_3, window_bounds = array<i64: 1, 256>}, {pipeline_mode = #tpu.pipeline_mode<synchronous>, transform_indices = @transform_4, window_bounds = array<i64: 2, 256, 256>}, {pipeline_mode = #tpu.pipeline_mode<synchronous>, transform_indices = @transform_5, window_bounds = array<i64: 2, 1, 256>}, {pipeline_mode = #tpu.pipeline_mode<synchronous>, transform_indices = @transform_6, window_bounds = array<i64: 2, 256, 512>}, {pipeline_mode = #tpu.pipeline_mode<synchronous>, transform_indices = @transform_7, window_bounds = array<i64: 2, 1, 512>}, {pipeline_mode = #tpu.pipeline_mode<synchronous>, transform_indices = @transform_8, window_bounds = array<i64: 2, 256, 256>}, {pipeline_mode = #tpu.pipeline_mode<synchronous>, transform_indices = @transform_9, window_bounds = array<i64: 2, 1, 256>}, {pipeline_mode = #tpu.pipeline_mode<synchronous>, transform_indices = @transform_10, window_bounds = array<i64: 2, 1, 256>}, {pipeline_mode = #tpu.pipeline_mode<synchronous>, transform_indices = @transform_11, window_bounds = array<i64: 2, 1, 256>}, {pipeline_mode = #tpu.pipeline_mode<synchronous>, transform_indices = @transform_12, window_bounds = array<i64: 2, 256, 1024>}, {pipeline_mode = #tpu.pipeline_mode<synchronous>, transform_indices = @transform_13, window_bounds = array<i64: 2, 1, 1024>}, {pipeline_mode = #tpu.pipeline_mode<synchronous>, transform_indices = @transform_14, window_bounds = array<i64: 2, 1024, 256>}, {pipeline_mode = #tpu.pipeline_mode<synchronous>, transform_indices = @transform_15, window_bounds = array<i64: 2, 1, 256>}, {pipeline_mode = #tpu.pipeline_mode<synchronous>, transform_indices = @transform_16, window_bounds = array<i64: 2, 1, 256>}, {pipeline_mode = #tpu.pipeline_mode<synchronous>, transform_indices = @transform_17, window_bounds = array<i64: 2, 1, 256>}, {pipeline_mode = #tpu.pipeline_mode<synchronous>, transform_indices = @transform_18, window_bounds = array<i64: 2, 32, 256>}]} {
    %c0 = arith.constant 0 : index
    %c0_0 = arith.constant 0 : index
    %0 = vector.load %arg1[%c0, %c0_0] : memref<16x256xf32, #tpu.memory_space<vmem>>, vector<16x256xf32>
    %1 = arith.truncf %0 : vector<16x256xf32> to vector<16x256xbf16>
    %c0_1 = arith.constant 0 : index
    %c0_2 = arith.constant 0 : index
    %2 = vector.load %arg3[%c0_1, %c0_2] : memref<256x256xbf16, #tpu.memory_space<vmem>>, vector<256x256xbf16>
    %cst = arith.constant dense<0.000000e+00> : vector<16x256xf32>
    %3 = tpu.matmul %1, %2, %cst {dimension_numbers = #tpu.dot_dimension_numbers<[1], [0], [0], [1], [0, 0, 1, 1], [], []>} : vector<16x256xbf16>, vector<256x256xbf16>, vector<16x256xf32> -> vector<16x256xf32>
    %c0_3 = arith.constant 0 : index
    %c0_4 = arith.constant 0 : index
    %4 = vector.load %arg4[%c0_3, %c0_4] : memref<1x256xf32, #tpu.memory_space<vmem>>, vector<1x256xf32>
    %5 = vector.broadcast %4 : vector<1x256xf32> to vector<16x256xf32>
    %6 = arith.addf %3, %5 : vector<16x256xf32>
    %c0_5 = arith.constant 0 : index
    %c0_6 = arith.constant 0 : index
    %c0_7 = arith.constant 0 : index
    %7 = vector.load %arg2[%c0_5, %c0_6, %c0_7] : memref<2x32x256xf32, #tpu.memory_space<vmem>>, vector<2x32x256xf32>
    %8 = vector.shape_cast %7 : vector<2x32x256xf32> to vector<64x256xf32>
    %c0_8 = arith.constant 0 : index
    %c0_9 = arith.constant 0 : index
    %c0_10 = arith.constant 0 : index
    %9 = vector.load %arg5[%c0_8, %c0_9, %c0_10] : memref<2x256x256xbf16, #tpu.memory_space<vmem>>, vector<1x256x256xbf16>
    %10 = vector.shape_cast %9 : vector<1x256x256xbf16> to vector<256x256xbf16>
    %c0_11 = arith.constant 0 : index
    %c0_12 = arith.constant 0 : index
    %c0_13 = arith.constant 0 : index
    %11 = vector.load %arg6[%c0_11, %c0_12, %c0_13] : memref<2x1x256xf32, #tpu.memory_space<vmem>>, vector<1x1x256xf32>
    %12 = vector.shape_cast %11 : vector<1x1x256xf32> to vector<1x256xf32>
    %c0_14 = arith.constant 0 : index
    %c0_15 = arith.constant 0 : index
    %c0_16 = arith.constant 0 : index
    %13 = vector.load %arg7[%c0_14, %c0_15, %c0_16] : memref<2x256x512xbf16, #tpu.memory_space<vmem>>, vector<1x256x512xbf16>
    %14 = vector.shape_cast %13 : vector<1x256x512xbf16> to vector<256x512xbf16>
    %c0_17 = arith.constant 0 : index
    %c0_18 = arith.constant 0 : index
    %c0_19 = arith.constant 0 : index
    %15 = vector.load %arg8[%c0_17, %c0_18, %c0_19] : memref<2x1x512xf32, #tpu.memory_space<vmem>>, vector<1x1x512xf32>
    %16 = vector.shape_cast %15 : vector<1x1x512xf32> to vector<1x512xf32>
    %c0_20 = arith.constant 0 : index
    %c0_21 = arith.constant 0 : index
    %c0_22 = arith.constant 0 : index
    %17 = vector.load %arg9[%c0_20, %c0_21, %c0_22] : memref<2x256x256xbf16, #tpu.memory_space<vmem>>, vector<1x256x256xbf16>
    %18 = vector.shape_cast %17 : vector<1x256x256xbf16> to vector<256x256xbf16>
    %c0_23 = arith.constant 0 : index
    %c0_24 = arith.constant 0 : index
    %c0_25 = arith.constant 0 : index
    %19 = vector.load %arg10[%c0_23, %c0_24, %c0_25] : memref<2x1x256xf32, #tpu.memory_space<vmem>>, vector<1x1x256xf32>
    %20 = vector.shape_cast %19 : vector<1x1x256xf32> to vector<1x256xf32>
    %c0_26 = arith.constant 0 : index
    %c0_27 = arith.constant 0 : index
    %c0_28 = arith.constant 0 : index
    %21 = vector.load %arg11[%c0_26, %c0_27, %c0_28] : memref<2x1x256xf32, #tpu.memory_space<vmem>>, vector<1x1x256xf32>
    %22 = vector.shape_cast %21 : vector<1x1x256xf32> to vector<1x256xf32>
    %c0_29 = arith.constant 0 : index
    %c0_30 = arith.constant 0 : index
    %c0_31 = arith.constant 0 : index
    %23 = vector.load %arg12[%c0_29, %c0_30, %c0_31] : memref<2x1x256xf32, #tpu.memory_space<vmem>>, vector<1x1x256xf32>
    %24 = vector.shape_cast %23 : vector<1x1x256xf32> to vector<1x256xf32>
    %c0_32 = arith.constant 0 : index
    %c0_33 = arith.constant 0 : index
    %c0_34 = arith.constant 0 : index
    %25 = vector.load %arg13[%c0_32, %c0_33, %c0_34] : memref<2x256x1024xbf16, #tpu.memory_space<vmem>>, vector<1x256x1024xbf16>
    %26 = vector.shape_cast %25 : vector<1x256x1024xbf16> to vector<256x1024xbf16>
    %c0_35 = arith.constant 0 : index
    %c0_36 = arith.constant 0 : index
    %c0_37 = arith.constant 0 : index
    %27 = vector.load %arg14[%c0_35, %c0_36, %c0_37] : memref<2x1x1024xf32, #tpu.memory_space<vmem>>, vector<1x1x1024xf32>
    %28 = vector.shape_cast %27 : vector<1x1x1024xf32> to vector<1x1024xf32>
    %c0_38 = arith.constant 0 : index
    %c0_39 = arith.constant 0 : index
    %c0_40 = arith.constant 0 : index
    %29 = vector.load %arg15[%c0_38, %c0_39, %c0_40] : memref<2x1024x256xbf16, #tpu.memory_space<vmem>>, vector<1x1024x256xbf16>
    %30 = vector.shape_cast %29 : vector<1x1024x256xbf16> to vector<1024x256xbf16>
    %c0_41 = arith.constant 0 : index
    %c0_42 = arith.constant 0 : index
    %c0_43 = arith.constant 0 : index
    %31 = vector.load %arg16[%c0_41, %c0_42, %c0_43] : memref<2x1x256xf32, #tpu.memory_space<vmem>>, vector<1x1x256xf32>
    %32 = vector.shape_cast %31 : vector<1x1x256xf32> to vector<1x256xf32>
    %c0_44 = arith.constant 0 : index
    %c0_45 = arith.constant 0 : index
    %c0_46 = arith.constant 0 : index
    %33 = vector.load %arg17[%c0_44, %c0_45, %c0_46] : memref<2x1x256xf32, #tpu.memory_space<vmem>>, vector<1x1x256xf32>
    %34 = vector.shape_cast %33 : vector<1x1x256xf32> to vector<1x256xf32>
    %c0_47 = arith.constant 0 : index
    %c0_48 = arith.constant 0 : index
    %c0_49 = arith.constant 0 : index
    %35 = vector.load %arg18[%c0_47, %c0_48, %c0_49] : memref<2x1x256xf32, #tpu.memory_space<vmem>>, vector<1x1x256xf32>
    %36 = vector.shape_cast %35 : vector<1x1x256xf32> to vector<1x256xf32>
    %37 = tpu.concatenate %6, %8 in 0 : vector<16x256xf32>, vector<64x256xf32> -> vector<80x256xf32>
    %38 = arith.truncf %37 : vector<80x256xf32> to vector<80x256xbf16>
    %cst_50 = arith.constant dense<0.000000e+00> : vector<80x256xf32>
    %39 = tpu.matmul %38, %10, %cst_50 {dimension_numbers = #tpu.dot_dimension_numbers<[1], [0], [0], [1], [0, 0, 1, 1], [], []>} : vector<80x256xbf16>, vector<256x256xbf16>, vector<80x256xf32> -> vector<80x256xf32>
    %40 = vector.broadcast %12 : vector<1x256xf32> to vector<80x256xf32>
    %41 = arith.addf %39, %40 : vector<80x256xf32>
    %cst_51 = arith.constant dense<0.000000e+00> : vector<80x512xf32>
    %42 = tpu.matmul %38, %14, %cst_51 {dimension_numbers = #tpu.dot_dimension_numbers<[1], [0], [0], [1], [0, 0, 1, 1], [], []>} : vector<80x256xbf16>, vector<256x512xbf16>, vector<80x512xf32> -> vector<80x512xf32>
    %43 = vector.broadcast %16 : vector<1x512xf32> to vector<80x512xf32>
    %44 = arith.addf %42, %43 : vector<80x512xf32>
    %45 = vector.extract_strided_slice %44 {offsets = [0, 0], sizes = [80, 256], strides = [1, 1]} : vector<80x512xf32> to vector<80x256xf32>
    %46 = vector.extract_strided_slice %44 {offsets = [0, 256], sizes = [80, 256], strides = [1, 1]} : vector<80x512xf32> to vector<80x256xf32>
    %47 = vector.extract_strided_slice %41 {offsets = [0, 0], sizes = [16, 256], strides = [1, 1]} : vector<80x256xf32> to vector<16x256xf32>
    %48 = vector.shape_cast %47 : vector<16x256xf32> to vector<2x8x256xf32>
    %49 = vector.extract_strided_slice %41 {offsets = [16, 0], sizes = [64, 256], strides = [1, 1]} : vector<80x256xf32> to vector<64x256xf32>
    %50 = vector.shape_cast %49 : vector<64x256xf32> to vector<2x32x256xf32>
    %51 = vector.extract_strided_slice %45 {offsets = [0, 0], sizes = [16, 256], strides = [1, 1]} : vector<80x256xf32> to vector<16x256xf32>
    %52 = vector.shape_cast %51 : vector<16x256xf32> to vector<2x8x256xf32>
    %53 = vector.extract_strided_slice %45 {offsets = [16, 0], sizes = [64, 256], strides = [1, 1]} : vector<80x256xf32> to vector<64x256xf32>
    %54 = vector.shape_cast %53 : vector<64x256xf32> to vector<2x32x256xf32>
    %55 = vector.extract_strided_slice %46 {offsets = [0, 0], sizes = [16, 256], strides = [1, 1]} : vector<80x256xf32> to vector<16x256xf32>
    %56 = vector.shape_cast %55 : vector<16x256xf32> to vector<2x8x256xf32>
    %57 = vector.extract_strided_slice %46 {offsets = [16, 0], sizes = [64, 256], strides = [1, 1]} : vector<80x256xf32> to vector<64x256xf32>
    %58 = vector.shape_cast %57 : vector<64x256xf32> to vector<2x32x256xf32>
    %59 = vector.extract_strided_slice %48 {offsets = [0, 0, 0], sizes = [2, 8, 128], strides = [1, 1, 1]} : vector<2x8x256xf32> to vector<2x8x128xf32>
    %60 = arith.truncf %59 : vector<2x8x128xf32> to vector<2x8x128xbf16>
    %61 = vector.extract_strided_slice %54 {offsets = [0, 0, 0], sizes = [2, 32, 128], strides = [1, 1, 1]} : vector<2x32x256xf32> to vector<2x32x128xf32>
    %62 = arith.truncf %61 : vector<2x32x128xf32> to vector<2x32x128xbf16>
    %63 = vector.extract_strided_slice %58 {offsets = [0, 0, 0], sizes = [2, 32, 128], strides = [1, 1, 1]} : vector<2x32x256xf32> to vector<2x32x128xf32>
    %64 = arith.truncf %63 : vector<2x32x128xf32> to vector<2x32x128xbf16>
    "tpu.trace_start"() <{level = 10 : i32, message = "bqd,bkd->bqk"}> : () -> ()
    %cst_52 = arith.constant dense<0.000000e+00> : vector<2x8x32xf32>
    %65 = tpu.matmul %60, %62, %cst_52 {dimension_numbers = #tpu.dot_dimension_numbers<[2], [2], [1], [1], [0, 0, 0, 1, 1, 1], [0], [0]>} : vector<2x8x128xbf16>, vector<2x32x128xbf16>, vector<2x8x32xf32> -> vector<2x8x32xf32>
    "tpu.trace_stop"() : () -> ()
    %cst_53 = arith.constant dense<0xFF800000> : vector<2x8xf32>
    %66 = vector.multi_reduction <maximumf>, %65, %cst_53 [2] : vector<2x8x32xf32> to vector<2x8xf32>
    %67 = vector.shape_cast %66 : vector<2x8xf32> to vector<2x8x1xf32>
    %68 = vector.broadcast %67 : vector<2x8x1xf32> to vector<2x8x32xf32>
    %69 = arith.subf %65, %68 : vector<2x8x32xf32>
    %70 = math.exp %69 : vector<2x8x32xf32>
    %cst_54 = arith.constant dense<0.000000e+00> : vector<2x8xf32>
    %71 = vector.multi_reduction <add>, %70, %cst_54 [2] : vector<2x8x32xf32> to vector<2x8xf32>
    %72 = vector.shape_cast %71 : vector<2x8xf32> to vector<2x8x1xf32>
    %73 = tpu.reciprocal %72 {approx = true} : vector<2x8x1xf32> -> vector<2x8x1xf32>
    %74 = vector.broadcast %73 : vector<2x8x1xf32> to vector<2x8x32xf32>
    %75 = arith.mulf %70, %74 : vector<2x8x32xf32>
    %76 = arith.truncf %75 : vector<2x8x32xf32> to vector<2x8x32xbf16>
    "tpu.trace_start"() <{level = 10 : i32, message = "bqk,bkd->bqd"}> : () -> ()
    %cst_55 = arith.constant dense<0.000000e+00> : vector<2x8x128xf32>
    %77 = tpu.matmul %76, %64, %cst_55 {dimension_numbers = #tpu.dot_dimension_numbers<[2], [1], [1], [2], [0, 0, 0, 1, 1, 2], [0], [0]>} : vector<2x8x32xbf16>, vector<2x32x128xbf16>, vector<2x8x128xf32> -> vector<2x8x128xf32>
    "tpu.trace_stop"() : () -> ()
    %78 = vector.extract_strided_slice %48 {offsets = [0, 0, 128], sizes = [2, 8, 128], strides = [1, 1, 1]} : vector<2x8x256xf32> to vector<2x8x128xf32>
    %79 = arith.truncf %78 : vector<2x8x128xf32> to vector<2x8x128xbf16>
    %80 = vector.extract_strided_slice %54 {offsets = [0, 0, 128], sizes = [2, 32, 128], strides = [1, 1, 1]} : vector<2x32x256xf32> to vector<2x32x128xf32>
    %81 = arith.truncf %80 : vector<2x32x128xf32> to vector<2x32x128xbf16>
    %82 = vector.extract_strided_slice %58 {offsets = [0, 0, 128], sizes = [2, 32, 128], strides = [1, 1, 1]} : vector<2x32x256xf32> to vector<2x32x128xf32>
    %83 = arith.truncf %82 : vector<2x32x128xf32> to vector<2x32x128xbf16>
    "tpu.trace_start"() <{level = 10 : i32, message = "bqd,bkd->bqk"}> : () -> ()
    %cst_56 = arith.constant dense<0.000000e+00> : vector<2x8x32xf32>
    %84 = tpu.matmul %79, %81, %cst_56 {dimension_numbers = #tpu.dot_dimension_numbers<[2], [2], [1], [1], [0, 0, 0, 1, 1, 1], [0], [0]>} : vector<2x8x128xbf16>, vector<2x32x128xbf16>, vector<2x8x32xf32> -> vector<2x8x32xf32>
    "tpu.trace_stop"() : () -> ()
    %cst_57 = arith.constant dense<0xFF800000> : vector<2x8xf32>
    %85 = vector.multi_reduction <maximumf>, %84, %cst_57 [2] : vector<2x8x32xf32> to vector<2x8xf32>
    %86 = vector.shape_cast %85 : vector<2x8xf32> to vector<2x8x1xf32>
    %87 = vector.broadcast %86 : vector<2x8x1xf32> to vector<2x8x32xf32>
    %88 = arith.subf %84, %87 : vector<2x8x32xf32>
    %89 = math.exp %88 : vector<2x8x32xf32>
    %cst_58 = arith.constant dense<0.000000e+00> : vector<2x8xf32>
    %90 = vector.multi_reduction <add>, %89, %cst_58 [2] : vector<2x8x32xf32> to vector<2x8xf32>
    %91 = vector.shape_cast %90 : vector<2x8xf32> to vector<2x8x1xf32>
    %92 = tpu.reciprocal %91 {approx = true} : vector<2x8x1xf32> -> vector<2x8x1xf32>
    %93 = vector.broadcast %92 : vector<2x8x1xf32> to vector<2x8x32xf32>
    %94 = arith.mulf %89, %93 : vector<2x8x32xf32>
    %95 = arith.truncf %94 : vector<2x8x32xf32> to vector<2x8x32xbf16>
    "tpu.trace_start"() <{level = 10 : i32, message = "bqk,bkd->bqd"}> : () -> ()
    %cst_59 = arith.constant dense<0.000000e+00> : vector<2x8x128xf32>
    %96 = tpu.matmul %95, %83, %cst_59 {dimension_numbers = #tpu.dot_dimension_numbers<[2], [1], [1], [2], [0, 0, 0, 1, 1, 2], [0], [0]>} : vector<2x8x32xbf16>, vector<2x32x128xbf16>, vector<2x8x128xf32> -> vector<2x8x128xf32>
    "tpu.trace_stop"() : () -> ()
    %97 = tpu.concatenate %77, %96 in 2 : vector<2x8x128xf32>, vector<2x8x128xf32> -> vector<2x8x256xf32>
    %98 = vector.extract_strided_slice %50 {offsets = [0, 0, 0], sizes = [2, 32, 128], strides = [1, 1, 1]} : vector<2x32x256xf32> to vector<2x32x128xf32>
    %99 = arith.truncf %98 : vector<2x32x128xf32> to vector<2x32x128xbf16>
    %100 = vector.extract_strided_slice %52 {offsets = [0, 0, 0], sizes = [2, 8, 128], strides = [1, 1, 1]} : vector<2x8x256xf32> to vector<2x8x128xf32>
    %101 = arith.truncf %100 : vector<2x8x128xf32> to vector<2x8x128xbf16>
    %102 = vector.extract_strided_slice %56 {offsets = [0, 0, 0], sizes = [2, 8, 128], strides = [1, 1, 1]} : vector<2x8x256xf32> to vector<2x8x128xf32>
    %103 = arith.truncf %102 : vector<2x8x128xf32> to vector<2x8x128xbf16>
    "tpu.trace_start"() <{level = 10 : i32, message = "bqd,bkd->bqk"}> : () -> ()
    %cst_60 = arith.constant dense<0.000000e+00> : vector<2x32x8xf32>
    %104 = tpu.matmul %99, %101, %cst_60 {dimension_numbers = #tpu.dot_dimension_numbers<[2], [2], [1], [1], [0, 0, 0, 1, 1, 1], [0], [0]>} : vector<2x32x128xbf16>, vector<2x8x128xbf16>, vector<2x32x8xf32> -> vector<2x32x8xf32>
    "tpu.trace_stop"() : () -> ()
    %cst_61 = arith.constant dense<0xFF800000> : vector<2x32xf32>
    %105 = vector.multi_reduction <maximumf>, %104, %cst_61 [2] : vector<2x32x8xf32> to vector<2x32xf32>
    %106 = vector.shape_cast %105 : vector<2x32xf32> to vector<2x32x1xf32>
    %107 = vector.broadcast %106 : vector<2x32x1xf32> to vector<2x32x8xf32>
    %108 = arith.subf %104, %107 : vector<2x32x8xf32>
    %109 = math.exp %108 : vector<2x32x8xf32>
    %cst_62 = arith.constant dense<0.000000e+00> : vector<2x32xf32>
    %110 = vector.multi_reduction <add>, %109, %cst_62 [2] : vector<2x32x8xf32> to vector<2x32xf32>
    %111 = vector.shape_cast %110 : vector<2x32xf32> to vector<2x32x1xf32>
    %112 = tpu.reciprocal %111 {approx = true} : vector<2x32x1xf32> -> vector<2x32x1xf32>
    %113 = vector.broadcast %112 : vector<2x32x1xf32> to vector<2x32x8xf32>
    %114 = arith.mulf %109, %113 : vector<2x32x8xf32>
    %115 = arith.truncf %114 : vector<2x32x8xf32> to vector<2x32x8xbf16>
    "tpu.trace_start"() <{level = 10 : i32, message = "bqk,bkd->bqd"}> : () -> ()
    %cst_63 = arith.constant dense<0.000000e+00> : vector<2x32x128xf32>
    %116 = tpu.matmul %115, %103, %cst_63 {dimension_numbers = #tpu.dot_dimension_numbers<[2], [1], [1], [2], [0, 0, 0, 1, 1, 2], [0], [0]>} : vector<2x32x8xbf16>, vector<2x8x128xbf16>, vector<2x32x128xf32> -> vector<2x32x128xf32>
    "tpu.trace_stop"() : () -> ()
    %117 = vector.extract_strided_slice %50 {offsets = [0, 0, 128], sizes = [2, 32, 128], strides = [1, 1, 1]} : vector<2x32x256xf32> to vector<2x32x128xf32>
    %118 = arith.truncf %117 : vector<2x32x128xf32> to vector<2x32x128xbf16>
    %119 = vector.extract_strided_slice %52 {offsets = [0, 0, 128], sizes = [2, 8, 128], strides = [1, 1, 1]} : vector<2x8x256xf32> to vector<2x8x128xf32>
    %120 = arith.truncf %119 : vector<2x8x128xf32> to vector<2x8x128xbf16>
    %121 = vector.extract_strided_slice %56 {offsets = [0, 0, 128], sizes = [2, 8, 128], strides = [1, 1, 1]} : vector<2x8x256xf32> to vector<2x8x128xf32>
    %122 = arith.truncf %121 : vector<2x8x128xf32> to vector<2x8x128xbf16>
    "tpu.trace_start"() <{level = 10 : i32, message = "bqd,bkd->bqk"}> : () -> ()
    %cst_64 = arith.constant dense<0.000000e+00> : vector<2x32x8xf32>
    %123 = tpu.matmul %118, %120, %cst_64 {dimension_numbers = #tpu.dot_dimension_numbers<[2], [2], [1], [1], [0, 0, 0, 1, 1, 1], [0], [0]>} : vector<2x32x128xbf16>, vector<2x8x128xbf16>, vector<2x32x8xf32> -> vector<2x32x8xf32>
    "tpu.trace_stop"() : () -> ()
    %cst_65 = arith.constant dense<0xFF800000> : vector<2x32xf32>
    %124 = vector.multi_reduction <maximumf>, %123, %cst_65 [2] : vector<2x32x8xf32> to vector<2x32xf32>
    %125 = vector.shape_cast %124 : vector<2x32xf32> to vector<2x32x1xf32>
    %126 = vector.broadcast %125 : vector<2x32x1xf32> to vector<2x32x8xf32>
    %127 = arith.subf %123, %126 : vector<2x32x8xf32>
    %128 = math.exp %127 : vector<2x32x8xf32>
    %cst_66 = arith.constant dense<0.000000e+00> : vector<2x32xf32>
    %129 = vector.multi_reduction <add>, %128, %cst_66 [2] : vector<2x32x8xf32> to vector<2x32xf32>
    %130 = vector.shape_cast %129 : vector<2x32xf32> to vector<2x32x1xf32>
    %131 = tpu.reciprocal %130 {approx = true} : vector<2x32x1xf32> -> vector<2x32x1xf32>
    %132 = vector.broadcast %131 : vector<2x32x1xf32> to vector<2x32x8xf32>
    %133 = arith.mulf %128, %132 : vector<2x32x8xf32>
    %134 = arith.truncf %133 : vector<2x32x8xf32> to vector<2x32x8xbf16>
    "tpu.trace_start"() <{level = 10 : i32, message = "bqk,bkd->bqd"}> : () -> ()
    %cst_67 = arith.constant dense<0.000000e+00> : vector<2x32x128xf32>
    %135 = tpu.matmul %134, %122, %cst_67 {dimension_numbers = #tpu.dot_dimension_numbers<[2], [1], [1], [2], [0, 0, 0, 1, 1, 2], [0], [0]>} : vector<2x32x8xbf16>, vector<2x8x128xbf16>, vector<2x32x128xf32> -> vector<2x32x128xf32>
    "tpu.trace_stop"() : () -> ()
    %136 = tpu.concatenate %116, %135 in 2 : vector<2x32x128xf32>, vector<2x32x128xf32> -> vector<2x32x256xf32>
    %137 = vector.shape_cast %97 : vector<2x8x256xf32> to vector<16x256xf32>
    %138 = vector.shape_cast %136 : vector<2x32x256xf32> to vector<64x256xf32>
    %139 = tpu.concatenate %137, %138 in 0 : vector<16x256xf32>, vector<64x256xf32> -> vector<80x256xf32>
    %140 = arith.truncf %139 : vector<80x256xf32> to vector<80x256xbf16>
    %cst_68 = arith.constant dense<0.000000e+00> : vector<80x256xf32>
    %141 = tpu.matmul %140, %18, %cst_68 {dimension_numbers = #tpu.dot_dimension_numbers<[1], [0], [0], [1], [0, 0, 1, 1], [], []>} : vector<80x256xbf16>, vector<256x256xbf16>, vector<80x256xf32> -> vector<80x256xf32>
    %142 = vector.broadcast %20 : vector<1x256xf32> to vector<80x256xf32>
    %143 = arith.addf %141, %142 : vector<80x256xf32>
    %144 = arith.addf %37, %143 : vector<80x256xf32>
    %cst_69 = arith.constant dense<0.000000e+00> : vector<80xf32>
    %145 = vector.multi_reduction <add>, %144, %cst_69 [1] : vector<80x256xf32> to vector<80xf32>
    %146 = vector.shape_cast %145 : vector<80xf32> to vector<80x1xf32>
    %cst_70 = arith.constant 2.560000e+02 : f32
    %147 = vector.broadcast %cst_70 : f32 to vector<80x1xf32>
    %148 = arith.divf %146, %147 : vector<80x1xf32>
    %149 = vector.broadcast %148 : vector<80x1xf32> to vector<80x256xf32>
    %150 = arith.subf %144, %149 : vector<80x256xf32>
    %151 = arith.mulf %150, %150 : vector<80x256xf32>
    %cst_71 = arith.constant dense<0.000000e+00> : vector<80xf32>
    %152 = vector.multi_reduction <add>, %151, %cst_71 [1] : vector<80x256xf32> to vector<80xf32>
    %153 = vector.shape_cast %152 : vector<80xf32> to vector<80x1xf32>
    %cst_72 = arith.constant 2.560000e+02 : f32
    %154 = vector.broadcast %cst_72 : f32 to vector<80x1xf32>
    %155 = arith.divf %153, %154 : vector<80x1xf32>
    %cst_73 = arith.constant 9.99999974E-6 : f32
    %156 = vector.broadcast %cst_73 : f32 to vector<80x1xf32>
    %157 = arith.addf %155, %156 : vector<80x1xf32>
    %158 = math.rsqrt %157 : vector<80x1xf32>
    %159 = vector.broadcast %158 : vector<80x1xf32> to vector<80x256xf32>
    %160 = arith.mulf %150, %159 : vector<80x256xf32>
    %161 = vector.broadcast %22 : vector<1x256xf32> to vector<80x256xf32>
    %162 = arith.mulf %160, %161 : vector<80x256xf32>
    %163 = vector.broadcast %24 : vector<1x256xf32> to vector<80x256xf32>
    %164 = arith.addf %162, %163 : vector<80x256xf32>
    %165 = arith.truncf %164 : vector<80x256xf32> to vector<80x256xbf16>
    %cst_74 = arith.constant dense<0.000000e+00> : vector<80x1024xf32>
    %166 = tpu.matmul %165, %26, %cst_74 {dimension_numbers = #tpu.dot_dimension_numbers<[1], [0], [0], [1], [0, 0, 1, 1], [], []>} : vector<80x256xbf16>, vector<256x1024xbf16>, vector<80x1024xf32> -> vector<80x1024xf32>
    %167 = vector.broadcast %28 : vector<1x1024xf32> to vector<80x1024xf32>
    %168 = arith.addf %166, %167 : vector<80x1024xf32>
    %cst_75 = arith.constant 0.000000e+00 : f32
    %169 = vector.broadcast %cst_75 : f32 to vector<80x1024xf32>
    %170 = arith.maximumf %168, %169 : vector<80x1024xf32>
    %171 = arith.truncf %170 : vector<80x1024xf32> to vector<80x1024xbf16>
    %cst_76 = arith.constant dense<0.000000e+00> : vector<80x256xf32>
    %172 = tpu.matmul %171, %30, %cst_76 {dimension_numbers = #tpu.dot_dimension_numbers<[1], [0], [0], [1], [0, 0, 1, 1], [], []>} : vector<80x1024xbf16>, vector<1024x256xbf16>, vector<80x256xf32> -> vector<80x256xf32>
    %173 = vector.broadcast %32 : vector<1x256xf32> to vector<80x256xf32>
    %174 = arith.addf %172, %173 : vector<80x256xf32>
    %175 = arith.addf %164, %174 : vector<80x256xf32>
    %cst_77 = arith.constant dense<0.000000e+00> : vector<80xf32>
    %176 = vector.multi_reduction <add>, %175, %cst_77 [1] : vector<80x256xf32> to vector<80xf32>
    %177 = vector.shape_cast %176 : vector<80xf32> to vector<80x1xf32>
    %cst_78 = arith.constant 2.560000e+02 : f32
    %178 = vector.broadcast %cst_78 : f32 to vector<80x1xf32>
    %179 = arith.divf %177, %178 : vector<80x1xf32>
    %180 = vector.broadcast %179 : vector<80x1xf32> to vector<80x256xf32>
    %181 = arith.subf %175, %180 : vector<80x256xf32>
    %182 = arith.mulf %181, %181 : vector<80x256xf32>
    %cst_79 = arith.constant dense<0.000000e+00> : vector<80xf32>
    %183 = vector.multi_reduction <add>, %182, %cst_79 [1] : vector<80x256xf32> to vector<80xf32>
    %184 = vector.shape_cast %183 : vector<80xf32> to vector<80x1xf32>
    %cst_80 = arith.constant 2.560000e+02 : f32
    %185 = vector.broadcast %cst_80 : f32 to vector<80x1xf32>
    %186 = arith.divf %184, %185 : vector<80x1xf32>
    %cst_81 = arith.constant 9.99999974E-6 : f32
    %187 = vector.broadcast %cst_81 : f32 to vector<80x1xf32>
    %188 = arith.addf %186, %187 : vector<80x1xf32>
    %189 = math.rsqrt %188 : vector<80x1xf32>
    %190 = vector.broadcast %189 : vector<80x1xf32> to vector<80x256xf32>
    %191 = arith.mulf %181, %190 : vector<80x256xf32>
    %192 = vector.broadcast %34 : vector<1x256xf32> to vector<80x256xf32>
    %193 = arith.mulf %191, %192 : vector<80x256xf32>
    %194 = vector.broadcast %36 : vector<1x256xf32> to vector<80x256xf32>
    %195 = arith.addf %193, %194 : vector<80x256xf32>
    %196 = vector.extract_strided_slice %195 {offsets = [0, 0], sizes = [16, 256], strides = [1, 1]} : vector<80x256xf32> to vector<16x256xf32>
    %197 = vector.extract_strided_slice %195 {offsets = [16, 0], sizes = [64, 256], strides = [1, 1]} : vector<80x256xf32> to vector<64x256xf32>
    %c1 = arith.constant 1 : index
    %c0_82 = arith.constant 0 : index
    %c0_83 = arith.constant 0 : index
    %198 = vector.load %arg5[%c1, %c0_82, %c0_83] : memref<2x256x256xbf16, #tpu.memory_space<vmem>>, vector<1x256x256xbf16>
    %199 = vector.shape_cast %198 : vector<1x256x256xbf16> to vector<256x256xbf16>
    %c1_84 = arith.constant 1 : index
    %c0_85 = arith.constant 0 : index
    %c0_86 = arith.constant 0 : index
    %200 = vector.load %arg6[%c1_84, %c0_85, %c0_86] : memref<2x1x256xf32, #tpu.memory_space<vmem>>, vector<1x1x256xf32>
    %201 = vector.shape_cast %200 : vector<1x1x256xf32> to vector<1x256xf32>
    %c1_87 = arith.constant 1 : index
    %c0_88 = arith.constant 0 : index
    %c0_89 = arith.constant 0 : index
    %202 = vector.load %arg7[%c1_87, %c0_88, %c0_89] : memref<2x256x512xbf16, #tpu.memory_space<vmem>>, vector<1x256x512xbf16>
    %203 = vector.shape_cast %202 : vector<1x256x512xbf16> to vector<256x512xbf16>
    %c1_90 = arith.constant 1 : index
    %c0_91 = arith.constant 0 : index
    %c0_92 = arith.constant 0 : index
    %204 = vector.load %arg8[%c1_90, %c0_91, %c0_92] : memref<2x1x512xf32, #tpu.memory_space<vmem>>, vector<1x1x512xf32>
    %205 = vector.shape_cast %204 : vector<1x1x512xf32> to vector<1x512xf32>
    %c1_93 = arith.constant 1 : index
    %c0_94 = arith.constant 0 : index
    %c0_95 = arith.constant 0 : index
    %206 = vector.load %arg9[%c1_93, %c0_94, %c0_95] : memref<2x256x256xbf16, #tpu.memory_space<vmem>>, vector<1x256x256xbf16>
    %207 = vector.shape_cast %206 : vector<1x256x256xbf16> to vector<256x256xbf16>
    %c1_96 = arith.constant 1 : index
    %c0_97 = arith.constant 0 : index
    %c0_98 = arith.constant 0 : index
    %208 = vector.load %arg10[%c1_96, %c0_97, %c0_98] : memref<2x1x256xf32, #tpu.memory_space<vmem>>, vector<1x1x256xf32>
    %209 = vector.shape_cast %208 : vector<1x1x256xf32> to vector<1x256xf32>
    %c1_99 = arith.constant 1 : index
    %c0_100 = arith.constant 0 : index
    %c0_101 = arith.constant 0 : index
    %210 = vector.load %arg11[%c1_99, %c0_100, %c0_101] : memref<2x1x256xf32, #tpu.memory_space<vmem>>, vector<1x1x256xf32>
    %211 = vector.shape_cast %210 : vector<1x1x256xf32> to vector<1x256xf32>
    %c1_102 = arith.constant 1 : index
    %c0_103 = arith.constant 0 : index
    %c0_104 = arith.constant 0 : index
    %212 = vector.load %arg12[%c1_102, %c0_103, %c0_104] : memref<2x1x256xf32, #tpu.memory_space<vmem>>, vector<1x1x256xf32>
    %213 = vector.shape_cast %212 : vector<1x1x256xf32> to vector<1x256xf32>
    %c1_105 = arith.constant 1 : index
    %c0_106 = arith.constant 0 : index
    %c0_107 = arith.constant 0 : index
    %214 = vector.load %arg13[%c1_105, %c0_106, %c0_107] : memref<2x256x1024xbf16, #tpu.memory_space<vmem>>, vector<1x256x1024xbf16>
    %215 = vector.shape_cast %214 : vector<1x256x1024xbf16> to vector<256x1024xbf16>
    %c1_108 = arith.constant 1 : index
    %c0_109 = arith.constant 0 : index
    %c0_110 = arith.constant 0 : index
    %216 = vector.load %arg14[%c1_108, %c0_109, %c0_110] : memref<2x1x1024xf32, #tpu.memory_space<vmem>>, vector<1x1x1024xf32>
    %217 = vector.shape_cast %216 : vector<1x1x1024xf32> to vector<1x1024xf32>
    %c1_111 = arith.constant 1 : index
    %c0_112 = arith.constant 0 : index
    %c0_113 = arith.constant 0 : index
    %218 = vector.load %arg15[%c1_111, %c0_112, %c0_113] : memref<2x1024x256xbf16, #tpu.memory_space<vmem>>, vector<1x1024x256xbf16>
    %219 = vector.shape_cast %218 : vector<1x1024x256xbf16> to vector<1024x256xbf16>
    %c1_114 = arith.constant 1 : index
    %c0_115 = arith.constant 0 : index
    %c0_116 = arith.constant 0 : index
    %220 = vector.load %arg16[%c1_114, %c0_115, %c0_116] : memref<2x1x256xf32, #tpu.memory_space<vmem>>, vector<1x1x256xf32>
    %221 = vector.shape_cast %220 : vector<1x1x256xf32> to vector<1x256xf32>
    %c1_117 = arith.constant 1 : index
    %c0_118 = arith.constant 0 : index
    %c0_119 = arith.constant 0 : index
    %222 = vector.load %arg17[%c1_117, %c0_118, %c0_119] : memref<2x1x256xf32, #tpu.memory_space<vmem>>, vector<1x1x256xf32>
    %223 = vector.shape_cast %222 : vector<1x1x256xf32> to vector<1x256xf32>
    %c1_120 = arith.constant 1 : index
    %c0_121 = arith.constant 0 : index
    %c0_122 = arith.constant 0 : index
    %224 = vector.load %arg18[%c1_120, %c0_121, %c0_122] : memref<2x1x256xf32, #tpu.memory_space<vmem>>, vector<1x1x256xf32>
    %225 = vector.shape_cast %224 : vector<1x1x256xf32> to vector<1x256xf32>
    %226 = tpu.concatenate %196, %197 in 0 : vector<16x256xf32>, vector<64x256xf32> -> vector<80x256xf32>
    %227 = arith.truncf %226 : vector<80x256xf32> to vector<80x256xbf16>
    %cst_123 = arith.constant dense<0.000000e+00> : vector<80x256xf32>
    %228 = tpu.matmul %227, %199, %cst_123 {dimension_numbers = #tpu.dot_dimension_numbers<[1], [0], [0], [1], [0, 0, 1, 1], [], []>} : vector<80x256xbf16>, vector<256x256xbf16>, vector<80x256xf32> -> vector<80x256xf32>
    %229 = vector.broadcast %201 : vector<1x256xf32> to vector<80x256xf32>
    %230 = arith.addf %228, %229 : vector<80x256xf32>
    %cst_124 = arith.constant dense<0.000000e+00> : vector<80x512xf32>
    %231 = tpu.matmul %227, %203, %cst_124 {dimension_numbers = #tpu.dot_dimension_numbers<[1], [0], [0], [1], [0, 0, 1, 1], [], []>} : vector<80x256xbf16>, vector<256x512xbf16>, vector<80x512xf32> -> vector<80x512xf32>
    %232 = vector.broadcast %205 : vector<1x512xf32> to vector<80x512xf32>
    %233 = arith.addf %231, %232 : vector<80x512xf32>
    %234 = vector.extract_strided_slice %233 {offsets = [0, 0], sizes = [80, 256], strides = [1, 1]} : vector<80x512xf32> to vector<80x256xf32>
    %235 = vector.extract_strided_slice %233 {offsets = [0, 256], sizes = [80, 256], strides = [1, 1]} : vector<80x512xf32> to vector<80x256xf32>
    %236 = vector.extract_strided_slice %230 {offsets = [0, 0], sizes = [16, 256], strides = [1, 1]} : vector<80x256xf32> to vector<16x256xf32>
    %237 = vector.shape_cast %236 : vector<16x256xf32> to vector<2x8x256xf32>
    %238 = vector.extract_strided_slice %230 {offsets = [16, 0], sizes = [64, 256], strides = [1, 1]} : vector<80x256xf32> to vector<64x256xf32>
    %239 = vector.shape_cast %238 : vector<64x256xf32> to vector<2x32x256xf32>
    %240 = vector.extract_strided_slice %234 {offsets = [0, 0], sizes = [16, 256], strides = [1, 1]} : vector<80x256xf32> to vector<16x256xf32>
    %241 = vector.shape_cast %240 : vector<16x256xf32> to vector<2x8x256xf32>
    %242 = vector.extract_strided_slice %234 {offsets = [16, 0], sizes = [64, 256], strides = [1, 1]} : vector<80x256xf32> to vector<64x256xf32>
    %243 = vector.shape_cast %242 : vector<64x256xf32> to vector<2x32x256xf32>
    %244 = vector.extract_strided_slice %235 {offsets = [0, 0], sizes = [16, 256], strides = [1, 1]} : vector<80x256xf32> to vector<16x256xf32>
    %245 = vector.shape_cast %244 : vector<16x256xf32> to vector<2x8x256xf32>
    %246 = vector.extract_strided_slice %235 {offsets = [16, 0], sizes = [64, 256], strides = [1, 1]} : vector<80x256xf32> to vector<64x256xf32>
    %247 = vector.shape_cast %246 : vector<64x256xf32> to vector<2x32x256xf32>
    %248 = vector.extract_strided_slice %237 {offsets = [0, 0, 0], sizes = [2, 8, 128], strides = [1, 1, 1]} : vector<2x8x256xf32> to vector<2x8x128xf32>
    %249 = arith.truncf %248 : vector<2x8x128xf32> to vector<2x8x128xbf16>
    %250 = vector.extract_strided_slice %243 {offsets = [0, 0, 0], sizes = [2, 32, 128], strides = [1, 1, 1]} : vector<2x32x256xf32> to vector<2x32x128xf32>
    %251 = arith.truncf %250 : vector<2x32x128xf32> to vector<2x32x128xbf16>
    %252 = vector.extract_strided_slice %247 {offsets = [0, 0, 0], sizes = [2, 32, 128], strides = [1, 1, 1]} : vector<2x32x256xf32> to vector<2x32x128xf32>
    %253 = arith.truncf %252 : vector<2x32x128xf32> to vector<2x32x128xbf16>
    "tpu.trace_start"() <{level = 10 : i32, message = "bqd,bkd->bqk"}> : () -> ()
    %cst_125 = arith.constant dense<0.000000e+00> : vector<2x8x32xf32>
    %254 = tpu.matmul %249, %251, %cst_125 {dimension_numbers = #tpu.dot_dimension_numbers<[2], [2], [1], [1], [0, 0, 0, 1, 1, 1], [0], [0]>} : vector<2x8x128xbf16>, vector<2x32x128xbf16>, vector<2x8x32xf32> -> vector<2x8x32xf32>
    "tpu.trace_stop"() : () -> ()
    %cst_126 = arith.constant dense<0xFF800000> : vector<2x8xf32>
    %255 = vector.multi_reduction <maximumf>, %254, %cst_126 [2] : vector<2x8x32xf32> to vector<2x8xf32>
    %256 = vector.shape_cast %255 : vector<2x8xf32> to vector<2x8x1xf32>
    %257 = vector.broadcast %256 : vector<2x8x1xf32> to vector<2x8x32xf32>
    %258 = arith.subf %254, %257 : vector<2x8x32xf32>
    %259 = math.exp %258 : vector<2x8x32xf32>
    %cst_127 = arith.constant dense<0.000000e+00> : vector<2x8xf32>
    %260 = vector.multi_reduction <add>, %259, %cst_127 [2] : vector<2x8x32xf32> to vector<2x8xf32>
    %261 = vector.shape_cast %260 : vector<2x8xf32> to vector<2x8x1xf32>
    %262 = tpu.reciprocal %261 {approx = true} : vector<2x8x1xf32> -> vector<2x8x1xf32>
    %263 = vector.broadcast %262 : vector<2x8x1xf32> to vector<2x8x32xf32>
    %264 = arith.mulf %259, %263 : vector<2x8x32xf32>
    %265 = arith.truncf %264 : vector<2x8x32xf32> to vector<2x8x32xbf16>
    "tpu.trace_start"() <{level = 10 : i32, message = "bqk,bkd->bqd"}> : () -> ()
    %cst_128 = arith.constant dense<0.000000e+00> : vector<2x8x128xf32>
    %266 = tpu.matmul %265, %253, %cst_128 {dimension_numbers = #tpu.dot_dimension_numbers<[2], [1], [1], [2], [0, 0, 0, 1, 1, 2], [0], [0]>} : vector<2x8x32xbf16>, vector<2x32x128xbf16>, vector<2x8x128xf32> -> vector<2x8x128xf32>
    "tpu.trace_stop"() : () -> ()
    %267 = vector.extract_strided_slice %237 {offsets = [0, 0, 128], sizes = [2, 8, 128], strides = [1, 1, 1]} : vector<2x8x256xf32> to vector<2x8x128xf32>
    %268 = arith.truncf %267 : vector<2x8x128xf32> to vector<2x8x128xbf16>
    %269 = vector.extract_strided_slice %243 {offsets = [0, 0, 128], sizes = [2, 32, 128], strides = [1, 1, 1]} : vector<2x32x256xf32> to vector<2x32x128xf32>
    %270 = arith.truncf %269 : vector<2x32x128xf32> to vector<2x32x128xbf16>
    %271 = vector.extract_strided_slice %247 {offsets = [0, 0, 128], sizes = [2, 32, 128], strides = [1, 1, 1]} : vector<2x32x256xf32> to vector<2x32x128xf32>
    %272 = arith.truncf %271 : vector<2x32x128xf32> to vector<2x32x128xbf16>
    "tpu.trace_start"() <{level = 10 : i32, message = "bqd,bkd->bqk"}> : () -> ()
    %cst_129 = arith.constant dense<0.000000e+00> : vector<2x8x32xf32>
    %273 = tpu.matmul %268, %270, %cst_129 {dimension_numbers = #tpu.dot_dimension_numbers<[2], [2], [1], [1], [0, 0, 0, 1, 1, 1], [0], [0]>} : vector<2x8x128xbf16>, vector<2x32x128xbf16>, vector<2x8x32xf32> -> vector<2x8x32xf32>
    "tpu.trace_stop"() : () -> ()
    %cst_130 = arith.constant dense<0xFF800000> : vector<2x8xf32>
    %274 = vector.multi_reduction <maximumf>, %273, %cst_130 [2] : vector<2x8x32xf32> to vector<2x8xf32>
    %275 = vector.shape_cast %274 : vector<2x8xf32> to vector<2x8x1xf32>
    %276 = vector.broadcast %275 : vector<2x8x1xf32> to vector<2x8x32xf32>
    %277 = arith.subf %273, %276 : vector<2x8x32xf32>
    %278 = math.exp %277 : vector<2x8x32xf32>
    %cst_131 = arith.constant dense<0.000000e+00> : vector<2x8xf32>
    %279 = vector.multi_reduction <add>, %278, %cst_131 [2] : vector<2x8x32xf32> to vector<2x8xf32>
    %280 = vector.shape_cast %279 : vector<2x8xf32> to vector<2x8x1xf32>
    %281 = tpu.reciprocal %280 {approx = true} : vector<2x8x1xf32> -> vector<2x8x1xf32>
    %282 = vector.broadcast %281 : vector<2x8x1xf32> to vector<2x8x32xf32>
    %283 = arith.mulf %278, %282 : vector<2x8x32xf32>
    %284 = arith.truncf %283 : vector<2x8x32xf32> to vector<2x8x32xbf16>
    "tpu.trace_start"() <{level = 10 : i32, message = "bqk,bkd->bqd"}> : () -> ()
    %cst_132 = arith.constant dense<0.000000e+00> : vector<2x8x128xf32>
    %285 = tpu.matmul %284, %272, %cst_132 {dimension_numbers = #tpu.dot_dimension_numbers<[2], [1], [1], [2], [0, 0, 0, 1, 1, 2], [0], [0]>} : vector<2x8x32xbf16>, vector<2x32x128xbf16>, vector<2x8x128xf32> -> vector<2x8x128xf32>
    "tpu.trace_stop"() : () -> ()
    %286 = tpu.concatenate %266, %285 in 2 : vector<2x8x128xf32>, vector<2x8x128xf32> -> vector<2x8x256xf32>
    %287 = vector.extract_strided_slice %239 {offsets = [0, 0, 0], sizes = [2, 32, 128], strides = [1, 1, 1]} : vector<2x32x256xf32> to vector<2x32x128xf32>
    %288 = arith.truncf %287 : vector<2x32x128xf32> to vector<2x32x128xbf16>
    %289 = vector.extract_strided_slice %241 {offsets = [0, 0, 0], sizes = [2, 8, 128], strides = [1, 1, 1]} : vector<2x8x256xf32> to vector<2x8x128xf32>
    %290 = arith.truncf %289 : vector<2x8x128xf32> to vector<2x8x128xbf16>
    %291 = vector.extract_strided_slice %245 {offsets = [0, 0, 0], sizes = [2, 8, 128], strides = [1, 1, 1]} : vector<2x8x256xf32> to vector<2x8x128xf32>
    %292 = arith.truncf %291 : vector<2x8x128xf32> to vector<2x8x128xbf16>
    "tpu.trace_start"() <{level = 10 : i32, message = "bqd,bkd->bqk"}> : () -> ()
    %cst_133 = arith.constant dense<0.000000e+00> : vector<2x32x8xf32>
    %293 = tpu.matmul %288, %290, %cst_133 {dimension_numbers = #tpu.dot_dimension_numbers<[2], [2], [1], [1], [0, 0, 0, 1, 1, 1], [0], [0]>} : vector<2x32x128xbf16>, vector<2x8x128xbf16>, vector<2x32x8xf32> -> vector<2x32x8xf32>
    "tpu.trace_stop"() : () -> ()
    %cst_134 = arith.constant dense<0xFF800000> : vector<2x32xf32>
    %294 = vector.multi_reduction <maximumf>, %293, %cst_134 [2] : vector<2x32x8xf32> to vector<2x32xf32>
    %295 = vector.shape_cast %294 : vector<2x32xf32> to vector<2x32x1xf32>
    %296 = vector.broadcast %295 : vector<2x32x1xf32> to vector<2x32x8xf32>
    %297 = arith.subf %293, %296 : vector<2x32x8xf32>
    %298 = math.exp %297 : vector<2x32x8xf32>
    %cst_135 = arith.constant dense<0.000000e+00> : vector<2x32xf32>
    %299 = vector.multi_reduction <add>, %298, %cst_135 [2] : vector<2x32x8xf32> to vector<2x32xf32>
    %300 = vector.shape_cast %299 : vector<2x32xf32> to vector<2x32x1xf32>
    %301 = tpu.reciprocal %300 {approx = true} : vector<2x32x1xf32> -> vector<2x32x1xf32>
    %302 = vector.broadcast %301 : vector<2x32x1xf32> to vector<2x32x8xf32>
    %303 = arith.mulf %298, %302 : vector<2x32x8xf32>
    %304 = arith.truncf %303 : vector<2x32x8xf32> to vector<2x32x8xbf16>
    "tpu.trace_start"() <{level = 10 : i32, message = "bqk,bkd->bqd"}> : () -> ()
    %cst_136 = arith.constant dense<0.000000e+00> : vector<2x32x128xf32>
    %305 = tpu.matmul %304, %292, %cst_136 {dimension_numbers = #tpu.dot_dimension_numbers<[2], [1], [1], [2], [0, 0, 0, 1, 1, 2], [0], [0]>} : vector<2x32x8xbf16>, vector<2x8x128xbf16>, vector<2x32x128xf32> -> vector<2x32x128xf32>
    "tpu.trace_stop"() : () -> ()
    %306 = vector.extract_strided_slice %239 {offsets = [0, 0, 128], sizes = [2, 32, 128], strides = [1, 1, 1]} : vector<2x32x256xf32> to vector<2x32x128xf32>
    %307 = arith.truncf %306 : vector<2x32x128xf32> to vector<2x32x128xbf16>
    %308 = vector.extract_strided_slice %241 {offsets = [0, 0, 128], sizes = [2, 8, 128], strides = [1, 1, 1]} : vector<2x8x256xf32> to vector<2x8x128xf32>
    %309 = arith.truncf %308 : vector<2x8x128xf32> to vector<2x8x128xbf16>
    %310 = vector.extract_strided_slice %245 {offsets = [0, 0, 128], sizes = [2, 8, 128], strides = [1, 1, 1]} : vector<2x8x256xf32> to vector<2x8x128xf32>
    %311 = arith.truncf %310 : vector<2x8x128xf32> to vector<2x8x128xbf16>
    "tpu.trace_start"() <{level = 10 : i32, message = "bqd,bkd->bqk"}> : () -> ()
    %cst_137 = arith.constant dense<0.000000e+00> : vector<2x32x8xf32>
    %312 = tpu.matmul %307, %309, %cst_137 {dimension_numbers = #tpu.dot_dimension_numbers<[2], [2], [1], [1], [0, 0, 0, 1, 1, 1], [0], [0]>} : vector<2x32x128xbf16>, vector<2x8x128xbf16>, vector<2x32x8xf32> -> vector<2x32x8xf32>
    "tpu.trace_stop"() : () -> ()
    %cst_138 = arith.constant dense<0xFF800000> : vector<2x32xf32>
    %313 = vector.multi_reduction <maximumf>, %312, %cst_138 [2] : vector<2x32x8xf32> to vector<2x32xf32>
    %314 = vector.shape_cast %313 : vector<2x32xf32> to vector<2x32x1xf32>
    %315 = vector.broadcast %314 : vector<2x32x1xf32> to vector<2x32x8xf32>
    %316 = arith.subf %312, %315 : vector<2x32x8xf32>
    %317 = math.exp %316 : vector<2x32x8xf32>
    %cst_139 = arith.constant dense<0.000000e+00> : vector<2x32xf32>
    %318 = vector.multi_reduction <add>, %317, %cst_139 [2] : vector<2x32x8xf32> to vector<2x32xf32>
    %319 = vector.shape_cast %318 : vector<2x32xf32> to vector<2x32x1xf32>
    %320 = tpu.reciprocal %319 {approx = true} : vector<2x32x1xf32> -> vector<2x32x1xf32>
    %321 = vector.broadcast %320 : vector<2x32x1xf32> to vector<2x32x8xf32>
    %322 = arith.mulf %317, %321 : vector<2x32x8xf32>
    %323 = arith.truncf %322 : vector<2x32x8xf32> to vector<2x32x8xbf16>
    "tpu.trace_start"() <{level = 10 : i32, message = "bqk,bkd->bqd"}> : () -> ()
    %cst_140 = arith.constant dense<0.000000e+00> : vector<2x32x128xf32>
    %324 = tpu.matmul %323, %311, %cst_140 {dimension_numbers = #tpu.dot_dimension_numbers<[2], [1], [1], [2], [0, 0, 0, 1, 1, 2], [0], [0]>} : vector<2x32x8xbf16>, vector<2x8x128xbf16>, vector<2x32x128xf32> -> vector<2x32x128xf32>
    "tpu.trace_stop"() : () -> ()
    %325 = tpu.concatenate %305, %324 in 2 : vector<2x32x128xf32>, vector<2x32x128xf32> -> vector<2x32x256xf32>
    %326 = vector.shape_cast %286 : vector<2x8x256xf32> to vector<16x256xf32>
    %327 = vector.shape_cast %325 : vector<2x32x256xf32> to vector<64x256xf32>
    %328 = tpu.concatenate %326, %327 in 0 : vector<16x256xf32>, vector<64x256xf32> -> vector<80x256xf32>
    %329 = arith.truncf %328 : vector<80x256xf32> to vector<80x256xbf16>
    %cst_141 = arith.constant dense<0.000000e+00> : vector<80x256xf32>
    %330 = tpu.matmul %329, %207, %cst_141 {dimension_numbers = #tpu.dot_dimension_numbers<[1], [0], [0], [1], [0, 0, 1, 1], [], []>} : vector<80x256xbf16>, vector<256x256xbf16>, vector<80x256xf32> -> vector<80x256xf32>
    %331 = vector.broadcast %209 : vector<1x256xf32> to vector<80x256xf32>
    %332 = arith.addf %330, %331 : vector<80x256xf32>
    %333 = arith.addf %226, %332 : vector<80x256xf32>
    %cst_142 = arith.constant dense<0.000000e+00> : vector<80xf32>
    %334 = vector.multi_reduction <add>, %333, %cst_142 [1] : vector<80x256xf32> to vector<80xf32>
    %335 = vector.shape_cast %334 : vector<80xf32> to vector<80x1xf32>
    %cst_143 = arith.constant 2.560000e+02 : f32
    %336 = vector.broadcast %cst_143 : f32 to vector<80x1xf32>
    %337 = arith.divf %335, %336 : vector<80x1xf32>
    %338 = vector.broadcast %337 : vector<80x1xf32> to vector<80x256xf32>
    %339 = arith.subf %333, %338 : vector<80x256xf32>
    %340 = arith.mulf %339, %339 : vector<80x256xf32>
    %cst_144 = arith.constant dense<0.000000e+00> : vector<80xf32>
    %341 = vector.multi_reduction <add>, %340, %cst_144 [1] : vector<80x256xf32> to vector<80xf32>
    %342 = vector.shape_cast %341 : vector<80xf32> to vector<80x1xf32>
    %cst_145 = arith.constant 2.560000e+02 : f32
    %343 = vector.broadcast %cst_145 : f32 to vector<80x1xf32>
    %344 = arith.divf %342, %343 : vector<80x1xf32>
    %cst_146 = arith.constant 9.99999974E-6 : f32
    %345 = vector.broadcast %cst_146 : f32 to vector<80x1xf32>
    %346 = arith.addf %344, %345 : vector<80x1xf32>
    %347 = math.rsqrt %346 : vector<80x1xf32>
    %348 = vector.broadcast %347 : vector<80x1xf32> to vector<80x256xf32>
    %349 = arith.mulf %339, %348 : vector<80x256xf32>
    %350 = vector.broadcast %211 : vector<1x256xf32> to vector<80x256xf32>
    %351 = arith.mulf %349, %350 : vector<80x256xf32>
    %352 = vector.broadcast %213 : vector<1x256xf32> to vector<80x256xf32>
    %353 = arith.addf %351, %352 : vector<80x256xf32>
    %354 = arith.truncf %353 : vector<80x256xf32> to vector<80x256xbf16>
    %cst_147 = arith.constant dense<0.000000e+00> : vector<80x1024xf32>
    %355 = tpu.matmul %354, %215, %cst_147 {dimension_numbers = #tpu.dot_dimension_numbers<[1], [0], [0], [1], [0, 0, 1, 1], [], []>} : vector<80x256xbf16>, vector<256x1024xbf16>, vector<80x1024xf32> -> vector<80x1024xf32>
    %356 = vector.broadcast %217 : vector<1x1024xf32> to vector<80x1024xf32>
    %357 = arith.addf %355, %356 : vector<80x1024xf32>
    %cst_148 = arith.constant 0.000000e+00 : f32
    %358 = vector.broadcast %cst_148 : f32 to vector<80x1024xf32>
    %359 = arith.maximumf %357, %358 : vector<80x1024xf32>
    %360 = arith.truncf %359 : vector<80x1024xf32> to vector<80x1024xbf16>
    %cst_149 = arith.constant dense<0.000000e+00> : vector<80x256xf32>
    %361 = tpu.matmul %360, %219, %cst_149 {dimension_numbers = #tpu.dot_dimension_numbers<[1], [0], [0], [1], [0, 0, 1, 1], [], []>} : vector<80x1024xbf16>, vector<1024x256xbf16>, vector<80x256xf32> -> vector<80x256xf32>
    %362 = vector.broadcast %221 : vector<1x256xf32> to vector<80x256xf32>
    %363 = arith.addf %361, %362 : vector<80x256xf32>
    %364 = arith.addf %353, %363 : vector<80x256xf32>
    %cst_150 = arith.constant dense<0.000000e+00> : vector<80xf32>
    %365 = vector.multi_reduction <add>, %364, %cst_150 [1] : vector<80x256xf32> to vector<80xf32>
    %366 = vector.shape_cast %365 : vector<80xf32> to vector<80x1xf32>
    %cst_151 = arith.constant 2.560000e+02 : f32
    %367 = vector.broadcast %cst_151 : f32 to vector<80x1xf32>
    %368 = arith.divf %366, %367 : vector<80x1xf32>
    %369 = vector.broadcast %368 : vector<80x1xf32> to vector<80x256xf32>
    %370 = arith.subf %364, %369 : vector<80x256xf32>
    %371 = arith.mulf %370, %370 : vector<80x256xf32>
    %cst_152 = arith.constant dense<0.000000e+00> : vector<80xf32>
    %372 = vector.multi_reduction <add>, %371, %cst_152 [1] : vector<80x256xf32> to vector<80xf32>
    %373 = vector.shape_cast %372 : vector<80xf32> to vector<80x1xf32>
    %cst_153 = arith.constant 2.560000e+02 : f32
    %374 = vector.broadcast %cst_153 : f32 to vector<80x1xf32>
    %375 = arith.divf %373, %374 : vector<80x1xf32>
    %cst_154 = arith.constant 9.99999974E-6 : f32
    %376 = vector.broadcast %cst_154 : f32 to vector<80x1xf32>
    %377 = arith.addf %375, %376 : vector<80x1xf32>
    %378 = math.rsqrt %377 : vector<80x1xf32>
    %379 = vector.broadcast %378 : vector<80x1xf32> to vector<80x256xf32>
    %380 = arith.mulf %370, %379 : vector<80x256xf32>
    %381 = vector.broadcast %223 : vector<1x256xf32> to vector<80x256xf32>
    %382 = arith.mulf %380, %381 : vector<80x256xf32>
    %383 = vector.broadcast %225 : vector<1x256xf32> to vector<80x256xf32>
    %384 = arith.addf %382, %383 : vector<80x256xf32>
    %385 = vector.extract_strided_slice %384 {offsets = [16, 0], sizes = [64, 256], strides = [1, 1]} : vector<80x256xf32> to vector<64x256xf32>
    %386 = vector.shape_cast %385 : vector<64x256xf32> to vector<2x32x256xf32>
    %387 = arith.addf %386, %7 : vector<2x32x256xf32>
    %c0_155 = arith.constant 0 : index
    %c0_156 = arith.constant 0 : index
    %c0_157 = arith.constant 0 : index
    %388 = vector.load %arg19[%c0_155, %c0_156, %c0_157] : memref<2x32x256xf32, #tpu.memory_space<vmem>>, vector<2x32x256xf32>
    tpu.vector_store %arg19[%c0_155, %c0_156, %c0_157], %387 {strides = array<i32>} : memref<2x32x256xf32, #tpu.memory_space<vmem>>, vector<2x32x256xf32>,
    return
  }
  func.func @transform_0(%arg0: i32) -> (i32, i32) {
    %c0_i32 = arith.constant 0 : i32
    %c0_i32_0 = arith.constant 0 : i32
    %c0_i32_1 = arith.constant 0 : i32
    return %c0_i32, %c0_i32_0 : i32, i32
  }
  func.func @transform_1(%arg0: i32) -> (i32, i32, i32) {
    %c0_i32 = arith.constant 0 : i32
    %c0_i32_0 = arith.constant 0 : i32
    %c0_i32_1 = arith.constant 0 : i32
    %c0_i32_2 = arith.constant 0 : i32
    return %c0_i32, %c0_i32_0, %c0_i32_1 : i32, i32, i32
  }
  func.func @transform_2(%arg0: i32) -> (i32, i32) {
    %c0_i32 = arith.constant 0 : i32
    %c0_i32_0 = arith.constant 0 : i32
    %c0_i32_1 = arith.constant 0 : i32
    return %c0_i32, %c0_i32_0 : i32, i32
  }
  func.func @transform_3(%arg0: i32) -> (i32, i32) {
    %c0_i32 = arith.constant 0 : i32
    %c0_i32_0 = arith.constant 0 : i32
    %c0_i32_1 = arith.constant 0 : i32
    return %c0_i32, %c0_i32_0 : i32, i32
  }
  func.func @transform_4(%arg0: i32) -> (i32, i32, i32) {
    %c0_i32 = arith.constant 0 : i32
    %c0_i32_0 = arith.constant 0 : i32
    %c0_i32_1 = arith.constant 0 : i32
    %c0_i32_2 = arith.constant 0 : i32
    return %c0_i32, %c0_i32_0, %c0_i32_1 : i32, i32, i32
  }
  func.func @transform_5(%arg0: i32) -> (i32, i32, i32) {
    %c0_i32 = arith.constant 0 : i32
    %c0_i32_0 = arith.constant 0 : i32
    %c0_i32_1 = arith.constant 0 : i32
    %c0_i32_2 = arith.constant 0 : i32
    return %c0_i32, %c0_i32_0, %c0_i32_1 : i32, i32, i32
  }
  func.func @transform_6(%arg0: i32) -> (i32, i32, i32) {
    %c0_i32 = arith.constant 0 : i32
    %c0_i32_0 = arith.constant 0 : i32
    %c0_i32_1 = arith.constant 0 : i32
    %c0_i32_2 = arith.constant 0 : i32
    return %c0_i32, %c0_i32_0, %c0_i32_1 : i32, i32, i32
  }
  func.func @transform_7(%arg0: i32) -> (i32, i32, i32) {
    %c0_i32 = arith.constant 0 : i32
    %c0_i32_0 = arith.constant 0 : i32
    %c0_i32_1 = arith.constant 0 : i32
    %c0_i32_2 = arith.constant 0 : i32
    return %c0_i32, %c0_i32_0, %c0_i32_1 : i32, i32, i32
  }
  func.func @transform_8(%arg0: i32) -> (i32, i32, i32) {
    %c0_i32 = arith.constant 0 : i32
    %c0_i32_0 = arith.constant 0 : i32
    %c0_i32_1 = arith.constant 0 : i32
    %c0_i32_2 = arith.constant 0 : i32
    return %c0_i32, %c0_i32_0, %c0_i32_1 : i32, i32, i32
  }
  func.func @transform_9(%arg0: i32) -> (i32, i32, i32) {
    %c0_i32 = arith.constant 0 : i32
    %c0_i32_0 = arith.constant 0 : i32
    %c0_i32_1 = arith.constant 0 : i32
    %c0_i32_2 = arith.constant 0 : i32
    return %c0_i32, %c0_i32_0, %c0_i32_1 : i32, i32, i32
  }
  func.func @transform_10(%arg0: i32) -> (i32, i32, i32) {
    %c0_i32 = arith.constant 0 : i32
    %c0_i32_0 = arith.constant 0 : i32
    %c0_i32_1 = arith.constant 0 : i32
    %c0_i32_2 = arith.constant 0 : i32
    return %c0_i32, %c0_i32_0, %c0_i32_1 : i32, i32, i32
  }
  func.func @transform_11(%arg0: i32) -> (i32, i32, i32) {
    %c0_i32 = arith.constant 0 : i32
    %c0_i32_0 = arith.constant 0 : i32
    %c0_i32_1 = arith.constant 0 : i32
    %c0_i32_2 = arith.constant 0 : i32
    return %c0_i32, %c0_i32_0, %c0_i32_1 : i32, i32, i32
  }
  func.func @transform_12(%arg0: i32) -> (i32, i32, i32) {
    %c0_i32 = arith.constant 0 : i32
    %c0_i32_0 = arith.constant 0 : i32
    %c0_i32_1 = arith.constant 0 : i32
    %c0_i32_2 = arith.constant 0 : i32
    return %c0_i32, %c0_i32_0, %c0_i32_1 : i32, i32, i32
  }
  func.func @transform_13(%arg0: i32) -> (i32, i32, i32) {
    %c0_i32 = arith.constant 0 : i32
    %c0_i32_0 = arith.constant 0 : i32
    %c0_i32_1 = arith.constant 0 : i32
    %c0_i32_2 = arith.constant 0 : i32
    return %c0_i32, %c0_i32_0, %c0_i32_1 : i32, i32, i32
  }
  func.func @transform_14(%arg0: i32) -> (i32, i32, i32) {
    %c0_i32 = arith.constant 0 : i32
    %c0_i32_0 = arith.constant 0 : i32
    %c0_i32_1 = arith.constant 0 : i32
    %c0_i32_2 = arith.constant 0 : i32
    return %c0_i32, %c0_i32_0, %c0_i32_1 : i32, i32, i32
  }
  func.func @transform_15(%arg0: i32) -> (i32, i32, i32) {
    %c0_i32 = arith.constant 0 : i32
    %c0_i32_0 = arith.constant 0 : i32
    %c0_i32_1 = arith.constant 0 : i32
    %c0_i32_2 = arith.constant 0 : i32
    return %c0_i32, %c0_i32_0, %c0_i32_1 : i32, i32, i32
  }
  func.func @transform_16(%arg0: i32) -> (i32, i32, i32) {
    %c0_i32 = arith.constant 0 : i32
    %c0_i32_0 = arith.constant 0 : i32
    %c0_i32_1 = arith.constant 0 : i32
    %c0_i32_2 = arith.constant 0 : i32
    return %c0_i32, %c0_i32_0, %c0_i32_1 : i32, i32, i32
  }
  func.func @transform_17(%arg0: i32) -> (i32, i32, i32) {
    %c0_i32 = arith.constant 0 : i32
    %c0_i32_0 = arith.constant 0 : i32
    %c0_i32_1 = arith.constant 0 : i32
    %c0_i32_2 = arith.constant 0 : i32
    return %c0_i32, %c0_i32_0, %c0_i32_1 : i32, i32, i32
  }
  func.func @transform_18(%arg0: i32) -> (i32, i32, i32) {
    %c0_i32 = arith.constant 0 : i32
    %c0_i32_0 = arith.constant 0 : i32
    %c0_i32_1 = arith.constant 0 : i32
    %c0_i32_2 = arith.constant 0 : i32
    return %c0_i32, %c0_i32_0, %c0_i32_1 : i32, i32, i32
  }
}

</mosaic_0001>

<llo_original>
// kernel: pcdre_forward.1
$region0: #{pcdre_forward.1}
  #allocation0 [shape = 'u32[]', space=smem, size = 0x4, offset = 0x4, fixed_abs, tag = 'smem constant byte address 0x4 - core index']
  #allocation1 [shape = 'u32[144,128]{1,0:T(1,128)}', space=vmem, size = 0x12000, scoped, tag = 'internal scratch']
  %s0 = inlined_call_operand.vmem [shape: f32[16,256], index: 0, kind: input, shape index: {}]
  %s1 = inlined_call_operand.vmem [shape: f32[2,32,256], index: 1, kind: input, shape index: {}]
  %s2 = inlined_call_operand.hbm [shape: bf16[256,256], index: 2, kind: input, shape index: {}]
  %s3 = inlined_call_operand.hbm [shape: f32[1,256], index: 3, kind: input, shape index: {}]
  %s4 = inlined_call_operand.vmem [shape: bf16[2,256,256], index: 4, kind: input, shape index: {}]
  %s5 = inlined_call_operand.vmem [shape: f32[2,1,256], index: 5, kind: input, shape index: {}]
  %s6 = inlined_call_operand.hbm [shape: bf16[2,256,512], index: 6, kind: input, shape index: {}]
  %s7 = inlined_call_operand.vmem [shape: f32[2,1,512], index: 7, kind: input, shape index: {}]
  %s8 = inlined_call_operand.hbm [shape: bf16[2,256,256], index: 8, kind: input, shape index: {}]
  %s9 = inlined_call_operand.vmem [shape: f32[2,1,256], index: 9, kind: input, shape index: {}]
  %s10 = inlined_call_operand.vmem [shape: f32[2,1,256], index: 10, kind: input, shape index: {}]
  %s11 = inlined_call_operand.vmem [shape: f32[2,1,256], index: 11, kind: input, shape index: {}]
  %s12 = inlined_call_operand.hbm [shape: bf16[2,256,1024], index: 12, kind: input, shape index: {}]
  %s13 = inlined_call_operand.vmem [shape: f32[2,1,1024], index: 13, kind: input, shape index: {}]
  %s14 = inlined_call_operand.hbm [shape: bf16[2,1024,256], index: 14, kind: input, shape index: {}]
  %s15 = inlined_call_operand.vmem [shape: f32[2,1,256], index: 15, kind: input, shape index: {}]
  %s16 = inlined_call_operand.vmem [shape: f32[2,1,256], index: 16, kind: input, shape index: {}]
  %s17 = inlined_call_operand.hbm [shape: f32[2,1,256], index: 17, kind: input, shape index: {}]
  %s18 = inlined_call_operand.vmem [shape: f32[2,32,256], index: 18, kind: output, shape index: {}]
  %s19 = sld [smem:[#allocation0]]
  $region110: #{pcdre_forward.1} parent=0
    _
  %s21 = ssub.s32 1, %s19
  %s22 = scalar_select 0, %s21, %s19
  $region1: #{pcdre_forward.1} parent=0
    #allocation2 [shape = 'u8[131072]{0}', space=vmem, size = 0x20000, scoped, tag = 'input window, operand 2, single buffered']
    #allocation3 [shape = 's32[1]{0}', space=sflag, size = 0x4, scoped, tag = 'scoped memory for pcdre_forward.1']
    #allocation4 [shape = 'u8[1024]{0}', space=vmem, size = 0x400, scoped, tag = 'input window, operand 3, single buffered']
    #allocation5 [shape = 's32[1]{0}', space=sflag, size = 0x4, scoped, tag = 'scoped memory for pcdre_forward.1']
    #allocation6 [shape = 'u8[524288]{0}', space=vmem, size = 0x80000, scoped, tag = 'input window, operand 6, single buffered']
    #allocation7 [shape = 'u8[262144]{0}', space=vmem, size = 0x40000, scoped, tag = 'input window, operand 8, single buffered']
    #allocation8 [shape = 's32[1]{0}', space=sflag, size = 0x4, scoped, tag = 'scoped memory for pcdre_forward.1']
    #allocation9 [shape = 'u8[1048576]{0}', space=vmem, size = 0x100000, scoped, tag = 'input window, operand 12, single buffered']
    #allocation10 [shape = 'u8[1048576]{0}', space=vmem, size = 0x100000, scoped, tag = 'input window, operand 14, single buffered']
    #allocation11 [shape = 's32[1]{0}', space=sflag, size = 0x4, scoped, tag = 'scoped memory for pcdre_forward.1']
    #allocation12 [shape = 'u8[2048]{0}', space=vmem, size = 0x800, scoped, tag = 'input window, operand 17, single buffered']
    %23 = vsyncpa [#allocation3], 0
    %24 = vsyncpa [#allocation5], 0
    %25 = vsyncpa [#allocation8], 0
    %26 = vsyncpa [#allocation11], 0
    // Predicated region
    $region2: #{pcdre_forward.1} parent=1 // pred_check
      _
    $region3: #{pcdre_forward.1} parent=1 // pred_check_branch
      %28 = sbr.rel (0) target = $region5
    $region4: #{pcdre_forward.1} parent=1 // pred_region
      _
    $region5: #{pcdre_forward.1} parent=1 // pred_fallthru
      _
    // Predicated region
    $region6: #{pcdre_forward.1} parent=1 // pred_check
      _
    $region7: #{pcdre_forward.1} parent=1 // pred_check_branch
      %30 = sbr.rel (0) target = $region9
    $region8: #{pcdre_forward.1} parent=1 // pred_region
      _
    $region9: #{pcdre_forward.1} parent=1 // pred_fallthru
      _
    // Predicated region
    $region10: #{pcdre_forward.1} parent=1 // pred_check
      _
    $region11: #{pcdre_forward.1} parent=1 // pred_check_branch
      %32 = sbr.rel (0) target = $region13
    $region12: #{pcdre_forward.1} parent=1 // pred_region
      %s34 = ssub.s32 4096, 4096
      %35 = vsyncadd [#allocation3], %s34
      %s36 = sshll.u32 [#allocation2], 4
      %s37 = int_to_ptr.vmem [resolvable:$true] %s36
      %42 = dma.hbm_to_vmem [thread:$0]  %s2, 4096, %s37, [#allocation3], 128, 128, 8
    $region13: #{pcdre_forward.1} parent=1 // pred_fallthru
      _
    // Predicated region
    $region14: #{pcdre_forward.1} parent=1 // pred_check
      _
    $region15: #{pcdre_forward.1} parent=1 // pred_check_branch
      %44 = sbr.rel (0) target = $region17
    $region16: #{pcdre_forward.1} parent=1 // pred_region
      %s46 = ssub.s32 32, 32
      %47 = vsyncadd [#allocation5], %s46
      %s49 = sshll.u32 [#allocation4], 4
      %s50 = int_to_ptr.vmem [resolvable:$true] %s49
      %52 = dma.hbm_to_vmem [thread:$0]  %s3, 32, %s50, [#allocation5]
    $region17: #{pcdre_forward.1} parent=1 // pred_fallthru
      _
    // Predicated region
    $region18: #{pcdre_forward.1} parent=1 // pred_check
      _
    $region19: #{pcdre_forward.1} parent=1 // pred_check_branch
      %54 = sbr.rel (0) target = $region21
    $region20: #{pcdre_forward.1} parent=1 // pred_region
      _
    $region21: #{pcdre_forward.1} parent=1 // pred_fallthru
      _
    // Predicated region
    $region22: #{pcdre_forward.1} parent=1 // pred_check
      _
    $region23: #{pcdre_forward.1} parent=1 // pred_check_branch
      %56 = sbr.rel (0) target = $region25
    $region24: #{pcdre_forward.1} parent=1 // pred_region
      _
    $region25: #{pcdre_forward.1} parent=1 // pred_fallthru
      _
    // Predicated region
    $region26: #{pcdre_forward.1} parent=1 // pred_check
      _
    $region27: #{pcdre_forward.1} parent=1 // pred_check_branch
      %58 = sbr.rel (0) target = $region29
    $region28: #{pcdre_forward.1} parent=1 // pred_region
      %s60 = ssub.s32 16384, 16384
      %61 = vsyncadd [#allocation5], %s60
      %s62 = sshll.u32 [#allocation6], 4
      %s63 = int_to_ptr.vmem [resolvable:$true] %s62
      %68 = dma.hbm_to_vmem [thread:$0]  %s6, 16384, %s63, [#allocation5], 256, 256, 16
    $region29: #{pcdre_forward.1} parent=1 // pred_fallthru
      _
    // Predicated region
    $region30: #{pcdre_forward.1} parent=1 // pred_check
      _
    $region31: #{pcdre_forward.1} parent=1 // pred_check_branch
      %70 = sbr.rel (0) target = $region33
    $region32: #{pcdre_forward.1} parent=1 // pred_region
      _
    $region33: #{pcdre_forward.1} parent=1 // pred_fallthru
      _
    // Predicated region
    $region34: #{pcdre_forward.1} parent=1 // pred_check
      _
    $region35: #{pcdre_forward.1} parent=1 // pred_check_branch
      %72 = sbr.rel (0) target = $region37
    $region36: #{pcdre_forward.1} parent=1 // pred_region
      %s74 = ssub.s32 8192, 8192
      %75 = vsyncadd [#allocation8], %s74
      %s76 = sshll.u32 [#allocation7], 4
      %s77 = int_to_ptr.vmem [resolvable:$true] %s76
      %82 = dma.hbm_to_vmem [thread:$0]  %s8, 8192, %s77, [#allocation8], 128, 128, 8
    $region37: #{pcdre_forward.1} parent=1 // pred_fallthru
      _
    // Predicated region
    $region38: #{pcdre_forward.1} parent=1 // pred_check
      _
    $region39: #{pcdre_forward.1} parent=1 // pred_check_branch
      %84 = sbr.rel (0) target = $region41
    $region40: #{pcdre_forward.1} parent=1 // pred_region
      _
    $region41: #{pcdre_forward.1} parent=1 // pred_fallthru
      _
    // Predicated region
    $region42: #{pcdre_forward.1} parent=1 // pred_check
      _
    $region43: #{pcdre_forward.1} parent=1 // pred_check_branch
      %86 = sbr.rel (0) target = $region45
    $region44: #{pcdre_forward.1} parent=1 // pred_region
      _
    $region45: #{pcdre_forward.1} parent=1 // pred_fallthru
      _
    // Predicated region
    $region46: #{pcdre_forward.1} parent=1 // pred_check
      _
    $region47: #{pcdre_forward.1} parent=1 // pred_check_branch
      %88 = sbr.rel (0) target = $region49
    $region48: #{pcdre_forward.1} parent=1 // pred_region
      _
    $region49: #{pcdre_forward.1} parent=1 // pred_fallthru
      _
    // Predicated region
    $region50: #{pcdre_forward.1} parent=1 // pred_check
      _
    $region51: #{pcdre_forward.1} parent=1 // pred_check_branch
      %90 = sbr.rel (0) target = $region53
    $region52: #{pcdre_forward.1} parent=1 // pred_region
      %s92 = ssub.s32 32768, 32768
      %93 = vsyncadd [#allocation8], %s92
      %s94 = sshll.u32 [#allocation9], 4
      %s95 = int_to_ptr.vmem [resolvable:$true] %s94
      %100 = dma.hbm_to_vmem [thread:$0]  %s12, 32768, %s95, [#allocation8], 512, 512, 32
    $region53: #{pcdre_forward.1} parent=1 // pred_fallthru
      _
    // Predicated region
    $region54: #{pcdre_forward.1} parent=1 // pred_check
      _
    $region55: #{pcdre_forward.1} parent=1 // pred_check_branch
      %102 = sbr.rel (0) target = $region57
    $region56: #{pcdre_forward.1} parent=1 // pred_region
      _
    $region57: #{pcdre_forward.1} parent=1 // pred_fallthru
      _
    // Predicated region
    $region58: #{pcdre_forward.1} parent=1 // pred_check
      _
    $region59: #{pcdre_forward.1} parent=1 // pred_check_branch
      %104 = sbr.rel (0) target = $region61
    $region60: #{pcdre_forward.1} parent=1 // pred_region
      %s106 = ssub.s32 32768, 32768
      %107 = vsyncadd [#allocation11], %s106
      %s108 = sshll.u32 [#allocation10], 4
      %s109 = int_to_ptr.vmem [resolvable:$true] %s108
      %114 = dma.hbm_to_vmem [thread:$0]  %s14, 32768, %s109, [#allocation11], 128, 128, 8
    $region61: #{pcdre_forward.1} parent=1 // pred_fallthru
      _
    // Predicated region
    $region62: #{pcdre_forward.1} parent=1 // pred_check
      _
    $region63: #{pcdre_forward.1} parent=1 // pred_check_branch
      %116 = sbr.rel (0) target = $region65
    $region64: #{pcdre_forward.1} parent=1 // pred_region
      _
    $region65: #{pcdre_forward.1} parent=1 // pred_fallthru
      _
    // Predicated region
    $region66: #{pcdre_forward.1} parent=1 // pred_check
      _
    $region67: #{pcdre_forward.1} parent=1 // pred_check_branch
      %118 = sbr.rel (0) target = $region69
    $region68: #{pcdre_forward.1} parent=1 // pred_region
      _
    $region69: #{pcdre_forward.1} parent=1 // pred_fallthru
      _
    // Predicated region
    $region70: #{pcdre_forward.1} parent=1 // pred_check
      _
    $region71: #{pcdre_forward.1} parent=1 // pred_check_branch
      %120 = sbr.rel (0) target = $region73
    $region72: #{pcdre_forward.1} parent=1 // pred_region
      %s122 = ssub.s32 64, 64
      %123 = vsyncadd [#allocation11], %s122
      %s124 = sshll.u32 [#allocation12], 4
      %s125 = int_to_ptr.vmem [resolvable:$true] %s124
      %130 = dma.hbm_to_vmem [thread:$0]  %s17, 64, %s125, [#allocation11], 32, 32, 2
    $region73: #{pcdre_forward.1} parent=1 // pred_fallthru
      _
    // Predicated region
    $region74: #{pcdre_forward.1} parent=1 // pred_check
      _
    $region75: #{pcdre_forward.1} parent=1 // pred_check_branch
      %132 = sbr.rel (0) target = $region77
    $region76: #{pcdre_forward.1} parent=1 // pred_region
      %133 = dma.done [#allocation3], 4096
    $region77: #{pcdre_forward.1} parent=1 // pred_fallthru
      _
    // Predicated region
    $region78: #{pcdre_forward.1} parent=1 // pred_check
      _
    $region79: #{pcdre_forward.1} parent=1 // pred_check_branch
      %135 = sbr.rel (0) target = $region81
    $region80: #{pcdre_forward.1} parent=1 // pred_region
      %136 = dma.done [#allocation5], 32
    $region81: #{pcdre_forward.1} parent=1 // pred_fallthru
      _
    // Predicated region
    $region82: #{pcdre_forward.1} parent=1 // pred_check
      _
    $region83: #{pcdre_forward.1} parent=1 // pred_check_branch
      %138 = sbr.rel (0) target = $region85
    $region84: #{pcdre_forward.1} parent=1 // pred_region
      %139 = dma.done [#allocation5], 16384
    $region85: #{pcdre_forward.1} parent=1 // pred_fallthru
      _
    // Predicated region
    $region86: #{pcdre_forward.1} parent=1 // pred_check
      _
    $region87: #{pcdre_forward.1} parent=1 // pred_check_branch
      %141 = sbr.rel (0) target = $region89
    $region88: #{pcdre_forward.1} parent=1 // pred_region
      %142 = dma.done [#allocation8], 8192
    $region89: #{pcdre_forward.1} parent=1 // pred_fallthru
      _
    // Predicated region
    $region90: #{pcdre_forward.1} parent=1 // pred_check
      _
    $region91: #{pcdre_forward.1} parent=1 // pred_check_branch
      %144 = sbr.rel (0) target = $region93
    $region92: #{pcdre_forward.1} parent=1 // pred_region
      %145 = dma.done [#allocation8], 32768
    $region93: #{pcdre_forward.1} parent=1 // pred_fallthru
      _
    // Predicated region
    $region94: #{pcdre_forward.1} parent=1 // pred_check
      _
    $region95: #{pcdre_forward.1} parent=1 // pred_check_branch
      %147 = sbr.rel (0) target = $region97
    $region96: #{pcdre_forward.1} parent=1 // pred_region
      %148 = dma.done [#allocation11], 32768
    $region97: #{pcdre_forward.1} parent=1 // pred_fallthru
      _
    // Predicated region
    $region98: #{pcdre_forward.1} parent=1 // pred_check
      _
    $region99: #{pcdre_forward.1} parent=1 // pred_check_branch
      %150 = sbr.rel (0) target = $region101
    $region100: #{pcdre_forward.1} parent=1 // pred_region
      %151 = dma.done [#allocation11], 64
    $region101: #{pcdre_forward.1} parent=1 // pred_fallthru
      _
    %v153 = vld [vmem:[%s0] sm:$0xff]
    %v154 = vld [vmem:[%s0 + $0x8] sm:$0xff]
    %v155 = vld [vmem:[%s0 + $0x10] sm:$0xff]
    %v156 = vld [vmem:[%s0 + $0x18] sm:$0xff]
    %v157 = vpack.c.bf16 %v155, %v153
    %v158 = vpack.c.bf16 %v156, %v154
    %v159 = vld [vmem:[#allocation2] sm:$0xff]
    %v160 = vld [vmem:[#allocation2 + $0x8] sm:$0xff]
    %v161 = vld [vmem:[#allocation2 + $0x10] sm:$0xff]
    %v162 = vld [vmem:[#allocation2 + $0x18] sm:$0xff]
    %v163 = vld [vmem:[#allocation2 + $0x20] sm:$0xff]
    %v164 = vld [vmem:[#allocation2 + $0x28] sm:$0xff]
    %v165 = vld [vmem:[#allocation2 + $0x30] sm:$0xff]
    %v166 = vld [vmem:[#allocation2 + $0x38] sm:$0xff]
    %v167 = vld [vmem:[#allocation2 + $0x40] sm:$0xff]
    %v168 = vld [vmem:[#allocation2 + $0x48] sm:$0xff]
    %v169 = vld [vmem:[#allocation2 + $0x50] sm:$0xff]
    %v170 = vld [vmem:[#allocation2 + $0x58] sm:$0xff]
    %v171 = vld [vmem:[#allocation2 + $0x60] sm:$0xff]
    %v172 = vld [vmem:[#allocation2 + $0x68] sm:$0xff]
    %v173 = vld [vmem:[#allocation2 + $0x70] sm:$0xff]
    %v174 = vld [vmem:[#allocation2 + $0x78] sm:$0xff]
    %v175 = vld [vmem:[#allocation2 + $0x80] sm:$0xff]
    %v176 = vld [vmem:[#allocation2 + $0x88] sm:$0xff]
    %v177 = vld [vmem:[#allocation2 + $0x90] sm:$0xff]
    %v178 = vld [vmem:[#allocation2 + $0x98] sm:$0xff]
    %v179 = vld [vmem:[#allocation2 + $0xa0] sm:$0xff]
    %v180 = vld [vmem:[#allocation2 + $0xa8] sm:$0xff]
    %v181 = vld [vmem:[#allocation2 + $0xb0] sm:$0xff]
    %v182 = vld [vmem:[#allocation2 + $0xb8] sm:$0xff]
    %v183 = vld [vmem:[#allocation2 + $0xc0] sm:$0xff]
    %v184 = vld [vmem:[#allocation2 + $0xc8] sm:$0xff]
    %v185 = vld [vmem:[#allocation2 + $0xd0] sm:$0xff]
    %v186 = vld [vmem:[#allocation2 + $0xd8] sm:$0xff]
    %v187 = vld [vmem:[#allocation2 + $0xe0] sm:$0xff]
    %v188 = vld [vmem:[#allocation2 + $0xe8] sm:$0xff]
    %v189 = vld [vmem:[#allocation2 + $0xf0] sm:$0xff]
    %v190 = vld [vmem:[#allocation2 + $0xf8] sm:$0xff]
    %v191 = vld [vmem:[#allocation4] sm:$0x3]
    %v193 = vlaneseq
    %v194 = vshrl.u32 %v193, 7
    %v195 = vsub.s32 0, %v194
    %v196 = vrot.slane %v191, %v195
    %v197 = vlaneseq
    %v198 = vshrl.u32 %v197, 7
    %v199 = vsub.s32 1, %v198
    %v200 = vrot.slane %v191, %v199
    %v235 = vunpack.c.l.b16 %v159
    %v236 = vunpack.c.h.b16 %v159
    %v237 = vunpack.c.l.b16 %v160
    %v238 = vunpack.c.h.b16 %v160
    %v239 = vunpack.c.l.b16 %v161
    %v240 = vunpack.c.h.b16 %v161
    %v241 = vunpack.c.l.b16 %v162
    %v242 = vunpack.c.h.b16 %v162
    %v243 = vunpack.c.l.b16 %v163
    %v244 = vunpack.c.h.b16 %v163
    %v245 = vunpack.c.l.b16 %v164
    %v246 = vunpack.c.h.b16 %v164
    %v247 = vunpack.c.l.b16 %v165
    %v248 = vunpack.c.h.b16 %v165
    %v249 = vunpack.c.l.b16 %v166
    %v250 = vunpack.c.h.b16 %v166
    %v251 = vunpack.c.l.b16 %v167
    %v252 = vunpack.c.h.b16 %v167
    %v253 = vunpack.c.l.b16 %v168
    %v254 = vunpack.c.h.b16 %v168
    %v255 = vunpack.c.l.b16 %v169
    %v256 = vunpack.c.h.b16 %v169
    %v257 = vunpack.c.l.b16 %v170
    %v258 = vunpack.c.h.b16 %v170
    %v259 = vunpack.c.l.b16 %v171
    %v260 = vunpack.c.h.b16 %v171
    %v261 = vunpack.c.l.b16 %v172
    %v262 = vunpack.c.h.b16 %v172
    %v263 = vunpack.c.l.b16 %v173
    %v264 = vunpack.c.h.b16 %v173
    %v265 = vunpack.c.l.b16 %v174
    %v266 = vunpack.c.h.b16 %v174
    %v267 = vunpack.c.l.b16 %v175
    %v268 = vunpack.c.h.b16 %v175
    %v269 = vunpack.c.l.b16 %v176
    %v270 = vunpack.c.h.b16 %v176
    %v271 = vunpack.c.l.b16 %v177
    %v272 = vunpack.c.h.b16 %v177
    %v273 = vunpack.c.l.b16 %v178
    %v274 = vunpack.c.h.b16 %v178
    %v275 = vunpack.c.l.b16 %v179
    %v276 = vunpack.c.h.b16 %v179
    %v277 = vunpack.c.l.b16 %v180
    %v278 = vunpack.c.h.b16 %v180
    %v279 = vunpack.c.l.b16 %v181
    %v280 = vunpack.c.h.b16 %v181
    %v281 = vunpack.c.l.b16 %v182
    %v282 = vunpack.c.h.b16 %v182
    %v283 = vunpack.c.l.b16 %v183
    %v284 = vunpack.c.h.b16 %v183
    %v285 = vunpack.c.l.b16 %v184
    %v286 = vunpack.c.h.b16 %v184
    %v287 = vunpack.c.l.b16 %v185
    %v288 = vunpack.c.h.b16 %v185
    %v289 = vunpack.c.l.b16 %v186
    %v290 = vunpack.c.h.b16 %v186
    %v291 = vunpack.c.l.b16 %v187
    %v292 = vunpack.c.h.b16 %v187
    %v293 = vunpack.c.l.b16 %v188
    %v294 = vunpack.c.h.b16 %v188
    %v295 = vunpack.c.l.b16 %v189
    %v296 = vunpack.c.h.b16 %v189
    %v297 = vunpack.c.l.b16 %v190
    %v298 = vunpack.c.h.b16 %v190
    %v299 = vpack.c.b16 %v237, %v235
    %v300 = vpack.c.b16 %v238, %v236
    %v301 = vpack.c.b16 %v241, %v239
    %v302 = vpack.c.b16 %v242, %v240
    %v303 = vpack.c.b16 %v245, %v243
    %v304 = vpack.c.b16 %v246, %v244
    %v305 = vpack.c.b16 %v249, %v247
    %v306 = vpack.c.b16 %v250, %v248
    %v307 = vpack.c.b16 %v253, %v251
    %v308 = vpack.c.b16 %v254, %v252
    %v309 = vpack.c.b16 %v257, %v255
    %v310 = vpack.c.b16 %v258, %v256
    %v311 = vpack.c.b16 %v261, %v259
    %v312 = vpack.c.b16 %v262, %v260
    %v313 = vpack.c.b16 %v265, %v263
    %v314 = vpack.c.b16 %v266, %v264
    %v315 = vpack.c.b16 %v269, %v267
    %v316 = vpack.c.b16 %v270, %v268
    %v317 = vpack.c.b16 %v273, %v271
    %v318 = vpack.c.b16 %v274, %v272
    %v319 = vpack.c.b16 %v277, %v275
    %v320 = vpack.c.b16 %v278, %v276
    %v321 = vpack.c.b16 %v281, %v279
    %v322 = vpack.c.b16 %v282, %v280
    %v323 = vpack.c.b16 %v285, %v283
    %v324 = vpack.c.b16 %v286, %v284
    %v325 = vpack.c.b16 %v289, %v287
    %v326 = vpack.c.b16 %v290, %v288
    %v327 = vpack.c.b16 %v293, %v291
    %v328 = vpack.c.b16 %v294, %v292
    %v329 = vpack.c.b16 %v297, %v295
    %v330 = vpack.c.b16 %v298, %v296
    %363 = vmatprep.subr.bf16.mxu0 %v300
    %364 = vmatpush1.bf16.msra.mxu0 %v299
    %365 = vmatprep.subr.bf16.mxu0 %v302
    %366 = vmatpush1.bf16.msra.mxu0 %v301
    %367 = vmatprep.subr.bf16.mxu0 %v304
    %368 = vmatpush1.bf16.msra.mxu0 %v303
    %369 = vmatprep.subr.bf16.mxu0 %v306
    %370 = vmatpush1.bf16.msra.mxu0 %v305
    %371 = vmatprep.subr.bf16.mxu0 %v308
    %372 = vmatpush1.bf16.msra.mxu0 %v307
    %373 = vmatprep.subr.bf16.mxu0 %v310
    %374 = vmatpush1.bf16.msra.mxu0 %v309
    %375 = vmatprep.subr.bf16.mxu0 %v312
    %376 = vmatpush1.bf16.msra.mxu0 %v311
    %377 = vmatprep.subr.bf16.mxu0 %v314
    %378 = vmatpush1.bf16.msra.mxu0 %v313
    %379 = vmatprep.subr.bf16.mxu0 %v316
    %380 = vmatpush1.bf16.msra.mxu0 %v315
    %381 = vmatprep.subr.bf16.mxu0 %v318
    %382 = vmatpush1.bf16.msra.mxu0 %v317
    %383 = vmatprep.subr.bf16.mxu0 %v320
    %384 = vmatpush1.bf16.msra.mxu0 %v319
    %385 = vmatprep.subr.bf16.mxu0 %v322
    %386 = vmatpush1.bf16.msra.mxu0 %v321
    %387 = vmatprep.subr.bf16.mxu0 %v324
    %388 = vmatpush1.bf16.msra.mxu0 %v323
    %389 = vmatprep.subr.bf16.mxu0 %v326
    %390 = vmatpush1.bf16.msra.mxu0 %v325
    %391 = vmatprep.subr.bf16.mxu0 %v328
    %392 = vmatpush1.bf16.msra.mxu0 %v327
    %393 = vmatprep.subr.bf16.mxu0 %v330
    %394 = vmatpush1.bf16.msra.mxu0 %v329
    %395 = vmatprep.mubr.bf16.mxu0 %v158
    %396 = vmatmul.mubr.bf16.gmra.mrb[0].mxu0 %v157
    %v397 = vpop.f32.mrb[0].mxu0
    %v398 = vadd.f32 %v196, %v397
    %v399 = vpop.f32.mrb[0].mxu0
    %v400 = vadd.f32 %v200, %v399
    %v401 = vpop.f32.mrb[0].mxu0
    %v402 = vadd.f32 %v196, %v401
    %v403 = vpop.f32.mrb[0].mxu0
    %v404 = vadd.f32 %v200, %v403
    %405 = vdwg.mxu0
    %v406 = vld [vmem:[%s1] sm:$0xff]
    %v407 = vld [vmem:[%s1 + $0x8] sm:$0xff]
    %v408 = vld [vmem:[%s1 + $0x10] sm:$0xff]
    %v409 = vld [vmem:[%s1 + $0x18] sm:$0xff]
    %v410 = vld [vmem:[%s1 + $0x20] sm:$0xff]
    %v411 = vld [vmem:[%s1 + $0x28] sm:$0xff]
    %v412 = vld [vmem:[%s1 + $0x30] sm:$0xff]
    %v413 = vld [vmem:[%s1 + $0x38] sm:$0xff]
    %v414 = vld [vmem:[%s1 + $0x40] sm:$0xff]
    %v415 = vld [vmem:[%s1 + $0x48] sm:$0xff]
    %v416 = vld [vmem:[%s1 + $0x50] sm:$0xff]
    %v417 = vld [vmem:[%s1 + $0x58] sm:$0xff]
    %v418 = vld [vmem:[%s1 + $0x60] sm:$0xff]
    %v419 = vld [vmem:[%s1 + $0x68] sm:$0xff]
    %v420 = vld [vmem:[%s1 + $0x70] sm:$0xff]
    %v421 = vld [vmem:[%s1 + $0x78] sm:$0xff]
    %v422 = vld [vmem:[%s4] sm:$0xff]
    %v423 = vld [vmem:[%s4 + $0x8] sm:$0xff]
    %v424 = vld [vmem:[%s4 + $0x10] sm:$0xff]
    %v425 = vld [vmem:[%s4 + $0x18] sm:$0xff]
    %v426 = vld [vmem:[%s4 + $0x20] sm:$0xff]
    %v427 = vld [vmem:[%s4 + $0x28] sm:$0xff]
    %v428 = vld [vmem:[%s4 + $0x30] sm:$0xff]
    %v429 = vld [vmem:[%s4 + $0x38] sm:$0xff]
    %v430 = vld [vmem:[%s4 + $0x40] sm:$0xff]
    %v431 = vld [vmem:[%s4 + $0x48] sm:$0xff]
    %v432 = vld [vmem:[%s4 + $0x50] sm:$0xff]
    %v433 = vld [vmem:[%s4 + $0x58] sm:$0xff]
    %v434 = vld [vmem:[%s4 + $0x60] sm:$0xff]
    %v435 = vld [vmem:[%s4 + $0x68] sm:$0xff]
    %v436 = vld [vmem:[%s4 + $0x70] sm:$0xff]
    %v437 = vld [vmem:[%s4 + $0x78] sm:$0xff]
    %v438 = vld [vmem:[%s4 + $0x80] sm:$0xff]
    %v439 = vld [vmem:[%s4 + $0x88] sm:$0xff]
    %v440 = vld [vmem:[%s4 + $0x90] sm:$0xff]
    %v441 = vld [vmem:[%s4 + $0x98] sm:$0xff]
    %v442 = vld [vmem:[%s4 + $0xa0] sm:$0xff]
    %v443 = vld [vmem:[%s4 + $0xa8] sm:$0xff]
    %v444 = vld [vmem:[%s4 + $0xb0] sm:$0xff]
    %v445 = vld [vmem:[%s4 + $0xb8] sm:$0xff]
    %v446 = vld [vmem:[%s4 + $0xc0] sm:$0xff]
    %v447 = vld [vmem:[%s4 + $0xc8] sm:$0xff]
    %v448 = vld [vmem:[%s4 + $0xd0] sm:$0xff]
    %v449 = vld [vmem:[%s4 + $0xd8] sm:$0xff]
    %v450 = vld [vmem:[%s4 + $0xe0] sm:$0xff]
    %v451 = vld [vmem:[%s4 + $0xe8] sm:$0xff]
    %v452 = vld [vmem:[%s4 + $0xf0] sm:$0xff]
    %v453 = vld [vmem:[%s4 + $0xf8] sm:$0xff]
    %v454 = vld [vmem:[%s5] sm:$0x3]
    %v455 = vld [vmem:[#allocation6] sm:$0xff]
    %v456 = vld [vmem:[#allocation6 + $0x8] sm:$0xff]
    %v457 = vld [vmem:[#allocation6 + $0x10] sm:$0xff]
    %v458 = vld [vmem:[#allocation6 + $0x18] sm:$0xff]
    %v459 = vld [vmem:[#allocation6 + $0x20] sm:$0xff]
    %v460 = vld [vmem:[#allocation6 + $0x28] sm:$0xff]
    %v461 = vld [vmem:[#allocation6 + $0x30] sm:$0xff]
    %v462 = vld [vmem:[#allocation6 + $0x38] sm:$0xff]
    %v463 = vld [vmem:[#allocation6 + $0x40] sm:$0xff]
    %v464 = vld [vmem:[#allocation6 + $0x48] sm:$0xff]
    %v465 = vld [vmem:[#allocation6 + $0x50] sm:$0xff]
    %v466 = vld [vmem:[#allocation6 + $0x58] sm:$0xff]
    %v467 = vld [vmem:[#allocation6 + $0x60] sm:$0xff]
    %v468 = vld [vmem:[#allocation6 + $0x68] sm:$0xff]
    %v469 = vld [vmem:[#allocation6 + $0x70] sm:$0xff]
    %v470 = vld [vmem:[#allocation6 + $0x78] sm:$0xff]
    %v471 = vld [vmem:[#allocation6 + $0x80] sm:$0xff]
    %v472 = vld [vmem:[#allocation6 + $0x88] sm:$0xff]
    %v473 = vld [vmem:[#allocation6 + $0x90] sm:$0xff]
    %v474 = vld [vmem:[#allocation6 + $0x98] sm:$0xff]
    %v475 = vld [vmem:[#allocation6 + $0xa0] sm:$0xff]
    %v476 = vld [vmem:[#allocation6 + $0xa8] sm:$0xff]
    %v477 = vld [vmem:[#allocation6 + $0xb0] sm:$0xff]
    %v478 = vld [vmem:[#allocation6 + $0xb8] sm:$0xff]
    %v479 = vld [vmem:[#allocation6 + $0xc0] sm:$0xff]
    %v480 = vld [vmem:[#allocation6 + $0xc8] sm:$0xff]
    %v481 = vld [vmem:[#allocation6 + $0xd0] sm:$0xff]
    %v482 = vld [vmem:[#allocation6 + $0xd8] sm:$0xff]
    %v483 = vld [vmem:[#allocation6 + $0xe0] sm:$0xff]
    %v484 = vld [vmem:[#allocation6 + $0xe8] sm:$0xff]
    %v485 = vld [vmem:[#allocation6 + $0xf0] sm:$0xff]
    %v486 = vld [vmem:[#allocation6 + $0xf8] sm:$0xff]
    %v487 = vld [vmem:[#allocation6 + $0x100] sm:$0xff]
    %v488 = vld [vmem:[#allocation6 + $0x108] sm:$0xff]
    %v489 = vld [vmem:[#allocation6 + $0x110] sm:$0xff]
    %v490 = vld [vmem:[#allocation6 + $0x118] sm:$0xff]
    %v491 = vld [vmem:[#allocation6 + $0x120] sm:$0xff]
    %v492 = vld [vmem:[#allocation6 + $0x128] sm:$0xff]
    %v493 = vld [vmem:[#allocation6 + $0x130] sm:$0xff]
    %v494 = vld [vmem:[#allocation6 + $0x138] sm:$0xff]
    %v495 = vld [vmem:[#allocation6 + $0x140] sm:$0xff]
    %v496 = vld [vmem:[#allocation6 + $0x148] sm:$0xff]
    %v497 = vld [vmem:[#allocation6 + $0x150] sm:$0xff]
    %v498 = vld [vmem:[#allocation6 + $0x158] sm:$0xff]
    %v499 = vld [vmem:[#allocation6 + $0x160] sm:$0xff]
    %v500 = vld [vmem:[#allocation6 + $0x168] sm:$0xff]
    %v501 = vld [vmem:[#allocation6 + $0x170] sm:$0xff]
    %v502 = vld [vmem:[#allocation6 + $0x178] sm:$0xff]
    %v503 = vld [vmem:[#allocation6 + $0x180] sm:$0xff]
    %v504 = vld [vmem:[#allocation6 + $0x188] sm:$0xff]
    %v505 = vld [vmem:[#allocation6 + $0x190] sm:$0xff]
    %v506 = vld [vmem:[#allocation6 + $0x198] sm:$0xff]
    %v507 = vld [vmem:[#allocation6 + $0x1a0] sm:$0xff]
    %v508 = vld [vmem:[#allocation6 + $0x1a8] sm:$0xff]
    %v509 = vld [vmem:[#allocation6 + $0x1b0] sm:$0xff]
    %v510 = vld [vmem:[#allocation6 + $0x1b8] sm:$0xff]
    %v511 = vld [vmem:[#allocation6 + $0x1c0] sm:$0xff]
    %v512 = vld [vmem:[#allocation6 + $0x1c8] sm:$0xff]
    %v513 = vld [vmem:[#allocation6 + $0x1d0] sm:$0xff]
    %v514 = vld [vmem:[#allocation6 + $0x1d8] sm:$0xff]
    %v515 = vld [vmem:[#allocation6 + $0x1e0] sm:$0xff]
    %v516 = vld [vmem:[#allocation6 + $0x1e8] sm:$0xff]
    %v517 = vld [vmem:[#allocation6 + $0x1f0] sm:$0xff]
    %v518 = vld [vmem:[#allocation6 + $0x1f8] sm:$0xff]
    %v519 = vld [vmem:[%s7] sm:$0xf]
    %v520 = vld [vmem:[#allocation7] sm:$0xff]
    %v521 = vld [vmem:[#allocation7 + $0x8] sm:$0xff]
    %v522 = vld [vmem:[#allocation7 + $0x10] sm:$0xff]
    %v523 = vld [vmem:[#allocation7 + $0x18] sm:$0xff]
    %v524 = vld [vmem:[#allocation7 + $0x20] sm:$0xff]
    %v525 = vld [vmem:[#allocation7 + $0x28] sm:$0xff]
    %v526 = vld [vmem:[#allocation7 + $0x30] sm:$0xff]
    %v527 = vld [vmem:[#allocation7 + $0x38] sm:$0xff]
    %v528 = vld [vmem:[#allocation7 + $0x40] sm:$0xff]
    %v529 = vld [vmem:[#allocation7 + $0x48] sm:$0xff]
    %v530 = vld [vmem:[#allocation7 + $0x50] sm:$0xff]
    %v531 = vld [vmem:[#allocation7 + $0x58] sm:$0xff]
    %v532 = vld [vmem:[#allocation7 + $0x60] sm:$0xff]
    %v533 = vld [vmem:[#allocation7 + $0x68] sm:$0xff]
    %v534 = vld [vmem:[#allocation7 + $0x70] sm:$0xff]
    %v535 = vld [vmem:[#allocation7 + $0x78] sm:$0xff]
    %v536 = vld [vmem:[#allocation7 + $0x80] sm:$0xff]
    %v537 = vld [vmem:[#allocation7 + $0x88] sm:$0xff]
    %v538 = vld [vmem:[#allocation7 + $0x90] sm:$0xff]
    %v539 = vld [vmem:[#allocation7 + $0x98] sm:$0xff]
    %v540 = vld [vmem:[#allocation7 + $0xa0] sm:$0xff]
    %v541 = vld [vmem:[#allocation7 + $0xa8] sm:$0xff]
    %v542 = vld [vmem:[#allocation7 + $0xb0] sm:$0xff]
    %v543 = vld [vmem:[#allocation7 + $0xb8] sm:$0xff]
    %v544 = vld [vmem:[#allocation7 + $0xc0] sm:$0xff]
    %v545 = vld [vmem:[#allocation7 + $0xc8] sm:$0xff]
    %v546 = vld [vmem:[#allocation7 + $0xd0] sm:$0xff]
    %v547 = vld [vmem:[#allocation7 + $0xd8] sm:$0xff]
    %v548 = vld [vmem:[#allocation7 + $0xe0] sm:$0xff]
    %v549 = vld [vmem:[#allocation7 + $0xe8] sm:$0xff]
    %v550 = vld [vmem:[#allocation7 + $0xf0] sm:$0xff]
    %v551 = vld [vmem:[#allocation7 + $0xf8] sm:$0xff]
    %v552 = vld [vmem:[%s9] sm:$0x3]
    %v553 = vld [vmem:[%s10] sm:$0x3]
    %v554 = vld [vmem:[%s11] sm:$0x3]
    %v555 = vld [vmem:[#allocation9] sm:$0xff]
    %v556 = vld [vmem:[#allocation9 + $0x8] sm:$0xff]
    %v557 = vld [vmem:[#allocation9 + $0x10] sm:$0xff]
    %v558 = vld [vmem:[#allocation9 + $0x18] sm:$0xff]
    %v559 = vld [vmem:[#allocation9 + $0x20] sm:$0xff]
    %v560 = vld [vmem:[#allocation9 + $0x28] sm:$0xff]
    %v561 = vld [vmem:[#allocation9 + $0x30] sm:$0xff]
    %v562 = vld [vmem:[#allocation9 + $0x38] sm:$0xff]
    %v563 = vld [vmem:[#allocation9 + $0x40] sm:$0xff]
    %v564 = vld [vmem:[#allocation9 + $0x48] sm:$0xff]
    %v565 = vld [vmem:[#allocation9 + $0x50] sm:$0xff]
    %v566 = vld [vmem:[#allocation9 + $0x58] sm:$0xff]
    %v567 = vld [vmem:[#allocation9 + $0x60] sm:$0xff]
    %v568 = vld [vmem:[#allocation9 + $0x68] sm:$0xff]
    %v569 = vld [vmem:[#allocation9 + $0x70] sm:$0xff]
    %v570 = vld [vmem:[#allocation9 + $0x78] sm:$0xff]
    %v571 = vld [vmem:[#allocation9 + $0x80] sm:$0xff]
    %v572 = vld [vmem:[#allocation9 + $0x88] sm:$0xff]
    %v573 = vld [vmem:[#allocation9 + $0x90] sm:$0xff]
    %v574 = vld [vmem:[#allocation9 + $0x98] sm:$0xff]
    %v575 = vld [vmem:[#allocation9 + $0xa0] sm:$0xff]
    %v576 = vld [vmem:[#allocation9 + $0xa8] sm:$0xff]
    %v577 = vld [vmem:[#allocation9 + $0xb0] sm:$0xff]
    %v578 = vld [vmem:[#allocation9 + $0xb8] sm:$0xff]
    %v579 = vld [vmem:[#allocation9 + $0xc0] sm:$0xff]
    %v580 = vld [vmem:[#allocation9 + $0xc8] sm:$0xff]
    %v581 = vld [vmem:[#allocation9 + $0xd0] sm:$0xff]
    %v582 = vld [vmem:[#allocation9 + $0xd8] sm:$0xff]
    %v583 = vld [vmem:[#allocation9 + $0xe0] sm:$0xff]
    %v584 = vld [vmem:[#allocation9 + $0xe8] sm:$0xff]
    %v585 = vld [vmem:[#allocation9 + $0xf0] sm:$0xff]
    %v586 = vld [vmem:[#allocation9 + $0xf8] sm:$0xff]
    %v587 = vld [vmem:[#allocation9 + $0x100] sm:$0xff]
    %v588 = vld [vmem:[#allocation9 + $0x108] sm:$0xff]
    %v589 = vld [vmem:[#allocation9 + $0x110] sm:$0xff]
    %v590 = vld [vmem:[#allocation9 + $0x118] sm:$0xff]
    %v591 = vld [vmem:[#allocation9 + $0x120] sm:$0xff]
    %v592 = vld [vmem:[#allocation9 + $0x128] sm:$0xff]
    %v593 = vld [vmem:[#allocation9 + $0x130] sm:$0xff]
    %v594 = vld [vmem:[#allocation9 + $0x138] sm:$0xff]
    %v595 = vld [vmem:[#allocation9 + $0x140] sm:$0xff]
    %v596 = vld [vmem:[#allocation9 + $0x148] sm:$0xff]
    %v597 = vld [vmem:[#allocation9 + $0x150] sm:$0xff]
    %v598 = vld [vmem:[#allocation9 + $0x158] sm:$0xff]
    %v599 = vld [vmem:[#allocation9 + $0x160] sm:$0xff]
    %v600 = vld [vmem:[#allocation9 + $0x168] sm:$0xff]
    %v601 = vld [vmem:[#allocation9 + $0x170] sm:$0xff]
    %v602 = vld [vmem:[#allocation9 + $0x178] sm:$0xff]
    %v603 = vld [vmem:[#allocation9 + $0x180] sm:$0xff]
    %v604 = vld [vmem:[#allocation9 + $0x188] sm:$0xff]
    %v605 = vld [vmem:[#allocation9 + $0x190] sm:$0xff]
    %v606 = vld [vmem:[#allocation9 + $0x198] sm:$0xff]
    %v607 = vld [vmem:[#allocation9 + $0x1a0] sm:$0xff]
    %v608 = vld [vmem:[#allocation9 + $0x1a8] sm:$0xff]
    %v609 = vld [vmem:[#allocation9 + $0x1b0] sm:$0xff]
    %v610 = vld [vmem:[#allocation9 + $0x1b8] sm:$0xff]
    %v611 = vld [vmem:[#allocation9 + $0x1c0] sm:$0xff]
    %v612 = vld [vmem:[#allocation9 + $0x1c8] sm:$0xff]
    %v613 = vld [vmem:[#allocation9 + $0x1d0] sm:$0xff]
    %v614 = vld [vmem:[#allocation9 + $0x1d8] sm:$0xff]
    %v615 = vld [vmem:[#allocation9 + $0x1e0] sm:$0xff]
    %v616 = vld [vmem:[#allocation9 + $0x1e8] sm:$0xff]
    %v617 = vld [vmem:[#allocation9 + $0x1f0] sm:$0xff]
    %v618 = vld [vmem:[#allocation9 + $0x1f8] sm:$0xff]
    %v619 = vld [vmem:[#allocation9 + $0x200] sm:$0xff]
    %v620 = vld [vmem:[#allocation9 + $0x208] sm:$0xff]
    %v621 = vld [vmem:[#allocation9 + $0x210] sm:$0xff]
    %v622 = vld [vmem:[#allocation9 + $0x218] sm:$0xff]
    %v623 = vld [vmem:[#allocation9 + $0x220] sm:$0xff]
    %v624 = vld [vmem:[#allocation9 + $0x228] sm:$0xff]
    %v625 = vld [vmem:[#allocation9 + $0x230] sm:$0xff]
    %v626 = vld [vmem:[#allocation9 + $0x238] sm:$0xff]
    %v627 = vld [vmem:[#allocation9 + $0x240] sm:$0xff]
    %v628 = vld [vmem:[#allocation9 + $0x248] sm:$0xff]
    %v629 = vld [vmem:[#allocation9 + $0x250] sm:$0xff]
    %v630 = vld [vmem:[#allocation9 + $0x258] sm:$0xff]
    %v631 = vld [vmem:[#allocation9 + $0x260] sm:$0xff]
    %v632 = vld [vmem:[#allocation9 + $0x268] sm:$0xff]
    %v633 = vld [vmem:[#allocation9 + $0x270] sm:$0xff]
    %v634 = vld [vmem:[#allocation9 + $0x278] sm:$0xff]
    %v635 = vld [vmem:[#allocation9 + $0x280] sm:$0xff]
    %v636 = vld [vmem:[#allocation9 + $0x288] sm:$0xff]
    %v637 = vld [vmem:[#allocation9 + $0x290] sm:$0xff]
    %v638 = vld [vmem:[#allocation9 + $0x298] sm:$0xff]
    %v639 = vld [vmem:[#allocation9 + $0x2a0] sm:$0xff]
    %v640 = vld [vmem:[#allocation9 + $0x2a8] sm:$0xff]
    %v641 = vld [vmem:[#allocation9 + $0x2b0] sm:$0xff]
    %v642 = vld [vmem:[#allocation9 + $0x2b8] sm:$0xff]
    %v643 = vld [vmem:[#allocation9 + $0x2c0] sm:$0xff]
    %v644 = vld [vmem:[#allocation9 + $0x2c8] sm:$0xff]
    %v645 = vld [vmem:[#allocation9 + $0x2d0] sm:$0xff]
    %v646 = vld [vmem:[#allocation9 + $0x2d8] sm:$0xff]
    %v647 = vld [vmem:[#allocation9 + $0x2e0] sm:$0xff]
    %v648 = vld [vmem:[#allocation9 + $0x2e8] sm:$0xff]
    %v649 = vld [vmem:[#allocation9 + $0x2f0] sm:$0xff]
    %v650 = vld [vmem:[#allocation9 + $0x2f8] sm:$0xff]
    %v651 = vld [vmem:[#allocation9 + $0x300] sm:$0xff]
    %v652 = vld [vmem:[#allocation9 + $0x308] sm:$0xff]
    %v653 = vld [vmem:[#allocation9 + $0x310] sm:$0xff]
    %v654 = vld [vmem:[#allocation9 + $0x318] sm:$0xff]
    %v655 = vld [vmem:[#allocation9 + $0x320] sm:$0xff]
    %v656 = vld [vmem:[#allocation9 + $0x328] sm:$0xff]
    %v657 = vld [vmem:[#allocation9 + $0x330] sm:$0xff]
    %v658 = vld [vmem:[#allocation9 + $0x338] sm:$0xff]
    %v659 = vld [vmem:[#allocation9 + $0x340] sm:$0xff]
    %v660 = vld [vmem:[#allocation9 + $0x348] sm:$0xff]
    %v661 = vld [vmem:[#allocation9 + $0x350] sm:$0xff]
    %v662 = vld [vmem:[#allocation9 + $0x358] sm:$0xff]
    %v663 = vld [vmem:[#allocation9 + $0x360] sm:$0xff]
    %v664 = vld [vmem:[#allocation9 + $0x368] sm:$0xff]
    %v665 = vld [vmem:[#allocation9 + $0x370] sm:$0xff]
    %v666 = vld [vmem:[#allocation9 + $0x378] sm:$0xff]
    %v667 = vld [vmem:[#allocation9 + $0x380] sm:$0xff]
    %v668 = vld [vmem:[#allocation9 + $0x388] sm:$0xff]
    %v669 = vld [vmem:[#allocation9 + $0x390] sm:$0xff]
    %v670 = vld [vmem:[#allocation9 + $0x398] sm:$0xff]
    %v671 = vld [vmem:[#allocation9 + $0x3a0] sm:$0xff]
    %v672 = vld [vmem:[#allocation9 + $0x3a8] sm:$0xff]
    %v673 = vld [vmem:[#allocation9 + $0x3b0] sm:$0xff]
    %v674 = vld [vmem:[#allocation9 + $0x3b8] sm:$0xff]
    %v675 = vld [vmem:[#allocation9 + $0x3c0] sm:$0xff]
    %v676 = vld [vmem:[#allocation9 + $0x3c8] sm:$0xff]
    %v677 = vld [vmem:[#allocation9 + $0x3d0] sm:$0xff]
    %v678 = vld [vmem:[#allocation9 + $0x3d8] sm:$0xff]
    %v679 = vld [vmem:[#allocation9 + $0x3e0] sm:$0xff]
    %v680 = vld [vmem:[#allocation9 + $0x3e8] sm:$0xff]
    %v681 = vld [vmem:[#allocation9 + $0x3f0] sm:$0xff]
    %v682 = vld [vmem:[#allocation9 + $0x3f8] sm:$0xff]
    %v683 = vld [vmem:[%s13] sm:$0xff]
    %v684 = vld [vmem:[#allocation10] sm:$0xff]
    %v685 = vld [vmem:[#allocation10 + $0x8] sm:$0xff]
    %v686 = vld [vmem:[#allocation10 + $0x10] sm:$0xff]
    %v687 = vld [vmem:[#allocation10 + $0x18] sm:$0xff]
    %v688 = vld [vmem:[#allocation10 + $0x20] sm:$0xff]
    %v689 = vld [vmem:[#allocation10 + $0x28] sm:$0xff]
    %v690 = vld [vmem:[#allocation10 + $0x30] sm:$0xff]
    %v691 = vld [vmem:[#allocation10 + $0x38] sm:$0xff]
    %v692 = vld [vmem:[#allocation10 + $0x40] sm:$0xff]
    %v693 = vld [vmem:[#allocation10 + $0x48] sm:$0xff]
    %v694 = vld [vmem:[#allocation10 + $0x50] sm:$0xff]
    %v695 = vld [vmem:[#allocation10 + $0x58] sm:$0xff]
    %v696 = vld [vmem:[#allocation10 + $0x60] sm:$0xff]
    %v697 = vld [vmem:[#allocation10 + $0x68] sm:$0xff]
    %v698 = vld [vmem:[#allocation10 + $0x70] sm:$0xff]
    %v699 = vld [vmem:[#allocation10 + $0x78] sm:$0xff]
    %v700 = vld [vmem:[#allocation10 + $0x80] sm:$0xff]
    %v701 = vld [vmem:[#allocation10 + $0x88] sm:$0xff]
    %v702 = vld [vmem:[#allocation10 + $0x90] sm:$0xff]
    %v703 = vld [vmem:[#allocation10 + $0x98] sm:$0xff]
    %v704 = vld [vmem:[#allocation10 + $0xa0] sm:$0xff]
    %v705 = vld [vmem:[#allocation10 + $0xa8] sm:$0xff]
    %v706 = vld [vmem:[#allocation10 + $0xb0] sm:$0xff]
    %v707 = vld [vmem:[#allocation10 + $0xb8] sm:$0xff]
    %v708 = vld [vmem:[#allocation10 + $0xc0] sm:$0xff]
    %v709 = vld [vmem:[#allocation10 + $0xc8] sm:$0xff]
    %v710 = vld [vmem:[#allocation10 + $0xd0] sm:$0xff]
    %v711 = vld [vmem:[#allocation10 + $0xd8] sm:$0xff]
    %v712 = vld [vmem:[#allocation10 + $0xe0] sm:$0xff]
    %v713 = vld [vmem:[#allocation10 + $0xe8] sm:$0xff]
    %v714 = vld [vmem:[#allocation10 + $0xf0] sm:$0xff]
    %v715 = vld [vmem:[#allocation10 + $0xf8] sm:$0xff]
    %v716 = vld [vmem:[#allocation10 + $0x100] sm:$0xff]
    %v717 = vld [vmem:[#allocation10 + $0x108] sm:$0xff]
    %v718 = vld [vmem:[#allocation10 + $0x110] sm:$0xff]
    %v719 = vld [vmem:[#allocation10 + $0x118] sm:$0xff]
    %v720 = vld [vmem:[#allocation10 + $0x120] sm:$0xff]
    %v721 = vld [vmem:[#allocation10 + $0x128] sm:$0xff]
    %v722 = vld [vmem:[#allocation10 + $0x130] sm:$0xff]
    %v723 = vld [vmem:[#allocation10 + $0x138] sm:$0xff]
    %v724 = vld [vmem:[#allocation10 + $0x140] sm:$0xff]
    %v725 = vld [vmem:[#allocation10 + $0x148] sm:$0xff]
    %v726 = vld [vmem:[#allocation10 + $0x150] sm:$0xff]
    %v727 = vld [vmem:[#allocation10 + $0x158] sm:$0xff]
    %v728 = vld [vmem:[#allocation10 + $0x160] sm:$0xff]
    %v729 = vld [vmem:[#allocation10 + $0x168] sm:$0xff]
    %v730 = vld [vmem:[#allocation10 + $0x170] sm:$0xff]
    %v731 = vld [vmem:[#allocation10 + $0x178] sm:$0xff]
    %v732 = vld [vmem:[#allocation10 + $0x180] sm:$0xff]
    %v733 = vld [vmem:[#allocation10 + $0x188] sm:$0xff]
    %v734 = vld [vmem:[#allocation10 + $0x190] sm:$0xff]
    %v735 = vld [vmem:[#allocation10 + $0x198] sm:$0xff]
    %v736 = vld [vmem:[#allocation10 + $0x1a0] sm:$0xff]
    %v737 = vld [vmem:[#allocation10 + $0x1a8] sm:$0xff]
    %v738 = vld [vmem:[#allocation10 + $0x1b0] sm:$0xff]
    %v739 = vld [vmem:[#allocation10 + $0x1b8] sm:$0xff]
    %v740 = vld [vmem:[#allocation10 + $0x1c0] sm:$0xff]
    %v741 = vld [vmem:[#allocation10 + $0x1c8] sm:$0xff]
    %v742 = vld [vmem:[#allocation10 + $0x1d0] sm:$0xff]
    %v743 = vld [vmem:[#allocation10 + $0x1d8] sm:$0xff]
    %v744 = vld [vmem:[#allocation10 + $0x1e0] sm:$0xff]
    %v745 = vld [vmem:[#allocation10 + $0x1e8] sm:$0xff]
    %v746 = vld [vmem:[#allocation10 + $0x1f0] sm:$0xff]
    %v747 = vld [vmem:[#allocation10 + $0x1f8] sm:$0xff]
    %v748 = vld [vmem:[#allocation10 + $0x200] sm:$0xff]
    %v749 = vld [vmem:[#allocation10 + $0x208] sm:$0xff]
    %v750 = vld [vmem:[#allocation10 + $0x210] sm:$0xff]
    %v751 = vld [vmem:[#allocation10 + $0x218] sm:$0xff]
    %v752 = vld [vmem:[#allocation10 + $0x220] sm:$0xff]
    %v753 = vld [vmem:[#allocation10 + $0x228] sm:$0xff]
    %v754 = vld [vmem:[#allocation10 + $0x230] sm:$0xff]
    %v755 = vld [vmem:[#allocation10 + $0x238] sm:$0xff]
    %v756 = vld [vmem:[#allocation10 + $0x240] sm:$0xff]
    %v757 = vld [vmem:[#allocation10 + $0x248] sm:$0xff]
    %v758 = vld [vmem:[#allocation10 + $0x250] sm:$0xff]
    %v759 = vld [vmem:[#allocation10 + $0x258] sm:$0xff]
    %v760 = vld [vmem:[#allocation10 + $0x260] sm:$0xff]
    %v761 = vld [vmem:[#allocation10 + $0x268] sm:$0xff]
    %v762 = vld [vmem:[#allocation10 + $0x270] sm:$0xff]
    %v763 = vld [vmem:[#allocation10 + $0x278] sm:$0xff]
    %v764 = vld [vmem:[#allocation10 + $0x280] sm:$0xff]
    %v765 = vld [vmem:[#allocation10 + $0x288] sm:$0xff]
    %v766 = vld [vmem:[#allocation10 + $0x290] sm:$0xff]
    %v767 = vld [vmem:[#allocation10 + $0x298] sm:$0xff]
    %v768 = vld [vmem:[#allocation10 + $0x2a0] sm:$0xff]
    %v769 = vld [vmem:[#allocation10 + $0x2a8] sm:$0xff]
    %v770 = vld [vmem:[#allocation10 + $0x2b0] sm:$0xff]
    %v771 = vld [vmem:[#allocation10 + $0x2b8] sm:$0xff]
    %v772 = vld [vmem:[#allocation10 + $0x2c0] sm:$0xff]
    %v773 = vld [vmem:[#allocation10 + $0x2c8] sm:$0xff]
    %v774 = vld [vmem:[#allocation10 + $0x2d0] sm:$0xff]
    %v775 = vld [vmem:[#allocation10 + $0x2d8] sm:$0xff]
    %v776 = vld [vmem:[#allocation10 + $0x2e0] sm:$0xff]
    %v777 = vld [vmem:[#allocation10 + $0x2e8] sm:$0xff]
    %v778 = vld [vmem:[#allocation10 + $0x2f0] sm:$0xff]
    %v779 = vld [vmem:[#allocation10 + $0x2f8] sm:$0xff]
    %v780 = vld [vmem:[#allocation10 + $0x300] sm:$0xff]
    %v781 = vld [vmem:[#allocation10 + $0x308] sm:$0xff]
    %v782 = vld [vmem:[#allocation10 + $0x310] sm:$0xff]
    %v783 = vld [vmem:[#allocation10 + $0x318] sm:$0xff]
    %v784 = vld [vmem:[#allocation10 + $0x320] sm:$0xff]
    %v785 = vld [vmem:[#allocation10 + $0x328] sm:$0xff]
    %v786 = vld [vmem:[#allocation10 + $0x330] sm:$0xff]
    %v787 = vld [vmem:[#allocation10 + $0x338] sm:$0xff]
    %v788 = vld [vmem:[#allocation10 + $0x340] sm:$0xff]
    %v789 = vld [vmem:[#allocation10 + $0x348] sm:$0xff]
    %v790 = vld [vmem:[#allocation10 + $0x350] sm:$0xff]
    %v791 = vld [vmem:[#allocation10 + $0x358] sm:$0xff]
    %v792 = vld [vmem:[#allocation10 + $0x360] sm:$0xff]
    %v793 = vld [vmem:[#allocation10 + $0x368] sm:$0xff]
    %v794 = vld [vmem:[#allocation10 + $0x370] sm:$0xff]
    %v795 = vld [vmem:[#allocation10 + $0x378] sm:$0xff]
    %v796 = vld [vmem:[#allocation10 + $0x380] sm:$0xff]
    %v797 = vld [vmem:[#allocation10 + $0x388] sm:$0xff]
    %v798 = vld [vmem:[#allocation10 + $0x390] sm:$0xff]
    %v799 = vld [vmem:[#allocation10 + $0x398] sm:$0xff]
    %v800 = vld [vmem:[#allocation10 + $0x3a0] sm:$0xff]
    %v801 = vld [vmem:[#allocation10 + $0x3a8] sm:$0xff]
    %v802 = vld [vmem:[#allocation10 + $0x3b0] sm:$0xff]
    %v803 = vld [vmem:[#allocation10 + $0x3b8] sm:$0xff]
    %v804 = vld [vmem:[#allocation10 + $0x3c0] sm:$0xff]
    %v805 = vld [vmem:[#allocation10 + $0x3c8] sm:$0xff]
    %v806 = vld [vmem:[#allocation10 + $0x3d0] sm:$0xff]
    %v807 = vld [vmem:[#allocation10 + $0x3d8] sm:$0xff]
    %v808 = vld [vmem:[#allocation10 + $0x3e0] sm:$0xff]
    %v809 = vld [vmem:[#allocation10 + $0x3e8] sm:$0xff]
    %v810 = vld [vmem:[#allocation10 + $0x3f0] sm:$0xff]
    %v811 = vld [vmem:[#allocation10 + $0x3f8] sm:$0xff]
    %v812 = vld [vmem:[%s15] sm:$0x3]
    %v813 = vld [vmem:[%s16] sm:$0x3]
    %v814 = vld [vmem:[#allocation12] sm:$0x3]
    %v815 = vpack.c.bf16 %v402, %v398
    %v816 = vpack.c.bf16 %v404, %v400
    %v817 = vpack.c.bf16 %v408, %v406
    %v818 = vpack.c.bf16 %v409, %v407
    %v819 = vpack.c.bf16 %v412, %v410
    %v820 = vpack.c.bf16 %v413, %v411
    %v821 = vpack.c.bf16 %v416, %v414
    %v822 = vpack.c.bf16 %v417, %v415
    %v823 = vpack.c.bf16 %v420, %v418
    %v824 = vpack.c.bf16 %v421, %v419
    %v826 = vlaneseq
    %v827 = vshrl.u32 %v826, 7
    %v828 = vsub.s32 0, %v827
    %v829 = vrot.slane %v454, %v828
    %v830 = vlaneseq
    %v831 = vshrl.u32 %v830, 7
    %v832 = vsub.s32 1, %v831
    %v833 = vrot.slane %v454, %v832
    %v868 = vunpack.c.l.b16 %v422
    %v869 = vunpack.c.h.b16 %v422
    %v870 = vunpack.c.l.b16 %v423
    %v871 = vunpack.c.h.b16 %v423
    %v872 = vunpack.c.l.b16 %v424
    %v873 = vunpack.c.h.b16 %v424
    %v874 = vunpack.c.l.b16 %v425
    %v875 = vunpack.c.h.b16 %v425
    %v876 = vunpack.c.l.b16 %v426
    %v877 = vunpack.c.h.b16 %v426
    %v878 = vunpack.c.l.b16 %v427
    %v879 = vunpack.c.h.b16 %v427
    %v880 = vunpack.c.l.b16 %v428
    %v881 = vunpack.c.h.b16 %v428
    %v882 = vunpack.c.l.b16 %v429
    %v883 = vunpack.c.h.b16 %v429
    %v884 = vunpack.c.l.b16 %v430
    %v885 = vunpack.c.h.b16 %v430
    %v886 = vunpack.c.l.b16 %v431
    %v887 = vunpack.c.h.b16 %v431
    %v888 = vunpack.c.l.b16 %v432
    %v889 = vunpack.c.h.b16 %v432
    %v890 = vunpack.c.l.b16 %v433
    %v891 = vunpack.c.h.b16 %v433
    %v892 = vunpack.c.l.b16 %v434
    %v893 = vunpack.c.h.b16 %v434
    %v894 = vunpack.c.l.b16 %v435
    %v895 = vunpack.c.h.b16 %v435
    %v896 = vunpack.c.l.b16 %v436
    %v897 = vunpack.c.h.b16 %v436
    %v898 = vunpack.c.l.b16 %v437
    %v899 = vunpack.c.h.b16 %v437
    %v900 = vunpack.c.l.b16 %v438
    %v901 = vunpack.c.h.b16 %v438
    %v902 = vunpack.c.l.b16 %v439
    %v903 = vunpack.c.h.b16 %v439
    %v904 = vunpack.c.l.b16 %v440
    %v905 = vunpack.c.h.b16 %v440
    %v906 = vunpack.c.l.b16 %v441
    %v907 = vunpack.c.h.b16 %v441
    %v908 = vunpack.c.l.b16 %v442
    %v909 = vunpack.c.h.b16 %v442
    %v910 = vunpack.c.l.b16 %v443
    %v911 = vunpack.c.h.b16 %v443
    %v912 = vunpack.c.l.b16 %v444
    %v913 = vunpack.c.h.b16 %v444
    %v914 = vunpack.c.l.b16 %v445
    %v915 = vunpack.c.h.b16 %v445
    %v916 = vunpack.c.l.b16 %v446
    %v917 = vunpack.c.h.b16 %v446
    %v918 = vunpack.c.l.b16 %v447
    %v919 = vunpack.c.h.b16 %v447
    %v920 = vunpack.c.l.b16 %v448
    %v921 = vunpack.c.h.b16 %v448
    %v922 = vunpack.c.l.b16 %v449
    %v923 = vunpack.c.h.b16 %v449
    %v924 = vunpack.c.l.b16 %v450
    %v925 = vunpack.c.h.b16 %v450
    %v926 = vunpack.c.l.b16 %v451
    %v927 = vunpack.c.h.b16 %v451
    %v928 = vunpack.c.l.b16 %v452
    %v929 = vunpack.c.h.b16 %v452
    %v930 = vunpack.c.l.b16 %v453
    %v931 = vunpack.c.h.b16 %v453
    %v932 = vpack.c.b16 %v870, %v868
    %v933 = vpack.c.b16 %v871, %v869
    %v934 = vpack.c.b16 %v874, %v872
    %v935 = vpack.c.b16 %v875, %v873
    %v936 = vpack.c.b16 %v878, %v876
    %v937 = vpack.c.b16 %v879, %v877
    %v938 = vpack.c.b16 %v882, %v880
    %v939 = vpack.c.b16 %v883, %v881
    %v940 = vpack.c.b16 %v886, %v884
    %v941 = vpack.c.b16 %v887, %v885
    %v942 = vpack.c.b16 %v890, %v888
    %v943 = vpack.c.b16 %v891, %v889
    %v944 = vpack.c.b16 %v894, %v892
    %v945 = vpack.c.b16 %v895, %v893
    %v946 = vpack.c.b16 %v898, %v896
    %v947 = vpack.c.b16 %v899, %v897
    %v948 = vpack.c.b16 %v902, %v900
    %v949 = vpack.c.b16 %v903, %v901
    %v950 = vpack.c.b16 %v906, %v904
    %v951 = vpack.c.b16 %v907, %v905
    %v952 = vpack.c.b16 %v910, %v908
    %v953 = vpack.c.b16 %v911, %v909
    %v954 = vpack.c.b16 %v914, %v912
    %v955 = vpack.c.b16 %v915, %v913
    %v956 = vpack.c.b16 %v918, %v916
    %v957 = vpack.c.b16 %v919, %v917
    %v958 = vpack.c.b16 %v922, %v920
    %v959 = vpack.c.b16 %v923, %v921
    %v960 = vpack.c.b16 %v926, %v924
    %v961 = vpack.c.b16 %v927, %v925
    %v962 = vpack.c.b16 %v930, %v928
    %v963 = vpack.c.b16 %v931, %v929
    %996 = vmatprep.subr.bf16.mxu0 %v933
    %997 = vmatpush1.bf16.msra.mxu0 %v932
    %998 = vmatprep.subr.bf16.mxu0 %v935
    %999 = vmatpush1.bf16.msra.mxu0 %v934
    %1000 = vmatprep.subr.bf16.mxu0 %v937
    %1001 = vmatpush1.bf16.msra.mxu0 %v936
    %1002 = vmatprep.subr.bf16.mxu0 %v939
    %1003 = vmatpush1.bf16.msra.mxu0 %v938
    %1004 = vmatprep.subr.bf16.mxu0 %v941
    %1005 = vmatpush1.bf16.msra.mxu0 %v940
    %1006 = vmatprep.subr.bf16.mxu0 %v943
    %1007 = vmatpush1.bf16.msra.mxu0 %v942
    %1008 = vmatprep.subr.bf16.mxu0 %v945
    %1009 = vmatpush1.bf16.msra.mxu0 %v944
    %1010 = vmatprep.subr.bf16.mxu0 %v947
    %1011 = vmatpush1.bf16.msra.mxu0 %v946
    %1012 = vmatprep.subr.bf16.mxu0 %v949
    %1013 = vmatpush1.bf16.msra.mxu0 %v948
    %1014 = vmatprep.subr.bf16.mxu0 %v951
    %1015 = vmatpush1.bf16.msra.mxu0 %v950
    %1016 = vmatprep.subr.bf16.mxu0 %v953
    %1017 = vmatpush1.bf16.msra.mxu0 %v952
    %1018 = vmatprep.subr.bf16.mxu0 %v955
    %1019 = vmatpush1.bf16.msra.mxu0 %v954
    %1020 = vmatprep.subr.bf16.mxu0 %v957
    %1021 = vmatpush1.bf16.msra.mxu0 %v956
    %1022 = vmatprep.subr.bf16.mxu0 %v959
    %1023 = vmatpush1.bf16.msra.mxu0 %v958
    %1024 = vmatprep.subr.bf16.mxu0 %v961
    %1025 = vmatpush1.bf16.msra.mxu0 %v960
    %1026 = vmatprep.subr.bf16.mxu0 %v963
    %1027 = vmatpush1.bf16.msra.mxu0 %v962
    %1028 = vmatprep.mubr.bf16.mxu0 %v816
    %1029 = vmatmul.mubr.bf16.gmra.mrb[0].mxu0 %v815
    %v1030 = vpop.f32.mrb[0].mxu0
    %v1031 = vadd.f32 %v829, %v1030
    %v1032 = vpop.f32.mrb[0].mxu0
    %v1033 = vadd.f32 %v833, %v1032
    %v1034 = vpop.f32.mrb[0].mxu0
    %v1035 = vadd.f32 %v829, %v1034
    %v1036 = vpop.f32.mrb[0].mxu0
    %v1037 = vadd.f32 %v833, %v1036
    %1038 = vmatprep.mubr.bf16.mxu0 %v818
    %1039 = vmatmul.mubr.bf16.gmra.mrb[0].mxu0 %v817
    %v1040 = vpop.f32.mrb[0].mxu0
    %v1041 = vadd.f32 %v829, %v1040
    %v1042 = vpop.f32.mrb[0].mxu0
    %v1043 = vadd.f32 %v833, %v1042
    %v1044 = vpop.f32.mrb[0].mxu0
    %v1045 = vadd.f32 %v829, %v1044
    %v1046 = vpop.f32.mrb[0].mxu0
    %v1047 = vadd.f32 %v833, %v1046
    %1048 = vmatprep.mubr.bf16.mxu0 %v820
    %1049 = vmatmul.mubr.bf16.gmra.mrb[0].mxu0 %v819
    %v1050 = vpop.f32.mrb[0].mxu0
    %v1051 = vadd.f32 %v829, %v1050
    %v1052 = vpop.f32.mrb[0].mxu0
    %v1053 = vadd.f32 %v833, %v1052
    %v1054 = vpop.f32.mrb[0].mxu0
    %v1055 = vadd.f32 %v829, %v1054
    %v1056 = vpop.f32.mrb[0].mxu0
    %v1057 = vadd.f32 %v833, %v1056
    %1058 = vmatprep.mubr.bf16.mxu0 %v822
    %1059 = vmatmul.mubr.bf16.gmra.mrb[0].mxu0 %v821
    %v1060 = vpop.f32.mrb[0].mxu0
    %v1061 = vadd.f32 %v829, %v1060
    %v1062 = vpop.f32.mrb[0].mxu0
    %v1063 = vadd.f32 %v833, %v1062
    %v1064 = vpop.f32.mrb[0].mxu0
    %v1065 = vadd.f32 %v829, %v1064
    %v1066 = vpop.f32.mrb[0].mxu0
    %v1067 = vadd.f32 %v833, %v1066
    %1068 = vmatprep.mubr.bf16.mxu0 %v824
    %1069 = vmatmul.mubr.bf16.gmra.mrb[0].mxu0 %v823
    %v1070 = vpop.f32.mrb[0].mxu0
    %v1071 = vadd.f32 %v829, %v1070
    %v1072 = vpop.f32.mrb[0].mxu0
    %v1073 = vadd.f32 %v833, %v1072
    %v1074 = vpop.f32.mrb[0].mxu0
    %v1075 = vadd.f32 %v829, %v1074
    %v1076 = vpop.f32.mrb[0].mxu0
    %v1077 = vadd.f32 %v833, %v1076
    %1078 = vdwg.mxu0
    %v1080 = vlaneseq
    %v1081 = vshrl.u32 %v1080, 7
    %v1082 = vsub.s32 0, %v1081
    %v1083 = vrot.slane %v519, %v1082
    %v1084 = vlaneseq
    %v1085 = vshrl.u32 %v1084, 7
    %v1086 = vsub.s32 1, %v1085
    %v1087 = vrot.slane %v519, %v1086
    %v1088 = vlaneseq
    %v1089 = vshrl.u32 %v1088, 7
    %v1090 = vsub.s32 2, %v1089
    %v1091 = vrot.slane %v519, %v1090
    %v1092 = vlaneseq
    %v1093 = vshrl.u32 %v1092, 7
    %v1094 = vsub.s32 3, %v1093
    %v1095 = vrot.slane %v519, %v1094
    %v1164 = vunpack.c.l.b16 %v455
    %v1165 = vunpack.c.h.b16 %v455
    %v1166 = vunpack.c.l.b16 %v456
    %v1167 = vunpack.c.h.b16 %v456
    %v1168 = vunpack.c.l.b16 %v457
    %v1169 = vunpack.c.h.b16 %v457
    %v1170 = vunpack.c.l.b16 %v458
    %v1171 = vunpack.c.h.b16 %v458
    %v1172 = vunpack.c.l.b16 %v459
    %v1173 = vunpack.c.h.b16 %v459
    %v1174 = vunpack.c.l.b16 %v460
    %v1175 = vunpack.c.h.b16 %v460
    %v1176 = vunpack.c.l.b16 %v461
    %v1177 = vunpack.c.h.b16 %v461
    %v1178 = vunpack.c.l.b16 %v462
    %v1179 = vunpack.c.h.b16 %v462
    %v1180 = vunpack.c.l.b16 %v463
    %v1181 = vunpack.c.h.b16 %v463
    %v1182 = vunpack.c.l.b16 %v464
    %v1183 = vunpack.c.h.b16 %v464
    %v1184 = vunpack.c.l.b16 %v465
    %v1185 = vunpack.c.h.b16 %v465
    %v1186 = vunpack.c.l.b16 %v466
    %v1187 = vunpack.c.h.b16 %v466
    %v1188 = vunpack.c.l.b16 %v467
    %v1189 = vunpack.c.h.b16 %v467
    %v1190 = vunpack.c.l.b16 %v468
    %v1191 = vunpack.c.h.b16 %v468
    %v1192 = vunpack.c.l.b16 %v469
    %v1193 = vunpack.c.h.b16 %v469
    %v1194 = vunpack.c.l.b16 %v470
    %v1195 = vunpack.c.h.b16 %v470
    %v1196 = vunpack.c.l.b16 %v471
    %v1197 = vunpack.c.h.b16 %v471
    %v1198 = vunpack.c.l.b16 %v472
    %v1199 = vunpack.c.h.b16 %v472
    %v1200 = vunpack.c.l.b16 %v473
    %v1201 = vunpack.c.h.b16 %v473
    %v1202 = vunpack.c.l.b16 %v474
    %v1203 = vunpack.c.h.b16 %v474
    %v1204 = vunpack.c.l.b16 %v475
    %v1205 = vunpack.c.h.b16 %v475
    %v1206 = vunpack.c.l.b16 %v476
    %v1207 = vunpack.c.h.b16 %v476
    %v1208 = vunpack.c.l.b16 %v477
    %v1209 = vunpack.c.h.b16 %v477
    %v1210 = vunpack.c.l.b16 %v478
    %v1211 = vunpack.c.h.b16 %v478
    %v1212 = vunpack.c.l.b16 %v479
    %v1213 = vunpack.c.h.b16 %v479
    %v1214 = vunpack.c.l.b16 %v480
    %v1215 = vunpack.c.h.b16 %v480
    %v1216 = vunpack.c.l.b16 %v481
    %v1217 = vunpack.c.h.b16 %v481
    %v1218 = vunpack.c.l.b16 %v482
    %v1219 = vunpack.c.h.b16 %v482
    %v1220 = vunpack.c.l.b16 %v483
    %v1221 = vunpack.c.h.b16 %v483
    %v1222 = vunpack.c.l.b16 %v484
    %v1223 = vunpack.c.h.b16 %v484
    %v1224 = vunpack.c.l.b16 %v485
    %v1225 = vunpack.c.h.b16 %v485
    %v1226 = vunpack.c.l.b16 %v486
    %v1227 = vunpack.c.h.b16 %v486
    %v1228 = vunpack.c.l.b16 %v487
    %v1229 = vunpack.c.h.b16 %v487
    %v1230 = vunpack.c.l.b16 %v488
    %v1231 = vunpack.c.h.b16 %v488
    %v1232 = vunpack.c.l.b16 %v489
    %v1233 = vunpack.c.h.b16 %v489
    %v1234 = vunpack.c.l.b16 %v490
    %v1235 = vunpack.c.h.b16 %v490
    %v1236 = vunpack.c.l.b16 %v491
    %v1237 = vunpack.c.h.b16 %v491
    %v1238 = vunpack.c.l.b16 %v492
    %v1239 = vunpack.c.h.b16 %v492
    %v1240 = vunpack.c.l.b16 %v493
    %v1241 = vunpack.c.h.b16 %v493
    %v1242 = vunpack.c.l.b16 %v494
    %v1243 = vunpack.c.h.b16 %v494
    %v1244 = vunpack.c.l.b16 %v495
    %v1245 = vunpack.c.h.b16 %v495
    %v1246 = vunpack.c.l.b16 %v496
    %v1247 = vunpack.c.h.b16 %v496
    %v1248 = vunpack.c.l.b16 %v497
    %v1249 = vunpack.c.h.b16 %v497
    %v1250 = vunpack.c.l.b16 %v498
    %v1251 = vunpack.c.h.b16 %v498
    %v1252 = vunpack.c.l.b16 %v499
    %v1253 = vunpack.c.h.b16 %v499
    %v1254 = vunpack.c.l.b16 %v500
    %v1255 = vunpack.c.h.b16 %v500
    %v1256 = vunpack.c.l.b16 %v501
    %v1257 = vunpack.c.h.b16 %v501
    %v1258 = vunpack.c.l.b16 %v502
    %v1259 = vunpack.c.h.b16 %v502
    %v1260 = vunpack.c.l.b16 %v503
    %v1261 = vunpack.c.h.b16 %v503
    %v1262 = vunpack.c.l.b16 %v504
    %v1263 = vunpack.c.h.b16 %v504
    %v1264 = vunpack.c.l.b16 %v505
    %v1265 = vunpack.c.h.b16 %v505
    %v1266 = vunpack.c.l.b16 %v506
    %v1267 = vunpack.c.h.b16 %v506
    %v1268 = vunpack.c.l.b16 %v507
    %v1269 = vunpack.c.h.b16 %v507
    %v1270 = vunpack.c.l.b16 %v508
    %v1271 = vunpack.c.h.b16 %v508
    %v1272 = vunpack.c.l.b16 %v509
    %v1273 = vunpack.c.h.b16 %v509
    %v1274 = vunpack.c.l.b16 %v510
    %v1275 = vunpack.c.h.b16 %v510
    %v1276 = vunpack.c.l.b16 %v511
    %v1277 = vunpack.c.h.b16 %v511
    %v1278 = vunpack.c.l.b16 %v512
    %v1279 = vunpack.c.h.b16 %v512
    %v1280 = vunpack.c.l.b16 %v513
    %v1281 = vunpack.c.h.b16 %v513
    %v1282 = vunpack.c.l.b16 %v514
    %v1283 = vunpack.c.h.b16 %v514
    %v1284 = vunpack.c.l.b16 %v515
    %v1285 = vunpack.c.h.b16 %v515
    %v1286 = vunpack.c.l.b16 %v516
    %v1287 = vunpack.c.h.b16 %v516
    %v1288 = vunpack.c.l.b16 %v517
    %v1289 = vunpack.c.h.b16 %v517
    %v1290 = vunpack.c.l.b16 %v518
    %v1291 = vunpack.c.h.b16 %v518
    %v1292 = vpack.c.b16 %v1168, %v1164
    %v1293 = vpack.c.b16 %v1169, %v1165
    %v1294 = vpack.c.b16 %v1170, %v1166
    %v1295 = vpack.c.b16 %v1171, %v1167
    %v1296 = vpack.c.b16 %v1176, %v1172
    %v1297 = vpack.c.b16 %v1177, %v1173
    %v1298 = vpack.c.b16 %v1178, %v1174
    %v1299 = vpack.c.b16 %v1179, %v1175
    %v1300 = vpack.c.b16 %v1184, %v1180
    %v1301 = vpack.c.b16 %v1185, %v1181
    %v1302 = vpack.c.b16 %v1186, %v1182
    %v1303 = vpack.c.b16 %v1187, %v1183
    %v1304 = vpack.c.b16 %v1192, %v1188
    %v1305 = vpack.c.b16 %v1193, %v1189
    %v1306 = vpack.c.b16 %v1194, %v1190
    %v1307 = vpack.c.b16 %v1195, %v1191
    %v1308 = vpack.c.b16 %v1200, %v1196
    %v1309 = vpack.c.b16 %v1201, %v1197
    %v1310 = vpack.c.b16 %v1202, %v1198
    %v1311 = vpack.c.b16 %v1203, %v1199
    %v1312 = vpack.c.b16 %v1208, %v1204
    %v1313 = vpack.c.b16 %v1209, %v1205
    %v1314 = vpack.c.b16 %v1210, %v1206
    %v1315 = vpack.c.b16 %v1211, %v1207
    %v1316 = vpack.c.b16 %v1216, %v1212
    %v1317 = vpack.c.b16 %v1217, %v1213
    %v1318 = vpack.c.b16 %v1218, %v1214
    %v1319 = vpack.c.b16 %v1219, %v1215
    %v1320 = vpack.c.b16 %v1224, %v1220
    %v1321 = vpack.c.b16 %v1225, %v1221
    %v1322 = vpack.c.b16 %v1226, %v1222
    %v1323 = vpack.c.b16 %v1227, %v1223
    %v1324 = vpack.c.b16 %v1232, %v1228
    %v1325 = vpack.c.b16 %v1233, %v1229
    %v1326 = vpack.c.b16 %v1234, %v1230
    %v1327 = vpack.c.b16 %v1235, %v1231
    %v1328 = vpack.c.b16 %v1240, %v1236
    %v1329 = vpack.c.b16 %v1241, %v1237
    %v1330 = vpack.c.b16 %v1242, %v1238
    %v1331 = vpack.c.b16 %v1243, %v1239
    %v1332 = vpack.c.b16 %v1248, %v1244
    %v1333 = vpack.c.b16 %v1249, %v1245
    %v1334 = vpack.c.b16 %v1250, %v1246
    %v1335 = vpack.c.b16 %v1251, %v1247
    %v1336 = vpack.c.b16 %v1256, %v1252
    %v1337 = vpack.c.b16 %v1257, %v1253
    %v1338 = vpack.c.b16 %v1258, %v1254
    %v1339 = vpack.c.b16 %v1259, %v1255
    %v1340 = vpack.c.b16 %v1264, %v1260
    %v1341 = vpack.c.b16 %v1265, %v1261
    %v1342 = vpack.c.b16 %v1266, %v1262
    %v1343 = vpack.c.b16 %v1267, %v1263
    %v1344 = vpack.c.b16 %v1272, %v1268
    %v1345 = vpack.c.b16 %v1273, %v1269
    %v1346 = vpack.c.b16 %v1274, %v1270
    %v1347 = vpack.c.b16 %v1275, %v1271
    %v1348 = vpack.c.b16 %v1280, %v1276
    %v1349 = vpack.c.b16 %v1281, %v1277
    %v1350 = vpack.c.b16 %v1282, %v1278
    %v1351 = vpack.c.b16 %v1283, %v1279
    %v1352 = vpack.c.b16 %v1288, %v1284
    %v1353 = vpack.c.b16 %v1289, %v1285
    %v1354 = vpack.c.b16 %v1290, %v1286
    %v1355 = vpack.c.b16 %v1291, %v1287
    %1420 = vmatprep.subr.bf16.mxu0 %v1293
    %1421 = vmatpush1.bf16.msra.mxu0 %v1292
    %1422 = vmatprep.subr.bf16.mxu0 %v1297
    %1423 = vmatpush1.bf16.msra.mxu0 %v1296
    %1424 = vmatprep.subr.bf16.mxu0 %v1301
    %1425 = vmatpush1.bf16.msra.mxu0 %v1300
    %1426 = vmatprep.subr.bf16.mxu0 %v1305
    %1427 = vmatpush1.bf16.msra.mxu0 %v1304
    %1428 = vmatprep.subr.bf16.mxu0 %v1309
    %1429 = vmatpush1.bf16.msra.mxu0 %v1308
    %1430 = vmatprep.subr.bf16.mxu0 %v1313
    %1431 = vmatpush1.bf16.msra.mxu0 %v1312
    %1432 = vmatprep.subr.bf16.mxu0 %v1317
    %1433 = vmatpush1.bf16.msra.mxu0 %v1316
    %1434 = vmatprep.subr.bf16.mxu0 %v1321
    %1435 = vmatpush1.bf16.msra.mxu0 %v1320
    %1436 = vmatprep.subr.bf16.mxu0 %v1325
    %1437 = vmatpush1.bf16.msra.mxu0 %v1324
    %1438 = vmatprep.subr.bf16.mxu0 %v1329
    %1439 = vmatpush1.bf16.msra.mxu0 %v1328
    %1440 = vmatprep.subr.bf16.mxu0 %v1333
    %1441 = vmatpush1.bf16.msra.mxu0 %v1332
    %1442 = vmatprep.subr.bf16.mxu0 %v1337
    %1443 = vmatpush1.bf16.msra.mxu0 %v1336
    %1444 = vmatprep.subr.bf16.mxu0 %v1341
    %1445 = vmatpush1.bf16.msra.mxu0 %v1340
    %1446 = vmatprep.subr.bf16.mxu0 %v1345
    %1447 = vmatpush1.bf16.msra.mxu0 %v1344
    %1448 = vmatprep.subr.bf16.mxu0 %v1349
    %1449 = vmatpush1.bf16.msra.mxu0 %v1348
    %1450 = vmatprep.subr.bf16.mxu0 %v1353
    %1451 = vmatpush1.bf16.msra.mxu0 %v1352
    %1452 = vmatprep.mubr.bf16.mxu0 %v816
    %1453 = vmatmul.mubr.bf16.gmra.mrb[0].mxu0 %v815
    %v1454 = vpop.f32.mrb[0].mxu0
    %v1455 = vadd.f32 %v1083, %v1454
    %v1456 = vpop.f32.mrb[0].mxu0
    %v1457 = vadd.f32 %v1087, %v1456
    %v1458 = vpop.f32.mrb[0].mxu0
    %v1459 = vadd.f32 %v1083, %v1458
    %v1460 = vpop.f32.mrb[0].mxu0
    %v1461 = vadd.f32 %v1087, %v1460
    %1462 = vmatprep.mubr.bf16.mxu0 %v818
    %1463 = vmatmul.mubr.bf16.gmra.mrb[0].mxu0 %v817
    %v1464 = vpop.f32.mrb[0].mxu0
    %v1465 = vadd.f32 %v1083, %v1464
    %v1466 = vpop.f32.mrb[0].mxu0
    %v1467 = vadd.f32 %v1087, %v1466
    %v1468 = vpop.f32.mrb[0].mxu0
    %v1469 = vadd.f32 %v1083, %v1468
    %v1470 = vpop.f32.mrb[0].mxu0
    %v1471 = vadd.f32 %v1087, %v1470
    %1472 = vmatprep.mubr.bf16.mxu0 %v820
    %1473 = vmatmul.mubr.bf16.gmra.mrb[0].mxu0 %v819
    %v1474 = vpop.f32.mrb[0].mxu0
    %v1475 = vadd.f32 %v1083, %v1474
    %v1476 = vpop.f32.mrb[0].mxu0
    %v1477 = vadd.f32 %v1087, %v1476
    %v1478 = vpop.f32.mrb[0].mxu0
    %v1479 = vadd.f32 %v1083, %v1478
    %v1480 = vpop.f32.mrb[0].mxu0
    %v1481 = vadd.f32 %v1087, %v1480
    %1482 = vmatprep.mubr.bf16.mxu0 %v822
    %1483 = vmatmul.mubr.bf16.gmra.mrb[0].mxu0 %v821
    %v1484 = vpop.f32.mrb[0].mxu0
    %v1485 = vadd.f32 %v1083, %v1484
    %v1486 = vpop.f32.mrb[0].mxu0
    %v1487 = vadd.f32 %v1087, %v1486
    %v1488 = vpop.f32.mrb[0].mxu0
    %v1489 = vadd.f32 %v1083, %v1488
    %v1490 = vpop.f32.mrb[0].mxu0
    %v1491 = vadd.f32 %v1087, %v1490
    %1492 = vmatprep.mubr.bf16.mxu0 %v824
    %1493 = vmatmul.mubr.bf16.gmra.mrb[0].mxu0 %v823
    %v1494 = vpop.f32.mrb[0].mxu0
    %v1495 = vadd.f32 %v1083, %v1494
    %v1496 = vpop.f32.mrb[0].mxu0
    %v1497 = vadd.f32 %v1087, %v1496
    %v1498 = vpop.f32.mrb[0].mxu0
    %v1499 = vadd.f32 %v1083, %v1498
    %v1500 = vpop.f32.mrb[0].mxu0
    %v1501 = vadd.f32 %v1087, %v1500
    %1502 = vdwg.mxu0
    %1503 = vmatprep.subr.bf16.mxu0 %v1295
    %1504 = vmatpush1.bf16.msra.mxu0 %v1294
    %1505 = vmatprep.subr.bf16.mxu0 %v1299
    %1506 = vmatpush1.bf16.msra.mxu0 %v1298
    %1507 = vmatprep.subr.bf16.mxu0 %v1303
    %1508 = vmatpush1.bf16.msra.mxu0 %v1302
    %1509 = vmatprep.subr.bf16.mxu0 %v1307
    %1510 = vmatpush1.bf16.msra.mxu0 %v1306
    %1511 = vmatprep.subr.bf16.mxu0 %v1311
    %1512 = vmatpush1.bf16.msra.mxu0 %v1310
    %1513 = vmatprep.subr.bf16.mxu0 %v1315
    %1514 = vmatpush1.bf16.msra.mxu0 %v1314
    %1515 = vmatprep.subr.bf16.mxu0 %v1319
    %1516 = vmatpush1.bf16.msra.mxu0 %v1318
    %1517 = vmatprep.subr.bf16.mxu0 %v1323
    %1518 = vmatpush1.bf16.msra.mxu0 %v1322
    %1519 = vmatprep.subr.bf16.mxu0 %v1327
    %1520 = vmatpush1.bf16.msra.mxu0 %v1326
    %1521 = vmatprep.subr.bf16.mxu0 %v1331
    %1522 = vmatpush1.bf16.msra.mxu0 %v1330
    %1523 = vmatprep.subr.bf16.mxu0 %v1335
    %1524 = vmatpush1.bf16.msra.mxu0 %v1334
    %1525 = vmatprep.subr.bf16.mxu0 %v1339
    %1526 = vmatpush1.bf16.msra.mxu0 %v1338
    %1527 = vmatprep.subr.bf16.mxu0 %v1343
    %1528 = vmatpush1.bf16.msra.mxu0 %v1342
    %1529 = vmatprep.subr.bf16.mxu0 %v1347
    %1530 = vmatpush1.bf16.msra.mxu0 %v1346
    %1531 = vmatprep.subr.bf16.mxu0 %v1351
    %1532 = vmatpush1.bf16.msra.mxu0 %v1350
    %1533 = vmatprep.subr.bf16.mxu0 %v1355
    %1534 = vmatpush1.bf16.msra.mxu0 %v1354
    %1535 = vmatprep.mubr.bf16.mxu0 %v816
    %1536 = vmatmul.mubr.bf16.gmra.mrb[0].mxu0 %v815
    %v1537 = vpop.f32.mrb[0].mxu0
    %v1538 = vadd.f32 %v1091, %v1537
    %v1539 = vpop.f32.mrb[0].mxu0
    %v1540 = vadd.f32 %v1095, %v1539
    %v1541 = vpop.f32.mrb[0].mxu0
    %v1542 = vadd.f32 %v1091, %v1541
    %v1543 = vpop.f32.mrb[0].mxu0
    %v1544 = vadd.f32 %v1095, %v1543
    %1545 = vmatprep.mubr.bf16.mxu0 %v818
    %1546 = vmatmul.mubr.bf16.gmra.mrb[0].mxu0 %v817
    %v1547 = vpop.f32.mrb[0].mxu0
    %v1548 = vadd.f32 %v1091, %v1547
    %v1549 = vpop.f32.mrb[0].mxu0
    %v1550 = vadd.f32 %v1095, %v1549
    %v1551 = vpop.f32.mrb[0].mxu0
    %v1552 = vadd.f32 %v1091, %v1551
    %v1553 = vpop.f32.mrb[0].mxu0
    %v1554 = vadd.f32 %v1095, %v1553
    %1555 = vmatprep.mubr.bf16.mxu0 %v820
    %1556 = vmatmul.mubr.bf16.gmra.mrb[0].mxu0 %v819
    %v1557 = vpop.f32.mrb[0].mxu0
    %v1558 = vadd.f32 %v1091, %v1557
    %v1559 = vpop.f32.mrb[0].mxu0
    %v1560 = vadd.f32 %v1095, %v1559
    %v1561 = vpop.f32.mrb[0].mxu0
    %v1562 = vadd.f32 %v1091, %v1561
    %v1563 = vpop.f32.mrb[0].mxu0
    %v1564 = vadd.f32 %v1095, %v1563
    %1565 = vmatprep.mubr.bf16.mxu0 %v822
    %1566 = vmatmul.mubr.bf16.gmra.mrb[0].mxu0 %v821
    %v1567 = vpop.f32.mrb[0].mxu0
    %v1568 = vadd.f32 %v1091, %v1567
    %v1569 = vpop.f32.mrb[0].mxu0
    %v1570 = vadd.f32 %v1095, %v1569
    %v1571 = vpop.f32.mrb[0].mxu0
    %v1572 = vadd.f32 %v1091, %v1571
    %v1573 = vpop.f32.mrb[0].mxu0
    %v1574 = vadd.f32 %v1095, %v1573
    %1575 = vmatprep.mubr.bf16.mxu0 %v824
    %1576 = vmatmul.mubr.bf16.gmra.mrb[0].mxu0 %v823
    %v1577 = vpop.f32.mrb[0].mxu0
    %v1578 = vadd.f32 %v1091, %v1577
    %v1579 = vpop.f32.mrb[0].mxu0
    %v1580 = vadd.f32 %v1095, %v1579
    %v1581 = vpop.f32.mrb[0].mxu0
    %v1582 = vadd.f32 %v1091, %v1581
    %v1583 = vpop.f32.mrb[0].mxu0
    %v1584 = vadd.f32 %v1095, %v1583
    %1585 = vdwg.mxu0
    %v1586 = vpack.c.bf16 %v1031, %v1031
    %v1587 = vpack.c.bf16 %v1035, %v1035
    %v1588 = vpack.c.bf16 %v1469, %v1465
    %v1589 = vpack.c.bf16 %v1479, %v1475
    %v1590 = vpack.c.bf16 %v1489, %v1485
    %v1591 = vpack.c.bf16 %v1499, %v1495
    %v1592 = vpack.c.bf16 %v1552, %v1548
    %v1593 = vpack.c.bf16 %v1562, %v1558
    %v1594 = vpack.c.bf16 %v1572, %v1568
    %v1595 = vpack.c.bf16 %v1582, %v1578
    %1596 = vmatprep.subr.bf16.mxu0 0
    %1597 = vmatpush1.bf16.xpose.msra.mxu0 %v1588
    %1598 = vmatprep.subr.bf16.mxu0 0
    %1599 = vmatpush1.bf16.xpose.msra.mxu0 %v1589
    %1600 = vmatprep.subr.bf16.mxu0 0
    %1601 = vmatpush1.bf16.xpose.msra.mxu0 0
    %1602 = vmatprep.subr.bf16.mxu0 0
    %1603 = vmatpush1.bf16.xpose.msra.mxu0 0
    %1604 = vmatprep.subr.bf16.mxu0 0
    %1605 = vmatpush1.bf16.xpose.msra.mxu0 0
    %1606 = vmatprep.subr.bf16.mxu0 0
    %1607 = vmatpush1.bf16.xpose.msra.mxu0 0
    %1608 = vmatprep.subr.bf16.mxu0 0
    %1609 = vmatpush1.bf16.xpose.msra.mxu0 0
    %1610 = vmatprep.subr.bf16.mxu0 0
    %1611 = vmatpush1.bf16.xpose.msra.mxu0 0
    %1612 = vmatprep.subr.bf16.mxu0 0
    %1613 = vmatpush1.bf16.xpose.msra.mxu0 0
    %1614 = vmatprep.subr.bf16.mxu0 0
    %1615 = vmatpush1.bf16.xpose.msra.mxu0 0
    %1616 = vmatprep.subr.bf16.mxu0 0
    %1617 = vmatpush1.bf16.xpose.msra.mxu0 0
    %1618 = vmatprep.subr.bf16.mxu0 0
    %1619 = vmatpush1.bf16.xpose.msra.mxu0 0
    %1620 = vmatprep.subr.bf16.mxu0 0
    %1621 = vmatpush1.bf16.xpose.msra.mxu0 0
    %1622 = vmatprep.subr.bf16.mxu0 0
    %1623 = vmatpush1.bf16.xpose.msra.mxu0 0
    %1624 = vmatprep.subr.bf16.mxu0 0
    %1625 = vmatpush1.bf16.xpose.msra.mxu0 0
    %1626 = vmatprep.subr.bf16.mxu0 0
    %1627 = vmatpush1.bf16.xpose.msra.mxu0 0
    %1628 = vmatprep.mubr.bf16.mxu0 0
    %1629 = vmatmul.mubr.bf16.gmra.mrb[0].mxu0 %v1586
    %v1630 = vpop.f32.mrb[0].mxu0
    %v1631 = vadd.f32 0.0, %v1630
    %v1632 = vpop.f32.mrb[0].mxu0
    %v1633 = vpop.f32.mrb[0].mxu0
    %v1634 = vpop.f32.mrb[0].mxu0
    %1635 = vdwg.mxu0
    %1636 = vmatprep.subr.bf16.mxu0 0
    %1637 = vmatpush1.bf16.xpose.msra.mxu0 %v1590
    %1638 = vmatprep.subr.bf16.mxu0 0
    %1639 = vmatpush1.bf16.xpose.msra.mxu0 %v1591
    %1640 = vmatprep.subr.bf16.mxu0 0
    %1641 = vmatpush1.bf16.xpose.msra.mxu0 0
    %1642 = vmatprep.subr.bf16.mxu0 0
    %1643 = vmatpush1.bf16.xpose.msra.mxu0 0
    %1644 = vmatprep.subr.bf16.mxu0 0
    %1645 = vmatpush1.bf16.xpose.msra.mxu0 0
    %1646 = vmatprep.subr.bf16.mxu0 0
    %1647 = vmatpush1.bf16.xpose.msra.mxu0 0
    %1648 = vmatprep.subr.bf16.mxu0 0
    %1649 = vmatpush1.bf16.xpose.msra.mxu0 0
    %1650 = vmatprep.subr.bf16.mxu0 0
    %1651 = vmatpush1.bf16.xpose.msra.mxu0 0
    %1652 = vmatprep.subr.bf16.mxu0 0
    %1653 = vmatpush1.bf16.xpose.msra.mxu0 0
    %1654 = vmatprep.subr.bf16.mxu0 0
    %1655 = vmatpush1.bf16.xpose.msra.mxu0 0
    %1656 = vmatprep.subr.bf16.mxu0 0
    %1657 = vmatpush1.bf16.xpose.msra.mxu0 0
    %1658 = vmatprep.subr.bf16.mxu0 0
    %1659 = vmatpush1.bf16.xpose.msra.mxu0 0
    %1660 = vmatprep.subr.bf16.mxu0 0
    %1661 = vmatpush1.bf16.xpose.msra.mxu0 0
    %1662 = vmatprep.subr.bf16.mxu0 0
    %1663 = vmatpush1.bf16.xpose.msra.mxu0 0
    %1664 = vmatprep.subr.bf16.mxu0 0
    %1665 = vmatpush1.bf16.xpose.msra.mxu0 0
    %1666 = vmatprep.subr.bf16.mxu0 0
    %1667 = vmatpush1.bf16.xpose.msra.mxu0 0
    %1668 = vmatprep.mubr.bf16.mxu0 0
    %1669 = vmatmul.mubr.bf16.gmra.mrb[0].mxu0 %v1587
    %v1670 = vpop.f32.mrb[0].mxu0
    %v1671 = vadd.f32 0.0, %v1670
    %v1672 = vpop.f32.mrb[0].mxu0
    %v1673 = vpop.f32.mrb[0].mxu0
    %v1674 = vpop.f32.mrb[0].mxu0
    %1675 = vdwg.mxu0
    %vm1676 = vcmask 261120
    %v1677 = vsel %vm1676, %v1631, -inf
    %1678 = vmax.xlane.f32.xlu0 %v1677
    %v1679 = vpop.xlane.xlu0 %1678
    %v1680 = vsel %vm1676, %v1671, -inf
    %1681 = vmax.xlane.f32.xlu0 %v1680
    %v1682 = vpop.xlane.xlu0 %1681
    %v1683 = vsub.f32 %v1631, %v1679
    %v1684 = vsub.f32 %v1671, %v1682
    %v1685 = vmul.f32 %v1683, 1.442695
    %v1686 = vpow.pop %v1685
    %v1687 = vmul.f32 %v1684, 1.442695
    %v1688 = vpow.pop %v1687
    %v1689 = vsel %vm1676, %v1686, 0.0
    %1690 = vadd.xlane.f32.xlu0 %v1689
    %v1691 = vpop.xlane.xlu0 %1690
    %v1692 = vsel %vm1676, %v1688, 0.0
    %1693 = vadd.xlane.f32.xlu0 %v1692
    %v1694 = vpop.xlane.xlu0 %1693
    %v1695 = vrcp.pop %v1691
    %v1696 = vrcp.pop %v1694
    %v1697 = vmul.f32 %v1686, %v1695
    %v1698 = vmul.f32 %v1688, %v1696
    %v1699 = vpack.c.bf16 %v1697, %v1697
    %v1700 = vpack.c.bf16 %v1698, %v1698
    %v1702 = vsel %vm1676, %v1699, 0
    %1704 = vmatprep.subr.bf16.mxu0 0
    %1705 = vmatpush1.bf16.msra.mxu0 %v1592
    %1706 = vmatprep.subr.bf16.mxu0 0
    %1707 = vmatpush1.bf16.msra.mxu0 %v1593
    %1708 = vmatprep.subr.bf16.mxu0 0
    %1709 = vmatpush1.bf16.msra.mxu0 0
    %1710 = vmatprep.subr.bf16.mxu0 0
    %1711 = vmatpush1.bf16.msra.mxu0 0
    %1712 = vmatprep.subr.bf16.mxu0 0
    %1713 = vmatpush1.bf16.msra.mxu0 0
    %1714 = vmatprep.subr.bf16.mxu0 0
    %1715 = vmatpush1.bf16.msra.mxu0 0
    %1716 = vmatprep.subr.bf16.mxu0 0
    %1717 = vmatpush1.bf16.msra.mxu0 0
    %1718 = vmatprep.subr.bf16.mxu0 0
    %1719 = vmatpush1.bf16.msra.mxu0 0
    %1720 = vmatprep.subr.bf16.mxu0 0
    %1721 = vmatpush1.bf16.msra.mxu0 0
    %1722 = vmatprep.subr.bf16.mxu0 0
    %1723 = vmatpush1.bf16.msra.mxu0 0
    %1724 = vmatprep.subr.bf16.mxu0 0
    %1725 = vmatpush1.bf16.msra.mxu0 0
    %1726 = vmatprep.subr.bf16.mxu0 0
    %1727 = vmatpush1.bf16.msra.mxu0 0
    %1728 = vmatprep.subr.bf16.mxu0 0
    %1729 = vmatpush1.bf16.msra.mxu0 0
    %1730 = vmatprep.subr.bf16.mxu0 0
    %1731 = vmatpush1.bf16.msra.mxu0 0
    %1732 = vmatprep.subr.bf16.mxu0 0
    %1733 = vmatpush1.bf16.msra.mxu0 0
    %1734 = vmatprep.subr.bf16.mxu0 0
    %1735 = vmatpush1.bf16.msra.mxu0 0
    %1736 = vmatprep.mubr.bf16.mxu0 0
    %1737 = vmatmul.mubr.bf16.gmra.mrb[0].mxu0 %v1702
    %v1738 = vpop.f32.mrb[0].mxu0
    %v1739 = vadd.f32 0.0, %v1738
    %v1740 = vpop.f32.mrb[0].mxu0
    %v1741 = vpop.f32.mrb[0].mxu0
    %v1742 = vpop.f32.mrb[0].mxu0
    %1743 = vdwg.mxu0
    %v1745 = vsel %vm1676, %v1700, 0
    %1747 = vmatprep.subr.bf16.mxu0 0
    %1748 = vmatpush1.bf16.msra.mxu0 %v1594
    %1749 = vmatprep.subr.bf16.mxu0 0
    %1750 = vmatpush1.bf16.msra.mxu0 %v1595
    %1751 = vmatprep.subr.bf16.mxu0 0
    %1752 = vmatpush1.bf16.msra.mxu0 0
    %1753 = vmatprep.subr.bf16.mxu0 0
    %1754 = vmatpush1.bf16.msra.mxu0 0
    %1755 = vmatprep.subr.bf16.mxu0 0
    %1756 = vmatpush1.bf16.msra.mxu0 0
    %1757 = vmatprep.subr.bf16.mxu0 0
    %1758 = vmatpush1.bf16.msra.mxu0 0
    %1759 = vmatprep.subr.bf16.mxu0 0
    %1760 = vmatpush1.bf16.msra.mxu0 0
    %1761 = vmatprep.subr.bf16.mxu0 0
    %1762 = vmatpush1.bf16.msra.mxu0 0
    %1763 = vmatprep.subr.bf16.mxu0 0
    %1764 = vmatpush1.bf16.msra.mxu0 0
    %1765 = vmatprep.subr.bf16.mxu0 0
    %1766 = vmatpush1.bf16.msra.mxu0 0
    %1767 = vmatprep.subr.bf16.mxu0 0
    %1768 = vmatpush1.bf16.msra.mxu0 0
    %1769 = vmatprep.subr.bf16.mxu0 0
    %1770 = vmatpush1.bf16.msra.mxu0 0
    %1771 = vmatprep.subr.bf16.mxu0 0
    %1772 = vmatpush1.bf16.msra.mxu0 0
    %1773 = vmatprep.subr.bf16.mxu0 0
    %1774 = vmatpush1.bf16.msra.mxu0 0
    %1775 = vmatprep.subr.bf16.mxu0 0
    %1776 = vmatpush1.bf16.msra.mxu0 0
    %1777 = vmatprep.subr.bf16.mxu0 0
    %1778 = vmatpush1.bf16.msra.mxu0 0
    %1779 = vmatprep.mubr.bf16.mxu0 0
    %1780 = vmatmul.mubr.bf16.gmra.mrb[0].mxu0 %v1745
    %v1781 = vpop.f32.mrb[0].mxu0
    %v1782 = vadd.f32 0.0, %v1781
    %v1783 = vpop.f32.mrb[0].mxu0
    %v1784 = vpop.f32.mrb[0].mxu0
    %v1785 = vpop.f32.mrb[0].mxu0
    %1786 = vdwg.mxu0
    %v1787 = vpack.c.bf16 %v1033, %v1033
    %v1788 = vpack.c.bf16 %v1037, %v1037
    %v1789 = vpack.c.bf16 %v1471, %v1467
    %v1790 = vpack.c.bf16 %v1481, %v1477
    %v1791 = vpack.c.bf16 %v1491, %v1487
    %v1792 = vpack.c.bf16 %v1501, %v1497
    %v1793 = vpack.c.bf16 %v1554, %v1550
    %v1794 = vpack.c.bf16 %v1564, %v1560
    %v1795 = vpack.c.bf16 %v1574, %v1570
    %v1796 = vpack.c.bf16 %v1584, %v1580
    %1797 = vmatprep.subr.bf16.mxu0 0
    %1798 = vmatpush1.bf16.xpose.msra.mxu0 %v1789
    %1799 = vmatprep.subr.bf16.mxu0 0
    %1800 = vmatpush1.bf16.xpose.msra.mxu0 %v1790
    %1801 = vmatprep.subr.bf16.mxu0 0
    %1802 = vmatpush1.bf16.xpose.msra.mxu0 0
    %1803 = vmatprep.subr.bf16.mxu0 0
    %1804 = vmatpush1.bf16.xpose.msra.mxu0 0
    %1805 = vmatprep.subr.bf16.mxu0 0
    %1806 = vmatpush1.bf16.xpose.msra.mxu0 0
    %1807 = vmatprep.subr.bf16.mxu0 0
    %1808 = vmatpush1.bf16.xpose.msra.mxu0 0
    %1809 = vmatprep.subr.bf16.mxu0 0
    %1810 = vmatpush1.bf16.xpose.msra.mxu0 0
    %1811 = vmatprep.subr.bf16.mxu0 0
    %1812 = vmatpush1.bf16.xpose.msra.mxu0 0
    %1813 = vmatprep.subr.bf16.mxu0 0
    %1814 = vmatpush1.bf16.xpose.msra.mxu0 0
    %1815 = vmatprep.subr.bf16.mxu0 0
    %1816 = vmatpush1.bf16.xpose.msra.mxu0 0
    %1817 = vmatprep.subr.bf16.mxu0 0
    %1818 = vmatpush1.bf16.xpose.msra.mxu0 0
    %1819 = vmatprep.subr.bf16.mxu0 0
    %1820 = vmatpush1.bf16.xpose.msra.mxu0 0
    %1821 = vmatprep.subr.bf16.mxu0 0
    %1822 = vmatpush1.bf16.xpose.msra.mxu0 0
    %1823 = vmatprep.subr.bf16.mxu0 0
    %1824 = vmatpush1.bf16.xpose.msra.mxu0 0
    %1825 = vmatprep.subr.bf16.mxu0 0
    %1826 = vmatpush1.bf16.xpose.msra.mxu0 0
    %1827 = vmatprep.subr.bf16.mxu0 0
    %1828 = vmatpush1.bf16.xpose.msra.mxu0 0
    %1829 = vmatprep.mubr.bf16.mxu0 0
    %1830 = vmatmul.mubr.bf16.gmra.mrb[0].mxu0 %v1787
    %v1831 = vpop.f32.mrb[0].mxu0
    %v1832 = vadd.f32 0.0, %v1831
    %v1833 = vpop.f32.mrb[0].mxu0
    %v1834 = vpop.f32.mrb[0].mxu0
    %v1835 = vpop.f32.mrb[0].mxu0
    %1836 = vdwg.mxu0
    %1837 = vmatprep.subr.bf16.mxu0 0
    %1838 = vmatpush1.bf16.xpose.msra.mxu0 %v1791
    %1839 = vmatprep.subr.bf16.mxu0 0
    %1840 = vmatpush1.bf16.xpose.msra.mxu0 %v1792
    %1841 = vmatprep.subr.bf16.mxu0 0
    %1842 = vmatpush1.bf16.xpose.msra.mxu0 0
    %1843 = vmatprep.subr.bf16.mxu0 0
    %1844 = vmatpush1.bf16.xpose.msra.mxu0 0
    %1845 = vmatprep.subr.bf16.mxu0 0
    %1846 = vmatpush1.bf16.xpose.msra.mxu0 0
    %1847 = vmatprep.subr.bf16.mxu0 0
    %1848 = vmatpush1.bf16.xpose.msra.mxu0 0
    %1849 = vmatprep.subr.bf16.mxu0 0
    %1850 = vmatpush1.bf16.xpose.msra.mxu0 0
    %1851 = vmatprep.subr.bf16.mxu0 0
    %1852 = vmatpush1.bf16.xpose.msra.mxu0 0
    %1853 = vmatprep.subr.bf16.mxu0 0
    %1854 = vmatpush1.bf16.xpose.msra.mxu0 0
    %1855 = vmatprep.subr.bf16.mxu0 0
    %1856 = vmatpush1.bf16.xpose.msra.mxu0 0
    %1857 = vmatprep.subr.bf16.mxu0 0
    %1858 = vmatpush1.bf16.xpose.msra.mxu0 0
    %1859 = vmatprep.subr.bf16.mxu0 0
    %1860 = vmatpush1.bf16.xpose.msra.mxu0 0
    %1861 = vmatprep.subr.bf16.mxu0 0
    %1862 = vmatpush1.bf16.xpose.msra.mxu0 0
    %1863 = vmatprep.subr.bf16.mxu0 0
    %1864 = vmatpush1.bf16.xpose.msra.mxu0 0
    %1865 = vmatprep.subr.bf16.mxu0 0
    %1866 = vmatpush1.bf16.xpose.msra.mxu0 0
    %1867 = vmatprep.subr.bf16.mxu0 0
    %1868 = vmatpush1.bf16.xpose.msra.mxu0 0
    %1869 = vmatprep.mubr.bf16.mxu0 0
    %1870 = vmatmul.mubr.bf16.gmra.mrb[0].mxu0 %v1788
    %v1871 = vpop.f32.mrb[0].mxu0
    %v1872 = vadd.f32 0.0, %v1871
    %v1873 = vpop.f32.mrb[0].mxu0
    %v1874 = vpop.f32.mrb[0].mxu0
    %v1875 = vpop.f32.mrb[0].mxu0
    %1876 = vdwg.mxu0
    %v1877 = vsel %vm1676, %v1832, -inf
    %1878 = vmax.xlane.f32.xlu0 %v1877
    %v1879 = vpop.xlane.xlu0 %1878
    %v1880 = vsel %vm1676, %v1872, -inf
    %1881 = vmax.xlane.f32.xlu0 %v1880
    %v1882 = vpop.xlane.xlu0 %1881
    %v1883 = vsub.f32 %v1832, %v1879
    %v1884 = vsub.f32 %v1872, %v1882
    %v1885 = vmul.f32 %v1883, 1.442695
    %v1886 = vpow.pop %v1885
    %v1887 = vmul.f32 %v1884, 1.442695
    %v1888 = vpow.pop %v1887
    %v1889 = vsel %vm1676, %v1886, 0.0
    %1890 = vadd.xlane.f32.xlu0 %v1889
    %v1891 = vpop.xlane.xlu0 %1890
    %v1892 = vsel %vm1676, %v1888, 0.0
    %1893 = vadd.xlane.f32.xlu0 %v1892
    %v1894 = vpop.xlane.xlu0 %1893
    %v1895 = vrcp.pop %v1891
    %v1896 = vrcp.pop %v1894
    %v1897 = vmul.f32 %v1886, %v1895
    %v1898 = vmul.f32 %v1888, %v1896
    %v1899 = vpack.c.bf16 %v1897, %v1897
    %v1900 = vpack.c.bf16 %v1898, %v1898
    %v1902 = vsel %vm1676, %v1899, 0
    %1904 = vmatprep.subr.bf16.mxu0 0
    %1905 = vmatpush1.bf16.msra.mxu0 %v1793
    %1906 = vmatprep.subr.bf16.mxu0 0
    %1907 = vmatpush1.bf16.msra.mxu0 %v1794
    %1908 = vmatprep.subr.bf16.mxu0 0
    %1909 = vmatpush1.bf16.msra.mxu0 0
    %1910 = vmatprep.subr.bf16.mxu0 0
    %1911 = vmatpush1.bf16.msra.mxu0 0
    %1912 = vmatprep.subr.bf16.mxu0 0
    %1913 = vmatpush1.bf16.msra.mxu0 0
    %1914 = vmatprep.subr.bf16.mxu0 0
    %1915 = vmatpush1.bf16.msra.mxu0 0
    %1916 = vmatprep.subr.bf16.mxu0 0
    %1917 = vmatpush1.bf16.msra.mxu0 0
    %1918 = vmatprep.subr.bf16.mxu0 0
    %1919 = vmatpush1.bf16.msra.mxu0 0
    %1920 = vmatprep.subr.bf16.mxu0 0
    %1921 = vmatpush1.bf16.msra.mxu0 0
    %1922 = vmatprep.subr.bf16.mxu0 0
    %1923 = vmatpush1.bf16.msra.mxu0 0
    %1924 = vmatprep.subr.bf16.mxu0 0
    %1925 = vmatpush1.bf16.msra.mxu0 0
    %1926 = vmatprep.subr.bf16.mxu0 0
    %1927 = vmatpush1.bf16.msra.mxu0 0
    %1928 = vmatprep.subr.bf16.mxu0 0
    %1929 = vmatpush1.bf16.msra.mxu0 0
    %1930 = vmatprep.subr.bf16.mxu0 0
    %1931 = vmatpush1.bf16.msra.mxu0 0
    %1932 = vmatprep.subr.bf16.mxu0 0
    %1933 = vmatpush1.bf16.msra.mxu0 0
    %1934 = vmatprep.subr.bf16.mxu0 0
    %1935 = vmatpush1.bf16.msra.mxu0 0
    %1936 = vmatprep.mubr.bf16.mxu0 0
    %1937 = vmatmul.mubr.bf16.gmra.mrb[0].mxu0 %v1902
    %v1938 = vpop.f32.mrb[0].mxu0
    %v1939 = vadd.f32 0.0, %v1938
    %v1940 = vpop.f32.mrb[0].mxu0
    %v1941 = vpop.f32.mrb[0].mxu0
    %v1942 = vpop.f32.mrb[0].mxu0
    %1943 = vdwg.mxu0
    %v1945 = vsel %vm1676, %v1900, 0
    %1947 = vmatprep.subr.bf16.mxu0 0
    %1948 = vmatpush1.bf16.msra.mxu0 %v1795
    %1949 = vmatprep.subr.bf16.mxu0 0
    %1950 = vmatpush1.bf16.msra.mxu0 %v1796
    %1951 = vmatprep.subr.bf16.mxu0 0
    %1952 = vmatpush1.bf16.msra.mxu0 0
    %1953 = vmatprep.subr.bf16.mxu0 0
    %1954 = vmatpush1.bf16.msra.mxu0 0
    %1955 = vmatprep.subr.bf16.mxu0 0
    %1956 = vmatpush1.bf16.msra.mxu0 0
    %1957 = vmatprep.subr.bf16.mxu0 0
    %1958 = vmatpush1.bf16.msra.mxu0 0
    %1959 = vmatprep.subr.bf16.mxu0 0
    %1960 = vmatpush1.bf16.msra.mxu0 0
    %1961 = vmatprep.subr.bf16.mxu0 0
    %1962 = vmatpush1.bf16.msra.mxu0 0
    %1963 = vmatprep.subr.bf16.mxu0 0
    %1964 = vmatpush1.bf16.msra.mxu0 0
    %1965 = vmatprep.subr.bf16.mxu0 0
    %1966 = vmatpush1.bf16.msra.mxu0 0
    %1967 = vmatprep.subr.bf16.mxu0 0
    %1968 = vmatpush1.bf16.msra.mxu0 0
    %1969 = vmatprep.subr.bf16.mxu0 0
    %1970 = vmatpush1.bf16.msra.mxu0 0
    %1971 = vmatprep.subr.bf16.mxu0 0
    %1972 = vmatpush1.bf16.msra.mxu0 0
    %1973 = vmatprep.subr.bf16.mxu0 0
    %1974 = vmatpush1.bf16.msra.mxu0 0
    %1975 = vmatprep.subr.bf16.mxu0 0
    %1976 = vmatpush1.bf16.msra.mxu0 0
    %1977 = vmatprep.subr.bf16.mxu0 0
    %1978 = vmatpush1.bf16.msra.mxu0 0
    %1979 = vmatprep.mubr.bf16.mxu0 0
    %1980 = vmatmul.mubr.bf16.gmra.mrb[0].mxu0 %v1945
    %v1981 = vpop.f32.mrb[0].mxu0
    %v1982 = vadd.f32 0.0, %v1981
    %v1983 = vpop.f32.mrb[0].mxu0
    %v1984 = vpop.f32.mrb[0].mxu0
    %v1985 = vpop.f32.mrb[0].mxu0
    %1986 = vdwg.mxu0
    %v1987 = vpack.c.bf16 %v1045, %v1041
    %v1988 = vpack.c.bf16 %v1055, %v1051
    %v1989 = vpack.c.bf16 %v1065, %v1061
    %v1990 = vpack.c.bf16 %v1075, %v1071
    %v1991 = vpack.c.bf16 %v1455, %v1455
    %v1992 = vpack.c.bf16 %v1459, %v1459
    %v1993 = vpack.c.bf16 %v1538, %v1538
    %v1994 = vpack.c.bf16 %v1542, %v1542
    %1995 = vmatprep.subr.bf16.mxu0 0
    %1996 = vmatpush1.bf16.xpose.msra.mxu0 %v1991
    %1997 = vmatprep.subr.bf16.mxu0 0
    %1998 = vmatpush1.bf16.xpose.msra.mxu0 0
    %1999 = vmatprep.subr.bf16.mxu0 0
    %2000 = vmatpush1.bf16.xpose.msra.mxu0 0
    %2001 = vmatprep.subr.bf16.mxu0 0
    %2002 = vmatpush1.bf16.xpose.msra.mxu0 0
    %2003 = vmatprep.subr.bf16.mxu0 0
    %2004 = vmatpush1.bf16.xpose.msra.mxu0 0
    %2005 = vmatprep.subr.bf16.mxu0 0
    %2006 = vmatpush1.bf16.xpose.msra.mxu0 0
    %2007 = vmatprep.subr.bf16.mxu0 0
    %2008 = vmatpush1.bf16.xpose.msra.mxu0 0
    %2009 = vmatprep.subr.bf16.mxu0 0
    %2010 = vmatpush1.bf16.xpose.msra.mxu0 0
    %2011 = vmatprep.subr.bf16.mxu0 0
    %2012 = vmatpush1.bf16.xpose.msra.mxu0 0
    %2013 = vmatprep.subr.bf16.mxu0 0
    %2014 = vmatpush1.bf16.xpose.msra.mxu0 0
    %2015 = vmatprep.subr.bf16.mxu0 0
    %2016 = vmatpush1.bf16.xpose.msra.mxu0 0
    %2017 = vmatprep.subr.bf16.mxu0 0
    %2018 = vmatpush1.bf16.xpose.msra.mxu0 0
    %2019 = vmatprep.subr.bf16.mxu0 0
    %2020 = vmatpush1.bf16.xpose.msra.mxu0 0
    %2021 = vmatprep.subr.bf16.mxu0 0
    %2022 = vmatpush1.bf16.xpose.msra.mxu0 0
    %2023 = vmatprep.subr.bf16.mxu0 0
    %2024 = vmatpush1.bf16.xpose.msra.mxu0 0
    %2025 = vmatprep.subr.bf16.mxu0 0
    %2026 = vmatpush1.bf16.xpose.msra.mxu0 0
    %2027 = vmatprep.mubr.bf16.mxu0 0
    %2028 = vmatmul.mubr.bf16.gmra.mrb[0].mxu0 %v1987
    %v2029 = vpop.f32.mrb[0].mxu0
    %v2030 = vadd.f32 0.0, %v2029
    %v2031 = vpop.f32.mrb[0].mxu0
    %v2032 = vpop.f32.mrb[0].mxu0
    %v2033 = vadd.f32 0.0, %v2032
    %v2034 = vpop.f32.mrb[0].mxu0
    %2035 = vmatprep.mubr.bf16.mxu0 0
    %2036 = vmatmul.mubr.bf16.gmra.mrb[0].mxu0 %v1988
    %v2037 = vpop.f32.mrb[0].mxu0
    %v2038 = vadd.f32 0.0, %v2037
    %v2039 = vpop.f32.mrb[0].mxu0
    %v2040 = vpop.f32.mrb[0].mxu0
    %v2041 = vadd.f32 0.0, %v2040
    %v2042 = vpop.f32.mrb[0].mxu0
    %2043 = vdwg.mxu0
    %2044 = vmatprep.subr.bf16.mxu0 0
    %2045 = vmatpush1.bf16.xpose.msra.mxu0 %v1992
    %2046 = vmatprep.subr.bf16.mxu0 0
    %2047 = vmatpush1.bf16.xpose.msra.mxu0 0
    %2048 = vmatprep.subr.bf16.mxu0 0
    %2049 = vmatpush1.bf16.xpose.msra.mxu0 0
    %2050 = vmatprep.subr.bf16.mxu0 0
    %2051 = vmatpush1.bf16.xpose.msra.mxu0 0
    %2052 = vmatprep.subr.bf16.mxu0 0
    %2053 = vmatpush1.bf16.xpose.msra.mxu0 0
    %2054 = vmatprep.subr.bf16.mxu0 0
    %2055 = vmatpush1.bf16.xpose.msra.mxu0 0
    %2056 = vmatprep.subr.bf16.mxu0 0
    %2057 = vmatpush1.bf16.xpose.msra.mxu0 0
    %2058 = vmatprep.subr.bf16.mxu0 0
    %2059 = vmatpush1.bf16.xpose.msra.mxu0 0
    %2060 = vmatprep.subr.bf16.mxu0 0
    %2061 = vmatpush1.bf16.xpose.msra.mxu0 0
    %2062 = vmatprep.subr.bf16.mxu0 0
    %2063 = vmatpush1.bf16.xpose.msra.mxu0 0
    %2064 = vmatprep.subr.bf16.mxu0 0
    %2065 = vmatpush1.bf16.xpose.msra.mxu0 0
    %2066 = vmatprep.subr.bf16.mxu0 0
    %2067 = vmatpush1.bf16.xpose.msra.mxu0 0
    %2068 = vmatprep.subr.bf16.mxu0 0
    %2069 = vmatpush1.bf16.xpose.msra.mxu0 0
    %2070 = vmatprep.subr.bf16.mxu0 0
    %2071 = vmatpush1.bf16.xpose.msra.mxu0 0
    %2072 = vmatprep.subr.bf16.mxu0 0
    %2073 = vmatpush1.bf16.xpose.msra.mxu0 0
    %2074 = vmatprep.subr.bf16.mxu0 0
    %2075 = vmatpush1.bf16.xpose.msra.mxu0 0
    %2076 = vmatprep.mubr.bf16.mxu0 0
    %2077 = vmatmul.mubr.bf16.gmra.mrb[0].mxu0 %v1989
    %v2078 = vpop.f32.mrb[0].mxu0
    %v2079 = vadd.f32 0.0, %v2078
    %v2080 = vpop.f32.mrb[0].mxu0
    %v2081 = vpop.f32.mrb[0].mxu0
    %v2082 = vadd.f32 0.0, %v2081
    %v2083 = vpop.f32.mrb[0].mxu0
    %2084 = vmatprep.mubr.bf16.mxu0 0
    %2085 = vmatmul.mubr.bf16.gmra.mrb[0].mxu0 %v1990
    %v2086 = vpop.f32.mrb[0].mxu0
    %v2087 = vadd.f32 0.0, %v2086
    %v2088 = vpop.f32.mrb[0].mxu0
    %v2089 = vpop.f32.mrb[0].mxu0
    %v2090 = vadd.f32 0.0, %v2089
    %v2091 = vpop.f32.mrb[0].mxu0
    %2092 = vdwg.mxu0
    %vm2093 = vcmask 64512
    %v2094 = vsel %vm2093, %v2030, -inf
    %2095 = vmax.xlane.f32.xlu0 %v2094
    %v2096 = vpop.xlane.xlu0 %2095
    %v2097 = vsel %vm2093, %v2033, -inf
    %2098 = vmax.xlane.f32.xlu0 %v2097
    %v2099 = vpop.xlane.xlu0 %2098
    %v2100 = vsel %vm2093, %v2038, -inf
    %2101 = vmax.xlane.f32.xlu0 %v2100
    %v2102 = vpop.xlane.xlu0 %2101
    %v2103 = vsel %vm2093, %v2041, -inf
    %2104 = vmax.xlane.f32.xlu0 %v2103
    %v2105 = vpop.xlane.xlu0 %2104
    %v2106 = vsel %vm2093, %v2079, -inf
    %2107 = vmax.xlane.f32.xlu0 %v2106
    %v2108 = vpop.xlane.xlu0 %2107
    %v2109 = vsel %vm2093, %v2082, -inf
    %2110 = vmax.xlane.f32.xlu0 %v2109
    %v2111 = vpop.xlane.xlu0 %2110
    %v2112 = vsel %vm2093, %v2087, -inf
    %2113 = vmax.xlane.f32.xlu0 %v2112
    %v2114 = vpop.xlane.xlu0 %2113
    %v2115 = vsel %vm2093, %v2090, -inf
    %2116 = vmax.xlane.f32.xlu0 %v2115
    %v2117 = vpop.xlane.xlu0 %2116
    %v2118 = vsub.f32 %v2030, %v2096
    %v2119 = vsub.f32 %v2033, %v2099
    %v2120 = vsub.f32 %v2038, %v2102
    %v2121 = vsub.f32 %v2041, %v2105
    %v2122 = vsub.f32 %v2079, %v2108
    %v2123 = vsub.f32 %v2082, %v2111
    %v2124 = vsub.f32 %v2087, %v2114
    %v2125 = vsub.f32 %v2090, %v2117
    %v2126 = vmul.f32 %v2118, 1.442695
    %v2127 = vpow.pop %v2126
    %v2128 = vmul.f32 %v2119, 1.442695
    %v2129 = vpow.pop %v2128
    %v2130 = vmul.f32 %v2120, 1.442695
    %v2131 = vpow.pop %v2130
    %v2132 = vmul.f32 %v2121, 1.442695
    %v2133 = vpow.pop %v2132
    %v2134 = vmul.f32 %v2122, 1.442695
    %v2135 = vpow.pop %v2134
    %v2136 = vmul.f32 %v2123, 1.442695
    %v2137 = vpow.pop %v2136
    %v2138 = vmul.f32 %v2124, 1.442695
    %v2139 = vpow.pop %v2138
    %v2140 = vmul.f32 %v2125, 1.442695
    %v2141 = vpow.pop %v2140
    %v2142 = vsel %vm2093, %v2127, 0.0
    %2143 = vadd.xlane.f32.xlu0 %v2142
    %v2144 = vpop.xlane.xlu0 %2143
    %v2145 = vsel %vm2093, %v2129, 0.0
    %2146 = vadd.xlane.f32.xlu0 %v2145
    %v2147 = vpop.xlane.xlu0 %2146
    %v2148 = vsel %vm2093, %v2131, 0.0
    %2149 = vadd.xlane.f32.xlu0 %v2148
    %v2150 = vpop.xlane.xlu0 %2149
    %v2151 = vsel %vm2093, %v2133, 0.0
    %2152 = vadd.xlane.f32.xlu0 %v2151
    %v2153 = vpop.xlane.xlu0 %2152
    %v2154 = vsel %vm2093, %v2135, 0.0
    %2155 = vadd.xlane.f32.xlu0 %v2154
    %v2156 = vpop.xlane.xlu0 %2155
    %v2157 = vsel %vm2093, %v2137, 0.0
    %2158 = vadd.xlane.f32.xlu0 %v2157
    %v2159 = vpop.xlane.xlu0 %2158
    %v2160 = vsel %vm2093, %v2139, 0.0
    %2161 = vadd.xlane.f32.xlu0 %v2160
    %v2162 = vpop.xlane.xlu0 %2161
    %v2163 = vsel %vm2093, %v2141, 0.0
    %2164 = vadd.xlane.f32.xlu0 %v2163
    %v2165 = vpop.xlane.xlu0 %2164
    %v2166 = vrcp.pop %v2144
    %v2167 = vrcp.pop %v2147
    %v2168 = vrcp.pop %v2150
    %v2169 = vrcp.pop %v2153
    %v2170 = vrcp.pop %v2156
    %v2171 = vrcp.pop %v2159
    %v2172 = vrcp.pop %v2162
    %v2173 = vrcp.pop %v2165
    %v2174 = vmul.f32 %v2127, %v2166
    %v2175 = vmul.f32 %v2129, %v2167
    %v2176 = vmul.f32 %v2131, %v2168
    %v2177 = vmul.f32 %v2133, %v2169
    %v2178 = vmul.f32 %v2135, %v2170
    %v2179 = vmul.f32 %v2137, %v2171
    %v2180 = vmul.f32 %v2139, %v2172
    %v2181 = vmul.f32 %v2141, %v2173
    %v2182 = vpack.c.bf16 %v2175, %v2174
    %v2183 = vpack.c.bf16 %v2177, %v2176
    %v2184 = vpack.c.bf16 %v2179, %v2178
    %v2185 = vpack.c.bf16 %v2181, %v2180
    %v2187 = vsel %vm2093, %v2182, 0
    %v2190 = vsel %vm2093, %v2183, 0
    %vm2192 = vcmask 1043456
    %v2194 = vsel %vm2192, %v1993, 0
    %2196 = vmatprep.subr.bf16.mxu0 0
    %2197 = vmatpush1.bf16.msra.mxu0 %v2194
    %2198 = vmatprep.subr.bf16.mxu0 0
    %2199 = vmatpush1.bf16.msra.mxu0 0
    %2200 = vmatprep.subr.bf16.mxu0 0
    %2201 = vmatpush1.bf16.msra.mxu0 0
    %2202 = vmatprep.subr.bf16.mxu0 0
    %2203 = vmatpush1.bf16.msra.mxu0 0
    %2204 = vmatprep.subr.bf16.mxu0 0
    %2205 = vmatpush1.bf16.msra.mxu0 0
    %2206 = vmatprep.subr.bf16.mxu0 0
    %2207 = vmatpush1.bf16.msra.mxu0 0
    %2208 = vmatprep.subr.bf16.mxu0 0
    %2209 = vmatpush1.bf16.msra.mxu0 0
    %2210 = vmatprep.subr.bf16.mxu0 0
    %2211 = vmatpush1.bf16.msra.mxu0 0
    %2212 = vmatprep.subr.bf16.mxu0 0
    %2213 = vmatpush1.bf16.msra.mxu0 0
    %2214 = vmatprep.subr.bf16.mxu0 0
    %2215 = vmatpush1.bf16.msra.mxu0 0
    %2216 = vmatprep.subr.bf16.mxu0 0
    %2217 = vmatpush1.bf16.msra.mxu0 0
    %2218 = vmatprep.subr.bf16.mxu0 0
    %2219 = vmatpush1.bf16.msra.mxu0 0
    %2220 = vmatprep.subr.bf16.mxu0 0
    %2221 = vmatpush1.bf16.msra.mxu0 0
    %2222 = vmatprep.subr.bf16.mxu0 0
    %2223 = vmatpush1.bf16.msra.mxu0 0
    %2224 = vmatprep.subr.bf16.mxu0 0
    %2225 = vmatpush1.bf16.msra.mxu0 0
    %2226 = vmatprep.subr.bf16.mxu0 0
    %2227 = vmatpush1.bf16.msra.mxu0 0
    %2228 = vmatprep.mubr.bf16.mxu0 0
    %2229 = vmatmul.mubr.bf16.gmra.mrb[0].mxu0 %v2187
    %v2230 = vpop.f32.mrb[0].mxu0
    %v2231 = vadd.f32 0.0, %v2230
    %v2232 = vpop.f32.mrb[0].mxu0
    %v2233 = vpop.f32.mrb[0].mxu0
    %v2234 = vadd.f32 0.0, %v2233
    %v2235 = vpop.f32.mrb[0].mxu0
    %2236 = vmatprep.mubr.bf16.mxu0 0
    %2237 = vmatmul.mubr.bf16.gmra.mrb[0].mxu0 %v2190
    %v2238 = vpop.f32.mrb[0].mxu0
    %v2239 = vadd.f32 0.0, %v2238
    %v2240 = vpop.f32.mrb[0].mxu0
    %v2241 = vpop.f32.mrb[0].mxu0
    %v2242 = vadd.f32 0.0, %v2241
    %v2243 = vpop.f32.mrb[0].mxu0
    %2244 = vdwg.mxu0
    %v2246 = vsel %vm2093, %v2184, 0
    %v2249 = vsel %vm2093, %v2185, 0
    %v2252 = vsel %vm2192, %v1994, 0
    %2254 = vmatprep.subr.bf16.mxu0 0
    %2255 = vmatpush1.bf16.msra.mxu0 %v2252
    %2256 = vmatprep.subr.bf16.mxu0 0
    %2257 = vmatpush1.bf16.msra.mxu0 0
    %2258 = vmatprep.subr.bf16.mxu0 0
    %2259 = vmatpush1.bf16.msra.mxu0 0
    %2260 = vmatprep.subr.bf16.mxu0 0
    %2261 = vmatpush1.bf16.msra.mxu0 0
    %2262 = vmatprep.subr.bf16.mxu0 0
    %2263 = vmatpush1.bf16.msra.mxu0 0
    %2264 = vmatprep.subr.bf16.mxu0 0
    %2265 = vmatpush1.bf16.msra.mxu0 0
    %2266 = vmatprep.subr.bf16.mxu0 0
    %2267 = vmatpush1.bf16.msra.mxu0 0
    %2268 = vmatprep.subr.bf16.mxu0 0
    %2269 = vmatpush1.bf16.msra.mxu0 0
    %2270 = vmatprep.subr.bf16.mxu0 0
    %2271 = vmatpush1.bf16.msra.mxu0 0
    %2272 = vmatprep.subr.bf16.mxu0 0
    %2273 = vmatpush1.bf16.msra.mxu0 0
    %2274 = vmatprep.subr.bf16.mxu0 0
    %2275 = vmatpush1.bf16.msra.mxu0 0
    %2276 = vmatprep.subr.bf16.mxu0 0
    %2277 = vmatpush1.bf16.msra.mxu0 0
    %2278 = vmatprep.subr.bf16.mxu0 0
    %2279 = vmatpush1.bf16.msra.mxu0 0
    %2280 = vmatprep.subr.bf16.mxu0 0
    %2281 = vmatpush1.bf16.msra.mxu0 0
    %2282 = vmatprep.subr.bf16.mxu0 0
    %2283 = vmatpush1.bf16.msra.mxu0 0
    %2284 = vmatprep.subr.bf16.mxu0 0
    %2285 = vmatpush1.bf16.msra.mxu0 0
    %2286 = vmatprep.mubr.bf16.mxu0 0
    %2287 = vmatmul.mubr.bf16.gmra.mrb[0].mxu0 %v2246
    %v2288 = vpop.f32.mrb[0].mxu0
    %v2289 = vadd.f32 0.0, %v2288
    %v2290 = vpop.f32.mrb[0].mxu0
    %v2291 = vpop.f32.mrb[0].mxu0
    %v2292 = vadd.f32 0.0, %v2291
    %v2293 = vpop.f32.mrb[0].mxu0
    %2294 = vmatprep.mubr.bf16.mxu0 0
    %2295 = vmatmul.mubr.bf16.gmra.mrb[0].mxu0 %v2249
    %v2296 = vpop.f32.mrb[0].mxu0
    %v2297 = vadd.f32 0.0, %v2296
    %v2298 = vpop.f32.mrb[0].mxu0
    %v2299 = vpop.f32.mrb[0].mxu0
    %v2300 = vadd.f32 0.0, %v2299
    %v2301 = vpop.f32.mrb[0].mxu0
    %2302 = vdwg.mxu0
    %v2303 = vpack.c.bf16 %v1047, %v1043
    %v2304 = vpack.c.bf16 %v1057, %v1053
    %v2305 = vpack.c.bf16 %v1067, %v1063
    %v2306 = vpack.c.bf16 %v1077, %v1073
    %v2307 = vpack.c.bf16 %v1457, %v1457
    %v2308 = vpack.c.bf16 %v1461, %v1461
    %v2309 = vpack.c.bf16 %v1540, %v1540
    %v2310 = vpack.c.bf16 %v1544, %v1544
    %2311 = vmatprep.subr.bf16.mxu0 0
    %2312 = vmatpush1.bf16.xpose.msra.mxu0 %v2307
    %2313 = vmatprep.subr.bf16.mxu0 0
    %2314 = vmatpush1.bf16.xpose.msra.mxu0 0
    %2315 = vmatprep.subr.bf16.mxu0 0
    %2316 = vmatpush1.bf16.xpose.msra.mxu0 0
    %2317 = vmatprep.subr.bf16.mxu0 0
    %2318 = vmatpush1.bf16.xpose.msra.mxu0 0
    %2319 = vmatprep.subr.bf16.mxu0 0
    %2320 = vmatpush1.bf16.xpose.msra.mxu0 0
    %2321 = vmatprep.subr.bf16.mxu0 0
    %2322 = vmatpush1.bf16.xpose.msra.mxu0 0
    %2323 = vmatprep.subr.bf16.mxu0 0
    %2324 = vmatpush1.bf16.xpose.msra.mxu0 0
    %2325 = vmatprep.subr.bf16.mxu0 0
    %2326 = vmatpush1.bf16.xpose.msra.mxu0 0
    %2327 = vmatprep.subr.bf16.mxu0 0
    %2328 = vmatpush1.bf16.xpose.msra.mxu0 0
    %2329 = vmatprep.subr.bf16.mxu0 0
    %2330 = vmatpush1.bf16.xpose.msra.mxu0 0
    %2331 = vmatprep.subr.bf16.mxu0 0
    %2332 = vmatpush1.bf16.xpose.msra.mxu0 0
    %2333 = vmatprep.subr.bf16.mxu0 0
    %2334 = vmatpush1.bf16.xpose.msra.mxu0 0
    %2335 = vmatprep.subr.bf16.mxu0 0
    %2336 = vmatpush1.bf16.xpose.msra.mxu0 0
    %2337 = vmatprep.subr.bf16.mxu0 0
    %2338 = vmatpush1.bf16.xpose.msra.mxu0 0
    %2339 = vmatprep.subr.bf16.mxu0 0
    %2340 = vmatpush1.bf16.xpose.msra.mxu0 0
    %2341 = vmatprep.subr.bf16.mxu0 0
    %2342 = vmatpush1.bf16.xpose.msra.mxu0 0
    %2343 = vmatprep.mubr.bf16.mxu0 0
    %2344 = vmatmul.mubr.bf16.gmra.mrb[0].mxu0 %v2303
    %v2345 = vpop.f32.mrb[0].mxu0
    %v2346 = vadd.f32 0.0, %v2345
    %v2347 = vpop.f32.mrb[0].mxu0
    %v2348 = vpop.f32.mrb[0].mxu0
    %v2349 = vadd.f32 0.0, %v2348
    %v2350 = vpop.f32.mrb[0].mxu0
    %2351 = vmatprep.mubr.bf16.mxu0 0
    %2352 = vmatmul.mubr.bf16.gmra.mrb[0].mxu0 %v2304
    %v2353 = vpop.f32.mrb[0].mxu0
    %v2354 = vadd.f32 0.0, %v2353
    %v2355 = vpop.f32.mrb[0].mxu0
    %v2356 = vpop.f32.mrb[0].mxu0
    %v2357 = vadd.f32 0.0, %v2356
    %v2358 = vpop.f32.mrb[0].mxu0
    %2359 = vdwg.mxu0
    %2360 = vmatprep.subr.bf16.mxu0 0
    %2361 = vmatpush1.bf16.xpose.msra.mxu0 %v2308
    %2362 = vmatprep.subr.bf16.mxu0 0
    %2363 = vmatpush1.bf16.xpose.msra.mxu0 0
    %2364 = vmatprep.subr.bf16.mxu0 0
    %2365 = vmatpush1.bf16.xpose.msra.mxu0 0
    %2366 = vmatprep.subr.bf16.mxu0 0
    %2367 = vmatpush1.bf16.xpose.msra.mxu0 0
    %2368 = vmatprep.subr.bf16.mxu0 0
    %2369 = vmatpush1.bf16.xpose.msra.mxu0 0
    %2370 = vmatprep.subr.bf16.mxu0 0
    %2371 = vmatpush1.bf16.xpose.msra.mxu0 0
    %2372 = vmatprep.subr.bf16.mxu0 0
    %2373 = vmatpush1.bf16.xpose.msra.mxu0 0
    %2374 = vmatprep.subr.bf16.mxu0 0
    %2375 = vmatpush1.bf16.xpose.msra.mxu0 0
    %2376 = vmatprep.subr.bf16.mxu0 0
    %2377 = vmatpush1.bf16.xpose.msra.mxu0 0
    %2378 = vmatprep.subr.bf16.mxu0 0
    %2379 = vmatpush1.bf16.xpose.msra.mxu0 0
    %2380 = vmatprep.subr.bf16.mxu0 0
    %2381 = vmatpush1.bf16.xpose.msra.mxu0 0
    %2382 = vmatprep.subr.bf16.mxu0 0
    %2383 = vmatpush1.bf16.xpose.msra.mxu0 0
    %2384 = vmatprep.subr.bf16.mxu0 0
    %2385 = vmatpush1.bf16.xpose.msra.mxu0 0
    %2386 = vmatprep.subr.bf16.mxu0 0
    %2387 = vmatpush1.bf16.xpose.msra.mxu0 0
    %2388 = vmatprep.subr.bf16.mxu0 0
    %2389 = vmatpush1.bf16.xpose.msra.mxu0 0
    %2390 = vmatprep.subr.bf16.mxu0 0
    %2391 = vmatpush1.bf16.xpose.msra.mxu0 0
    %2392 = vmatprep.mubr.bf16.mxu0 0
    %2393 = vmatmul.mubr.bf16.gmra.mrb[0].mxu0 %v2305
    %v2394 = vpop.f32.mrb[0].mxu0
    %v2395 = vadd.f32 0.0, %v2394
    %v2396 = vpop.f32.mrb[0].mxu0
    %v2397 = vpop.f32.mrb[0].mxu0
    %v2398 = vadd.f32 0.0, %v2397
    %v2399 = vpop.f32.mrb[0].mxu0
    %2400 = vmatprep.mubr.bf16.mxu0 0
    %2401 = vmatmul.mubr.bf16.gmra.mrb[0].mxu0 %v2306
    %v2402 = vpop.f32.mrb[0].mxu0
    %v2403 = vadd.f32 0.0, %v2402
    %v2404 = vpop.f32.mrb[0].mxu0
    %v2405 = vpop.f32.mrb[0].mxu0
    %v2406 = vadd.f32 0.0, %v2405
    %v2407 = vpop.f32.mrb[0].mxu0
    %2408 = vdwg.mxu0
    %v2409 = vsel %vm2093, %v2346, -inf
    %2410 = vmax.xlane.f32.xlu0 %v2409
    %v2411 = vpop.xlane.xlu0 %2410
    %v2412 = vsel %vm2093, %v2349, -inf
    %2413 = vmax.xlane.f32.xlu0 %v2412
    %v2414 = vpop.xlane.xlu0 %2413
    %v2415 = vsel %vm2093, %v2354, -inf
    %2416 = vmax.xlane.f32.xlu0 %v2415
    %v2417 = vpop.xlane.xlu0 %2416
    %v2418 = vsel %vm2093, %v2357, -inf
    %2419 = vmax.xlane.f32.xlu0 %v2418
    %v2420 = vpop.xlane.xlu0 %2419
    %v2421 = vsel %vm2093, %v2395, -inf
    %2422 = vmax.xlane.f32.xlu0 %v2421
    %v2423 = vpop.xlane.xlu0 %2422
    %v2424 = vsel %vm2093, %v2398, -inf
    %2425 = vmax.xlane.f32.xlu0 %v2424
    %v2426 = vpop.xlane.xlu0 %2425
    %v2427 = vsel %vm2093, %v2403, -inf
    %2428 = vmax.xlane.f32.xlu0 %v2427
    %v2429 = vpop.xlane.xlu0 %2428
    %v2430 = vsel %vm2093, %v2406, -inf
    %2431 = vmax.xlane.f32.xlu0 %v2430
    %v2432 = vpop.xlane.xlu0 %2431
    %v2433 = vsub.f32 %v2346, %v2411
    %v2434 = vsub.f32 %v2349, %v2414
    %v2435 = vsub.f32 %v2354, %v2417
    %v2436 = vsub.f32 %v2357, %v2420
    %v2437 = vsub.f32 %v2395, %v2423
    %v2438 = vsub.f32 %v2398, %v2426
    %v2439 = vsub.f32 %v2403, %v2429
    %v2440 = vsub.f32 %v2406, %v2432
    %v2441 = vmul.f32 %v2433, 1.442695
    %v2442 = vpow.pop %v2441
    %v2443 = vmul.f32 %v2434, 1.442695
    %v2444 = vpow.pop %v2443
    %v2445 = vmul.f32 %v2435, 1.442695
    %v2446 = vpow.pop %v2445
    %v2447 = vmul.f32 %v2436, 1.442695
    %v2448 = vpow.pop %v2447
    %v2449 = vmul.f32 %v2437, 1.442695
    %v2450 = vpow.pop %v2449
    %v2451 = vmul.f32 %v2438, 1.442695
    %v2452 = vpow.pop %v2451
    %v2453 = vmul.f32 %v2439, 1.442695
    %v2454 = vpow.pop %v2453
    %v2455 = vmul.f32 %v2440, 1.442695
    %v2456 = vpow.pop %v2455
    %v2457 = vsel %vm2093, %v2442, 0.0
    %2458 = vadd.xlane.f32.xlu0 %v2457
    %v2459 = vpop.xlane.xlu0 %2458
    %v2460 = vsel %vm2093, %v2444, 0.0
    %2461 = vadd.xlane.f32.xlu0 %v2460
    %v2462 = vpop.xlane.xlu0 %2461
    %v2463 = vsel %vm2093, %v2446, 0.0
    %2464 = vadd.xlane.f32.xlu0 %v2463
    %v2465 = vpop.xlane.xlu0 %2464
    %v2466 = vsel %vm2093, %v2448, 0.0
    %2467 = vadd.xlane.f32.xlu0 %v2466
    %v2468 = vpop.xlane.xlu0 %2467
    %v2469 = vsel %vm2093, %v2450, 0.0
    %2470 = vadd.xlane.f32.xlu0 %v2469
    %v2471 = vpop.xlane.xlu0 %2470
    %v2472 = vsel %vm2093, %v2452, 0.0
    %2473 = vadd.xlane.f32.xlu0 %v2472
    %v2474 = vpop.xlane.xlu0 %2473
    %v2475 = vsel %vm2093, %v2454, 0.0
    %2476 = vadd.xlane.f32.xlu0 %v2475
    %v2477 = vpop.xlane.xlu0 %2476
    %v2478 = vsel %vm2093, %v2456, 0.0
    %2479 = vadd.xlane.f32.xlu0 %v2478
    %v2480 = vpop.xlane.xlu0 %2479
    %v2481 = vrcp.pop %v2459
    %v2482 = vrcp.pop %v2462
    %v2483 = vrcp.pop %v2465
    %v2484 = vrcp.pop %v2468
    %v2485 = vrcp.pop %v2471
    %v2486 = vrcp.pop %v2474
    %v2487 = vrcp.pop %v2477
    %v2488 = vrcp.pop %v2480
    %v2489 = vmul.f32 %v2442, %v2481
    %v2490 = vmul.f32 %v2444, %v2482
    %v2491 = vmul.f32 %v2446, %v2483
    %v2492 = vmul.f32 %v2448, %v2484
    %v2493 = vmul.f32 %v2450, %v2485
    %v2494 = vmul.f32 %v2452, %v2486
    %v2495 = vmul.f32 %v2454, %v2487
    %v2496 = vmul.f32 %v2456, %v2488
    %v2497 = vpack.c.bf16 %v2490, %v2489
    %v2498 = vpack.c.bf16 %v2492, %v2491
    %v2499 = vpack.c.bf16 %v2494, %v2493
    %v2500 = vpack.c.bf16 %v2496, %v2495
    %v2502 = vsel %vm2093, %v2497, 0
    %v2505 = vsel %vm2093, %v2498, 0
    %v2508 = vsel %vm2192, %v2309, 0
    %2510 = vmatprep.subr.bf16.mxu0 0
    %2511 = vmatpush1.bf16.msra.mxu0 %v2508
    %2512 = vmatprep.subr.bf16.mxu0 0
    %2513 = vmatpush1.bf16.msra.mxu0 0
    %2514 = vmatprep.subr.bf16.mxu0 0
    %2515 = vmatpush1.bf16.msra.mxu0 0
    %2516 = vmatprep.subr.bf16.mxu0 0
    %2517 = vmatpush1.bf16.msra.mxu0 0
    %2518 = vmatprep.subr.bf16.mxu0 0
    %2519 = vmatpush1.bf16.msra.mxu0 0
    %2520 = vmatprep.subr.bf16.mxu0 0
    %2521 = vmatpush1.bf16.msra.mxu0 0
    %2522 = vmatprep.subr.bf16.mxu0 0
    %2523 = vmatpush1.bf16.msra.mxu0 0
    %2524 = vmatprep.subr.bf16.mxu0 0
    %2525 = vmatpush1.bf16.msra.mxu0 0
    %2526 = vmatprep.subr.bf16.mxu0 0
    %2527 = vmatpush1.bf16.msra.mxu0 0
    %2528 = vmatprep.subr.bf16.mxu0 0
    %2529 = vmatpush1.bf16.msra.mxu0 0
    %2530 = vmatprep.subr.bf16.mxu0 0
    %2531 = vmatpush1.bf16.msra.mxu0 0
    %2532 = vmatprep.subr.bf16.mxu0 0
    %2533 = vmatpush1.bf16.msra.mxu0 0
    %2534 = vmatprep.subr.bf16.mxu0 0
    %2535 = vmatpush1.bf16.msra.mxu0 0
    %2536 = vmatprep.subr.bf16.mxu0 0
    %2537 = vmatpush1.bf16.msra.mxu0 0
    %2538 = vmatprep.subr.bf16.mxu0 0
    %2539 = vmatpush1.bf16.msra.mxu0 0
    %2540 = vmatprep.subr.bf16.mxu0 0
    %2541 = vmatpush1.bf16.msra.mxu0 0
    %2542 = vmatprep.mubr.bf16.mxu0 0
    %2543 = vmatmul.mubr.bf16.gmra.mrb[0].mxu0 %v2502
    %v2544 = vpop.f32.mrb[0].mxu0
    %v2545 = vadd.f32 0.0, %v2544
    %v2546 = vpop.f32.mrb[0].mxu0
    %v2547 = vpop.f32.mrb[0].mxu0
    %v2548 = vadd.f32 0.0, %v2547
    %v2549 = vpop.f32.mrb[0].mxu0
    %2550 = vmatprep.mubr.bf16.mxu0 0
    %2551 = vmatmul.mubr.bf16.gmra.mrb[0].mxu0 %v2505
    %v2552 = vpop.f32.mrb[0].mxu0
    %v2553 = vadd.f32 0.0, %v2552
    %v2554 = vpop.f32.mrb[0].mxu0
    %v2555 = vpop.f32.mrb[0].mxu0
    %v2556 = vadd.f32 0.0, %v2555
    %v2557 = vpop.f32.mrb[0].mxu0
    %2558 = vdwg.mxu0
    %v2560 = vsel %vm2093, %v2499, 0
    %v2563 = vsel %vm2093, %v2500, 0
    %v2566 = vsel %vm2192, %v2310, 0
    %2568 = vmatprep.subr.bf16.mxu0 0
    %2569 = vmatpush1.bf16.msra.mxu0 %v2566
    %2570 = vmatprep.subr.bf16.mxu0 0
    %2571 = vmatpush1.bf16.msra.mxu0 0
    %2572 = vmatprep.subr.bf16.mxu0 0
    %2573 = vmatpush1.bf16.msra.mxu0 0
    %2574 = vmatprep.subr.bf16.mxu0 0
    %2575 = vmatpush1.bf16.msra.mxu0 0
    %2576 = vmatprep.subr.bf16.mxu0 0
    %2577 = vmatpush1.bf16.msra.mxu0 0
    %2578 = vmatprep.subr.bf16.mxu0 0
    %2579 = vmatpush1.bf16.msra.mxu0 0
    %2580 = vmatprep.subr.bf16.mxu0 0
    %2581 = vmatpush1.bf16.msra.mxu0 0
    %2582 = vmatprep.subr.bf16.mxu0 0
    %2583 = vmatpush1.bf16.msra.mxu0 0
    %2584 = vmatprep.subr.bf16.mxu0 0
    %2585 = vmatpush1.bf16.msra.mxu0 0
    %2586 = vmatprep.subr.bf16.mxu0 0
    %2587 = vmatpush1.bf16.msra.mxu0 0
    %2588 = vmatprep.subr.bf16.mxu0 0
    %2589 = vmatpush1.bf16.msra.mxu0 0
    %2590 = vmatprep.subr.bf16.mxu0 0
    %2591 = vmatpush1.bf16.msra.mxu0 0
    %2592 = vmatprep.subr.bf16.mxu0 0
    %2593 = vmatpush1.bf16.msra.mxu0 0
    %2594 = vmatprep.subr.bf16.mxu0 0
    %2595 = vmatpush1.bf16.msra.mxu0 0
    %2596 = vmatprep.subr.bf16.mxu0 0
    %2597 = vmatpush1.bf16.msra.mxu0 0
    %2598 = vmatprep.subr.bf16.mxu0 0
    %2599 = vmatpush1.bf16.msra.mxu0 0
    %2600 = vmatprep.mubr.bf16.mxu0 0
    %2601 = vmatmul.mubr.bf16.gmra.mrb[0].mxu0 %v2560
    %v2602 = vpop.f32.mrb[0].mxu0
    %v2603 = vadd.f32 0.0, %v2602
    %v2604 = vpop.f32.mrb[0].mxu0
    %v2605 = vpop.f32.mrb[0].mxu0
    %v2606 = vadd.f32 0.0, %v2605
    %v2607 = vpop.f32.mrb[0].mxu0
    %2608 = vmatprep.mubr.bf16.mxu0 0
    %2609 = vmatmul.mubr.bf16.gmra.mrb[0].mxu0 %v2563
    %v2610 = vpop.f32.mrb[0].mxu0
    %v2611 = vadd.f32 0.0, %v2610
    %v2612 = vpop.f32.mrb[0].mxu0
    %v2613 = vpop.f32.mrb[0].mxu0
    %v2614 = vadd.f32 0.0, %v2613
    %v2615 = vpop.f32.mrb[0].mxu0
    %2616 = vdwg.mxu0
    %v2617 = vpack.c.bf16 %v1782, %v1739
    %v2618 = vpack.c.bf16 %v1982, %v1939
    %v2619 = vpack.c.bf16 %v2234, %v2231
    %v2620 = vpack.c.bf16 %v2548, %v2545
    %v2621 = vpack.c.bf16 %v2242, %v2239
    %v2622 = vpack.c.bf16 %v2556, %v2553
    %v2623 = vpack.c.bf16 %v2292, %v2289
    %v2624 = vpack.c.bf16 %v2606, %v2603
    %v2625 = vpack.c.bf16 %v2300, %v2297
    %v2626 = vpack.c.bf16 %v2614, %v2611
    %v2628 = vlaneseq
    %v2629 = vshrl.u32 %v2628, 7
    %v2630 = vsub.s32 0, %v2629
    %v2631 = vrot.slane %v552, %v2630
    %v2632 = vlaneseq
    %v2633 = vshrl.u32 %v2632, 7
    %v2634 = vsub.s32 1, %v2633
    %v2635 = vrot.slane %v552, %v2634
    %v2670 = vunpack.c.l.b16 %v520
    %v2671 = vunpack.c.h.b16 %v520
    %v2672 = vunpack.c.l.b16 %v521
    %v2673 = vunpack.c.h.b16 %v521
    %v2674 = vunpack.c.l.b16 %v522
    %v2675 = vunpack.c.h.b16 %v522
    %v2676 = vunpack.c.l.b16 %v523
    %v2677 = vunpack.c.h.b16 %v523
    %v2678 = vunpack.c.l.b16 %v524
    %v2679 = vunpack.c.h.b16 %v524
    %v2680 = vunpack.c.l.b16 %v525
    %v2681 = vunpack.c.h.b16 %v525
    %v2682 = vunpack.c.l.b16 %v526
    %v2683 = vunpack.c.h.b16 %v526
    %v2684 = vunpack.c.l.b16 %v527
    %v2685 = vunpack.c.h.b16 %v527
    %v2686 = vunpack.c.l.b16 %v528
    %v2687 = vunpack.c.h.b16 %v528
    %v2688 = vunpack.c.l.b16 %v529
    %v2689 = vunpack.c.h.b16 %v529
    %v2690 = vunpack.c.l.b16 %v530
    %v2691 = vunpack.c.h.b16 %v530
    %v2692 = vunpack.c.l.b16 %v531
    %v2693 = vunpack.c.h.b16 %v531
    %v2694 = vunpack.c.l.b16 %v532
    %v2695 = vunpack.c.h.b16 %v532
    %v2696 = vunpack.c.l.b16 %v533
    %v2697 = vunpack.c.h.b16 %v533
    %v2698 = vunpack.c.l.b16 %v534
    %v2699 = vunpack.c.h.b16 %v534
    %v2700 = vunpack.c.l.b16 %v535
    %v2701 = vunpack.c.h.b16 %v535
    %v2702 = vunpack.c.l.b16 %v536
    %v2703 = vunpack.c.h.b16 %v536
    %v2704 = vunpack.c.l.b16 %v537
    %v2705 = vunpack.c.h.b16 %v537
    %v2706 = vunpack.c.l.b16 %v538
    %v2707 = vunpack.c.h.b16 %v538
    %v2708 = vunpack.c.l.b16 %v539
    %v2709 = vunpack.c.h.b16 %v539
    %v2710 = vunpack.c.l.b16 %v540
    %v2711 = vunpack.c.h.b16 %v540
    %v2712 = vunpack.c.l.b16 %v541
    %v2713 = vunpack.c.h.b16 %v541
    %v2714 = vunpack.c.l.b16 %v542
    %v2715 = vunpack.c.h.b16 %v542
    %v2716 = vunpack.c.l.b16 %v543
    %v2717 = vunpack.c.h.b16 %v543
    %v2718 = vunpack.c.l.b16 %v544
    %v2719 = vunpack.c.h.b16 %v544
    %v2720 = vunpack.c.l.b16 %v545
    %v2721 = vunpack.c.h.b16 %v545
    %v2722 = vunpack.c.l.b16 %v546
    %v2723 = vunpack.c.h.b16 %v546
    %v2724 = vunpack.c.l.b16 %v547
    %v2725 = vunpack.c.h.b16 %v547
    %v2726 = vunpack.c.l.b16 %v548
    %v2727 = vunpack.c.h.b16 %v548
    %v2728 = vunpack.c.l.b16 %v549
    %v2729 = vunpack.c.h.b16 %v549
    %v2730 = vunpack.c.l.b16 %v550
    %v2731 = vunpack.c.h.b16 %v550
    %v2732 = vunpack.c.l.b16 %v551
    %v2733 = vunpack.c.h.b16 %v551
    %v2734 = vpack.c.b16 %v2672, %v2670
    %v2735 = vpack.c.b16 %v2673, %v2671
    %v2736 = vpack.c.b16 %v2676, %v2674
    %v2737 = vpack.c.b16 %v2677, %v2675
    %v2738 = vpack.c.b16 %v2680, %v2678
    %v2739 = vpack.c.b16 %v2681, %v2679
    %v2740 = vpack.c.b16 %v2684, %v2682
    %v2741 = vpack.c.b16 %v2685, %v2683
    %v2742 = vpack.c.b16 %v2688, %v2686
    %v2743 = vpack.c.b16 %v2689, %v2687
    %v2744 = vpack.c.b16 %v2692, %v2690
    %v2745 = vpack.c.b16 %v2693, %v2691
    %v2746 = vpack.c.b16 %v2696, %v2694
    %v2747 = vpack.c.b16 %v2697, %v2695
    %v2748 = vpack.c.b16 %v2700, %v2698
    %v2749 = vpack.c.b16 %v2701, %v2699
    %v2750 = vpack.c.b16 %v2704, %v2702
    %v2751 = vpack.c.b16 %v2705, %v2703
    %v2752 = vpack.c.b16 %v2708, %v2706
    %v2753 = vpack.c.b16 %v2709, %v2707
    %v2754 = vpack.c.b16 %v2712, %v2710
    %v2755 = vpack.c.b16 %v2713, %v2711
    %v2756 = vpack.c.b16 %v2716, %v2714
    %v2757 = vpack.c.b16 %v2717, %v2715
    %v2758 = vpack.c.b16 %v2720, %v2718
    %v2759 = vpack.c.b16 %v2721, %v2719
    %v2760 = vpack.c.b16 %v2724, %v2722
    %v2761 = vpack.c.b16 %v2725, %v2723
    %v2762 = vpack.c.b16 %v2728, %v2726
    %v2763 = vpack.c.b16 %v2729, %v2727
    %v2764 = vpack.c.b16 %v2732, %v2730
    %v2765 = vpack.c.b16 %v2733, %v2731
    %2798 = vmatprep.subr.bf16.mxu0 %v2735
    %2799 = vmatpush1.bf16.msra.mxu0 %v2734
    %2800 = vmatprep.subr.bf16.mxu0 %v2737
    %2801 = vmatpush1.bf16.msra.mxu0 %v2736
    %2802 = vmatprep.subr.bf16.mxu0 %v2739
    %2803 = vmatpush1.bf16.msra.mxu0 %v2738
    %2804 = vmatprep.subr.bf16.mxu0 %v2741
    %2805 = vmatpush1.bf16.msra.mxu0 %v2740
    %2806 = vmatprep.subr.bf16.mxu0 %v2743
    %2807 = vmatpush1.bf16.msra.mxu0 %v2742
    %2808 = vmatprep.subr.bf16.mxu0 %v2745
    %2809 = vmatpush1.bf16.msra.mxu0 %v2744
    %2810 = vmatprep.subr.bf16.mxu0 %v2747
    %2811 = vmatpush1.bf16.msra.mxu0 %v2746
    %2812 = vmatprep.subr.bf16.mxu0 %v2749
    %2813 = vmatpush1.bf16.msra.mxu0 %v2748
    %2814 = vmatprep.subr.bf16.mxu0 %v2751
    %2815 = vmatpush1.bf16.msra.mxu0 %v2750
    %2816 = vmatprep.subr.bf16.mxu0 %v2753
    %2817 = vmatpush1.bf16.msra.mxu0 %v2752
    %2818 = vmatprep.subr.bf16.mxu0 %v2755
    %2819 = vmatpush1.bf16.msra.mxu0 %v2754
    %2820 = vmatprep.subr.bf16.mxu0 %v2757
    %2821 = vmatpush1.bf16.msra.mxu0 %v2756
    %2822 = vmatprep.subr.bf16.mxu0 %v2759
    %2823 = vmatpush1.bf16.msra.mxu0 %v2758
    %2824 = vmatprep.subr.bf16.mxu0 %v2761
    %2825 = vmatpush1.bf16.msra.mxu0 %v2760
    %2826 = vmatprep.subr.bf16.mxu0 %v2763
    %2827 = vmatpush1.bf16.msra.mxu0 %v2762
    %2828 = vmatprep.subr.bf16.mxu0 %v2765
    %2829 = vmatpush1.bf16.msra.mxu0 %v2764
    %2830 = vmatprep.mubr.bf16.mxu0 %v2618
    %2831 = vmatmul.mubr.bf16.gmra.mrb[0].mxu0 %v2617
    %v2832 = vpop.f32.mrb[0].mxu0
    %v2833 = vadd.f32 %v2631, %v2832
    %v2834 = vpop.f32.mrb[0].mxu0
    %v2835 = vadd.f32 %v2635, %v2834
    %v2836 = vpop.f32.mrb[0].mxu0
    %v2837 = vadd.f32 %v2631, %v2836
    %v2838 = vpop.f32.mrb[0].mxu0
    %v2839 = vadd.f32 %v2635, %v2838
    %2840 = vmatprep.mubr.bf16.mxu0 %v2620
    %2841 = vmatmul.mubr.bf16.gmra.mrb[0].mxu0 %v2619
    %v2842 = vpop.f32.mrb[0].mxu0
    %v2843 = vadd.f32 %v2631, %v2842
    %v2844 = vpop.f32.mrb[0].mxu0
    %v2845 = vadd.f32 %v2635, %v2844
    %v2846 = vpop.f32.mrb[0].mxu0
    %v2847 = vadd.f32 %v2631, %v2846
    %v2848 = vpop.f32.mrb[0].mxu0
    %v2849 = vadd.f32 %v2635, %v2848
    %2850 = vmatprep.mubr.bf16.mxu0 %v2622
    %2851 = vmatmul.mubr.bf16.gmra.mrb[0].mxu0 %v2621
    %v2852 = vpop.f32.mrb[0].mxu0
    %v2853 = vadd.f32 %v2631, %v2852
    %v2854 = vpop.f32.mrb[0].mxu0
    %v2855 = vadd.f32 %v2635, %v2854
    %v2856 = vpop.f32.mrb[0].mxu0
    %v2857 = vadd.f32 %v2631, %v2856
    %v2858 = vpop.f32.mrb[0].mxu0
    %v2859 = vadd.f32 %v2635, %v2858
    %2860 = vmatprep.mubr.bf16.mxu0 %v2624
    %2861 = vmatmul.mubr.bf16.gmra.mrb[0].mxu0 %v2623
    %v2862 = vpop.f32.mrb[0].mxu0
    %v2863 = vadd.f32 %v2631, %v2862
    %v2864 = vpop.f32.mrb[0].mxu0
    %v2865 = vadd.f32 %v2635, %v2864
    %v2866 = vpop.f32.mrb[0].mxu0
    %v2867 = vadd.f32 %v2631, %v2866
    %v2868 = vpop.f32.mrb[0].mxu0
    %v2869 = vadd.f32 %v2635, %v2868
    %2870 = vmatprep.mubr.bf16.mxu0 %v2626
    %2871 = vmatmul.mubr.bf16.gmra.mrb[0].mxu0 %v2625
    %v2872 = vpop.f32.mrb[0].mxu0
    %v2873 = vadd.f32 %v2631, %v2872
    %v2874 = vpop.f32.mrb[0].mxu0
    %v2875 = vadd.f32 %v2635, %v2874
    %v2876 = vpop.f32.mrb[0].mxu0
    %v2877 = vadd.f32 %v2631, %v2876
    %v2878 = vpop.f32.mrb[0].mxu0
    %v2879 = vadd.f32 %v2635, %v2878
    %2880 = vdwg.mxu0
    %v2881 = vadd.f32 %v398, %v2833
    %v2882 = vadd.f32 %v400, %v2835
    %v2883 = vadd.f32 %v402, %v2837
    %v2884 = vadd.f32 %v404, %v2839
    %v2885 = vadd.f32 %v406, %v2843
    %v2886 = vadd.f32 %v407, %v2845
    %v2887 = vadd.f32 %v408, %v2847
    %v2888 = vadd.f32 %v409, %v2849
    %v2889 = vadd.f32 %v410, %v2853
    %v2890 = vadd.f32 %v411, %v2855
    %v2891 = vadd.f32 %v412, %v2857
    %v2892 = vadd.f32 %v413, %v2859
    %v2893 = vadd.f32 %v414, %v2863
    %v2894 = vadd.f32 %v415, %v2865
    %v2895 = vadd.f32 %v416, %v2867
    %v2896 = vadd.f32 %v417, %v2869
    %v2897 = vadd.f32 %v418, %v2873
    %v2898 = vadd.f32 %v419, %v2875
    %v2899 = vadd.f32 %v420, %v2877
    %v2900 = vadd.f32 %v421, %v2879
    %v2901 = vadd.f32 %v2881, %v2882
    %2902 = vadd.xlane.f32.xlu0 %v2901
    %v2903 = vpop.xlane.xlu0 %2902
    %v2904 = vadd.f32 %v2883, %v2884
    %2905 = vadd.xlane.f32.xlu0 %v2904
    %v2906 = vpop.xlane.xlu0 %2905
    %v2907 = vadd.f32 %v2885, %v2886
    %2908 = vadd.xlane.f32.xlu0 %v2907
    %v2909 = vpop.xlane.xlu0 %2908
    %v2910 = vadd.f32 %v2887, %v2888
    %2911 = vadd.xlane.f32.xlu0 %v2910
    %v2912 = vpop.xlane.xlu0 %2911
    %v2913 = vadd.f32 %v2889, %v2890
    %2914 = vadd.xlane.f32.xlu0 %v2913
    %v2915 = vpop.xlane.xlu0 %2914
    %v2916 = vadd.f32 %v2891, %v2892
    %2917 = vadd.xlane.f32.xlu0 %v2916
    %v2918 = vpop.xlane.xlu0 %2917
    %v2919 = vadd.f32 %v2893, %v2894
    %2920 = vadd.xlane.f32.xlu0 %v2919
    %v2921 = vpop.xlane.xlu0 %2920
    %v2922 = vadd.f32 %v2895, %v2896
    %2923 = vadd.xlane.f32.xlu0 %v2922
    %v2924 = vpop.xlane.xlu0 %2923
    %v2925 = vadd.f32 %v2897, %v2898
    %2926 = vadd.xlane.f32.xlu0 %v2925
    %v2927 = vpop.xlane.xlu0 %2926
    %v2928 = vadd.f32 %v2899, %v2900
    %2929 = vadd.xlane.f32.xlu0 %v2928
    %v2930 = vpop.xlane.xlu0 %2929
    %v2931 = vrcp.pop 256.0
    %v2932 = vmul.f32 %v2903, %v2931
    %v2933 = vmul.f32 %v2906, %v2931
    %v2934 = vmul.f32 %v2909, %v2931
    %v2935 = vmul.f32 %v2912, %v2931
    %v2936 = vmul.f32 %v2915, %v2931
    %v2937 = vmul.f32 %v2918, %v2931
    %v2938 = vmul.f32 %v2921, %v2931
    %v2939 = vmul.f32 %v2924, %v2931
    %v2940 = vmul.f32 %v2927, %v2931
    %v2941 = vmul.f32 %v2930, %v2931
    %v2942 = vsub.f32 %v2881, %v2932
    %v2943 = vsub.f32 %v2882, %v2932
    %v2944 = vsub.f32 %v2883, %v2933
    %v2945 = vsub.f32 %v2884, %v2933
    %v2946 = vsub.f32 %v2885, %v2934
    %v2947 = vsub.f32 %v2886, %v2934
    %v2948 = vsub.f32 %v2887, %v2935
    %v2949 = vsub.f32 %v2888, %v2935
    %v2950 = vsub.f32 %v2889, %v2936
    %v2951 = vsub.f32 %v2890, %v2936
    %v2952 = vsub.f32 %v2891, %v2937
    %v2953 = vsub.f32 %v2892, %v2937
    %v2954 = vsub.f32 %v2893, %v2938
    %v2955 = vsub.f32 %v2894, %v2938
    %v2956 = vsub.f32 %v2895, %v2939
    %v2957 = vsub.f32 %v2896, %v2939
    %v2958 = vsub.f32 %v2897, %v2940
    %v2959 = vsub.f32 %v2898, %v2940
    %v2960 = vsub.f32 %v2899, %v2941
    %v2961 = vsub.f32 %v2900, %v2941
    %v2962 = vmul.f32 %v2942, %v2942
    %v2963 = vmul.f32 %v2943, %v2943
    %v2964 = vmul.f32 %v2944, %v2944
    %v2965 = vmul.f32 %v2945, %v2945
    %v2966 = vmul.f32 %v2946, %v2946
    %v2967 = vmul.f32 %v2947, %v2947
    %v2968 = vmul.f32 %v2948, %v2948
    %v2969 = vmul.f32 %v2949, %v2949
    %v2970 = vmul.f32 %v2950, %v2950
    %v2971 = vmul.f32 %v2951, %v2951
    %v2972 = vmul.f32 %v2952, %v2952
    %v2973 = vmul.f32 %v2953, %v2953
    %v2974 = vmul.f32 %v2954, %v2954
    %v2975 = vmul.f32 %v2955, %v2955
    %v2976 = vmul.f32 %v2956, %v2956
    %v2977 = vmul.f32 %v2957, %v2957
    %v2978 = vmul.f32 %v2958, %v2958
    %v2979 = vmul.f32 %v2959, %v2959
    %v2980 = vmul.f32 %v2960, %v2960
    %v2981 = vmul.f32 %v2961, %v2961
    %v2982 = vadd.f32 %v2962, %v2963
    %2983 = vadd.xlane.f32.xlu0 %v2982
    %v2984 = vpop.xlane.xlu0 %2983
    %v2985 = vadd.f32 %v2964, %v2965
    %2986 = vadd.xlane.f32.xlu0 %v2985
    %v2987 = vpop.xlane.xlu0 %2986
    %v2988 = vadd.f32 %v2966, %v2967
    %2989 = vadd.xlane.f32.xlu0 %v2988
    %v2990 = vpop.xlane.xlu0 %2989
    %v2991 = vadd.f32 %v2968, %v2969
    %2992 = vadd.xlane.f32.xlu0 %v2991
    %v2993 = vpop.xlane.xlu0 %2992
    %v2994 = vadd.f32 %v2970, %v2971
    %2995 = vadd.xlane.f32.xlu0 %v2994
    %v2996 = vpop.xlane.xlu0 %2995
    %v2997 = vadd.f32 %v2972, %v2973
    %2998 = vadd.xlane.f32.xlu0 %v2997
    %v2999 = vpop.xlane.xlu0 %2998
    %v3000 = vadd.f32 %v2974, %v2975
    %3001 = vadd.xlane.f32.xlu0 %v3000
    %v3002 = vpop.xlane.xlu0 %3001
    %v3003 = vadd.f32 %v2976, %v2977
    %3004 = vadd.xlane.f32.xlu0 %v3003
    %v3005 = vpop.xlane.xlu0 %3004
    %v3006 = vadd.f32 %v2978, %v2979
    %3007 = vadd.xlane.f32.xlu0 %v3006
    %v3008 = vpop.xlane.xlu0 %3007
    %v3009 = vadd.f32 %v2980, %v2981
    %3010 = vadd.xlane.f32.xlu0 %v3009
    %v3011 = vpop.xlane.xlu0 %3010
    %v3012 = vmul.f32 %v2984, %v2931
    %v3013 = vmul.f32 %v2987, %v2931
    %v3014 = vmul.f32 %v2990, %v2931
    %v3015 = vmul.f32 %v2993, %v2931
    %v3016 = vmul.f32 %v2996, %v2931
    %v3017 = vmul.f32 %v2999, %v2931
    %v3018 = vmul.f32 %v3002, %v2931
    %v3019 = vmul.f32 %v3005, %v2931
    %v3020 = vmul.f32 %v3008, %v2931
    %v3021 = vmul.f32 %v3011, %v2931
    %v3022 = vadd.f32 %v3012, 1e-05
    %v3023 = vadd.f32 %v3013, 1e-05
    %v3024 = vadd.f32 %v3014, 1e-05
    %v3025 = vadd.f32 %v3015, 1e-05
    %v3026 = vadd.f32 %v3016, 1e-05
    %v3027 = vadd.f32 %v3017, 1e-05
    %v3028 = vadd.f32 %v3018, 1e-05
    %v3029 = vadd.f32 %v3019, 1e-05
    %v3030 = vadd.f32 %v3020, 1e-05
    %v3031 = vadd.f32 %v3021, 1e-05
    %v3032 = vrsqrt.pop %v3022
    %v3033 = vrsqrt.pop %v3023
    %v3034 = vrsqrt.pop %v3024
    %v3035 = vrsqrt.pop %v3025
    %v3036 = vrsqrt.pop %v3026
    %v3037 = vrsqrt.pop %v3027
    %v3038 = vrsqrt.pop %v3028
    %v3039 = vrsqrt.pop %v3029
    %v3040 = vrsqrt.pop %v3030
    %v3041 = vrsqrt.pop %v3031
    %v3042 = vmul.f32 %v2942, %v3032
    %v3043 = vmul.f32 %v2943, %v3032
    %v3044 = vmul.f32 %v2944, %v3033
    %v3045 = vmul.f32 %v2945, %v3033
    %v3046 = vmul.f32 %v2946, %v3034
    %v3047 = vmul.f32 %v2947, %v3034
    %v3048 = vmul.f32 %v2948, %v3035
    %v3049 = vmul.f32 %v2949, %v3035
    %v3050 = vmul.f32 %v2950, %v3036
    %v3051 = vmul.f32 %v2951, %v3036
    %v3052 = vmul.f32 %v2952, %v3037
    %v3053 = vmul.f32 %v2953, %v3037
    %v3054 = vmul.f32 %v2954, %v3038
    %v3055 = vmul.f32 %v2955, %v3038
    %v3056 = vmul.f32 %v2956, %v3039
    %v3057 = vmul.f32 %v2957, %v3039
    %v3058 = vmul.f32 %v2958, %v3040
    %v3059 = vmul.f32 %v2959, %v3040
    %v3060 = vmul.f32 %v2960, %v3041
    %v3061 = vmul.f32 %v2961, %v3041
    %v3063 = vlaneseq
    %v3064 = vshrl.u32 %v3063, 7
    %v3065 = vsub.s32 0, %v3064
    %v3066 = vrot.slane %v553, %v3065
    %v3067 = vlaneseq
    %v3068 = vshrl.u32 %v3067, 7
    %v3069 = vsub.s32 1, %v3068
    %v3070 = vrot.slane %v553, %v3069
    %v3073 = vmul.f32 %v3042, %v3066
    %v3074 = vmul.f32 %v3043, %v3070
    %v3075 = vmul.f32 %v3044, %v3066
    %v3076 = vmul.f32 %v3045, %v3070
    %v3077 = vmul.f32 %v3046, %v3066
    %v3078 = vmul.f32 %v3047, %v3070
    %v3079 = vmul.f32 %v3048, %v3066
    %v3080 = vmul.f32 %v3049, %v3070
    %v3081 = vmul.f32 %v3050, %v3066
    %v3082 = vmul.f32 %v3051, %v3070
    %v3083 = vmul.f32 %v3052, %v3066
    %v3084 = vmul.f32 %v3053, %v3070
    %v3085 = vmul.f32 %v3054, %v3066
    %v3086 = vmul.f32 %v3055, %v3070
    %v3087 = vmul.f32 %v3056, %v3066
    %v3088 = vmul.f32 %v3057, %v3070
    %v3089 = vmul.f32 %v3058, %v3066
    %v3090 = vmul.f32 %v3059, %v3070
    %v3091 = vmul.f32 %v3060, %v3066
    %v3092 = vmul.f32 %v3061, %v3070
    %v3094 = vlaneseq
    %v3095 = vshrl.u32 %v3094, 7
    %v3096 = vsub.s32 0, %v3095
    %v3097 = vrot.slane %v554, %v3096
    %v3098 = vlaneseq
    %v3099 = vshrl.u32 %v3098, 7
    %v3100 = vsub.s32 1, %v3099
    %v3101 = vrot.slane %v554, %v3100
    %v3104 = vadd.f32 %v3073, %v3097
    %v3105 = vadd.f32 %v3074, %v3101
    %v3106 = vadd.f32 %v3075, %v3097
    %v3107 = vadd.f32 %v3076, %v3101
    %v3108 = vadd.f32 %v3077, %v3097
    %v3109 = vadd.f32 %v3078, %v3101
    %v3110 = vadd.f32 %v3079, %v3097
    %v3111 = vadd.f32 %v3080, %v3101
    %v3112 = vadd.f32 %v3081, %v3097
    %v3113 = vadd.f32 %v3082, %v3101
    %v3114 = vadd.f32 %v3083, %v3097
    %v3115 = vadd.f32 %v3084, %v3101
    %v3116 = vadd.f32 %v3085, %v3097
    %v3117 = vadd.f32 %v3086, %v3101
    %v3118 = vadd.f32 %v3087, %v3097
    %v3119 = vadd.f32 %v3088, %v3101
    %v3120 = vadd.f32 %v3089, %v3097
    %v3121 = vadd.f32 %v3090, %v3101
    %v3122 = vadd.f32 %v3091, %v3097
    %v3123 = vadd.f32 %v3092, %v3101
    %v3124 = vpack.c.bf16 %v3106, %v3104
    %v3125 = vpack.c.bf16 %v3107, %v3105
    %v3126 = vpack.c.bf16 %v3110, %v3108
    %v3127 = vpack.c.bf16 %v3111, %v3109
    %v3128 = vpack.c.bf16 %v3114, %v3112
    %v3129 = vpack.c.bf16 %v3115, %v3113
    %v3130 = vpack.c.bf16 %v3118, %v3116
    %v3131 = vpack.c.bf16 %v3119, %v3117
    %v3132 = vpack.c.bf16 %v3122, %v3120
    %v3133 = vpack.c.bf16 %v3123, %v3121
    %v3135 = vlaneseq
    %v3136 = vshrl.u32 %v3135, 7
    %v3137 = vsub.s32 0, %v3136
    %v3138 = vrot.slane %v683, %v3137
    %v3139 = vlaneseq
    %v3140 = vshrl.u32 %v3139, 7
    %v3141 = vsub.s32 1, %v3140
    %v3142 = vrot.slane %v683, %v3141
    %v3143 = vlaneseq
    %v3144 = vshrl.u32 %v3143, 7
    %v3145 = vsub.s32 2, %v3144
    %v3146 = vrot.slane %v683, %v3145
    %v3147 = vlaneseq
    %v3148 = vshrl.u32 %v3147, 7
    %v3149 = vsub.s32 3, %v3148
    %v3150 = vrot.slane %v683, %v3149
    %v3151 = vlaneseq
    %v3152 = vshrl.u32 %v3151, 7
    %v3153 = vsub.s32 4, %v3152
    %v3154 = vrot.slane %v683, %v3153
    %v3155 = vlaneseq
    %v3156 = vshrl.u32 %v3155, 7
    %v3157 = vsub.s32 5, %v3156
    %v3158 = vrot.slane %v683, %v3157
    %v3159 = vlaneseq
    %v3160 = vshrl.u32 %v3159, 7
    %v3161 = vsub.s32 6, %v3160
    %v3162 = vrot.slane %v683, %v3161
    %v3163 = vlaneseq
    %v3164 = vshrl.u32 %v3163, 7
    %v3165 = vsub.s32 7, %v3164
    %v3166 = vrot.slane %v683, %v3165
    %v3303 = vunpack.c.l.b16 %v555
    %v3304 = vunpack.c.h.b16 %v555
    %v3305 = vunpack.c.l.b16 %v556
    %v3306 = vunpack.c.h.b16 %v556
    %v3307 = vunpack.c.l.b16 %v557
    %v3308 = vunpack.c.h.b16 %v557
    %v3309 = vunpack.c.l.b16 %v558
    %v3310 = vunpack.c.h.b16 %v558
    %v3311 = vunpack.c.l.b16 %v559
    %v3312 = vunpack.c.h.b16 %v559
    %v3313 = vunpack.c.l.b16 %v560
    %v3314 = vunpack.c.h.b16 %v560
    %v3315 = vunpack.c.l.b16 %v561
    %v3316 = vunpack.c.h.b16 %v561
    %v3317 = vunpack.c.l.b16 %v562
    %v3318 = vunpack.c.h.b16 %v562
    %v3319 = vunpack.c.l.b16 %v563
    %v3320 = vunpack.c.h.b16 %v563
    %v3321 = vunpack.c.l.b16 %v564
    %v3322 = vunpack.c.h.b16 %v564
    %v3323 = vunpack.c.l.b16 %v565
    %v3324 = vunpack.c.h.b16 %v565
    %v3325 = vunpack.c.l.b16 %v566
    %v3326 = vunpack.c.h.b16 %v566
    %v3327 = vunpack.c.l.b16 %v567
    %v3328 = vunpack.c.h.b16 %v567
    %v3329 = vunpack.c.l.b16 %v568
    %v3330 = vunpack.c.h.b16 %v568
    %v3331 = vunpack.c.l.b16 %v569
    %v3332 = vunpack.c.h.b16 %v569
    %v3333 = vunpack.c.l.b16 %v570
    %v3334 = vunpack.c.h.b16 %v570
    %v3335 = vunpack.c.l.b16 %v571
    %v3336 = vunpack.c.h.b16 %v571
    %v3337 = vunpack.c.l.b16 %v572
    %v3338 = vunpack.c.h.b16 %v572
    %v3339 = vunpack.c.l.b16 %v573
    %v3340 = vunpack.c.h.b16 %v573
    %v3341 = vunpack.c.l.b16 %v574
    %v3342 = vunpack.c.h.b16 %v574
    %v3343 = vunpack.c.l.b16 %v575
    %v3344 = vunpack.c.h.b16 %v575
    %v3345 = vunpack.c.l.b16 %v576
    %v3346 = vunpack.c.h.b16 %v576
    %v3347 = vunpack.c.l.b16 %v577
    %v3348 = vunpack.c.h.b16 %v577
    %v3349 = vunpack.c.l.b16 %v578
    %v3350 = vunpack.c.h.b16 %v578
    %v3351 = vunpack.c.l.b16 %v579
    %v3352 = vunpack.c.h.b16 %v579
    %v3353 = vunpack.c.l.b16 %v580
    %v3354 = vunpack.c.h.b16 %v580
    %v3355 = vunpack.c.l.b16 %v581
    %v3356 = vunpack.c.h.b16 %v581
    %v3357 = vunpack.c.l.b16 %v582
    %v3358 = vunpack.c.h.b16 %v582
    %v3359 = vunpack.c.l.b16 %v583
    %v3360 = vunpack.c.h.b16 %v583
    %v3361 = vunpack.c.l.b16 %v584
    %v3362 = vunpack.c.h.b16 %v584
    %v3363 = vunpack.c.l.b16 %v585
    %v3364 = vunpack.c.h.b16 %v585
    %v3365 = vunpack.c.l.b16 %v586
    %v3366 = vunpack.c.h.b16 %v586
    %v3367 = vunpack.c.l.b16 %v587
    %v3368 = vunpack.c.h.b16 %v587
    %v3369 = vunpack.c.l.b16 %v588
    %v3370 = vunpack.c.h.b16 %v588
    %v3371 = vunpack.c.l.b16 %v589
    %v3372 = vunpack.c.h.b16 %v589
    %v3373 = vunpack.c.l.b16 %v590
    %v3374 = vunpack.c.h.b16 %v590
    %v3375 = vunpack.c.l.b16 %v591
    %v3376 = vunpack.c.h.b16 %v591
    %v3377 = vunpack.c.l.b16 %v592
    %v3378 = vunpack.c.h.b16 %v592
    %v3379 = vunpack.c.l.b16 %v593
    %v3380 = vunpack.c.h.b16 %v593
    %v3381 = vunpack.c.l.b16 %v594
    %v3382 = vunpack.c.h.b16 %v594
    %v3383 = vunpack.c.l.b16 %v595
    %v3384 = vunpack.c.h.b16 %v595
    %v3385 = vunpack.c.l.b16 %v596
    %v3386 = vunpack.c.h.b16 %v596
    %v3387 = vunpack.c.l.b16 %v597
    %v3388 = vunpack.c.h.b16 %v597
    %v3389 = vunpack.c.l.b16 %v598
    %v3390 = vunpack.c.h.b16 %v598
    %v3391 = vunpack.c.l.b16 %v599
    %v3392 = vunpack.c.h.b16 %v599
    %v3393 = vunpack.c.l.b16 %v600
    %v3394 = vunpack.c.h.b16 %v600
    %v3395 = vunpack.c.l.b16 %v601
    %v3396 = vunpack.c.h.b16 %v601
    %v3397 = vunpack.c.l.b16 %v602
    %v3398 = vunpack.c.h.b16 %v602
    %v3399 = vunpack.c.l.b16 %v603
    %v3400 = vunpack.c.h.b16 %v603
    %v3401 = vunpack.c.l.b16 %v604
    %v3402 = vunpack.c.h.b16 %v604
    %v3403 = vunpack.c.l.b16 %v605
    %v3404 = vunpack.c.h.b16 %v605
    %v3405 = vunpack.c.l.b16 %v606
    %v3406 = vunpack.c.h.b16 %v606
    %v3407 = vunpack.c.l.b16 %v607
    %v3408 = vunpack.c.h.b16 %v607
    %v3409 = vunpack.c.l.b16 %v608
    %v3410 = vunpack.c.h.b16 %v608
    %v3411 = vunpack.c.l.b16 %v609
    %v3412 = vunpack.c.h.b16 %v609
    %v3413 = vunpack.c.l.b16 %v610
    %v3414 = vunpack.c.h.b16 %v610
    %v3415 = vunpack.c.l.b16 %v611
    %v3416 = vunpack.c.h.b16 %v611
    %v3417 = vunpack.c.l.b16 %v612
    %v3418 = vunpack.c.h.b16 %v612
    %v3419 = vunpack.c.l.b16 %v613
    %v3420 = vunpack.c.h.b16 %v613
    %v3421 = vunpack.c.l.b16 %v614
    %v3422 = vunpack.c.h.b16 %v614
    %v3423 = vunpack.c.l.b16 %v615
    %v3424 = vunpack.c.h.b16 %v615
    %v3425 = vunpack.c.l.b16 %v616
    %v3426 = vunpack.c.h.b16 %v616
    %v3427 = vunpack.c.l.b16 %v617
    %v3428 = vunpack.c.h.b16 %v617
    %v3429 = vunpack.c.l.b16 %v618
    %v3430 = vunpack.c.h.b16 %v618
    %v3431 = vunpack.c.l.b16 %v619
    %v3432 = vunpack.c.h.b16 %v619
    %v3433 = vunpack.c.l.b16 %v620
    %v3434 = vunpack.c.h.b16 %v620
    %v3435 = vunpack.c.l.b16 %v621
    %v3436 = vunpack.c.h.b16 %v621
    %v3437 = vunpack.c.l.b16 %v622
    %v3438 = vunpack.c.h.b16 %v622
    %v3439 = vunpack.c.l.b16 %v623
    %v3440 = vunpack.c.h.b16 %v623
    %v3441 = vunpack.c.l.b16 %v624
    %v3442 = vunpack.c.h.b16 %v624
    %v3443 = vunpack.c.l.b16 %v625
    %v3444 = vunpack.c.h.b16 %v625
    %v3445 = vunpack.c.l.b16 %v626
    %v3446 = vunpack.c.h.b16 %v626
    %v3447 = vunpack.c.l.b16 %v627
    %v3448 = vunpack.c.h.b16 %v627
    %v3449 = vunpack.c.l.b16 %v628
    %v3450 = vunpack.c.h.b16 %v628
    %v3451 = vunpack.c.l.b16 %v629
    %v3452 = vunpack.c.h.b16 %v629
    %v3453 = vunpack.c.l.b16 %v630
    %v3454 = vunpack.c.h.b16 %v630
    %v3455 = vunpack.c.l.b16 %v631
    %v3456 = vunpack.c.h.b16 %v631
    %v3457 = vunpack.c.l.b16 %v632
    %v3458 = vunpack.c.h.b16 %v632
    %v3459 = vunpack.c.l.b16 %v633
    %v3460 = vunpack.c.h.b16 %v633
    %v3461 = vunpack.c.l.b16 %v634
    %v3462 = vunpack.c.h.b16 %v634
    %v3463 = vunpack.c.l.b16 %v635
    %v3464 = vunpack.c.h.b16 %v635
    %v3465 = vunpack.c.l.b16 %v636
    %v3466 = vunpack.c.h.b16 %v636
    %v3467 = vunpack.c.l.b16 %v637
    %v3468 = vunpack.c.h.b16 %v637
    %v3469 = vunpack.c.l.b16 %v638
    %v3470 = vunpack.c.h.b16 %v638
    %v3471 = vunpack.c.l.b16 %v639
    %v3472 = vunpack.c.h.b16 %v639
    %v3473 = vunpack.c.l.b16 %v640
    %v3474 = vunpack.c.h.b16 %v640
    %v3475 = vunpack.c.l.b16 %v641
    %v3476 = vunpack.c.h.b16 %v641
    %v3477 = vunpack.c.l.b16 %v642
    %v3478 = vunpack.c.h.b16 %v642
    %v3479 = vunpack.c.l.b16 %v643
    %v3480 = vunpack.c.h.b16 %v643
    %v3481 = vunpack.c.l.b16 %v644
    %v3482 = vunpack.c.h.b16 %v644
    %v3483 = vunpack.c.l.b16 %v645
    %v3484 = vunpack.c.h.b16 %v645
    %v3485 = vunpack.c.l.b16 %v646
    %v3486 = vunpack.c.h.b16 %v646
    %v3487 = vunpack.c.l.b16 %v647
    %v3488 = vunpack.c.h.b16 %v647
    %v3489 = vunpack.c.l.b16 %v648
    %v3490 = vunpack.c.h.b16 %v648
    %v3491 = vunpack.c.l.b16 %v649
    %v3492 = vunpack.c.h.b16 %v649
    %v3493 = vunpack.c.l.b16 %v650
    %v3494 = vunpack.c.h.b16 %v650
    %v3495 = vunpack.c.l.b16 %v651
    %v3496 = vunpack.c.h.b16 %v651
    %v3497 = vunpack.c.l.b16 %v652
    %v3498 = vunpack.c.h.b16 %v652
    %v3499 = vunpack.c.l.b16 %v653
    %v3500 = vunpack.c.h.b16 %v653
    %v3501 = vunpack.c.l.b16 %v654
    %v3502 = vunpack.c.h.b16 %v654
    %v3503 = vunpack.c.l.b16 %v655
    %v3504 = vunpack.c.h.b16 %v655
    %v3505 = vunpack.c.l.b16 %v656
    %v3506 = vunpack.c.h.b16 %v656
    %v3507 = vunpack.c.l.b16 %v657
    %v3508 = vunpack.c.h.b16 %v657
    %v3509 = vunpack.c.l.b16 %v658
    %v3510 = vunpack.c.h.b16 %v658
    %v3511 = vunpack.c.l.b16 %v659
    %v3512 = vunpack.c.h.b16 %v659
    %v3513 = vunpack.c.l.b16 %v660
    %v3514 = vunpack.c.h.b16 %v660
    %v3515 = vunpack.c.l.b16 %v661
    %v3516 = vunpack.c.h.b16 %v661
    %v3517 = vunpack.c.l.b16 %v662
    %v3518 = vunpack.c.h.b16 %v662
    %v3519 = vunpack.c.l.b16 %v663
    %v3520 = vunpack.c.h.b16 %v663
    %v3521 = vunpack.c.l.b16 %v664
    %v3522 = vunpack.c.h.b16 %v664
    %v3523 = vunpack.c.l.b16 %v665
    %v3524 = vunpack.c.h.b16 %v665
    %v3525 = vunpack.c.l.b16 %v666
    %v3526 = vunpack.c.h.b16 %v666
    %v3527 = vunpack.c.l.b16 %v667
    %v3528 = vunpack.c.h.b16 %v667
    %v3529 = vunpack.c.l.b16 %v668
    %v3530 = vunpack.c.h.b16 %v668
    %v3531 = vunpack.c.l.b16 %v669
    %v3532 = vunpack.c.h.b16 %v669
    %v3533 = vunpack.c.l.b16 %v670
    %v3534 = vunpack.c.h.b16 %v670
    %v3535 = vunpack.c.l.b16 %v671
    %v3536 = vunpack.c.h.b16 %v671
    %v3537 = vunpack.c.l.b16 %v672
    %v3538 = vunpack.c.h.b16 %v672
    %v3539 = vunpack.c.l.b16 %v673
    %v3540 = vunpack.c.h.b16 %v673
    %v3541 = vunpack.c.l.b16 %v674
    %v3542 = vunpack.c.h.b16 %v674
    %v3543 = vunpack.c.l.b16 %v675
    %v3544 = vunpack.c.h.b16 %v675
    %v3545 = vunpack.c.l.b16 %v676
    %v3546 = vunpack.c.h.b16 %v676
    %v3547 = vunpack.c.l.b16 %v677
    %v3548 = vunpack.c.h.b16 %v677
    %v3549 = vunpack.c.l.b16 %v678
    %v3550 = vunpack.c.h.b16 %v678
    %v3551 = vunpack.c.l.b16 %v679
    %v3552 = vunpack.c.h.b16 %v679
    %v3553 = vunpack.c.l.b16 %v680
    %v3554 = vunpack.c.h.b16 %v680
    %v3555 = vunpack.c.l.b16 %v681
    %v3556 = vunpack.c.h.b16 %v681
    %v3557 = vunpack.c.l.b16 %v682
    %v3558 = vunpack.c.h.b16 %v682
    %v3559 = vpack.c.b16 %v3311, %v3303
    %v3560 = vpack.c.b16 %v3312, %v3304
    %v3561 = vpack.c.b16 %v3313, %v3305
    %v3562 = vpack.c.b16 %v3314, %v3306
    %v3563 = vpack.c.b16 %v3315, %v3307
    %v3564 = vpack.c.b16 %v3316, %v3308
    %v3565 = vpack.c.b16 %v3317, %v3309
    %v3566 = vpack.c.b16 %v3318, %v3310
    %v3567 = vpack.c.b16 %v3327, %v3319
    %v3568 = vpack.c.b16 %v3328, %v3320
    %v3569 = vpack.c.b16 %v3329, %v3321
    %v3570 = vpack.c.b16 %v3330, %v3322
    %v3571 = vpack.c.b16 %v3331, %v3323
    %v3572 = vpack.c.b16 %v3332, %v3324
    %v3573 = vpack.c.b16 %v3333, %v3325
    %v3574 = vpack.c.b16 %v3334, %v3326
    %v3575 = vpack.c.b16 %v3343, %v3335
    %v3576 = vpack.c.b16 %v3344, %v3336
    %v3577 = vpack.c.b16 %v3345, %v3337
    %v3578 = vpack.c.b16 %v3346, %v3338
    %v3579 = vpack.c.b16 %v3347, %v3339
    %v3580 = vpack.c.b16 %v3348, %v3340
    %v3581 = vpack.c.b16 %v3349, %v3341
    %v3582 = vpack.c.b16 %v3350, %v3342
    %v3583 = vpack.c.b16 %v3359, %v3351
    %v3584 = vpack.c.b16 %v3360, %v3352
    %v3585 = vpack.c.b16 %v3361, %v3353
    %v3586 = vpack.c.b16 %v3362, %v3354
    %v3587 = vpack.c.b16 %v3363, %v3355
    %v3588 = vpack.c.b16 %v3364, %v3356
    %v3589 = vpack.c.b16 %v3365, %v3357
    %v3590 = vpack.c.b16 %v3366, %v3358
    %v3591 = vpack.c.b16 %v3375, %v3367
    %v3592 = vpack.c.b16 %v3376, %v3368
    %v3593 = vpack.c.b16 %v3377, %v3369
    %v3594 = vpack.c.b16 %v3378, %v3370
    %v3595 = vpack.c.b16 %v3379, %v3371
    %v3596 = vpack.c.b16 %v3380, %v3372
    %v3597 = vpack.c.b16 %v3381, %v3373
    %v3598 = vpack.c.b16 %v3382, %v3374
    %v3599 = vpack.c.b16 %v3391, %v3383
    %v3600 = vpack.c.b16 %v3392, %v3384
    %v3601 = vpack.c.b16 %v3393, %v3385
    %v3602 = vpack.c.b16 %v3394, %v3386
    %v3603 = vpack.c.b16 %v3395, %v3387
    %v3604 = vpack.c.b16 %v3396, %v3388
    %v3605 = vpack.c.b16 %v3397, %v3389
    %v3606 = vpack.c.b16 %v3398, %v3390
    %v3607 = vpack.c.b16 %v3407, %v3399
    %v3608 = vpack.c.b16 %v3408, %v3400
    %v3609 = vpack.c.b16 %v3409, %v3401
    %v3610 = vpack.c.b16 %v3410, %v3402
    %v3611 = vpack.c.b16 %v3411, %v3403
    %v3612 = vpack.c.b16 %v3412, %v3404
    %v3613 = vpack.c.b16 %v3413, %v3405
    %v3614 = vpack.c.b16 %v3414, %v3406
    %v3615 = vpack.c.b16 %v3423, %v3415
    %v3616 = vpack.c.b16 %v3424, %v3416
    %v3617 = vpack.c.b16 %v3425, %v3417
    %v3618 = vpack.c.b16 %v3426, %v3418
    %v3619 = vpack.c.b16 %v3427, %v3419
    %v3620 = vpack.c.b16 %v3428, %v3420
    %v3621 = vpack.c.b16 %v3429, %v3421
    %v3622 = vpack.c.b16 %v3430, %v3422
    %v3623 = vpack.c.b16 %v3439, %v3431
    %v3624 = vpack.c.b16 %v3440, %v3432
    %v3625 = vpack.c.b16 %v3441, %v3433
    %v3626 = vpack.c.b16 %v3442, %v3434
    %v3627 = vpack.c.b16 %v3443, %v3435
    %v3628 = vpack.c.b16 %v3444, %v3436
    %v3629 = vpack.c.b16 %v3445, %v3437
    %v3630 = vpack.c.b16 %v3446, %v3438
    %v3631 = vpack.c.b16 %v3455, %v3447
    %v3632 = vpack.c.b16 %v3456, %v3448
    %v3633 = vpack.c.b16 %v3457, %v3449
    %v3634 = vpack.c.b16 %v3458, %v3450
    %v3635 = vpack.c.b16 %v3459, %v3451
    %v3636 = vpack.c.b16 %v3460, %v3452
    %v3637 = vpack.c.b16 %v3461, %v3453
    %v3638 = vpack.c.b16 %v3462, %v3454
    %v3639 = vpack.c.b16 %v3471, %v3463
    %v3640 = vpack.c.b16 %v3472, %v3464
    %v3641 = vpack.c.b16 %v3473, %v3465
    %v3642 = vpack.c.b16 %v3474, %v3466
    %v3643 = vpack.c.b16 %v3475, %v3467
    %v3644 = vpack.c.b16 %v3476, %v3468
    %v3645 = vpack.c.b16 %v3477, %v3469
    %v3646 = vpack.c.b16 %v3478, %v3470
    %v3647 = vpack.c.b16 %v3487, %v3479
    %v3648 = vpack.c.b16 %v3488, %v3480
    %v3649 = vpack.c.b16 %v3489, %v3481
    %v3650 = vpack.c.b16 %v3490, %v3482
    %v3651 = vpack.c.b16 %v3491, %v3483
    %v3652 = vpack.c.b16 %v3492, %v3484
    %v3653 = vpack.c.b16 %v3493, %v3485
    %v3654 = vpack.c.b16 %v3494, %v3486
    %v3655 = vpack.c.b16 %v3503, %v3495
    %v3656 = vpack.c.b16 %v3504, %v3496
    %v3657 = vpack.c.b16 %v3505, %v3497
    %v3658 = vpack.c.b16 %v3506, %v3498
    %v3659 = vpack.c.b16 %v3507, %v3499
    %v3660 = vpack.c.b16 %v3508, %v3500
    %v3661 = vpack.c.b16 %v3509, %v3501
    %v3662 = vpack.c.b16 %v3510, %v3502
    %v3663 = vpack.c.b16 %v3519, %v3511
    %v3664 = vpack.c.b16 %v3520, %v3512
    %v3665 = vpack.c.b16 %v3521, %v3513
    %v3666 = vpack.c.b16 %v3522, %v3514
    %v3667 = vpack.c.b16 %v3523, %v3515
    %v3668 = vpack.c.b16 %v3524, %v3516
    %v3669 = vpack.c.b16 %v3525, %v3517
    %v3670 = vpack.c.b16 %v3526, %v3518
    %v3671 = vpack.c.b16 %v3535, %v3527
    %v3672 = vpack.c.b16 %v3536, %v3528
    %v3673 = vpack.c.b16 %v3537, %v3529
    %v3674 = vpack.c.b16 %v3538, %v3530
    %v3675 = vpack.c.b16 %v3539, %v3531
    %v3676 = vpack.c.b16 %v3540, %v3532
    %v3677 = vpack.c.b16 %v3541, %v3533
    %v3678 = vpack.c.b16 %v3542, %v3534
    %v3679 = vpack.c.b16 %v3551, %v3543
    %v3680 = vpack.c.b16 %v3552, %v3544
    %v3681 = vpack.c.b16 %v3553, %v3545
    %v3682 = vpack.c.b16 %v3554, %v3546
    %v3683 = vpack.c.b16 %v3555, %v3547
    %v3684 = vpack.c.b16 %v3556, %v3548
    %v3685 = vpack.c.b16 %v3557, %v3549
    %v3686 = vpack.c.b16 %v3558, %v3550
    %3815 = vmatprep.subr.bf16.mxu0 %v3560
    %3816 = vmatpush1.bf16.msra.mxu0 %v3559
    %3817 = vmatprep.subr.bf16.mxu0 %v3568
    %3818 = vmatpush1.bf16.msra.mxu0 %v3567
    %3819 = vmatprep.subr.bf16.mxu0 %v3576
    %3820 = vmatpush1.bf16.msra.mxu0 %v3575
    %3821 = vmatprep.subr.bf16.mxu0 %v3584
    %3822 = vmatpush1.bf16.msra.mxu0 %v3583
    %3823 = vmatprep.subr.bf16.mxu0 %v3592
    %3824 = vmatpush1.bf16.msra.mxu0 %v3591
    %3825 = vmatprep.subr.bf16.mxu0 %v3600
    %3826 = vmatpush1.bf16.msra.mxu0 %v3599
    %3827 = vmatprep.subr.bf16.mxu0 %v3608
    %3828 = vmatpush1.bf16.msra.mxu0 %v3607
    %3829 = vmatprep.subr.bf16.mxu0 %v3616
    %3830 = vmatpush1.bf16.msra.mxu0 %v3615
    %3831 = vmatprep.subr.bf16.mxu0 %v3624
    %3832 = vmatpush1.bf16.msra.mxu0 %v3623
    %3833 = vmatprep.subr.bf16.mxu0 %v3632
    %3834 = vmatpush1.bf16.msra.mxu0 %v3631
    %3835 = vmatprep.subr.bf16.mxu0 %v3640
    %3836 = vmatpush1.bf16.msra.mxu0 %v3639
    %3837 = vmatprep.subr.bf16.mxu0 %v3648
    %3838 = vmatpush1.bf16.msra.mxu0 %v3647
    %3839 = vmatprep.subr.bf16.mxu0 %v3656
    %3840 = vmatpush1.bf16.msra.mxu0 %v3655
    %3841 = vmatprep.subr.bf16.mxu0 %v3664
    %3842 = vmatpush1.bf16.msra.mxu0 %v3663
    %3843 = vmatprep.subr.bf16.mxu0 %v3672
    %3844 = vmatpush1.bf16.msra.mxu0 %v3671
    %3845 = vmatprep.subr.bf16.mxu0 %v3680
    %3846 = vmatpush1.bf16.msra.mxu0 %v3679
    %3847 = vmatprep.mubr.bf16.mxu0 %v3125
    %3848 = vmatmul.mubr.bf16.gmra.mrb[0].mxu0 %v3124
    %v3849 = vpop.f32.mrb[0].mxu0
    %v3850 = vadd.f32 %v3138, %v3849
    %v3851 = vpop.f32.mrb[0].mxu0
    %v3852 = vadd.f32 %v3142, %v3851
    %v3853 = vpop.f32.mrb[0].mxu0
    %v3854 = vadd.f32 %v3138, %v3853
    %v3855 = vpop.f32.mrb[0].mxu0
    %v3856 = vadd.f32 %v3142, %v3855
    %3857 = vmatprep.mubr.bf16.mxu0 %v3127
    %3858 = vmatmul.mubr.bf16.gmra.mrb[0].mxu0 %v3126
    %v3859 = vpop.f32.mrb[0].mxu0
    %v3860 = vadd.f32 %v3138, %v3859
    %v3861 = vpop.f32.mrb[0].mxu0
    %v3862 = vadd.f32 %v3142, %v3861
    %v3863 = vpop.f32.mrb[0].mxu0
    %v3864 = vadd.f32 %v3138, %v3863
    %v3865 = vpop.f32.mrb[0].mxu0
    %v3866 = vadd.f32 %v3142, %v3865
    %3867 = vmatprep.mubr.bf16.mxu0 %v3129
    %3868 = vmatmul.mubr.bf16.gmra.mrb[0].mxu0 %v3128
    %v3869 = vpop.f32.mrb[0].mxu0
    %v3870 = vadd.f32 %v3138, %v3869
    %v3871 = vpop.f32.mrb[0].mxu0
    %v3872 = vadd.f32 %v3142, %v3871
    %v3873 = vpop.f32.mrb[0].mxu0
    %v3874 = vadd.f32 %v3138, %v3873
    %v3875 = vpop.f32.mrb[0].mxu0
    %v3876 = vadd.f32 %v3142, %v3875
    %3877 = vmatprep.mubr.bf16.mxu0 %v3131
    %3878 = vmatmul.mubr.bf16.gmra.mrb[0].mxu0 %v3130
    %v3879 = vpop.f32.mrb[0].mxu0
    %v3880 = vadd.f32 %v3138, %v3879
    %v3881 = vpop.f32.mrb[0].mxu0
    %v3882 = vadd.f32 %v3142, %v3881
    %v3883 = vpop.f32.mrb[0].mxu0
    %v3884 = vadd.f32 %v3138, %v3883
    %v3885 = vpop.f32.mrb[0].mxu0
    %v3886 = vadd.f32 %v3142, %v3885
    %3887 = vmatprep.mubr.bf16.mxu0 %v3133
    %3888 = vmatmul.mubr.bf16.gmra.mrb[0].mxu0 %v3132
    %v3889 = vpop.f32.mrb[0].mxu0
    %v3890 = vadd.f32 %v3138, %v3889
    %v3891 = vpop.f32.mrb[0].mxu0
    %v3892 = vadd.f32 %v3142, %v3891
    %v3893 = vpop.f32.mrb[0].mxu0
    %v3894 = vadd.f32 %v3138, %v3893
    %v3895 = vpop.f32.mrb[0].mxu0
    %v3896 = vadd.f32 %v3142, %v3895
    %3897 = vdwg.mxu0
    %3898 = vmatprep.subr.bf16.mxu0 %v3562
    %3899 = vmatpush1.bf16.msra.mxu0 %v3561
    %3900 = vmatprep.subr.bf16.mxu0 %v3570
    %3901 = vmatpush1.bf16.msra.mxu0 %v3569
    %3902 = vmatprep.subr.bf16.mxu0 %v3578
    %3903 = vmatpush1.bf16.msra.mxu0 %v3577
    %3904 = vmatprep.subr.bf16.mxu0 %v3586
    %3905 = vmatpush1.bf16.msra.mxu0 %v3585
    %3906 = vmatprep.subr.bf16.mxu0 %v3594
    %3907 = vmatpush1.bf16.msra.mxu0 %v3593
    %3908 = vmatprep.subr.bf16.mxu0 %v3602
    %3909 = vmatpush1.bf16.msra.mxu0 %v3601
    %3910 = vmatprep.subr.bf16.mxu0 %v3610
    %3911 = vmatpush1.bf16.msra.mxu0 %v3609
    %3912 = vmatprep.subr.bf16.mxu0 %v3618
    %3913 = vmatpush1.bf16.msra.mxu0 %v3617
    %3914 = vmatprep.subr.bf16.mxu0 %v3626
    %3915 = vmatpush1.bf16.msra.mxu0 %v3625
    %3916 = vmatprep.subr.bf16.mxu0 %v3634
    %3917 = vmatpush1.bf16.msra.mxu0 %v3633
    %3918 = vmatprep.subr.bf16.mxu0 %v3642
    %3919 = vmatpush1.bf16.msra.mxu0 %v3641
    %3920 = vmatprep.subr.bf16.mxu0 %v3650
    %3921 = vmatpush1.bf16.msra.mxu0 %v3649
    %3922 = vmatprep.subr.bf16.mxu0 %v3658
    %3923 = vmatpush1.bf16.msra.mxu0 %v3657
    %3924 = vmatprep.subr.bf16.mxu0 %v3666
    %3925 = vmatpush1.bf16.msra.mxu0 %v3665
    %3926 = vmatprep.subr.bf16.mxu0 %v3674
    %3927 = vmatpush1.bf16.msra.mxu0 %v3673
    %3928 = vmatprep.subr.bf16.mxu0 %v3682
    %3929 = vmatpush1.bf16.msra.mxu0 %v3681
    %3930 = vmatprep.mubr.bf16.mxu0 %v3125
    %3931 = vmatmul.mubr.bf16.gmra.mrb[0].mxu0 %v3124
    %v3932 = vpop.f32.mrb[0].mxu0
    %v3933 = vadd.f32 %v3146, %v3932
    %v3934 = vpop.f32.mrb[0].mxu0
    %v3935 = vadd.f32 %v3150, %v3934
    %v3936 = vpop.f32.mrb[0].mxu0
    %v3937 = vadd.f32 %v3146, %v3936
    %v3938 = vpop.f32.mrb[0].mxu0
    %v3939 = vadd.f32 %v3150, %v3938
    %3940 = vmatprep.mubr.bf16.mxu0 %v3127
    %3941 = vmatmul.mubr.bf16.gmra.mrb[0].mxu0 %v3126
    %v3942 = vpop.f32.mrb[0].mxu0
    %v3943 = vadd.f32 %v3146, %v3942
    %v3944 = vpop.f32.mrb[0].mxu0
    %v3945 = vadd.f32 %v3150, %v3944
    %v3946 = vpop.f32.mrb[0].mxu0
    %v3947 = vadd.f32 %v3146, %v3946
    %v3948 = vpop.f32.mrb[0].mxu0
    %v3949 = vadd.f32 %v3150, %v3948
    %3950 = vmatprep.mubr.bf16.mxu0 %v3129
    %3951 = vmatmul.mubr.bf16.gmra.mrb[0].mxu0 %v3128
    %v3952 = vpop.f32.mrb[0].mxu0
    %v3953 = vadd.f32 %v3146, %v3952
    %v3954 = vpop.f32.mrb[0].mxu0
    %v3955 = vadd.f32 %v3150, %v3954
    %v3956 = vpop.f32.mrb[0].mxu0
    %v3957 = vadd.f32 %v3146, %v3956
    %v3958 = vpop.f32.mrb[0].mxu0
    %v3959 = vadd.f32 %v3150, %v3958
    %3960 = vmatprep.mubr.bf16.mxu0 %v3131
    %3961 = vmatmul.mubr.bf16.gmra.mrb[0].mxu0 %v3130
    %v3962 = vpop.f32.mrb[0].mxu0
    %v3963 = vadd.f32 %v3146, %v3962
    %v3964 = vpop.f32.mrb[0].mxu0
    %v3965 = vadd.f32 %v3150, %v3964
    %v3966 = vpop.f32.mrb[0].mxu0
    %v3967 = vadd.f32 %v3146, %v3966
    %v3968 = vpop.f32.mrb[0].mxu0
    %v3969 = vadd.f32 %v3150, %v3968
    %3970 = vmatprep.mubr.bf16.mxu0 %v3133
    %3971 = vmatmul.mubr.bf16.gmra.mrb[0].mxu0 %v3132
    %v3972 = vpop.f32.mrb[0].mxu0
    %v3973 = vadd.f32 %v3146, %v3972
    %v3974 = vpop.f32.mrb[0].mxu0
    %v3975 = vadd.f32 %v3150, %v3974
    %v3976 = vpop.f32.mrb[0].mxu0
    %v3977 = vadd.f32 %v3146, %v3976
    %v3978 = vpop.f32.mrb[0].mxu0
    %v3979 = vadd.f32 %v3150, %v3978
    %3980 = vdwg.mxu0
    %3981 = vmatprep.subr.bf16.mxu0 %v3564
    %3982 = vmatpush1.bf16.msra.mxu0 %v3563
    %3983 = vmatprep.subr.bf16.mxu0 %v3572
    %3984 = vmatpush1.bf16.msra.mxu0 %v3571
    %3985 = vmatprep.subr.bf16.mxu0 %v3580
    %3986 = vmatpush1.bf16.msra.mxu0 %v3579
    %3987 = vmatprep.subr.bf16.mxu0 %v3588
    %3988 = vmatpush1.bf16.msra.mxu0 %v3587
    %3989 = vmatprep.subr.bf16.mxu0 %v3596
    %3990 = vmatpush1.bf16.msra.mxu0 %v3595
    %3991 = vmatprep.subr.bf16.mxu0 %v3604
    %3992 = vmatpush1.bf16.msra.mxu0 %v3603
    %3993 = vmatprep.subr.bf16.mxu0 %v3612
    %3994 = vmatpush1.bf16.msra.mxu0 %v3611
    %3995 = vmatprep.subr.bf16.mxu0 %v3620
    %3996 = vmatpush1.bf16.msra.mxu0 %v3619
    %3997 = vmatprep.subr.bf16.mxu0 %v3628
    %3998 = vmatpush1.bf16.msra.mxu0 %v3627
    %3999 = vmatprep.subr.bf16.mxu0 %v3636
    %4000 = vmatpush1.bf16.msra.mxu0 %v3635
    %4001 = vmatprep.subr.bf16.mxu0 %v3644
    %4002 = vmatpush1.bf16.msra.mxu0 %v3643
    %4003 = vmatprep.subr.bf16.mxu0 %v3652
    %4004 = vmatpush1.bf16.msra.mxu0 %v3651
    %4005 = vmatprep.subr.bf16.mxu0 %v3660
    %4006 = vmatpush1.bf16.msra.mxu0 %v3659
    %4007 = vmatprep.subr.bf16.mxu0 %v3668
    %4008 = vmatpush1.bf16.msra.mxu0 %v3667
    %4009 = vmatprep.subr.bf16.mxu0 %v3676
    %4010 = vmatpush1.bf16.msra.mxu0 %v3675
    %4011 = vmatprep.subr.bf16.mxu0 %v3684
    %4012 = vmatpush1.bf16.msra.mxu0 %v3683
    %4013 = vmatprep.mubr.bf16.mxu0 %v3125
    %4014 = vmatmul.mubr.bf16.gmra.mrb[0].mxu0 %v3124
    %v4015 = vpop.f32.mrb[0].mxu0
    %v4016 = vadd.f32 %v3154, %v4015
    %v4017 = vpop.f32.mrb[0].mxu0
    %v4018 = vadd.f32 %v3158, %v4017
    %v4019 = vpop.f32.mrb[0].mxu0
    %v4020 = vadd.f32 %v3154, %v4019
    %v4021 = vpop.f32.mrb[0].mxu0
    %v4022 = vadd.f32 %v3158, %v4021
    %4023 = vmatprep.mubr.bf16.mxu0 %v3127
    %4024 = vmatmul.mubr.bf16.gmra.mrb[0].mxu0 %v3126
    %v4025 = vpop.f32.mrb[0].mxu0
    %v4026 = vadd.f32 %v3154, %v4025
    %v4027 = vpop.f32.mrb[0].mxu0
    %v4028 = vadd.f32 %v3158, %v4027
    %v4029 = vpop.f32.mrb[0].mxu0
    %v4030 = vadd.f32 %v3154, %v4029
    %v4031 = vpop.f32.mrb[0].mxu0
    %v4032 = vadd.f32 %v3158, %v4031
    %4033 = vmatprep.mubr.bf16.mxu0 %v3129
    %4034 = vmatmul.mubr.bf16.gmra.mrb[0].mxu0 %v3128
    %v4035 = vpop.f32.mrb[0].mxu0
    %v4036 = vadd.f32 %v3154, %v4035
    %v4037 = vpop.f32.mrb[0].mxu0
    %v4038 = vadd.f32 %v3158, %v4037
    %v4039 = vpop.f32.mrb[0].mxu0
    %v4040 = vadd.f32 %v3154, %v4039
    %v4041 = vpop.f32.mrb[0].mxu0
    %v4042 = vadd.f32 %v3158, %v4041
    %4043 = vmatprep.mubr.bf16.mxu0 %v3131
    %4044 = vmatmul.mubr.bf16.gmra.mrb[0].mxu0 %v3130
    %v4045 = vpop.f32.mrb[0].mxu0
    %v4046 = vadd.f32 %v3154, %v4045
    %v4047 = vpop.f32.mrb[0].mxu0
    %v4048 = vadd.f32 %v3158, %v4047
    %v4049 = vpop.f32.mrb[0].mxu0
    %v4050 = vadd.f32 %v3154, %v4049
    %v4051 = vpop.f32.mrb[0].mxu0
    %v4052 = vadd.f32 %v3158, %v4051
    %4053 = vmatprep.mubr.bf16.mxu0 %v3133
    %4054 = vmatmul.mubr.bf16.gmra.mrb[0].mxu0 %v3132
    %v4055 = vpop.f32.mrb[0].mxu0
    %v4056 = vadd.f32 %v3154, %v4055
    %v4057 = vpop.f32.mrb[0].mxu0
    %v4058 = vadd.f32 %v3158, %v4057
    %v4059 = vpop.f32.mrb[0].mxu0
    %v4060 = vadd.f32 %v3154, %v4059
    %v4061 = vpop.f32.mrb[0].mxu0
    %v4062 = vadd.f32 %v3158, %v4061
    %4063 = vdwg.mxu0
    %4064 = vmatprep.subr.bf16.mxu0 %v3566
    %4065 = vmatpush1.bf16.msra.mxu0 %v3565
    %4066 = vmatprep.subr.bf16.mxu0 %v3574
    %4067 = vmatpush1.bf16.msra.mxu0 %v3573
    %4068 = vmatprep.subr.bf16.mxu0 %v3582
    %4069 = vmatpush1.bf16.msra.mxu0 %v3581
    %4070 = vmatprep.subr.bf16.mxu0 %v3590
    %4071 = vmatpush1.bf16.msra.mxu0 %v3589
    %4072 = vmatprep.subr.bf16.mxu0 %v3598
    %4073 = vmatpush1.bf16.msra.mxu0 %v3597
    %4074 = vmatprep.subr.bf16.mxu0 %v3606
    %4075 = vmatpush1.bf16.msra.mxu0 %v3605
    %4076 = vmatprep.subr.bf16.mxu0 %v3614
    %4077 = vmatpush1.bf16.msra.mxu0 %v3613
    %4078 = vmatprep.subr.bf16.mxu0 %v3622
    %4079 = vmatpush1.bf16.msra.mxu0 %v3621
    %4080 = vmatprep.subr.bf16.mxu0 %v3630
    %4081 = vmatpush1.bf16.msra.mxu0 %v3629
    %4082 = vmatprep.subr.bf16.mxu0 %v3638
    %4083 = vmatpush1.bf16.msra.mxu0 %v3637
    %4084 = vmatprep.subr.bf16.mxu0 %v3646
    %4085 = vmatpush1.bf16.msra.mxu0 %v3645
    %4086 = vmatprep.subr.bf16.mxu0 %v3654
    %4087 = vmatpush1.bf16.msra.mxu0 %v3653
    %4088 = vmatprep.subr.bf16.mxu0 %v3662
    %4089 = vmatpush1.bf16.msra.mxu0 %v3661
    %4090 = vmatprep.subr.bf16.mxu0 %v3670
    %4091 = vmatpush1.bf16.msra.mxu0 %v3669
    %4092 = vmatprep.subr.bf16.mxu0 %v3678
    %4093 = vmatpush1.bf16.msra.mxu0 %v3677
    %4094 = vmatprep.subr.bf16.mxu0 %v3686
    %4095 = vmatpush1.bf16.msra.mxu0 %v3685
    %4096 = vmatprep.mubr.bf16.mxu0 %v3125
    %4097 = vmatmul.mubr.bf16.gmra.mrb[0].mxu0 %v3124
    %v4098 = vpop.f32.mrb[0].mxu0
    %v4099 = vadd.f32 %v3162, %v4098
    %v4100 = vpop.f32.mrb[0].mxu0
    %v4101 = vadd.f32 %v3166, %v4100
    %v4102 = vpop.f32.mrb[0].mxu0
    %v4103 = vadd.f32 %v3162, %v4102
    %v4104 = vpop.f32.mrb[0].mxu0
    %v4105 = vadd.f32 %v3166, %v4104
    %4106 = vmatprep.mubr.bf16.mxu0 %v3127
    %4107 = vmatmul.mubr.bf16.gmra.mrb[0].mxu0 %v3126
    %v4108 = vpop.f32.mrb[0].mxu0
    %v4109 = vadd.f32 %v3162, %v4108
    %v4110 = vpop.f32.mrb[0].mxu0
    %v4111 = vadd.f32 %v3166, %v4110
    %v4112 = vpop.f32.mrb[0].mxu0
    %v4113 = vadd.f32 %v3162, %v4112
    %v4114 = vpop.f32.mrb[0].mxu0
    %v4115 = vadd.f32 %v3166, %v4114
    %4116 = vmatprep.mubr.bf16.mxu0 %v3129
    %4117 = vmatmul.mubr.bf16.gmra.mrb[0].mxu0 %v3128
    %v4118 = vpop.f32.mrb[0].mxu0
    %v4119 = vadd.f32 %v3162, %v4118
    %v4120 = vpop.f32.mrb[0].mxu0
    %v4121 = vadd.f32 %v3166, %v4120
    %v4122 = vpop.f32.mrb[0].mxu0
    %v4123 = vadd.f32 %v3162, %v4122
    %v4124 = vpop.f32.mrb[0].mxu0
    %v4125 = vadd.f32 %v3166, %v4124
    %4126 = vmatprep.mubr.bf16.mxu0 %v3131
    %4127 = vmatmul.mubr.bf16.gmra.mrb[0].mxu0 %v3130
    %v4128 = vpop.f32.mrb[0].mxu0
    %v4129 = vadd.f32 %v3162, %v4128
    %v4130 = vpop.f32.mrb[0].mxu0
    %v4131 = vadd.f32 %v3166, %v4130
    %v4132 = vpop.f32.mrb[0].mxu0
    %v4133 = vadd.f32 %v3162, %v4132
    %v4134 = vpop.f32.mrb[0].mxu0
    %v4135 = vadd.f32 %v3166, %v4134
    %4136 = vmatprep.mubr.bf16.mxu0 %v3133
    %4137 = vmatmul.mubr.bf16.gmra.mrb[0].mxu0 %v3132
    %v4138 = vpop.f32.mrb[0].mxu0
    %v4139 = vadd.f32 %v3162, %v4138
    %v4140 = vpop.f32.mrb[0].mxu0
    %v4141 = vadd.f32 %v3166, %v4140
    %v4142 = vpop.f32.mrb[0].mxu0
    %v4143 = vadd.f32 %v3162, %v4142
    %v4144 = vpop.f32.mrb[0].mxu0
    %v4145 = vadd.f32 %v3166, %v4144
    %4146 = vdwg.mxu0
    %v4147 = vmax.f32 %v3850, 0.0
    %v4148 = vmax.f32 %v3852, 0.0
    %v4149 = vmax.f32 %v3933, 0.0
    %v4150 = vmax.f32 %v3935, 0.0
    %v4151 = vmax.f32 %v4016, 0.0
    %v4152 = vmax.f32 %v4018, 0.0
    %v4153 = vmax.f32 %v4099, 0.0
    %v4154 = vmax.f32 %v4101, 0.0
    %v4155 = vmax.f32 %v3854, 0.0
    %v4156 = vmax.f32 %v3856, 0.0
    %v4157 = vmax.f32 %v3937, 0.0
    %v4158 = vmax.f32 %v3939, 0.0
    %v4159 = vmax.f32 %v4020, 0.0
    %v4160 = vmax.f32 %v4022, 0.0
    %v4161 = vmax.f32 %v4103, 0.0
    %v4162 = vmax.f32 %v4105, 0.0
    %v4163 = vmax.f32 %v3860, 0.0
    %v4164 = vmax.f32 %v3862, 0.0
    %v4165 = vmax.f32 %v3943, 0.0
    %v4166 = vmax.f32 %v3945, 0.0
    %v4167 = vmax.f32 %v4026, 0.0
    %v4168 = vmax.f32 %v4028, 0.0
    %v4169 = vmax.f32 %v4109, 0.0
    %v4170 = vmax.f32 %v4111, 0.0
    %v4171 = vmax.f32 %v3864, 0.0
    %v4172 = vmax.f32 %v3866, 0.0
    %v4173 = vmax.f32 %v3947, 0.0
    %v4174 = vmax.f32 %v3949, 0.0
    %v4175 = vmax.f32 %v4030, 0.0
    %v4176 = vmax.f32 %v4032, 0.0
    %v4177 = vmax.f32 %v4113, 0.0
    %v4178 = vmax.f32 %v4115, 0.0
    %v4179 = vmax.f32 %v3870, 0.0
    %v4180 = vmax.f32 %v3872, 0.0
    %v4181 = vmax.f32 %v3953, 0.0
    %v4182 = vmax.f32 %v3955, 0.0
    %v4183 = vmax.f32 %v4036, 0.0
    %v4184 = vmax.f32 %v4038, 0.0
    %v4185 = vmax.f32 %v4119, 0.0
    %v4186 = vmax.f32 %v4121, 0.0
    %v4187 = vmax.f32 %v3874, 0.0
    %v4188 = vmax.f32 %v3876, 0.0
    %v4189 = vmax.f32 %v3957, 0.0
    %v4190 = vmax.f32 %v3959, 0.0
    %v4191 = vmax.f32 %v4040, 0.0
    %v4192 = vmax.f32 %v4042, 0.0
    %v4193 = vmax.f32 %v4123, 0.0
    %v4194 = vmax.f32 %v4125, 0.0
    %v4195 = vmax.f32 %v3880, 0.0
    %v4196 = vmax.f32 %v3882, 0.0
    %v4197 = vmax.f32 %v3963, 0.0
    %v4198 = vmax.f32 %v3965, 0.0
    %v4199 = vmax.f32 %v4046, 0.0
    %v4200 = vmax.f32 %v4048, 0.0
    %v4201 = vmax.f32 %v4129, 0.0
    %v4202 = vmax.f32 %v4131, 0.0
    %v4203 = vmax.f32 %v3884, 0.0
    %v4204 = vmax.f32 %v3886, 0.0
    %v4205 = vmax.f32 %v3967, 0.0
    %v4206 = vmax.f32 %v3969, 0.0
    %v4207 = vmax.f32 %v4050, 0.0
    %v4208 = vmax.f32 %v4052, 0.0
    %v4209 = vmax.f32 %v4133, 0.0
    %v4210 = vmax.f32 %v4135, 0.0
    %v4211 = vmax.f32 %v3890, 0.0
    %v4212 = vmax.f32 %v3892, 0.0
    %v4213 = vmax.f32 %v3973, 0.0
    %v4214 = vmax.f32 %v3975, 0.0
    %v4215 = vmax.f32 %v4056, 0.0
    %v4216 = vmax.f32 %v4058, 0.0
    %v4217 = vmax.f32 %v4139, 0.0
    %v4218 = vmax.f32 %v4141, 0.0
    %v4219 = vmax.f32 %v3894, 0.0
    %v4220 = vmax.f32 %v3896, 0.0
    %v4221 = vmax.f32 %v3977, 0.0
    %v4222 = vmax.f32 %v3979, 0.0
    %v4223 = vmax.f32 %v4060, 0.0
    %v4224 = vmax.f32 %v4062, 0.0
    %v4225 = vmax.f32 %v4143, 0.0
    %v4226 = vmax.f32 %v4145, 0.0
    %v4227 = vpack.c.bf16 %v4155, %v4147
    %v4228 = vpack.c.bf16 %v4156, %v4148
    %v4229 = vpack.c.bf16 %v4157, %v4149
    %v4230 = vpack.c.bf16 %v4158, %v4150
    %v4231 = vpack.c.bf16 %v4159, %v4151
    %v4232 = vpack.c.bf16 %v4160, %v4152
    %v4233 = vpack.c.bf16 %v4161, %v4153
    %v4234 = vpack.c.bf16 %v4162, %v4154
    %v4235 = vpack.c.bf16 %v4171, %v4163
    %v4236 = vpack.c.bf16 %v4172, %v4164
    %v4237 = vpack.c.bf16 %v4173, %v4165
    %v4238 = vpack.c.bf16 %v4174, %v4166
    %v4239 = vpack.c.bf16 %v4175, %v4167
    %v4240 = vpack.c.bf16 %v4176, %v4168
    %v4241 = vpack.c.bf16 %v4177, %v4169
    %v4242 = vpack.c.bf16 %v4178, %v4170
    %v4243 = vpack.c.bf16 %v4187, %v4179
    %v4244 = vpack.c.bf16 %v4188, %v4180
    %v4245 = vpack.c.bf16 %v4189, %v4181
    %v4246 = vpack.c.bf16 %v4190, %v4182
    %v4247 = vpack.c.bf16 %v4191, %v4183
    %v4248 = vpack.c.bf16 %v4192, %v4184
    %v4249 = vpack.c.bf16 %v4193, %v4185
    %v4250 = vpack.c.bf16 %v4194, %v4186
    %v4251 = vpack.c.bf16 %v4203, %v4195
    %v4252 = vpack.c.bf16 %v4204, %v4196
    %v4253 = vpack.c.bf16 %v4205, %v4197
    %v4254 = vpack.c.bf16 %v4206, %v4198
    %v4255 = vpack.c.bf16 %v4207, %v4199
    %v4256 = vpack.c.bf16 %v4208, %v4200
    %v4257 = vpack.c.bf16 %v4209, %v4201
    %v4258 = vpack.c.bf16 %v4210, %v4202
    %v4259 = vpack.c.bf16 %v4219, %v4211
    %v4260 = vpack.c.bf16 %v4220, %v4212
    %v4261 = vpack.c.bf16 %v4221, %v4213
    %v4262 = vpack.c.bf16 %v4222, %v4214
    %v4263 = vpack.c.bf16 %v4223, %v4215
    %v4264 = vpack.c.bf16 %v4224, %v4216
    %v4265 = vpack.c.bf16 %v4225, %v4217
    %v4266 = vpack.c.bf16 %v4226, %v4218
    %v4268 = vlaneseq
    %v4269 = vshrl.u32 %v4268, 7
    %v4270 = vsub.s32 0, %v4269
    %v4271 = vrot.slane %v812, %v4270
    %v4272 = vlaneseq
    %v4273 = vshrl.u32 %v4272, 7
    %v4274 = vsub.s32 1, %v4273
    %v4275 = vrot.slane %v812, %v4274
    %v4406 = vunpack.c.l.b16 %v684
    %v4407 = vunpack.c.h.b16 %v684
    %v4408 = vunpack.c.l.b16 %v685
    %v4409 = vunpack.c.h.b16 %v685
    %v4410 = vunpack.c.l.b16 %v686
    %v4411 = vunpack.c.h.b16 %v686
    %v4412 = vunpack.c.l.b16 %v687
    %v4413 = vunpack.c.h.b16 %v687
    %v4414 = vunpack.c.l.b16 %v688
    %v4415 = vunpack.c.h.b16 %v688
    %v4416 = vunpack.c.l.b16 %v689
    %v4417 = vunpack.c.h.b16 %v689
    %v4418 = vunpack.c.l.b16 %v690
    %v4419 = vunpack.c.h.b16 %v690
    %v4420 = vunpack.c.l.b16 %v691
    %v4421 = vunpack.c.h.b16 %v691
    %v4422 = vunpack.c.l.b16 %v692
    %v4423 = vunpack.c.h.b16 %v692
    %v4424 = vunpack.c.l.b16 %v693
    %v4425 = vunpack.c.h.b16 %v693
    %v4426 = vunpack.c.l.b16 %v694
    %v4427 = vunpack.c.h.b16 %v694
    %v4428 = vunpack.c.l.b16 %v695
    %v4429 = vunpack.c.h.b16 %v695
    %v4430 = vunpack.c.l.b16 %v696
    %v4431 = vunpack.c.h.b16 %v696
    %v4432 = vunpack.c.l.b16 %v697
    %v4433 = vunpack.c.h.b16 %v697
    %v4434 = vunpack.c.l.b16 %v698
    %v4435 = vunpack.c.h.b16 %v698
    %v4436 = vunpack.c.l.b16 %v699
    %v4437 = vunpack.c.h.b16 %v699
    %v4438 = vunpack.c.l.b16 %v700
    %v4439 = vunpack.c.h.b16 %v700
    %v4440 = vunpack.c.l.b16 %v701
    %v4441 = vunpack.c.h.b16 %v701
    %v4442 = vunpack.c.l.b16 %v702
    %v4443 = vunpack.c.h.b16 %v702
    %v4444 = vunpack.c.l.b16 %v703
    %v4445 = vunpack.c.h.b16 %v703
    %v4446 = vunpack.c.l.b16 %v704
    %v4447 = vunpack.c.h.b16 %v704
    %v4448 = vunpack.c.l.b16 %v705
    %v4449 = vunpack.c.h.b16 %v705
    %v4450 = vunpack.c.l.b16 %v706
    %v4451 = vunpack.c.h.b16 %v706
    %v4452 = vunpack.c.l.b16 %v707
    %v4453 = vunpack.c.h.b16 %v707
    %v4454 = vunpack.c.l.b16 %v708
    %v4455 = vunpack.c.h.b16 %v708
    %v4456 = vunpack.c.l.b16 %v709
    %v4457 = vunpack.c.h.b16 %v709
    %v4458 = vunpack.c.l.b16 %v710
    %v4459 = vunpack.c.h.b16 %v710
    %v4460 = vunpack.c.l.b16 %v711
    %v4461 = vunpack.c.h.b16 %v711
    %v4462 = vunpack.c.l.b16 %v712
    %v4463 = vunpack.c.h.b16 %v712
    %v4464 = vunpack.c.l.b16 %v713
    %v4465 = vunpack.c.h.b16 %v713
    %v4466 = vunpack.c.l.b16 %v714
    %v4467 = vunpack.c.h.b16 %v714
    %v4468 = vunpack.c.l.b16 %v715
    %v4469 = vunpack.c.h.b16 %v715
    %v4470 = vunpack.c.l.b16 %v716
    %v4471 = vunpack.c.h.b16 %v716
    %v4472 = vunpack.c.l.b16 %v717
    %v4473 = vunpack.c.h.b16 %v717
    %v4474 = vunpack.c.l.b16 %v718
    %v4475 = vunpack.c.h.b16 %v718
    %v4476 = vunpack.c.l.b16 %v719
    %v4477 = vunpack.c.h.b16 %v719
    %v4478 = vunpack.c.l.b16 %v720
    %v4479 = vunpack.c.h.b16 %v720
    %v4480 = vunpack.c.l.b16 %v721
    %v4481 = vunpack.c.h.b16 %v721
    %v4482 = vunpack.c.l.b16 %v722
    %v4483 = vunpack.c.h.b16 %v722
    %v4484 = vunpack.c.l.b16 %v723
    %v4485 = vunpack.c.h.b16 %v723
    %v4486 = vunpack.c.l.b16 %v724
    %v4487 = vunpack.c.h.b16 %v724
    %v4488 = vunpack.c.l.b16 %v725
    %v4489 = vunpack.c.h.b16 %v725
    %v4490 = vunpack.c.l.b16 %v726
    %v4491 = vunpack.c.h.b16 %v726
    %v4492 = vunpack.c.l.b16 %v727
    %v4493 = vunpack.c.h.b16 %v727
    %v4494 = vunpack.c.l.b16 %v728
    %v4495 = vunpack.c.h.b16 %v728
    %v4496 = vunpack.c.l.b16 %v729
    %v4497 = vunpack.c.h.b16 %v729
    %v4498 = vunpack.c.l.b16 %v730
    %v4499 = vunpack.c.h.b16 %v730
    %v4500 = vunpack.c.l.b16 %v731
    %v4501 = vunpack.c.h.b16 %v731
    %v4502 = vunpack.c.l.b16 %v732
    %v4503 = vunpack.c.h.b16 %v732
    %v4504 = vunpack.c.l.b16 %v733
    %v4505 = vunpack.c.h.b16 %v733
    %v4506 = vunpack.c.l.b16 %v734
    %v4507 = vunpack.c.h.b16 %v734
    %v4508 = vunpack.c.l.b16 %v735
    %v4509 = vunpack.c.h.b16 %v735
    %v4510 = vunpack.c.l.b16 %v736
    %v4511 = vunpack.c.h.b16 %v736
    %v4512 = vunpack.c.l.b16 %v737
    %v4513 = vunpack.c.h.b16 %v737
    %v4514 = vunpack.c.l.b16 %v738
    %v4515 = vunpack.c.h.b16 %v738
    %v4516 = vunpack.c.l.b16 %v739
    %v4517 = vunpack.c.h.b16 %v739
    %v4518 = vunpack.c.l.b16 %v740
    %v4519 = vunpack.c.h.b16 %v740
    %v4520 = vunpack.c.l.b16 %v741
    %v4521 = vunpack.c.h.b16 %v741
    %v4522 = vunpack.c.l.b16 %v742
    %v4523 = vunpack.c.h.b16 %v742
    %v4524 = vunpack.c.l.b16 %v743
    %v4525 = vunpack.c.h.b16 %v743
    %v4526 = vunpack.c.l.b16 %v744
    %v4527 = vunpack.c.h.b16 %v744
    %v4528 = vunpack.c.l.b16 %v745
    %v4529 = vunpack.c.h.b16 %v745
    %v4530 = vunpack.c.l.b16 %v746
    %v4531 = vunpack.c.h.b16 %v746
    %v4532 = vunpack.c.l.b16 %v747
    %v4533 = vunpack.c.h.b16 %v747
    %v4534 = vunpack.c.l.b16 %v748
    %v4535 = vunpack.c.h.b16 %v748
    %v4536 = vunpack.c.l.b16 %v749
    %v4537 = vunpack.c.h.b16 %v749
    %v4538 = vunpack.c.l.b16 %v750
    %v4539 = vunpack.c.h.b16 %v750
    %v4540 = vunpack.c.l.b16 %v751
    %v4541 = vunpack.c.h.b16 %v751
    %v4542 = vunpack.c.l.b16 %v752
    %v4543 = vunpack.c.h.b16 %v752
    %v4544 = vunpack.c.l.b16 %v753
    %v4545 = vunpack.c.h.b16 %v753
    %v4546 = vunpack.c.l.b16 %v754
    %v4547 = vunpack.c.h.b16 %v754
    %v4548 = vunpack.c.l.b16 %v755
    %v4549 = vunpack.c.h.b16 %v755
    %v4550 = vunpack.c.l.b16 %v756
    %v4551 = vunpack.c.h.b16 %v756
    %v4552 = vunpack.c.l.b16 %v757
    %v4553 = vunpack.c.h.b16 %v757
    %v4554 = vunpack.c.l.b16 %v758
    %v4555 = vunpack.c.h.b16 %v758
    %v4556 = vunpack.c.l.b16 %v759
    %v4557 = vunpack.c.h.b16 %v759
    %v4558 = vunpack.c.l.b16 %v760
    %v4559 = vunpack.c.h.b16 %v760
    %v4560 = vunpack.c.l.b16 %v761
    %v4561 = vunpack.c.h.b16 %v761
    %v4562 = vunpack.c.l.b16 %v762
    %v4563 = vunpack.c.h.b16 %v762
    %v4564 = vunpack.c.l.b16 %v763
    %v4565 = vunpack.c.h.b16 %v763
    %v4566 = vunpack.c.l.b16 %v764
    %v4567 = vunpack.c.h.b16 %v764
    %v4568 = vunpack.c.l.b16 %v765
    %v4569 = vunpack.c.h.b16 %v765
    %v4570 = vunpack.c.l.b16 %v766
    %v4571 = vunpack.c.h.b16 %v766
    %v4572 = vunpack.c.l.b16 %v767
    %v4573 = vunpack.c.h.b16 %v767
    %v4574 = vunpack.c.l.b16 %v768
    %v4575 = vunpack.c.h.b16 %v768
    %v4576 = vunpack.c.l.b16 %v769
    %v4577 = vunpack.c.h.b16 %v769
    %v4578 = vunpack.c.l.b16 %v770
    %v4579 = vunpack.c.h.b16 %v770
    %v4580 = vunpack.c.l.b16 %v771
    %v4581 = vunpack.c.h.b16 %v771
    %v4582 = vunpack.c.l.b16 %v772
    %v4583 = vunpack.c.h.b16 %v772
    %v4584 = vunpack.c.l.b16 %v773
    %v4585 = vunpack.c.h.b16 %v773
    %v4586 = vunpack.c.l.b16 %v774
    %v4587 = vunpack.c.h.b16 %v774
    %v4588 = vunpack.c.l.b16 %v775
    %v4589 = vunpack.c.h.b16 %v775
    %v4590 = vunpack.c.l.b16 %v776
    %v4591 = vunpack.c.h.b16 %v776
    %v4592 = vunpack.c.l.b16 %v777
    %v4593 = vunpack.c.h.b16 %v777
    %v4594 = vunpack.c.l.b16 %v778
    %v4595 = vunpack.c.h.b16 %v778
    %v4596 = vunpack.c.l.b16 %v779
    %v4597 = vunpack.c.h.b16 %v779
    %v4598 = vunpack.c.l.b16 %v780
    %v4599 = vunpack.c.h.b16 %v780
    %v4600 = vunpack.c.l.b16 %v781
    %v4601 = vunpack.c.h.b16 %v781
    %v4602 = vunpack.c.l.b16 %v782
    %v4603 = vunpack.c.h.b16 %v782
    %v4604 = vunpack.c.l.b16 %v783
    %v4605 = vunpack.c.h.b16 %v783
    %v4606 = vunpack.c.l.b16 %v784
    %v4607 = vunpack.c.h.b16 %v784
    %v4608 = vunpack.c.l.b16 %v785
    %v4609 = vunpack.c.h.b16 %v785
    %v4610 = vunpack.c.l.b16 %v786
    %v4611 = vunpack.c.h.b16 %v786
    %v4612 = vunpack.c.l.b16 %v787
    %v4613 = vunpack.c.h.b16 %v787
    %v4614 = vunpack.c.l.b16 %v788
    %v4615 = vunpack.c.h.b16 %v788
    %v4616 = vunpack.c.l.b16 %v789
    %v4617 = vunpack.c.h.b16 %v789
    %v4618 = vunpack.c.l.b16 %v790
    %v4619 = vunpack.c.h.b16 %v790
    %v4620 = vunpack.c.l.b16 %v791
    %v4621 = vunpack.c.h.b16 %v791
    %v4622 = vunpack.c.l.b16 %v792
    %v4623 = vunpack.c.h.b16 %v792
    %v4624 = vunpack.c.l.b16 %v793
    %v4625 = vunpack.c.h.b16 %v793
    %v4626 = vunpack.c.l.b16 %v794
    %v4627 = vunpack.c.h.b16 %v794
    %v4628 = vunpack.c.l.b16 %v795
    %v4629 = vunpack.c.h.b16 %v795
    %v4630 = vunpack.c.l.b16 %v796
    %v4631 = vunpack.c.h.b16 %v796
    %v4632 = vunpack.c.l.b16 %v797
    %v4633 = vunpack.c.h.b16 %v797
    %v4634 = vunpack.c.l.b16 %v798
    %v4635 = vunpack.c.h.b16 %v798
    %v4636 = vunpack.c.l.b16 %v799
    %v4637 = vunpack.c.h.b16 %v799
    %v4638 = vunpack.c.l.b16 %v800
    %v4639 = vunpack.c.h.b16 %v800
    %v4640 = vunpack.c.l.b16 %v801
    %v4641 = vunpack.c.h.b16 %v801
    %v4642 = vunpack.c.l.b16 %v802
    %v4643 = vunpack.c.h.b16 %v802
    %v4644 = vunpack.c.l.b16 %v803
    %v4645 = vunpack.c.h.b16 %v803
    %v4646 = vunpack.c.l.b16 %v804
    %v4647 = vunpack.c.h.b16 %v804
    %v4648 = vunpack.c.l.b16 %v805
    %v4649 = vunpack.c.h.b16 %v805
    %v4650 = vunpack.c.l.b16 %v806
    %v4651 = vunpack.c.h.b16 %v806
    %v4652 = vunpack.c.l.b16 %v807
    %v4653 = vunpack.c.h.b16 %v807
    %v4654 = vunpack.c.l.b16 %v808
    %v4655 = vunpack.c.h.b16 %v808
    %v4656 = vunpack.c.l.b16 %v809
    %v4657 = vunpack.c.h.b16 %v809
    %v4658 = vunpack.c.l.b16 %v810
    %v4659 = vunpack.c.h.b16 %v810
    %v4660 = vunpack.c.l.b16 %v811
    %v4661 = vunpack.c.h.b16 %v811
    %v4662 = vpack.c.b16 %v4408, %v4406
    %v4663 = vpack.c.b16 %v4409, %v4407
    %v4664 = vpack.c.b16 %v4412, %v4410
    %v4665 = vpack.c.b16 %v4413, %v4411
    %v4666 = vpack.c.b16 %v4416, %v4414
    %v4667 = vpack.c.b16 %v4417, %v4415
    %v4668 = vpack.c.b16 %v4420, %v4418
    %v4669 = vpack.c.b16 %v4421, %v4419
    %v4670 = vpack.c.b16 %v4424, %v4422
    %v4671 = vpack.c.b16 %v4425, %v4423
    %v4672 = vpack.c.b16 %v4428, %v4426
    %v4673 = vpack.c.b16 %v4429, %v4427
    %v4674 = vpack.c.b16 %v4432, %v4430
    %v4675 = vpack.c.b16 %v4433, %v4431
    %v4676 = vpack.c.b16 %v4436, %v4434
    %v4677 = vpack.c.b16 %v4437, %v4435
    %v4678 = vpack.c.b16 %v4440, %v4438
    %v4679 = vpack.c.b16 %v4441, %v4439
    %v4680 = vpack.c.b16 %v4444, %v4442
    %v4681 = vpack.c.b16 %v4445, %v4443
    %v4682 = vpack.c.b16 %v4448, %v4446
    %v4683 = vpack.c.b16 %v4449, %v4447
    %v4684 = vpack.c.b16 %v4452, %v4450
    %v4685 = vpack.c.b16 %v4453, %v4451
    %v4686 = vpack.c.b16 %v4456, %v4454
    %v4687 = vpack.c.b16 %v4457, %v4455
    %v4688 = vpack.c.b16 %v4460, %v4458
    %v4689 = vpack.c.b16 %v4461, %v4459
    %v4690 = vpack.c.b16 %v4464, %v4462
    %v4691 = vpack.c.b16 %v4465, %v4463
    %v4692 = vpack.c.b16 %v4468, %v4466
    %v4693 = vpack.c.b16 %v4469, %v4467
    %v4694 = vpack.c.b16 %v4472, %v4470
    %v4695 = vpack.c.b16 %v4473, %v4471
    %v4696 = vpack.c.b16 %v4476, %v4474
    %v4697 = vpack.c.b16 %v4477, %v4475
    %v4698 = vpack.c.b16 %v4480, %v4478
    %v4699 = vpack.c.b16 %v4481, %v4479
    %v4700 = vpack.c.b16 %v4484, %v4482
    %v4701 = vpack.c.b16 %v4485, %v4483
    %v4702 = vpack.c.b16 %v4488, %v4486
    %v4703 = vpack.c.b16 %v4489, %v4487
    %v4704 = vpack.c.b16 %v4492, %v4490
    %v4705 = vpack.c.b16 %v4493, %v4491
    %v4706 = vpack.c.b16 %v4496, %v4494
    %v4707 = vpack.c.b16 %v4497, %v4495
    %v4708 = vpack.c.b16 %v4500, %v4498
    %v4709 = vpack.c.b16 %v4501, %v4499
    %v4710 = vpack.c.b16 %v4504, %v4502
    %v4711 = vpack.c.b16 %v4505, %v4503
    %v4712 = vpack.c.b16 %v4508, %v4506
    %v4713 = vpack.c.b16 %v4509, %v4507
    %v4714 = vpack.c.b16 %v4512, %v4510
    %v4715 = vpack.c.b16 %v4513, %v4511
    %v4716 = vpack.c.b16 %v4516, %v4514
    %v4717 = vpack.c.b16 %v4517, %v4515
    %v4718 = vpack.c.b16 %v4520, %v4518
    %v4719 = vpack.c.b16 %v4521, %v4519
    %v4720 = vpack.c.b16 %v4524, %v4522
    %v4721 = vpack.c.b16 %v4525, %v4523
    %v4722 = vpack.c.b16 %v4528, %v4526
    %v4723 = vpack.c.b16 %v4529, %v4527
    %v4724 = vpack.c.b16 %v4532, %v4530
    %v4725 = vpack.c.b16 %v4533, %v4531
    %v4726 = vpack.c.b16 %v4536, %v4534
    %v4727 = vpack.c.b16 %v4537, %v4535
    %v4728 = vpack.c.b16 %v4540, %v4538
    %v4729 = vpack.c.b16 %v4541, %v4539
    %v4730 = vpack.c.b16 %v4544, %v4542
    %v4731 = vpack.c.b16 %v4545, %v4543
    %v4732 = vpack.c.b16 %v4548, %v4546
    %v4733 = vpack.c.b16 %v4549, %v4547
    %v4734 = vpack.c.b16 %v4552, %v4550
    %v4735 = vpack.c.b16 %v4553, %v4551
    %v4736 = vpack.c.b16 %v4556, %v4554
    %v4737 = vpack.c.b16 %v4557, %v4555
    %v4738 = vpack.c.b16 %v4560, %v4558
    %v4739 = vpack.c.b16 %v4561, %v4559
    %v4740 = vpack.c.b16 %v4564, %v4562
    %v4741 = vpack.c.b16 %v4565, %v4563
    %v4742 = vpack.c.b16 %v4568, %v4566
    %v4743 = vpack.c.b16 %v4569, %v4567
    %v4744 = vpack.c.b16 %v4572, %v4570
    %v4745 = vpack.c.b16 %v4573, %v4571
    %v4746 = vpack.c.b16 %v4576, %v4574
    %v4747 = vpack.c.b16 %v4577, %v4575
    %v4748 = vpack.c.b16 %v4580, %v4578
    %v4749 = vpack.c.b16 %v4581, %v4579
    %v4750 = vpack.c.b16 %v4584, %v4582
    %v4751 = vpack.c.b16 %v4585, %v4583
    %v4752 = vpack.c.b16 %v4588, %v4586
    %v4753 = vpack.c.b16 %v4589, %v4587
    %v4754 = vpack.c.b16 %v4592, %v4590
    %v4755 = vpack.c.b16 %v4593, %v4591
    %v4756 = vpack.c.b16 %v4596, %v4594
    %v4757 = vpack.c.b16 %v4597, %v4595
    %v4758 = vpack.c.b16 %v4600, %v4598
    %v4759 = vpack.c.b16 %v4601, %v4599
    %v4760 = vpack.c.b16 %v4604, %v4602
    %v4761 = vpack.c.b16 %v4605, %v4603
    %v4762 = vpack.c.b16 %v4608, %v4606
    %v4763 = vpack.c.b16 %v4609, %v4607
    %v4764 = vpack.c.b16 %v4612, %v4610
    %v4765 = vpack.c.b16 %v4613, %v4611
    %v4766 = vpack.c.b16 %v4616, %v4614
    %v4767 = vpack.c.b16 %v4617, %v4615
    %v4768 = vpack.c.b16 %v4620, %v4618
    %v4769 = vpack.c.b16 %v4621, %v4619
    %v4770 = vpack.c.b16 %v4624, %v4622
    %v4771 = vpack.c.b16 %v4625, %v4623
    %v4772 = vpack.c.b16 %v4628, %v4626
    %v4773 = vpack.c.b16 %v4629, %v4627
    %v4774 = vpack.c.b16 %v4632, %v4630
    %v4775 = vpack.c.b16 %v4633, %v4631
    %v4776 = vpack.c.b16 %v4636, %v4634
    %v4777 = vpack.c.b16 %v4637, %v4635
    %v4778 = vpack.c.b16 %v4640, %v4638
    %v4779 = vpack.c.b16 %v4641, %v4639
    %v4780 = vpack.c.b16 %v4644, %v4642
    %v4781 = vpack.c.b16 %v4645, %v4643
    %v4782 = vpack.c.b16 %v4648, %v4646
    %v4783 = vpack.c.b16 %v4649, %v4647
    %v4784 = vpack.c.b16 %v4652, %v4650
    %v4785 = vpack.c.b16 %v4653, %v4651
    %v4786 = vpack.c.b16 %v4656, %v4654
    %v4787 = vpack.c.b16 %v4657, %v4655
    %v4788 = vpack.c.b16 %v4660, %v4658
    %v4789 = vpack.c.b16 %v4661, %v4659
    %4918 = vmatprep.subr.bf16.mxu0 %v4663
    %4919 = vmatpush1.bf16.msra.mxu0 %v4662
    %4920 = vmatprep.subr.bf16.mxu0 %v4665
    %4921 = vmatpush1.bf16.msra.mxu0 %v4664
    %4922 = vmatprep.subr.bf16.mxu0 %v4667
    %4923 = vmatpush1.bf16.msra.mxu0 %v4666
    %4924 = vmatprep.subr.bf16.mxu0 %v4669
    %4925 = vmatpush1.bf16.msra.mxu0 %v4668
    %4926 = vmatprep.subr.bf16.mxu0 %v4671
    %4927 = vmatpush1.bf16.msra.mxu0 %v4670
    %4928 = vmatprep.subr.bf16.mxu0 %v4673
    %4929 = vmatpush1.bf16.msra.mxu0 %v4672
    %4930 = vmatprep.subr.bf16.mxu0 %v4675
    %4931 = vmatpush1.bf16.msra.mxu0 %v4674
    %4932 = vmatprep.subr.bf16.mxu0 %v4677
    %4933 = vmatpush1.bf16.msra.mxu0 %v4676
    %4934 = vmatprep.subr.bf16.mxu0 %v4679
    %4935 = vmatpush1.bf16.msra.mxu0 %v4678
    %4936 = vmatprep.subr.bf16.mxu0 %v4681
    %4937 = vmatpush1.bf16.msra.mxu0 %v4680
    %4938 = vmatprep.subr.bf16.mxu0 %v4683
    %4939 = vmatpush1.bf16.msra.mxu0 %v4682
    %4940 = vmatprep.subr.bf16.mxu0 %v4685
    %4941 = vmatpush1.bf16.msra.mxu0 %v4684
    %4942 = vmatprep.subr.bf16.mxu0 %v4687
    %4943 = vmatpush1.bf16.msra.mxu0 %v4686
    %4944 = vmatprep.subr.bf16.mxu0 %v4689
    %4945 = vmatpush1.bf16.msra.mxu0 %v4688
    %4946 = vmatprep.subr.bf16.mxu0 %v4691
    %4947 = vmatpush1.bf16.msra.mxu0 %v4690
    %4948 = vmatprep.subr.bf16.mxu0 %v4693
    %4949 = vmatpush1.bf16.msra.mxu0 %v4692
    %4950 = vmatprep.mubr.bf16.mxu0 %v4228
    %4951 = vmatmul.mubr.bf16.gmra.mrb[0].mxu0 %v4227
    %v4952 = vpop.f32.mrb[0].mxu0
    %v4953 = vadd.f32 %v4271, %v4952
    %v4954 = vpop.f32.mrb[0].mxu0
    %v4955 = vadd.f32 %v4275, %v4954
    %v4956 = vpop.f32.mrb[0].mxu0
    %v4957 = vadd.f32 %v4271, %v4956
    %v4958 = vpop.f32.mrb[0].mxu0
    %v4959 = vadd.f32 %v4275, %v4958
    %4960 = vmatprep.mubr.bf16.mxu0 %v4236
    %4961 = vmatmul.mubr.bf16.gmra.mrb[0].mxu0 %v4235
    %v4962 = vpop.f32.mrb[0].mxu0
    %v4963 = vadd.f32 %v4271, %v4962
    %v4964 = vpop.f32.mrb[0].mxu0
    %v4965 = vadd.f32 %v4275, %v4964
    %v4966 = vpop.f32.mrb[0].mxu0
    %v4967 = vadd.f32 %v4271, %v4966
    %v4968 = vpop.f32.mrb[0].mxu0
    %v4969 = vadd.f32 %v4275, %v4968
    %4970 = vmatprep.mubr.bf16.mxu0 %v4244
    %4971 = vmatmul.mubr.bf16.gmra.mrb[0].mxu0 %v4243
    %v4972 = vpop.f32.mrb[0].mxu0
    %v4973 = vadd.f32 %v4271, %v4972
    %v4974 = vpop.f32.mrb[0].mxu0
    %v4975 = vadd.f32 %v4275, %v4974
    %v4976 = vpop.f32.mrb[0].mxu0
    %v4977 = vadd.f32 %v4271, %v4976
    %v4978 = vpop.f32.mrb[0].mxu0
    %v4979 = vadd.f32 %v4275, %v4978
    %4980 = vmatprep.mubr.bf16.mxu0 %v4252
    %4981 = vmatmul.mubr.bf16.gmra.mrb[0].mxu0 %v4251
    %v4982 = vpop.f32.mrb[0].mxu0
    %v4983 = vadd.f32 %v4271, %v4982
    %v4984 = vpop.f32.mrb[0].mxu0
    %v4985 = vadd.f32 %v4275, %v4984
    %v4986 = vpop.f32.mrb[0].mxu0
    %v4987 = vadd.f32 %v4271, %v4986
    %v4988 = vpop.f32.mrb[0].mxu0
    %v4989 = vadd.f32 %v4275, %v4988
    %4990 = vmatprep.mubr.bf16.mxu0 %v4260
    %4991 = vmatmul.mubr.bf16.gmra.mrb[0].mxu0 %v4259
    %v4992 = vpop.f32.mrb[0].mxu0
    %v4993 = vadd.f32 %v4271, %v4992
    %v4994 = vpop.f32.mrb[0].mxu0
    %v4995 = vadd.f32 %v4275, %v4994
    %v4996 = vpop.f32.mrb[0].mxu0
    %v4997 = vadd.f32 %v4271, %v4996
    %v4998 = vpop.f32.mrb[0].mxu0
    %v4999 = vadd.f32 %v4275, %v4998
    %5000 = vdwg.mxu0
    %5001 = vmatprep.subr.bf16.mxu0 %v4695
    %5002 = vmatpush1.bf16.msra.mxu0 %v4694
    %5003 = vmatprep.subr.bf16.mxu0 %v4697
    %5004 = vmatpush1.bf16.msra.mxu0 %v4696
    %5005 = vmatprep.subr.bf16.mxu0 %v4699
    %5006 = vmatpush1.bf16.msra.mxu0 %v4698
    %5007 = vmatprep.subr.bf16.mxu0 %v4701
    %5008 = vmatpush1.bf16.msra.mxu0 %v4700
    %5009 = vmatprep.subr.bf16.mxu0 %v4703
    %5010 = vmatpush1.bf16.msra.mxu0 %v4702
    %5011 = vmatprep.subr.bf16.mxu0 %v4705
    %5012 = vmatpush1.bf16.msra.mxu0 %v4704
    %5013 = vmatprep.subr.bf16.mxu0 %v4707
    %5014 = vmatpush1.bf16.msra.mxu0 %v4706
    %5015 = vmatprep.subr.bf16.mxu0 %v4709
    %5016 = vmatpush1.bf16.msra.mxu0 %v4708
    %5017 = vmatprep.subr.bf16.mxu0 %v4711
    %5018 = vmatpush1.bf16.msra.mxu0 %v4710
    %5019 = vmatprep.subr.bf16.mxu0 %v4713
    %5020 = vmatpush1.bf16.msra.mxu0 %v4712
    %5021 = vmatprep.subr.bf16.mxu0 %v4715
    %5022 = vmatpush1.bf16.msra.mxu0 %v4714
    %5023 = vmatprep.subr.bf16.mxu0 %v4717
    %5024 = vmatpush1.bf16.msra.mxu0 %v4716
    %5025 = vmatprep.subr.bf16.mxu0 %v4719
    %5026 = vmatpush1.bf16.msra.mxu0 %v4718
    %5027 = vmatprep.subr.bf16.mxu0 %v4721
    %5028 = vmatpush1.bf16.msra.mxu0 %v4720
    %5029 = vmatprep.subr.bf16.mxu0 %v4723
    %5030 = vmatpush1.bf16.msra.mxu0 %v4722
    %5031 = vmatprep.subr.bf16.mxu0 %v4725
    %5032 = vmatpush1.bf16.msra.mxu0 %v4724
    %5033 = vmatprep.mubr.bf16.mxu0 %v4230
    %5034 = vmatmul.mubr.bf16.gmra.mrb[0].mxu0 %v4229
    %v5035 = vpop.f32.mrb[0].mxu0
    %v5036 = vadd.f32 %v4953, %v5035
    %v5037 = vpop.f32.mrb[0].mxu0
    %v5038 = vadd.f32 %v4955, %v5037
    %v5039 = vpop.f32.mrb[0].mxu0
    %v5040 = vadd.f32 %v4957, %v5039
    %v5041 = vpop.f32.mrb[0].mxu0
    %v5042 = vadd.f32 %v4959, %v5041
    %5043 = vmatprep.mubr.bf16.mxu0 %v4238
    %5044 = vmatmul.mubr.bf16.gmra.mrb[0].mxu0 %v4237
    %v5045 = vpop.f32.mrb[0].mxu0
    %v5046 = vadd.f32 %v4963, %v5045
    %v5047 = vpop.f32.mrb[0].mxu0
    %v5048 = vadd.f32 %v4965, %v5047
    %v5049 = vpop.f32.mrb[0].mxu0
    %v5050 = vadd.f32 %v4967, %v5049
    %v5051 = vpop.f32.mrb[0].mxu0
    %v5052 = vadd.f32 %v4969, %v5051
    %5053 = vmatprep.mubr.bf16.mxu0 %v4246
    %5054 = vmatmul.mubr.bf16.gmra.mrb[0].mxu0 %v4245
    %v5055 = vpop.f32.mrb[0].mxu0
    %v5056 = vadd.f32 %v4973, %v5055
    %v5057 = vpop.f32.mrb[0].mxu0
    %v5058 = vadd.f32 %v4975, %v5057
    %v5059 = vpop.f32.mrb[0].mxu0
    %v5060 = vadd.f32 %v4977, %v5059
    %v5061 = vpop.f32.mrb[0].mxu0
    %v5062 = vadd.f32 %v4979, %v5061
    %5063 = vmatprep.mubr.bf16.mxu0 %v4254
    %5064 = vmatmul.mubr.bf16.gmra.mrb[0].mxu0 %v4253
    %v5065 = vpop.f32.mrb[0].mxu0
    %v5066 = vadd.f32 %v4983, %v5065
    %v5067 = vpop.f32.mrb[0].mxu0
    %v5068 = vadd.f32 %v4985, %v5067
    %v5069 = vpop.f32.mrb[0].mxu0
    %v5070 = vadd.f32 %v4987, %v5069
    %v5071 = vpop.f32.mrb[0].mxu0
    %v5072 = vadd.f32 %v4989, %v5071
    %5073 = vmatprep.mubr.bf16.mxu0 %v4262
    %5074 = vmatmul.mubr.bf16.gmra.mrb[0].mxu0 %v4261
    %v5075 = vpop.f32.mrb[0].mxu0
    %v5076 = vadd.f32 %v4993, %v5075
    %v5077 = vpop.f32.mrb[0].mxu0
    %v5078 = vadd.f32 %v4995, %v5077
    %v5079 = vpop.f32.mrb[0].mxu0
    %v5080 = vadd.f32 %v4997, %v5079
    %v5081 = vpop.f32.mrb[0].mxu0
    %v5082 = vadd.f32 %v4999, %v5081
    %5083 = vdwg.mxu0
    %5084 = vmatprep.subr.bf16.mxu0 %v4727
    %5085 = vmatpush1.bf16.msra.mxu0 %v4726
    %5086 = vmatprep.subr.bf16.mxu0 %v4729
    %5087 = vmatpush1.bf16.msra.mxu0 %v4728
    %5088 = vmatprep.subr.bf16.mxu0 %v4731
    %5089 = vmatpush1.bf16.msra.mxu0 %v4730
    %5090 = vmatprep.subr.bf16.mxu0 %v4733
    %5091 = vmatpush1.bf16.msra.mxu0 %v4732
    %5092 = vmatprep.subr.bf16.mxu0 %v4735
    %5093 = vmatpush1.bf16.msra.mxu0 %v4734
    %5094 = vmatprep.subr.bf16.mxu0 %v4737
    %5095 = vmatpush1.bf16.msra.mxu0 %v4736
    %5096 = vmatprep.subr.bf16.mxu0 %v4739
    %5097 = vmatpush1.bf16.msra.mxu0 %v4738
    %5098 = vmatprep.subr.bf16.mxu0 %v4741
    %5099 = vmatpush1.bf16.msra.mxu0 %v4740
    %5100 = vmatprep.subr.bf16.mxu0 %v4743
    %5101 = vmatpush1.bf16.msra.mxu0 %v4742
    %5102 = vmatprep.subr.bf16.mxu0 %v4745
    %5103 = vmatpush1.bf16.msra.mxu0 %v4744
    %5104 = vmatprep.subr.bf16.mxu0 %v4747
    %5105 = vmatpush1.bf16.msra.mxu0 %v4746
    %5106 = vmatprep.subr.bf16.mxu0 %v4749
    %5107 = vmatpush1.bf16.msra.mxu0 %v4748
    %5108 = vmatprep.subr.bf16.mxu0 %v4751
    %5109 = vmatpush1.bf16.msra.mxu0 %v4750
    %5110 = vmatprep.subr.bf16.mxu0 %v4753
    %5111 = vmatpush1.bf16.msra.mxu0 %v4752
    %5112 = vmatprep.subr.bf16.mxu0 %v4755
    %5113 = vmatpush1.bf16.msra.mxu0 %v4754
    %5114 = vmatprep.subr.bf16.mxu0 %v4757
    %5115 = vmatpush1.bf16.msra.mxu0 %v4756
    %5116 = vmatprep.mubr.bf16.mxu0 %v4232
    %5117 = vmatmul.mubr.bf16.gmra.mrb[0].mxu0 %v4231
    %v5118 = vpop.f32.mrb[0].mxu0
    %v5119 = vadd.f32 %v5036, %v5118
    %v5120 = vpop.f32.mrb[0].mxu0
    %v5121 = vadd.f32 %v5038, %v5120
    %v5122 = vpop.f32.mrb[0].mxu0
    %v5123 = vadd.f32 %v5040, %v5122
    %v5124 = vpop.f32.mrb[0].mxu0
    %v5125 = vadd.f32 %v5042, %v5124
    %5126 = vmatprep.mubr.bf16.mxu0 %v4240
    %5127 = vmatmul.mubr.bf16.gmra.mrb[0].mxu0 %v4239
    %v5128 = vpop.f32.mrb[0].mxu0
    %v5129 = vadd.f32 %v5046, %v5128
    %v5130 = vpop.f32.mrb[0].mxu0
    %v5131 = vadd.f32 %v5048, %v5130
    %v5132 = vpop.f32.mrb[0].mxu0
    %v5133 = vadd.f32 %v5050, %v5132
    %v5134 = vpop.f32.mrb[0].mxu0
    %v5135 = vadd.f32 %v5052, %v5134
    %5136 = vmatprep.mubr.bf16.mxu0 %v4248
    %5137 = vmatmul.mubr.bf16.gmra.mrb[0].mxu0 %v4247
    %v5138 = vpop.f32.mrb[0].mxu0
    %v5139 = vadd.f32 %v5056, %v5138
    %v5140 = vpop.f32.mrb[0].mxu0
    %v5141 = vadd.f32 %v5058, %v5140
    %v5142 = vpop.f32.mrb[0].mxu0
    %v5143 = vadd.f32 %v5060, %v5142
    %v5144 = vpop.f32.mrb[0].mxu0
    %v5145 = vadd.f32 %v5062, %v5144
    %5146 = vmatprep.mubr.bf16.mxu0 %v4256
    %5147 = vmatmul.mubr.bf16.gmra.mrb[0].mxu0 %v4255
    %v5148 = vpop.f32.mrb[0].mxu0
    %v5149 = vadd.f32 %v5066, %v5148
    %v5150 = vpop.f32.mrb[0].mxu0
    %v5151 = vadd.f32 %v5068, %v5150
    %v5152 = vpop.f32.mrb[0].mxu0
    %v5153 = vadd.f32 %v5070, %v5152
    %v5154 = vpop.f32.mrb[0].mxu0
    %v5155 = vadd.f32 %v5072, %v5154
    %5156 = vmatprep.mubr.bf16.mxu0 %v4264
    %5157 = vmatmul.mubr.bf16.gmra.mrb[0].mxu0 %v4263
    %v5158 = vpop.f32.mrb[0].mxu0
    %v5159 = vadd.f32 %v5076, %v5158
    %v5160 = vpop.f32.mrb[0].mxu0
    %v5161 = vadd.f32 %v5078, %v5160
    %v5162 = vpop.f32.mrb[0].mxu0
    %v5163 = vadd.f32 %v5080, %v5162
    %v5164 = vpop.f32.mrb[0].mxu0
    %v5165 = vadd.f32 %v5082, %v5164
    %5166 = vdwg.mxu0
    %5167 = vmatprep.subr.bf16.mxu0 %v4759
    %5168 = vmatpush1.bf16.msra.mxu0 %v4758
    %5169 = vmatprep.subr.bf16.mxu0 %v4761
    %5170 = vmatpush1.bf16.msra.mxu0 %v4760
    %5171 = vmatprep.subr.bf16.mxu0 %v4763
    %5172 = vmatpush1.bf16.msra.mxu0 %v4762
    %5173 = vmatprep.subr.bf16.mxu0 %v4765
    %5174 = vmatpush1.bf16.msra.mxu0 %v4764
    %5175 = vmatprep.subr.bf16.mxu0 %v4767
    %5176 = vmatpush1.bf16.msra.mxu0 %v4766
    %5177 = vmatprep.subr.bf16.mxu0 %v4769
    %5178 = vmatpush1.bf16.msra.mxu0 %v4768
    %5179 = vmatprep.subr.bf16.mxu0 %v4771
    %5180 = vmatpush1.bf16.msra.mxu0 %v4770
    %5181 = vmatprep.subr.bf16.mxu0 %v4773
    %5182 = vmatpush1.bf16.msra.mxu0 %v4772
    %5183 = vmatprep.subr.bf16.mxu0 %v4775
    %5184 = vmatpush1.bf16.msra.mxu0 %v4774
    %5185 = vmatprep.subr.bf16.mxu0 %v4777
    %5186 = vmatpush1.bf16.msra.mxu0 %v4776
    %5187 = vmatprep.subr.bf16.mxu0 %v4779
    %5188 = vmatpush1.bf16.msra.mxu0 %v4778
    %5189 = vmatprep.subr.bf16.mxu0 %v4781
    %5190 = vmatpush1.bf16.msra.mxu0 %v4780
    %5191 = vmatprep.subr.bf16.mxu0 %v4783
    %5192 = vmatpush1.bf16.msra.mxu0 %v4782
    %5193 = vmatprep.subr.bf16.mxu0 %v4785
    %5194 = vmatpush1.bf16.msra.mxu0 %v4784
    %5195 = vmatprep.subr.bf16.mxu0 %v4787
    %5196 = vmatpush1.bf16.msra.mxu0 %v4786
    %5197 = vmatprep.subr.bf16.mxu0 %v4789
    %5198 = vmatpush1.bf16.msra.mxu0 %v4788
    %5199 = vmatprep.mubr.bf16.mxu0 %v4234
    %5200 = vmatmul.mubr.bf16.gmra.mrb[0].mxu0 %v4233
    %v5201 = vpop.f32.mrb[0].mxu0
    %v5202 = vadd.f32 %v5119, %v5201
    %v5203 = vpop.f32.mrb[0].mxu0
    %v5204 = vadd.f32 %v5121, %v5203
    %v5205 = vpop.f32.mrb[0].mxu0
    %v5206 = vadd.f32 %v5123, %v5205
    %v5207 = vpop.f32.mrb[0].mxu0
    %v5208 = vadd.f32 %v5125, %v5207
    %5209 = vmatprep.mubr.bf16.mxu0 %v4242
    %5210 = vmatmul.mubr.bf16.gmra.mrb[0].mxu0 %v4241
    %v5211 = vpop.f32.mrb[0].mxu0
    %v5212 = vadd.f32 %v5129, %v5211
    %v5213 = vpop.f32.mrb[0].mxu0
    %v5214 = vadd.f32 %v5131, %v5213
    %v5215 = vpop.f32.mrb[0].mxu0
    %v5216 = vadd.f32 %v5133, %v5215
    %v5217 = vpop.f32.mrb[0].mxu0
    %v5218 = vadd.f32 %v5135, %v5217
    %5219 = vmatprep.mubr.bf16.mxu0 %v4250
    %5220 = vmatmul.mubr.bf16.gmra.mrb[0].mxu0 %v4249
    %v5221 = vpop.f32.mrb[0].mxu0
    %v5222 = vadd.f32 %v5139, %v5221
    %v5223 = vpop.f32.mrb[0].mxu0
    %v5224 = vadd.f32 %v5141, %v5223
    %v5225 = vpop.f32.mrb[0].mxu0
    %v5226 = vadd.f32 %v5143, %v5225
    %v5227 = vpop.f32.mrb[0].mxu0
    %v5228 = vadd.f32 %v5145, %v5227
    %5229 = vmatprep.mubr.bf16.mxu0 %v4258
    %5230 = vmatmul.mubr.bf16.gmra.mrb[0].mxu0 %v4257
    %v5231 = vpop.f32.mrb[0].mxu0
    %v5232 = vadd.f32 %v5149, %v5231
    %v5233 = vpop.f32.mrb[0].mxu0
    %v5234 = vadd.f32 %v5151, %v5233
    %v5235 = vpop.f32.mrb[0].mxu0
    %v5236 = vadd.f32 %v5153, %v5235
    %v5237 = vpop.f32.mrb[0].mxu0
    %v5238 = vadd.f32 %v5155, %v5237
    %5239 = vmatprep.mubr.bf16.mxu0 %v4266
    %5240 = vmatmul.mubr.bf16.gmra.mrb[0].mxu0 %v4265
    %v5241 = vpop.f32.mrb[0].mxu0
    %v5242 = vadd.f32 %v5159, %v5241
    %v5243 = vpop.f32.mrb[0].mxu0
    %v5244 = vadd.f32 %v5161, %v5243
    %v5245 = vpop.f32.mrb[0].mxu0
    %v5246 = vadd.f32 %v5163, %v5245
    %v5247 = vpop.f32.mrb[0].mxu0
    %v5248 = vadd.f32 %v5165, %v5247
    %5249 = vdwg.mxu0
    %v5250 = vadd.f32 %v3104, %v5202
    %v5251 = vadd.f32 %v3105, %v5204
    %v5252 = vadd.f32 %v3106, %v5206
    %v5253 = vadd.f32 %v3107, %v5208
    %v5254 = vadd.f32 %v3108, %v5212
    %v5255 = vadd.f32 %v3109, %v5214
    %v5256 = vadd.f32 %v3110, %v5216
    %v5257 = vadd.f32 %v3111, %v5218
    %v5258 = vadd.f32 %v3112, %v5222
    %v5259 = vadd.f32 %v3113, %v5224
    %v5260 = vadd.f32 %v3114, %v5226
    %v5261 = vadd.f32 %v3115, %v5228
    %v5262 = vadd.f32 %v3116, %v5232
    %v5263 = vadd.f32 %v3117, %v5234
    %v5264 = vadd.f32 %v3118, %v5236
    %v5265 = vadd.f32 %v3119, %v5238
    %v5266 = vadd.f32 %v3120, %v5242
    %v5267 = vadd.f32 %v3121, %v5244
    %v5268 = vadd.f32 %v3122, %v5246
    %v5269 = vadd.f32 %v3123, %v5248
    %v5270 = vadd.f32 %v5250, %v5251
    %5271 = vadd.xlane.f32.xlu0 %v5270
    %v5272 = vpop.xlane.xlu0 %5271
    %v5273 = vadd.f32 %v5252, %v5253
    %5274 = vadd.xlane.f32.xlu0 %v5273
    %v5275 = vpop.xlane.xlu0 %5274
    %v5276 = vadd.f32 %v5254, %v5255
    %5277 = vadd.xlane.f32.xlu0 %v5276
    %v5278 = vpop.xlane.xlu0 %5277
    %v5279 = vadd.f32 %v5256, %v5257
    %5280 = vadd.xlane.f32.xlu0 %v5279
    %v5281 = vpop.xlane.xlu0 %5280
    %v5282 = vadd.f32 %v5258, %v5259
    %5283 = vadd.xlane.f32.xlu0 %v5282
    %v5284 = vpop.xlane.xlu0 %5283
    %v5285 = vadd.f32 %v5260, %v5261
    %5286 = vadd.xlane.f32.xlu0 %v5285
    %v5287 = vpop.xlane.xlu0 %5286
    %v5288 = vadd.f32 %v5262, %v5263
    %5289 = vadd.xlane.f32.xlu0 %v5288
    %v5290 = vpop.xlane.xlu0 %5289
    %v5291 = vadd.f32 %v5264, %v5265
    %5292 = vadd.xlane.f32.xlu0 %v5291
    %v5293 = vpop.xlane.xlu0 %5292
    %v5294 = vadd.f32 %v5266, %v5267
    %5295 = vadd.xlane.f32.xlu0 %v5294
    %v5296 = vpop.xlane.xlu0 %5295
    %v5297 = vadd.f32 %v5268, %v5269
    %5298 = vadd.xlane.f32.xlu0 %v5297
    %v5299 = vpop.xlane.xlu0 %5298
    %v5300 = vmul.f32 %v5272, %v2931
    %v5301 = vmul.f32 %v5275, %v2931
    %v5302 = vmul.f32 %v5278, %v2931
    %v5303 = vmul.f32 %v5281, %v2931
    %v5304 = vmul.f32 %v5284, %v2931
    %v5305 = vmul.f32 %v5287, %v2931
    %v5306 = vmul.f32 %v5290, %v2931
    %v5307 = vmul.f32 %v5293, %v2931
    %v5308 = vmul.f32 %v5296, %v2931
    %v5309 = vmul.f32 %v5299, %v2931
    %v5310 = vsub.f32 %v5250, %v5300
    %v5311 = vsub.f32 %v5251, %v5300
    %v5312 = vsub.f32 %v5252, %v5301
    %v5313 = vsub.f32 %v5253, %v5301
    %v5314 = vsub.f32 %v5254, %v5302
    %v5315 = vsub.f32 %v5255, %v5302
    %v5316 = vsub.f32 %v5256, %v5303
    %v5317 = vsub.f32 %v5257, %v5303
    %v5318 = vsub.f32 %v5258, %v5304
    %v5319 = vsub.f32 %v5259, %v5304
    %v5320 = vsub.f32 %v5260, %v5305
    %v5321 = vsub.f32 %v5261, %v5305
    %v5322 = vsub.f32 %v5262, %v5306
    %v5323 = vsub.f32 %v5263, %v5306
    %v5324 = vsub.f32 %v5264, %v5307
    %v5325 = vsub.f32 %v5265, %v5307
    %v5326 = vsub.f32 %v5266, %v5308
    %v5327 = vsub.f32 %v5267, %v5308
    %v5328 = vsub.f32 %v5268, %v5309
    %v5329 = vsub.f32 %v5269, %v5309
    %v5330 = vmul.f32 %v5310, %v5310
    %v5331 = vmul.f32 %v5311, %v5311
    %v5332 = vmul.f32 %v5312, %v5312
    %v5333 = vmul.f32 %v5313, %v5313
    %v5334 = vmul.f32 %v5314, %v5314
    %v5335 = vmul.f32 %v5315, %v5315
    %v5336 = vmul.f32 %v5316, %v5316
    %v5337 = vmul.f32 %v5317, %v5317
    %v5338 = vmul.f32 %v5318, %v5318
    %v5339 = vmul.f32 %v5319, %v5319
    %v5340 = vmul.f32 %v5320, %v5320
    %v5341 = vmul.f32 %v5321, %v5321
    %v5342 = vmul.f32 %v5322, %v5322
    %v5343 = vmul.f32 %v5323, %v5323
    %v5344 = vmul.f32 %v5324, %v5324
    %v5345 = vmul.f32 %v5325, %v5325
    %v5346 = vmul.f32 %v5326, %v5326
    %v5347 = vmul.f32 %v5327, %v5327
    %v5348 = vmul.f32 %v5328, %v5328
    %v5349 = vmul.f32 %v5329, %v5329
    %v5350 = vadd.f32 %v5330, %v5331
    %5351 = vadd.xlane.f32.xlu0 %v5350
    %v5352 = vpop.xlane.xlu0 %5351
    %v5353 = vadd.f32 %v5332, %v5333
    %5354 = vadd.xlane.f32.xlu0 %v5353
    %v5355 = vpop.xlane.xlu0 %5354
    %v5356 = vadd.f32 %v5334, %v5335
    %5357 = vadd.xlane.f32.xlu0 %v5356
    %v5358 = vpop.xlane.xlu0 %5357
    %v5359 = vadd.f32 %v5336, %v5337
    %5360 = vadd.xlane.f32.xlu0 %v5359
    %v5361 = vpop.xlane.xlu0 %5360
    %v5362 = vadd.f32 %v5338, %v5339
    %5363 = vadd.xlane.f32.xlu0 %v5362
    %v5364 = vpop.xlane.xlu0 %5363
    %v5365 = vadd.f32 %v5340, %v5341
    %5366 = vadd.xlane.f32.xlu0 %v5365
    %v5367 = vpop.xlane.xlu0 %5366
    %v5368 = vadd.f32 %v5342, %v5343
    %5369 = vadd.xlane.f32.xlu0 %v5368
    %v5370 = vpop.xlane.xlu0 %5369
    %v5371 = vadd.f32 %v5344, %v5345
    %5372 = vadd.xlane.f32.xlu0 %v5371
    %v5373 = vpop.xlane.xlu0 %5372
    %v5374 = vadd.f32 %v5346, %v5347
    %5375 = vadd.xlane.f32.xlu0 %v5374
    %v5376 = vpop.xlane.xlu0 %5375
    %v5377 = vadd.f32 %v5348, %v5349
    %5378 = vadd.xlane.f32.xlu0 %v5377
    %v5379 = vpop.xlane.xlu0 %5378
    %v5380 = vmul.f32 %v5352, %v2931
    %v5381 = vmul.f32 %v5355, %v2931
    %v5382 = vmul.f32 %v5358, %v2931
    %v5383 = vmul.f32 %v5361, %v2931
    %v5384 = vmul.f32 %v5364, %v2931
    %v5385 = vmul.f32 %v5367, %v2931
    %v5386 = vmul.f32 %v5370, %v2931
    %v5387 = vmul.f32 %v5373, %v2931
    %v5388 = vmul.f32 %v5376, %v2931
    %v5389 = vmul.f32 %v5379, %v2931
    %v5390 = vadd.f32 %v5380, 1e-05
    %v5391 = vadd.f32 %v5381, 1e-05
    %v5392 = vadd.f32 %v5382, 1e-05
    %v5393 = vadd.f32 %v5383, 1e-05
    %v5394 = vadd.f32 %v5384, 1e-05
    %v5395 = vadd.f32 %v5385, 1e-05
    %v5396 = vadd.f32 %v5386, 1e-05
    %v5397 = vadd.f32 %v5387, 1e-05
    %v5398 = vadd.f32 %v5388, 1e-05
    %v5399 = vadd.f32 %v5389, 1e-05
    %v5400 = vrsqrt.pop %v5390
    %v5401 = vrsqrt.pop %v5391
    %v5402 = vrsqrt.pop %v5392
    %v5403 = vrsqrt.pop %v5393
    %v5404 = vrsqrt.pop %v5394
    %v5405 = vrsqrt.pop %v5395
    %v5406 = vrsqrt.pop %v5396
    %v5407 = vrsqrt.pop %v5397
    %v5408 = vrsqrt.pop %v5398
    %v5409 = vrsqrt.pop %v5399
    %v5410 = vmul.f32 %v5310, %v5400
    %v5411 = vmul.f32 %v5311, %v5400
    %v5412 = vmul.f32 %v5312, %v5401
    %v5413 = vmul.f32 %v5313, %v5401
    %v5414 = vmul.f32 %v5314, %v5402
    %v5415 = vmul.f32 %v5315, %v5402
    %v5416 = vmul.f32 %v5316, %v5403
    %v5417 = vmul.f32 %v5317, %v5403
    %v5418 = vmul.f32 %v5318, %v5404
    %v5419 = vmul.f32 %v5319, %v5404
    %v5420 = vmul.f32 %v5320, %v5405
    %v5421 = vmul.f32 %v5321, %v5405
    %v5422 = vmul.f32 %v5322, %v5406
    %v5423 = vmul.f32 %v5323, %v5406
    %v5424 = vmul.f32 %v5324, %v5407
    %v5425 = vmul.f32 %v5325, %v5407
    %v5426 = vmul.f32 %v5326, %v5408
    %v5427 = vmul.f32 %v5327, %v5408
    %v5428 = vmul.f32 %v5328, %v5409
    %v5429 = vmul.f32 %v5329, %v5409
    %v5431 = vlaneseq
    %v5432 = vshrl.u32 %v5431, 7
    %v5433 = vsub.s32 0, %v5432
    %v5434 = vrot.slane %v813, %v5433
    %v5435 = vlaneseq
    %v5436 = vshrl.u32 %v5435, 7
    %v5437 = vsub.s32 1, %v5436
    %v5438 = vrot.slane %v813, %v5437
    %v5441 = vmul.f32 %v5410, %v5434
    %v5442 = vmul.f32 %v5411, %v5438
    %v5443 = vmul.f32 %v5412, %v5434
    %v5444 = vmul.f32 %v5413, %v5438
    %v5445 = vmul.f32 %v5414, %v5434
    %v5446 = vmul.f32 %v5415, %v5438
    %v5447 = vmul.f32 %v5416, %v5434
    %v5448 = vmul.f32 %v5417, %v5438
    %v5449 = vmul.f32 %v5418, %v5434
    %v5450 = vmul.f32 %v5419, %v5438
    %v5451 = vmul.f32 %v5420, %v5434
    %v5452 = vmul.f32 %v5421, %v5438
    %v5453 = vmul.f32 %v5422, %v5434
    %v5454 = vmul.f32 %v5423, %v5438
    %v5455 = vmul.f32 %v5424, %v5434
    %v5456 = vmul.f32 %v5425, %v5438
    %v5457 = vmul.f32 %v5426, %v5434
    %v5458 = vmul.f32 %v5427, %v5438
    %v5459 = vmul.f32 %v5428, %v5434
    %v5460 = vmul.f32 %v5429, %v5438
    %v5462 = vlaneseq
    %v5463 = vshrl.u32 %v5462, 7
    %v5464 = vsub.s32 0, %v5463
    %v5465 = vrot.slane %v814, %v5464
    %v5466 = vlaneseq
    %v5467 = vshrl.u32 %v5466, 7
    %v5468 = vsub.s32 1, %v5467
    %v5469 = vrot.slane %v814, %v5468
    %v5472 = vadd.f32 %v5441, %v5465
    %v5473 = vadd.f32 %v5442, %v5469
    %v5474 = vadd.f32 %v5443, %v5465
    %v5475 = vadd.f32 %v5444, %v5469
    %v5476 = vadd.f32 %v5445, %v5465
    %v5477 = vadd.f32 %v5446, %v5469
    %v5478 = vadd.f32 %v5447, %v5465
    %v5479 = vadd.f32 %v5448, %v5469
    %v5480 = vadd.f32 %v5449, %v5465
    %v5481 = vadd.f32 %v5450, %v5469
    %v5482 = vadd.f32 %v5451, %v5465
    %v5483 = vadd.f32 %v5452, %v5469
    %v5484 = vadd.f32 %v5453, %v5465
    %v5485 = vadd.f32 %v5454, %v5469
    %v5486 = vadd.f32 %v5455, %v5465
    %v5487 = vadd.f32 %v5456, %v5469
    %v5488 = vadd.f32 %v5457, %v5465
    %v5489 = vadd.f32 %v5458, %v5469
    %v5490 = vadd.f32 %v5459, %v5465
    %v5491 = vadd.f32 %v5460, %v5469
    %s5492 = scalar_lea.vmem %s4, 256
    %v5493 = vld [vmem:[%s5492] sm:$0xff]
    %v5494 = vld [vmem:[%s5492 + $0x8] sm:$0xff]
    %v5495 = vld [vmem:[%s5492 + $0x10] sm:$0xff]
    %v5496 = vld [vmem:[%s5492 + $0x18] sm:$0xff]
    %v5497 = vld [vmem:[%s5492 + $0x20] sm:$0xff]
    %v5498 = vld [vmem:[%s5492 + $0x28] sm:$0xff]
    %v5499 = vld [vmem:[%s5492 + $0x30] sm:$0xff]
    %v5500 = vld [vmem:[%s5492 + $0x38] sm:$0xff]
    %v5501 = vld [vmem:[%s5492 + $0x40] sm:$0xff]
    %v5502 = vld [vmem:[%s5492 + $0x48] sm:$0xff]
    %v5503 = vld [vmem:[%s5492 + $0x50] sm:$0xff]
    %v5504 = vld [vmem:[%s5492 + $0x58] sm:$0xff]
    %v5505 = vld [vmem:[%s5492 + $0x60] sm:$0xff]
    %v5506 = vld [vmem:[%s5492 + $0x68] sm:$0xff]
    %v5507 = vld [vmem:[%s5492 + $0x70] sm:$0xff]
    %v5508 = vld [vmem:[%s5492 + $0x78] sm:$0xff]
    %v5509 = vld [vmem:[%s5492 + $0x80] sm:$0xff]
    %v5510 = vld [vmem:[%s5492 + $0x88] sm:$0xff]
    %v5511 = vld [vmem:[%s5492 + $0x90] sm:$0xff]
    %v5512 = vld [vmem:[%s5492 + $0x98] sm:$0xff]
    %v5513 = vld [vmem:[%s5492 + $0xa0] sm:$0xff]
    %v5514 = vld [vmem:[%s5492 + $0xa8] sm:$0xff]
    %v5515 = vld [vmem:[%s5492 + $0xb0] sm:$0xff]
    %v5516 = vld [vmem:[%s5492 + $0xb8] sm:$0xff]
    %v5517 = vld [vmem:[%s5492 + $0xc0] sm:$0xff]
    %v5518 = vld [vmem:[%s5492 + $0xc8] sm:$0xff]
    %v5519 = vld [vmem:[%s5492 + $0xd0] sm:$0xff]
    %v5520 = vld [vmem:[%s5492 + $0xd8] sm:$0xff]
    %v5521 = vld [vmem:[%s5492 + $0xe0] sm:$0xff]
    %v5522 = vld [vmem:[%s5492 + $0xe8] sm:$0xff]
    %v5523 = vld [vmem:[%s5492 + $0xf0] sm:$0xff]
    %v5524 = vld [vmem:[%s5492 + $0xf8] sm:$0xff]
    %s5525 = scalar_lea.vmem %s5, 2
    %v5526 = vld [vmem:[%s5525] sm:$0x3]
    %s5527 = scalar_lea.vmem [#allocation6], 512
    %v5528 = vld [vmem:[%s5527] sm:$0xff]
    %v5529 = vld [vmem:[%s5527 + $0x8] sm:$0xff]
    %v5530 = vld [vmem:[%s5527 + $0x10] sm:$0xff]
    %v5531 = vld [vmem:[%s5527 + $0x18] sm:$0xff]
    %v5532 = vld [vmem:[%s5527 + $0x20] sm:$0xff]
    %v5533 = vld [vmem:[%s5527 + $0x28] sm:$0xff]
    %v5534 = vld [vmem:[%s5527 + $0x30] sm:$0xff]
    %v5535 = vld [vmem:[%s5527 + $0x38] sm:$0xff]
    %v5536 = vld [vmem:[%s5527 + $0x40] sm:$0xff]
    %v5537 = vld [vmem:[%s5527 + $0x48] sm:$0xff]
    %v5538 = vld [vmem:[%s5527 + $0x50] sm:$0xff]
    %v5539 = vld [vmem:[%s5527 + $0x58] sm:$0xff]
    %v5540 = vld [vmem:[%s5527 + $0x60] sm:$0xff]
    %v5541 = vld [vmem:[%s5527 + $0x68] sm:$0xff]
    %v5542 = vld [vmem:[%s5527 + $0x70] sm:$0xff]
    %v5543 = vld [vmem:[%s5527 + $0x78] sm:$0xff]
    %v5544 = vld [vmem:[%s5527 + $0x80] sm:$0xff]
    %v5545 = vld [vmem:[%s5527 + $0x88] sm:$0xff]
    %v5546 = vld [vmem:[%s5527 + $0x90] sm:$0xff]
    %v5547 = vld [vmem:[%s5527 + $0x98] sm:$0xff]
    %v5548 = vld [vmem:[%s5527 + $0xa0] sm:$0xff]
    %v5549 = vld [vmem:[%s5527 + $0xa8] sm:$0xff]
    %v5550 = vld [vmem:[%s5527 + $0xb0] sm:$0xff]
    %v5551 = vld [vmem:[%s5527 + $0xb8] sm:$0xff]
    %v5552 = vld [vmem:[%s5527 + $0xc0] sm:$0xff]
    %v5553 = vld [vmem:[%s5527 + $0xc8] sm:$0xff]
    %v5554 = vld [vmem:[%s5527 + $0xd0] sm:$0xff]
    %v5555 = vld [vmem:[%s5527 + $0xd8] sm:$0xff]
    %v5556 = vld [vmem:[%s5527 + $0xe0] sm:$0xff]
    %v5557 = vld [vmem:[%s5527 + $0xe8] sm:$0xff]
    %v5558 = vld [vmem:[%s5527 + $0xf0] sm:$0xff]
    %v5559 = vld [vmem:[%s5527 + $0xf8] sm:$0xff]
    %v5560 = vld [vmem:[%s5527 + $0x100] sm:$0xff]
    %v5561 = vld [vmem:[%s5527 + $0x108] sm:$0xff]
    %v5562 = vld [vmem:[%s5527 + $0x110] sm:$0xff]
    %v5563 = vld [vmem:[%s5527 + $0x118] sm:$0xff]
    %v5564 = vld [vmem:[%s5527 + $0x120] sm:$0xff]
    %v5565 = vld [vmem:[%s5527 + $0x128] sm:$0xff]
    %v5566 = vld [vmem:[%s5527 + $0x130] sm:$0xff]
    %v5567 = vld [vmem:[%s5527 + $0x138] sm:$0xff]
    %v5568 = vld [vmem:[%s5527 + $0x140] sm:$0xff]
    %v5569 = vld [vmem:[%s5527 + $0x148] sm:$0xff]
    %v5570 = vld [vmem:[%s5527 + $0x150] sm:$0xff]
    %v5571 = vld [vmem:[%s5527 + $0x158] sm:$0xff]
    %v5572 = vld [vmem:[%s5527 + $0x160] sm:$0xff]
    %v5573 = vld [vmem:[%s5527 + $0x168] sm:$0xff]
    %v5574 = vld [vmem:[%s5527 + $0x170] sm:$0xff]
    %v5575 = vld [vmem:[%s5527 + $0x178] sm:$0xff]
    %v5576 = vld [vmem:[%s5527 + $0x180] sm:$0xff]
    %v5577 = vld [vmem:[%s5527 + $0x188] sm:$0xff]
    %v5578 = vld [vmem:[%s5527 + $0x190] sm:$0xff]
    %v5579 = vld [vmem:[%s5527 + $0x198] sm:$0xff]
    %v5580 = vld [vmem:[%s5527 + $0x1a0] sm:$0xff]
    %v5581 = vld [vmem:[%s5527 + $0x1a8] sm:$0xff]
    %v5582 = vld [vmem:[%s5527 + $0x1b0] sm:$0xff]
    %v5583 = vld [vmem:[%s5527 + $0x1b8] sm:$0xff]
    %v5584 = vld [vmem:[%s5527 + $0x1c0] sm:$0xff]
    %v5585 = vld [vmem:[%s5527 + $0x1c8] sm:$0xff]
    %v5586 = vld [vmem:[%s5527 + $0x1d0] sm:$0xff]
    %v5587 = vld [vmem:[%s5527 + $0x1d8] sm:$0xff]
    %v5588 = vld [vmem:[%s5527 + $0x1e0] sm:$0xff]
    %v5589 = vld [vmem:[%s5527 + $0x1e8] sm:$0xff]
    %v5590 = vld [vmem:[%s5527 + $0x1f0] sm:$0xff]
    %v5591 = vld [vmem:[%s5527 + $0x1f8] sm:$0xff]
    %s5592 = scalar_lea.vmem %s7, 4
    %v5593 = vld [vmem:[%s5592] sm:$0xf]
    %s5594 = scalar_lea.vmem [#allocation7], 256
    %v5595 = vld [vmem:[%s5594] sm:$0xff]
    %v5596 = vld [vmem:[%s5594 + $0x8] sm:$0xff]
    %v5597 = vld [vmem:[%s5594 + $0x10] sm:$0xff]
    %v5598 = vld [vmem:[%s5594 + $0x18] sm:$0xff]
    %v5599 = vld [vmem:[%s5594 + $0x20] sm:$0xff]
    %v5600 = vld [vmem:[%s5594 + $0x28] sm:$0xff]
    %v5601 = vld [vmem:[%s5594 + $0x30] sm:$0xff]
    %v5602 = vld [vmem:[%s5594 + $0x38] sm:$0xff]
    %v5603 = vld [vmem:[%s5594 + $0x40] sm:$0xff]
    %v5604 = vld [vmem:[%s5594 + $0x48] sm:$0xff]
    %v5605 = vld [vmem:[%s5594 + $0x50] sm:$0xff]
    %v5606 = vld [vmem:[%s5594 + $0x58] sm:$0xff]
    %v5607 = vld [vmem:[%s5594 + $0x60] sm:$0xff]
    %v5608 = vld [vmem:[%s5594 + $0x68] sm:$0xff]
    %v5609 = vld [vmem:[%s5594 + $0x70] sm:$0xff]
    %v5610 = vld [vmem:[%s5594 + $0x78] sm:$0xff]
    %v5611 = vld [vmem:[%s5594 + $0x80] sm:$0xff]
    %v5612 = vld [vmem:[%s5594 + $0x88] sm:$0xff]
    %v5613 = vld [vmem:[%s5594 + $0x90] sm:$0xff]
    %v5614 = vld [vmem:[%s5594 + $0x98] sm:$0xff]
    %v5615 = vld [vmem:[%s5594 + $0xa0] sm:$0xff]
    %v5616 = vld [vmem:[%s5594 + $0xa8] sm:$0xff]
    %v5617 = vld [vmem:[%s5594 + $0xb0] sm:$0xff]
    %v5618 = vld [vmem:[%s5594 + $0xb8] sm:$0xff]
    %v5619 = vld [vmem:[%s5594 + $0xc0] sm:$0xff]
    %v5620 = vld [vmem:[%s5594 + $0xc8] sm:$0xff]
    %v5621 = vld [vmem:[%s5594 + $0xd0] sm:$0xff]
    %v5622 = vld [vmem:[%s5594 + $0xd8] sm:$0xff]
    %v5623 = vld [vmem:[%s5594 + $0xe0] sm:$0xff]
    %v5624 = vld [vmem:[%s5594 + $0xe8] sm:$0xff]
    %v5625 = vld [vmem:[%s5594 + $0xf0] sm:$0xff]
    %v5626 = vld [vmem:[%s5594 + $0xf8] sm:$0xff]
    %s5627 = scalar_lea.vmem %s9, 2
    %v5628 = vld [vmem:[%s5627] sm:$0x3]
    %s5629 = scalar_lea.vmem %s10, 2
    %v5630 = vld [vmem:[%s5629] sm:$0x3]
    %s5631 = scalar_lea.vmem %s11, 2
    %v5632 = vld [vmem:[%s5631] sm:$0x3]
    %s5633 = scalar_lea.vmem [#allocation9], 1024
    %v5634 = vld [vmem:[%s5633] sm:$0xff]
    %v5635 = vld [vmem:[%s5633 + $0x8] sm:$0xff]
    %v5636 = vld [vmem:[%s5633 + $0x10] sm:$0xff]
    %v5637 = vld [vmem:[%s5633 + $0x18] sm:$0xff]
    %v5638 = vld [vmem:[%s5633 + $0x20] sm:$0xff]
    %v5639 = vld [vmem:[%s5633 + $0x28] sm:$0xff]
    %v5640 = vld [vmem:[%s5633 + $0x30] sm:$0xff]
    %v5641 = vld [vmem:[%s5633 + $0x38] sm:$0xff]
    %v5642 = vld [vmem:[%s5633 + $0x40] sm:$0xff]
    %v5643 = vld [vmem:[%s5633 + $0x48] sm:$0xff]
    %v5644 = vld [vmem:[%s5633 + $0x50] sm:$0xff]
    %v5645 = vld [vmem:[%s5633 + $0x58] sm:$0xff]
    %v5646 = vld [vmem:[%s5633 + $0x60] sm:$0xff]
    %v5647 = vld [vmem:[%s5633 + $0x68] sm:$0xff]
    %v5648 = vld [vmem:[%s5633 + $0x70] sm:$0xff]
    %v5649 = vld [vmem:[%s5633 + $0x78] sm:$0xff]
    %v5650 = vld [vmem:[%s5633 + $0x80] sm:$0xff]
    %v5651 = vld [vmem:[%s5633 + $0x88] sm:$0xff]
    %v5652 = vld [vmem:[%s5633 + $0x90] sm:$0xff]
    %v5653 = vld [vmem:[%s5633 + $0x98] sm:$0xff]
    %v5654 = vld [vmem:[%s5633 + $0xa0] sm:$0xff]
    %v5655 = vld [vmem:[%s5633 + $0xa8] sm:$0xff]
    %v5656 = vld [vmem:[%s5633 + $0xb0] sm:$0xff]
    %v5657 = vld [vmem:[%s5633 + $0xb8] sm:$0xff]
    %v5658 = vld [vmem:[%s5633 + $0xc0] sm:$0xff]
    %v5659 = vld [vmem:[%s5633 + $0xc8] sm:$0xff]
    %v5660 = vld [vmem:[%s5633 + $0xd0] sm:$0xff]
    %v5661 = vld [vmem:[%s5633 + $0xd8] sm:$0xff]
    %v5662 = vld [vmem:[%s5633 + $0xe0] sm:$0xff]
    %v5663 = vld [vmem:[%s5633 + $0xe8] sm:$0xff]
    %v5664 = vld [vmem:[%s5633 + $0xf0] sm:$0xff]
    %v5665 = vld [vmem:[%s5633 + $0xf8] sm:$0xff]
    %v5666 = vld [vmem:[%s5633 + $0x100] sm:$0xff]
    %v5667 = vld [vmem:[%s5633 + $0x108] sm:$0xff]
    %v5668 = vld [vmem:[%s5633 + $0x110] sm:$0xff]
    %v5669 = vld [vmem:[%s5633 + $0x118] sm:$0xff]
    %v5670 = vld [vmem:[%s5633 + $0x120] sm:$0xff]
    %v5671 = vld [vmem:[%s5633 + $0x128] sm:$0xff]
    %v5672 = vld [vmem:[%s5633 + $0x130] sm:$0xff]
    %v5673 = vld [vmem:[%s5633 + $0x138] sm:$0xff]
    %v5674 = vld [vmem:[%s5633 + $0x140] sm:$0xff]
    %v5675 = vld [vmem:[%s5633 + $0x148] sm:$0xff]
    %v5676 = vld [vmem:[%s5633 + $0x150] sm:$0xff]
    %v5677 = vld [vmem:[%s5633 + $0x158] sm:$0xff]
    %v5678 = vld [vmem:[%s5633 + $0x160] sm:$0xff]
    %v5679 = vld [vmem:[%s5633 + $0x168] sm:$0xff]
    %v5680 = vld [vmem:[%s5633 + $0x170] sm:$0xff]
    %v5681 = vld [vmem:[%s5633 + $0x178] sm:$0xff]
    %v5682 = vld [vmem:[%s5633 + $0x180] sm:$0xff]
    %v5683 = vld [vmem:[%s5633 + $0x188] sm:$0xff]
    %v5684 = vld [vmem:[%s5633 + $0x190] sm:$0xff]
    %v5685 = vld [vmem:[%s5633 + $0x198] sm:$0xff]
    %v5686 = vld [vmem:[%s5633 + $0x1a0] sm:$0xff]
    %v5687 = vld [vmem:[%s5633 + $0x1a8] sm:$0xff]
    %v5688 = vld [vmem:[%s5633 + $0x1b0] sm:$0xff]
    %v5689 = vld [vmem:[%s5633 + $0x1b8] sm:$0xff]
    %v5690 = vld [vmem:[%s5633 + $0x1c0] sm:$0xff]
    %v5691 = vld [vmem:[%s5633 + $0x1c8] sm:$0xff]
    %v5692 = vld [vmem:[%s5633 + $0x1d0] sm:$0xff]
    %v5693 = vld [vmem:[%s5633 + $0x1d8] sm:$0xff]
    %v5694 = vld [vmem:[%s5633 + $0x1e0] sm:$0xff]
    %v5695 = vld [vmem:[%s5633 + $0x1e8] sm:$0xff]
    %v5696 = vld [vmem:[%s5633 + $0x1f0] sm:$0xff]
    %v5697 = vld [vmem:[%s5633 + $0x1f8] sm:$0xff]
    %v5698 = vld [vmem:[%s5633 + $0x200] sm:$0xff]
    %v5699 = vld [vmem:[%s5633 + $0x208] sm:$0xff]
    %v5700 = vld [vmem:[%s5633 + $0x210] sm:$0xff]
    %v5701 = vld [vmem:[%s5633 + $0x218] sm:$0xff]
    %v5702 = vld [vmem:[%s5633 + $0x220] sm:$0xff]
    %v5703 = vld [vmem:[%s5633 + $0x228] sm:$0xff]
    %v5704 = vld [vmem:[%s5633 + $0x230] sm:$0xff]
    %v5705 = vld [vmem:[%s5633 + $0x238] sm:$0xff]
    %v5706 = vld [vmem:[%s5633 + $0x240] sm:$0xff]
    %v5707 = vld [vmem:[%s5633 + $0x248] sm:$0xff]
    %v5708 = vld [vmem:[%s5633 + $0x250] sm:$0xff]
    %v5709 = vld [vmem:[%s5633 + $0x258] sm:$0xff]
    %v5710 = vld [vmem:[%s5633 + $0x260] sm:$0xff]
    %v5711 = vld [vmem:[%s5633 + $0x268] sm:$0xff]
    %v5712 = vld [vmem:[%s5633 + $0x270] sm:$0xff]
    %v5713 = vld [vmem:[%s5633 + $0x278] sm:$0xff]
    %v5714 = vld [vmem:[%s5633 + $0x280] sm:$0xff]
    %v5715 = vld [vmem:[%s5633 + $0x288] sm:$0xff]
    %v5716 = vld [vmem:[%s5633 + $0x290] sm:$0xff]
    %v5717 = vld [vmem:[%s5633 + $0x298] sm:$0xff]
    %v5718 = vld [vmem:[%s5633 + $0x2a0] sm:$0xff]
    %v5719 = vld [vmem:[%s5633 + $0x2a8] sm:$0xff]
    %v5720 = vld [vmem:[%s5633 + $0x2b0] sm:$0xff]
    %v5721 = vld [vmem:[%s5633 + $0x2b8] sm:$0xff]
    %v5722 = vld [vmem:[%s5633 + $0x2c0] sm:$0xff]
    %v5723 = vld [vmem:[%s5633 + $0x2c8] sm:$0xff]
    %v5724 = vld [vmem:[%s5633 + $0x2d0] sm:$0xff]
    %v5725 = vld [vmem:[%s5633 + $0x2d8] sm:$0xff]
    %v5726 = vld [vmem:[%s5633 + $0x2e0] sm:$0xff]
    %v5727 = vld [vmem:[%s5633 + $0x2e8] sm:$0xff]
    %v5728 = vld [vmem:[%s5633 + $0x2f0] sm:$0xff]
    %v5729 = vld [vmem:[%s5633 + $0x2f8] sm:$0xff]
    %v5730 = vld [vmem:[%s5633 + $0x300] sm:$0xff]
    %v5731 = vld [vmem:[%s5633 + $0x308] sm:$0xff]
    %v5732 = vld [vmem:[%s5633 + $0x310] sm:$0xff]
    %v5733 = vld [vmem:[%s5633 + $0x318] sm:$0xff]
    %v5734 = vld [vmem:[%s5633 + $0x320] sm:$0xff]
    %v5735 = vld [vmem:[%s5633 + $0x328] sm:$0xff]
    %v5736 = vld [vmem:[%s5633 + $0x330] sm:$0xff]
    %v5737 = vld [vmem:[%s5633 + $0x338] sm:$0xff]
    %v5738 = vld [vmem:[%s5633 + $0x340] sm:$0xff]
    %v5739 = vld [vmem:[%s5633 + $0x348] sm:$0xff]
    %v5740 = vld [vmem:[%s5633 + $0x350] sm:$0xff]
    %v5741 = vld [vmem:[%s5633 + $0x358] sm:$0xff]
    %v5742 = vld [vmem:[%s5633 + $0x360] sm:$0xff]
    %v5743 = vld [vmem:[%s5633 + $0x368] sm:$0xff]
    %v5744 = vld [vmem:[%s5633 + $0x370] sm:$0xff]
    %v5745 = vld [vmem:[%s5633 + $0x378] sm:$0xff]
    %v5746 = vld [vmem:[%s5633 + $0x380] sm:$0xff]
    %v5747 = vld [vmem:[%s5633 + $0x388] sm:$0xff]
    %v5748 = vld [vmem:[%s5633 + $0x390] sm:$0xff]
    %v5749 = vld [vmem:[%s5633 + $0x398] sm:$0xff]
    %v5750 = vld [vmem:[%s5633 + $0x3a0] sm:$0xff]
    %v5751 = vld [vmem:[%s5633 + $0x3a8] sm:$0xff]
    %v5752 = vld [vmem:[%s5633 + $0x3b0] sm:$0xff]
    %v5753 = vld [vmem:[%s5633 + $0x3b8] sm:$0xff]
    %v5754 = vld [vmem:[%s5633 + $0x3c0] sm:$0xff]
    %v5755 = vld [vmem:[%s5633 + $0x3c8] sm:$0xff]
    %v5756 = vld [vmem:[%s5633 + $0x3d0] sm:$0xff]
    %v5757 = vld [vmem:[%s5633 + $0x3d8] sm:$0xff]
    %v5758 = vld [vmem:[%s5633 + $0x3e0] sm:$0xff]
    %v5759 = vld [vmem:[%s5633 + $0x3e8] sm:$0xff]
    %v5760 = vld [vmem:[%s5633 + $0x3f0] sm:$0xff]
    %v5761 = vld [vmem:[%s5633 + $0x3f8] sm:$0xff]
    %s5762 = scalar_lea.vmem %s13, 8
    %v5763 = vld [vmem:[%s5762] sm:$0xff]
    %s5764 = scalar_lea.vmem [#allocation10], 1024
    %v5765 = vld [vmem:[%s5764] sm:$0xff]
    %v5766 = vld [vmem:[%s5764 + $0x8] sm:$0xff]
    %v5767 = vld [vmem:[%s5764 + $0x10] sm:$0xff]
    %v5768 = vld [vmem:[%s5764 + $0x18] sm:$0xff]
    %v5769 = vld [vmem:[%s5764 + $0x20] sm:$0xff]
    %v5770 = vld [vmem:[%s5764 + $0x28] sm:$0xff]
    %v5771 = vld [vmem:[%s5764 + $0x30] sm:$0xff]
    %v5772 = vld [vmem:[%s5764 + $0x38] sm:$0xff]
    %v5773 = vld [vmem:[%s5764 + $0x40] sm:$0xff]
    %v5774 = vld [vmem:[%s5764 + $0x48] sm:$0xff]
    %v5775 = vld [vmem:[%s5764 + $0x50] sm:$0xff]
    %v5776 = vld [vmem:[%s5764 + $0x58] sm:$0xff]
    %v5777 = vld [vmem:[%s5764 + $0x60] sm:$0xff]
    %v5778 = vld [vmem:[%s5764 + $0x68] sm:$0xff]
    %v5779 = vld [vmem:[%s5764 + $0x70] sm:$0xff]
    %v5780 = vld [vmem:[%s5764 + $0x78] sm:$0xff]
    %v5781 = vld [vmem:[%s5764 + $0x80] sm:$0xff]
    %v5782 = vld [vmem:[%s5764 + $0x88] sm:$0xff]
    %v5783 = vld [vmem:[%s5764 + $0x90] sm:$0xff]
    %v5784 = vld [vmem:[%s5764 + $0x98] sm:$0xff]
    %v5785 = vld [vmem:[%s5764 + $0xa0] sm:$0xff]
    %v5786 = vld [vmem:[%s5764 + $0xa8] sm:$0xff]
    %v5787 = vld [vmem:[%s5764 + $0xb0] sm:$0xff]
    %v5788 = vld [vmem:[%s5764 + $0xb8] sm:$0xff]
    %v5789 = vld [vmem:[%s5764 + $0xc0] sm:$0xff]
    %v5790 = vld [vmem:[%s5764 + $0xc8] sm:$0xff]
    %v5791 = vld [vmem:[%s5764 + $0xd0] sm:$0xff]
    %v5792 = vld [vmem:[%s5764 + $0xd8] sm:$0xff]
    %v5793 = vld [vmem:[%s5764 + $0xe0] sm:$0xff]
    %v5794 = vld [vmem:[%s5764 + $0xe8] sm:$0xff]
    %v5795 = vld [vmem:[%s5764 + $0xf0] sm:$0xff]
    %v5796 = vld [vmem:[%s5764 + $0xf8] sm:$0xff]
    %v5797 = vld [vmem:[%s5764 + $0x100] sm:$0xff]
    %v5798 = vld [vmem:[%s5764 + $0x108] sm:$0xff]
    %v5799 = vld [vmem:[%s5764 + $0x110] sm:$0xff]
    %v5800 = vld [vmem:[%s5764 + $0x118] sm:$0xff]
    %v5801 = vld [vmem:[%s5764 + $0x120] sm:$0xff]
    %v5802 = vld [vmem:[%s5764 + $0x128] sm:$0xff]
    %v5803 = vld [vmem:[%s5764 + $0x130] sm:$0xff]
    %v5804 = vld [vmem:[%s5764 + $0x138] sm:$0xff]
    %v5805 = vld [vmem:[%s5764 + $0x140] sm:$0xff]
    %v5806 = vld [vmem:[%s5764 + $0x148] sm:$0xff]
    %v5807 = vld [vmem:[%s5764 + $0x150] sm:$0xff]
    %v5808 = vld [vmem:[%s5764 + $0x158] sm:$0xff]
    %v5809 = vld [vmem:[%s5764 + $0x160] sm:$0xff]
    %v5810 = vld [vmem:[%s5764 + $0x168] sm:$0xff]
    %v5811 = vld [vmem:[%s5764 + $0x170] sm:$0xff]
    %v5812 = vld [vmem:[%s5764 + $0x178] sm:$0xff]
    %v5813 = vld [vmem:[%s5764 + $0x180] sm:$0xff]
    %v5814 = vld [vmem:[%s5764 + $0x188] sm:$0xff]
    %v5815 = vld [vmem:[%s5764 + $0x190] sm:$0xff]
    %v5816 = vld [vmem:[%s5764 + $0x198] sm:$0xff]
    %v5817 = vld [vmem:[%s5764 + $0x1a0] sm:$0xff]
    %v5818 = vld [vmem:[%s5764 + $0x1a8] sm:$0xff]
    %v5819 = vld [vmem:[%s5764 + $0x1b0] sm:$0xff]
    %v5820 = vld [vmem:[%s5764 + $0x1b8] sm:$0xff]
    %v5821 = vld [vmem:[%s5764 + $0x1c0] sm:$0xff]
    %v5822 = vld [vmem:[%s5764 + $0x1c8] sm:$0xff]
    %v5823 = vld [vmem:[%s5764 + $0x1d0] sm:$0xff]
    %v5824 = vld [vmem:[%s5764 + $0x1d8] sm:$0xff]
    %v5825 = vld [vmem:[%s5764 + $0x1e0] sm:$0xff]
    %v5826 = vld [vmem:[%s5764 + $0x1e8] sm:$0xff]
    %v5827 = vld [vmem:[%s5764 + $0x1f0] sm:$0xff]
    %v5828 = vld [vmem:[%s5764 + $0x1f8] sm:$0xff]
    %v5829 = vld [vmem:[%s5764 + $0x200] sm:$0xff]
    %v5830 = vld [vmem:[%s5764 + $0x208] sm:$0xff]
    %v5831 = vld [vmem:[%s5764 + $0x210] sm:$0xff]
    %v5832 = vld [vmem:[%s5764 + $0x218] sm:$0xff]
    %v5833 = vld [vmem:[%s5764 + $0x220] sm:$0xff]
    %v5834 = vld [vmem:[%s5764 + $0x228] sm:$0xff]
    %v5835 = vld [vmem:[%s5764 + $0x230] sm:$0xff]
    %v5836 = vld [vmem:[%s5764 + $0x238] sm:$0xff]
    %v5837 = vld [vmem:[%s5764 + $0x240] sm:$0xff]
    %v5838 = vld [vmem:[%s5764 + $0x248] sm:$0xff]
    %v5839 = vld [vmem:[%s5764 + $0x250] sm:$0xff]
    %v5840 = vld [vmem:[%s5764 + $0x258] sm:$0xff]
    %v5841 = vld [vmem:[%s5764 + $0x260] sm:$0xff]
    %v5842 = vld [vmem:[%s5764 + $0x268] sm:$0xff]
    %v5843 = vld [vmem:[%s5764 + $0x270] sm:$0xff]
    %v5844 = vld [vmem:[%s5764 + $0x278] sm:$0xff]
    %v5845 = vld [vmem:[%s5764 + $0x280] sm:$0xff]
    %v5846 = vld [vmem:[%s5764 + $0x288] sm:$0xff]
    %v5847 = vld [vmem:[%s5764 + $0x290] sm:$0xff]
    %v5848 = vld [vmem:[%s5764 + $0x298] sm:$0xff]
    %v5849 = vld [vmem:[%s5764 + $0x2a0] sm:$0xff]
    %v5850 = vld [vmem:[%s5764 + $0x2a8] sm:$0xff]
    %v5851 = vld [vmem:[%s5764 + $0x2b0] sm:$0xff]
    %v5852 = vld [vmem:[%s5764 + $0x2b8] sm:$0xff]
    %v5853 = vld [vmem:[%s5764 + $0x2c0] sm:$0xff]
    %v5854 = vld [vmem:[%s5764 + $0x2c8] sm:$0xff]
    %v5855 = vld [vmem:[%s5764 + $0x2d0] sm:$0xff]
    %v5856 = vld [vmem:[%s5764 + $0x2d8] sm:$0xff]
    %v5857 = vld [vmem:[%s5764 + $0x2e0] sm:$0xff]
    %v5858 = vld [vmem:[%s5764 + $0x2e8] sm:$0xff]
    %v5859 = vld [vmem:[%s5764 + $0x2f0] sm:$0xff]
    %v5860 = vld [vmem:[%s5764 + $0x2f8] sm:$0xff]
    %v5861 = vld [vmem:[%s5764 + $0x300] sm:$0xff]
    %v5862 = vld [vmem:[%s5764 + $0x308] sm:$0xff]
    %v5863 = vld [vmem:[%s5764 + $0x310] sm:$0xff]
    %v5864 = vld [vmem:[%s5764 + $0x318] sm:$0xff]
    %v5865 = vld [vmem:[%s5764 + $0x320] sm:$0xff]
    %v5866 = vld [vmem:[%s5764 + $0x328] sm:$0xff]
    %v5867 = vld [vmem:[%s5764 + $0x330] sm:$0xff]
    %v5868 = vld [vmem:[%s5764 + $0x338] sm:$0xff]
    %v5869 = vld [vmem:[%s5764 + $0x340] sm:$0xff]
    %v5870 = vld [vmem:[%s5764 + $0x348] sm:$0xff]
    %v5871 = vld [vmem:[%s5764 + $0x350] sm:$0xff]
    %v5872 = vld [vmem:[%s5764 + $0x358] sm:$0xff]
    %v5873 = vld [vmem:[%s5764 + $0x360] sm:$0xff]
    %v5874 = vld [vmem:[%s5764 + $0x368] sm:$0xff]
    %v5875 = vld [vmem:[%s5764 + $0x370] sm:$0xff]
    %v5876 = vld [vmem:[%s5764 + $0x378] sm:$0xff]
    %v5877 = vld [vmem:[%s5764 + $0x380] sm:$0xff]
    %v5878 = vld [vmem:[%s5764 + $0x388] sm:$0xff]
    %v5879 = vld [vmem:[%s5764 + $0x390] sm:$0xff]
    %v5880 = vld [vmem:[%s5764 + $0x398] sm:$0xff]
    %v5881 = vld [vmem:[%s5764 + $0x3a0] sm:$0xff]
    %v5882 = vld [vmem:[%s5764 + $0x3a8] sm:$0xff]
    %v5883 = vld [vmem:[%s5764 + $0x3b0] sm:$0xff]
    %v5884 = vld [vmem:[%s5764 + $0x3b8] sm:$0xff]
    %v5885 = vld [vmem:[%s5764 + $0x3c0] sm:$0xff]
    %v5886 = vld [vmem:[%s5764 + $0x3c8] sm:$0xff]
    %v5887 = vld [vmem:[%s5764 + $0x3d0] sm:$0xff]
    %v5888 = vld [vmem:[%s5764 + $0x3d8] sm:$0xff]
    %v5889 = vld [vmem:[%s5764 + $0x3e0] sm:$0xff]
    %v5890 = vld [vmem:[%s5764 + $0x3e8] sm:$0xff]
    %v5891 = vld [vmem:[%s5764 + $0x3f0] sm:$0xff]
    %v5892 = vld [vmem:[%s5764 + $0x3f8] sm:$0xff]
    %s5893 = scalar_lea.vmem %s15, 2
    %v5894 = vld [vmem:[%s5893] sm:$0x3]
    %s5895 = scalar_lea.vmem %s16, 2
    %v5896 = vld [vmem:[%s5895] sm:$0x3]
    %s5897 = scalar_lea.vmem [#allocation12], 2
    %v5898 = vld [vmem:[%s5897] sm:$0x3]
    %v5899 = vpack.c.bf16 %v5474, %v5472
    %v5900 = vpack.c.bf16 %v5475, %v5473
    %v5901 = vpack.c.bf16 %v5478, %v5476
    %v5902 = vpack.c.bf16 %v5479, %v5477
    %v5903 = vpack.c.bf16 %v5482, %v5480
    %v5904 = vpack.c.bf16 %v5483, %v5481
    %v5905 = vpack.c.bf16 %v5486, %v5484
    %v5906 = vpack.c.bf16 %v5487, %v5485
    %v5907 = vpack.c.bf16 %v5490, %v5488
    %v5908 = vpack.c.bf16 %v5491, %v5489
    %v5910 = vlaneseq
    %v5911 = vshrl.u32 %v5910, 7
    %v5912 = vsub.s32 0, %v5911
    %v5913 = vrot.slane %v5526, %v5912
    %v5914 = vlaneseq
    %v5915 = vshrl.u32 %v5914, 7
    %v5916 = vsub.s32 1, %v5915
    %v5917 = vrot.slane %v5526, %v5916
    %v5952 = vunpack.c.l.b16 %v5493
    %v5953 = vunpack.c.h.b16 %v5493
    %v5954 = vunpack.c.l.b16 %v5494
    %v5955 = vunpack.c.h.b16 %v5494
    %v5956 = vunpack.c.l.b16 %v5495
    %v5957 = vunpack.c.h.b16 %v5495
    %v5958 = vunpack.c.l.b16 %v5496
    %v5959 = vunpack.c.h.b16 %v5496
    %v5960 = vunpack.c.l.b16 %v5497
    %v5961 = vunpack.c.h.b16 %v5497
    %v5962 = vunpack.c.l.b16 %v5498
    %v5963 = vunpack.c.h.b16 %v5498
    %v5964 = vunpack.c.l.b16 %v5499
    %v5965 = vunpack.c.h.b16 %v5499
    %v5966 = vunpack.c.l.b16 %v5500
    %v5967 = vunpack.c.h.b16 %v5500
    %v5968 = vunpack.c.l.b16 %v5501
    %v5969 = vunpack.c.h.b16 %v5501
    %v5970 = vunpack.c.l.b16 %v5502
    %v5971 = vunpack.c.h.b16 %v5502
    %v5972 = vunpack.c.l.b16 %v5503
    %v5973 = vunpack.c.h.b16 %v5503
    %v5974 = vunpack.c.l.b16 %v5504
    %v5975 = vunpack.c.h.b16 %v5504
    %v5976 = vunpack.c.l.b16 %v5505
    %v5977 = vunpack.c.h.b16 %v5505
    %v5978 = vunpack.c.l.b16 %v5506
    %v5979 = vunpack.c.h.b16 %v5506
    %v5980 = vunpack.c.l.b16 %v5507
    %v5981 = vunpack.c.h.b16 %v5507
    %v5982 = vunpack.c.l.b16 %v5508
    %v5983 = vunpack.c.h.b16 %v5508
    %v5984 = vunpack.c.l.b16 %v5509
    %v5985 = vunpack.c.h.b16 %v5509
    %v5986 = vunpack.c.l.b16 %v5510
    %v5987 = vunpack.c.h.b16 %v5510
    %v5988 = vunpack.c.l.b16 %v5511
    %v5989 = vunpack.c.h.b16 %v5511
    %v5990 = vunpack.c.l.b16 %v5512
    %v5991 = vunpack.c.h.b16 %v5512
    %v5992 = vunpack.c.l.b16 %v5513
    %v5993 = vunpack.c.h.b16 %v5513
    %v5994 = vunpack.c.l.b16 %v5514
    %v5995 = vunpack.c.h.b16 %v5514
    %v5996 = vunpack.c.l.b16 %v5515
    %v5997 = vunpack.c.h.b16 %v5515
    %v5998 = vunpack.c.l.b16 %v5516
    %v5999 = vunpack.c.h.b16 %v5516
    %v6000 = vunpack.c.l.b16 %v5517
    %v6001 = vunpack.c.h.b16 %v5517
    %v6002 = vunpack.c.l.b16 %v5518
    %v6003 = vunpack.c.h.b16 %v5518
    %v6004 = vunpack.c.l.b16 %v5519
    %v6005 = vunpack.c.h.b16 %v5519
    %v6006 = vunpack.c.l.b16 %v5520
    %v6007 = vunpack.c.h.b16 %v5520
    %v6008 = vunpack.c.l.b16 %v5521
    %v6009 = vunpack.c.h.b16 %v5521
    %v6010 = vunpack.c.l.b16 %v5522
    %v6011 = vunpack.c.h.b16 %v5522
    %v6012 = vunpack.c.l.b16 %v5523
    %v6013 = vunpack.c.h.b16 %v5523
    %v6014 = vunpack.c.l.b16 %v5524
    %v6015 = vunpack.c.h.b16 %v5524
    %v6016 = vpack.c.b16 %v5954, %v5952
    %v6017 = vpack.c.b16 %v5955, %v5953
    %v6018 = vpack.c.b16 %v5958, %v5956
    %v6019 = vpack.c.b16 %v5959, %v5957
    %v6020 = vpack.c.b16 %v5962, %v5960
    %v6021 = vpack.c.b16 %v5963, %v5961
    %v6022 = vpack.c.b16 %v5966, %v5964
    %v6023 = vpack.c.b16 %v5967, %v5965
    %v6024 = vpack.c.b16 %v5970, %v5968
    %v6025 = vpack.c.b16 %v5971, %v5969
    %v6026 = vpack.c.b16 %v5974, %v5972
    %v6027 = vpack.c.b16 %v5975, %v5973
    %v6028 = vpack.c.b16 %v5978, %v5976
    %v6029 = vpack.c.b16 %v5979, %v5977
    %v6030 = vpack.c.b16 %v5982, %v5980
    %v6031 = vpack.c.b16 %v5983, %v5981
    %v6032 = vpack.c.b16 %v5986, %v5984
    %v6033 = vpack.c.b16 %v5987, %v5985
    %v6034 = vpack.c.b16 %v5990, %v5988
    %v6035 = vpack.c.b16 %v5991, %v5989
    %v6036 = vpack.c.b16 %v5994, %v5992
    %v6037 = vpack.c.b16 %v5995, %v5993
    %v6038 = vpack.c.b16 %v5998, %v5996
    %v6039 = vpack.c.b16 %v5999, %v5997
    %v6040 = vpack.c.b16 %v6002, %v6000
    %v6041 = vpack.c.b16 %v6003, %v6001
    %v6042 = vpack.c.b16 %v6006, %v6004
    %v6043 = vpack.c.b16 %v6007, %v6005
    %v6044 = vpack.c.b16 %v6010, %v6008
    %v6045 = vpack.c.b16 %v6011, %v6009
    %v6046 = vpack.c.b16 %v6014, %v6012
    %v6047 = vpack.c.b16 %v6015, %v6013
    %6080 = vmatprep.subr.bf16.mxu0 %v6017
    %6081 = vmatpush1.bf16.msra.mxu0 %v6016
    %6082 = vmatprep.subr.bf16.mxu0 %v6019
    %6083 = vmatpush1.bf16.msra.mxu0 %v6018
    %6084 = vmatprep.subr.bf16.mxu0 %v6021
    %6085 = vmatpush1.bf16.msra.mxu0 %v6020
    %6086 = vmatprep.subr.bf16.mxu0 %v6023
    %6087 = vmatpush1.bf16.msra.mxu0 %v6022
    %6088 = vmatprep.subr.bf16.mxu0 %v6025
    %6089 = vmatpush1.bf16.msra.mxu0 %v6024
    %6090 = vmatprep.subr.bf16.mxu0 %v6027
    %6091 = vmatpush1.bf16.msra.mxu0 %v6026
    %6092 = vmatprep.subr.bf16.mxu0 %v6029
    %6093 = vmatpush1.bf16.msra.mxu0 %v6028
    %6094 = vmatprep.subr.bf16.mxu0 %v6031
    %6095 = vmatpush1.bf16.msra.mxu0 %v6030
    %6096 = vmatprep.subr.bf16.mxu0 %v6033
    %6097 = vmatpush1.bf16.msra.mxu0 %v6032
    %6098 = vmatprep.subr.bf16.mxu0 %v6035
    %6099 = vmatpush1.bf16.msra.mxu0 %v6034
    %6100 = vmatprep.subr.bf16.mxu0 %v6037
    %6101 = vmatpush1.bf16.msra.mxu0 %v6036
    %6102 = vmatprep.subr.bf16.mxu0 %v6039
    %6103 = vmatpush1.bf16.msra.mxu0 %v6038
    %6104 = vmatprep.subr.bf16.mxu0 %v6041
    %6105 = vmatpush1.bf16.msra.mxu0 %v6040
    %6106 = vmatprep.subr.bf16.mxu0 %v6043
    %6107 = vmatpush1.bf16.msra.mxu0 %v6042
    %6108 = vmatprep.subr.bf16.mxu0 %v6045
    %6109 = vmatpush1.bf16.msra.mxu0 %v6044
    %6110 = vmatprep.subr.bf16.mxu0 %v6047
    %6111 = vmatpush1.bf16.msra.mxu0 %v6046
    %6112 = vmatprep.mubr.bf16.mxu0 %v5900
    %6113 = vmatmul.mubr.bf16.gmra.mrb[0].mxu0 %v5899
    %v6114 = vpop.f32.mrb[0].mxu0
    %v6115 = vadd.f32 %v5913, %v6114
    %v6116 = vpop.f32.mrb[0].mxu0
    %v6117 = vadd.f32 %v5917, %v6116
    %v6118 = vpop.f32.mrb[0].mxu0
    %v6119 = vadd.f32 %v5913, %v6118
    %v6120 = vpop.f32.mrb[0].mxu0
    %v6121 = vadd.f32 %v5917, %v6120
    %6122 = vmatprep.mubr.bf16.mxu0 %v5902
    %6123 = vmatmul.mubr.bf16.gmra.mrb[0].mxu0 %v5901
    %v6124 = vpop.f32.mrb[0].mxu0
    %v6125 = vadd.f32 %v5913, %v6124
    %v6126 = vpop.f32.mrb[0].mxu0
    %v6127 = vadd.f32 %v5917, %v6126
    %v6128 = vpop.f32.mrb[0].mxu0
    %v6129 = vadd.f32 %v5913, %v6128
    %v6130 = vpop.f32.mrb[0].mxu0
    %v6131 = vadd.f32 %v5917, %v6130
    %6132 = vmatprep.mubr.bf16.mxu0 %v5904
    %6133 = vmatmul.mubr.bf16.gmra.mrb[0].mxu0 %v5903
    %v6134 = vpop.f32.mrb[0].mxu0
    %v6135 = vadd.f32 %v5913, %v6134
    %v6136 = vpop.f32.mrb[0].mxu0
    %v6137 = vadd.f32 %v5917, %v6136
    %v6138 = vpop.f32.mrb[0].mxu0
    %v6139 = vadd.f32 %v5913, %v6138
    %v6140 = vpop.f32.mrb[0].mxu0
    %v6141 = vadd.f32 %v5917, %v6140
    %6142 = vmatprep.mubr.bf16.mxu0 %v5906
    %6143 = vmatmul.mubr.bf16.gmra.mrb[0].mxu0 %v5905
    %v6144 = vpop.f32.mrb[0].mxu0
    %v6145 = vadd.f32 %v5913, %v6144
    %v6146 = vpop.f32.mrb[0].mxu0
    %v6147 = vadd.f32 %v5917, %v6146
    %v6148 = vpop.f32.mrb[0].mxu0
    %v6149 = vadd.f32 %v5913, %v6148
    %v6150 = vpop.f32.mrb[0].mxu0
    %v6151 = vadd.f32 %v5917, %v6150
    %6152 = vmatprep.mubr.bf16.mxu0 %v5908
    %6153 = vmatmul.mubr.bf16.gmra.mrb[0].mxu0 %v5907
    %v6154 = vpop.f32.mrb[0].mxu0
    %v6155 = vadd.f32 %v5913, %v6154
    %v6156 = vpop.f32.mrb[0].mxu0
    %v6157 = vadd.f32 %v5917, %v6156
    %v6158 = vpop.f32.mrb[0].mxu0
    %v6159 = vadd.f32 %v5913, %v6158
    %v6160 = vpop.f32.mrb[0].mxu0
    %v6161 = vadd.f32 %v5917, %v6160
    %6162 = vdwg.mxu0
    %v6164 = vlaneseq
    %v6165 = vshrl.u32 %v6164, 7
    %v6166 = vsub.s32 0, %v6165
    %v6167 = vrot.slane %v5593, %v6166
    %v6168 = vlaneseq
    %v6169 = vshrl.u32 %v6168, 7
    %v6170 = vsub.s32 1, %v6169
    %v6171 = vrot.slane %v5593, %v6170
    %v6172 = vlaneseq
    %v6173 = vshrl.u32 %v6172, 7
    %v6174 = vsub.s32 2, %v6173
    %v6175 = vrot.slane %v5593, %v6174
    %v6176 = vlaneseq
    %v6177 = vshrl.u32 %v6176, 7
    %v6178 = vsub.s32 3, %v6177
    %v6179 = vrot.slane %v5593, %v6178
    %v6248 = vunpack.c.l.b16 %v5528
    %v6249 = vunpack.c.h.b16 %v5528
    %v6250 = vunpack.c.l.b16 %v5529
    %v6251 = vunpack.c.h.b16 %v5529
    %v6252 = vunpack.c.l.b16 %v5530
    %v6253 = vunpack.c.h.b16 %v5530
    %v6254 = vunpack.c.l.b16 %v5531
    %v6255 = vunpack.c.h.b16 %v5531
    %v6256 = vunpack.c.l.b16 %v5532
    %v6257 = vunpack.c.h.b16 %v5532
    %v6258 = vunpack.c.l.b16 %v5533
    %v6259 = vunpack.c.h.b16 %v5533
    %v6260 = vunpack.c.l.b16 %v5534
    %v6261 = vunpack.c.h.b16 %v5534
    %v6262 = vunpack.c.l.b16 %v5535
    %v6263 = vunpack.c.h.b16 %v5535
    %v6264 = vunpack.c.l.b16 %v5536
    %v6265 = vunpack.c.h.b16 %v5536
    %v6266 = vunpack.c.l.b16 %v5537
    %v6267 = vunpack.c.h.b16 %v5537
    %v6268 = vunpack.c.l.b16 %v5538
    %v6269 = vunpack.c.h.b16 %v5538
    %v6270 = vunpack.c.l.b16 %v5539
    %v6271 = vunpack.c.h.b16 %v5539
    %v6272 = vunpack.c.l.b16 %v5540
    %v6273 = vunpack.c.h.b16 %v5540
    %v6274 = vunpack.c.l.b16 %v5541
    %v6275 = vunpack.c.h.b16 %v5541
    %v6276 = vunpack.c.l.b16 %v5542
    %v6277 = vunpack.c.h.b16 %v5542
    %v6278 = vunpack.c.l.b16 %v5543
    %v6279 = vunpack.c.h.b16 %v5543
    %v6280 = vunpack.c.l.b16 %v5544
    %v6281 = vunpack.c.h.b16 %v5544
    %v6282 = vunpack.c.l.b16 %v5545
    %v6283 = vunpack.c.h.b16 %v5545
    %v6284 = vunpack.c.l.b16 %v5546
    %v6285 = vunpack.c.h.b16 %v5546
    %v6286 = vunpack.c.l.b16 %v5547
    %v6287 = vunpack.c.h.b16 %v5547
    %v6288 = vunpack.c.l.b16 %v5548
    %v6289 = vunpack.c.h.b16 %v5548
    %v6290 = vunpack.c.l.b16 %v5549
    %v6291 = vunpack.c.h.b16 %v5549
    %v6292 = vunpack.c.l.b16 %v5550
    %v6293 = vunpack.c.h.b16 %v5550
    %v6294 = vunpack.c.l.b16 %v5551
    %v6295 = vunpack.c.h.b16 %v5551
    %v6296 = vunpack.c.l.b16 %v5552
    %v6297 = vunpack.c.h.b16 %v5552
    %v6298 = vunpack.c.l.b16 %v5553
    %v6299 = vunpack.c.h.b16 %v5553
    %v6300 = vunpack.c.l.b16 %v5554
    %v6301 = vunpack.c.h.b16 %v5554
    %v6302 = vunpack.c.l.b16 %v5555
    %v6303 = vunpack.c.h.b16 %v5555
    %v6304 = vunpack.c.l.b16 %v5556
    %v6305 = vunpack.c.h.b16 %v5556
    %v6306 = vunpack.c.l.b16 %v5557
    %v6307 = vunpack.c.h.b16 %v5557
    %v6308 = vunpack.c.l.b16 %v5558
    %v6309 = vunpack.c.h.b16 %v5558
    %v6310 = vunpack.c.l.b16 %v5559
    %v6311 = vunpack.c.h.b16 %v5559
    %v6312 = vunpack.c.l.b16 %v5560
    %v6313 = vunpack.c.h.b16 %v5560
    %v6314 = vunpack.c.l.b16 %v5561
    %v6315 = vunpack.c.h.b16 %v5561
    %v6316 = vunpack.c.l.b16 %v5562
    %v6317 = vunpack.c.h.b16 %v5562
    %v6318 = vunpack.c.l.b16 %v5563
    %v6319 = vunpack.c.h.b16 %v5563
    %v6320 = vunpack.c.l.b16 %v5564
    %v6321 = vunpack.c.h.b16 %v5564
    %v6322 = vunpack.c.l.b16 %v5565
    %v6323 = vunpack.c.h.b16 %v5565
    %v6324 = vunpack.c.l.b16 %v5566
    %v6325 = vunpack.c.h.b16 %v5566
    %v6326 = vunpack.c.l.b16 %v5567
    %v6327 = vunpack.c.h.b16 %v5567
    %v6328 = vunpack.c.l.b16 %v5568
    %v6329 = vunpack.c.h.b16 %v5568
    %v6330 = vunpack.c.l.b16 %v5569
    %v6331 = vunpack.c.h.b16 %v5569
    %v6332 = vunpack.c.l.b16 %v5570
    %v6333 = vunpack.c.h.b16 %v5570
    %v6334 = vunpack.c.l.b16 %v5571
    %v6335 = vunpack.c.h.b16 %v5571
    %v6336 = vunpack.c.l.b16 %v5572
    %v6337 = vunpack.c.h.b16 %v5572
    %v6338 = vunpack.c.l.b16 %v5573
    %v6339 = vunpack.c.h.b16 %v5573
    %v6340 = vunpack.c.l.b16 %v5574
    %v6341 = vunpack.c.h.b16 %v5574
    %v6342 = vunpack.c.l.b16 %v5575
    %v6343 = vunpack.c.h.b16 %v5575
    %v6344 = vunpack.c.l.b16 %v5576
    %v6345 = vunpack.c.h.b16 %v5576
    %v6346 = vunpack.c.l.b16 %v5577
    %v6347 = vunpack.c.h.b16 %v5577
    %v6348 = vunpack.c.l.b16 %v5578
    %v6349 = vunpack.c.h.b16 %v5578
    %v6350 = vunpack.c.l.b16 %v5579
    %v6351 = vunpack.c.h.b16 %v5579
    %v6352 = vunpack.c.l.b16 %v5580
    %v6353 = vunpack.c.h.b16 %v5580
    %v6354 = vunpack.c.l.b16 %v5581
    %v6355 = vunpack.c.h.b16 %v5581
    %v6356 = vunpack.c.l.b16 %v5582
    %v6357 = vunpack.c.h.b16 %v5582
    %v6358 = vunpack.c.l.b16 %v5583
    %v6359 = vunpack.c.h.b16 %v5583
    %v6360 = vunpack.c.l.b16 %v5584
    %v6361 = vunpack.c.h.b16 %v5584
    %v6362 = vunpack.c.l.b16 %v5585
    %v6363 = vunpack.c.h.b16 %v5585
    %v6364 = vunpack.c.l.b16 %v5586
    %v6365 = vunpack.c.h.b16 %v5586
    %v6366 = vunpack.c.l.b16 %v5587
    %v6367 = vunpack.c.h.b16 %v5587
    %v6368 = vunpack.c.l.b16 %v5588
    %v6369 = vunpack.c.h.b16 %v5588
    %v6370 = vunpack.c.l.b16 %v5589
    %v6371 = vunpack.c.h.b16 %v5589
    %v6372 = vunpack.c.l.b16 %v5590
    %v6373 = vunpack.c.h.b16 %v5590
    %v6374 = vunpack.c.l.b16 %v5591
    %v6375 = vunpack.c.h.b16 %v5591
    %v6376 = vpack.c.b16 %v6252, %v6248
    %v6377 = vpack.c.b16 %v6253, %v6249
    %v6378 = vpack.c.b16 %v6254, %v6250
    %v6379 = vpack.c.b16 %v6255, %v6251
    %v6380 = vpack.c.b16 %v6260, %v6256
    %v6381 = vpack.c.b16 %v6261, %v6257
    %v6382 = vpack.c.b16 %v6262, %v6258
    %v6383 = vpack.c.b16 %v6263, %v6259
    %v6384 = vpack.c.b16 %v6268, %v6264
    %v6385 = vpack.c.b16 %v6269, %v6265
    %v6386 = vpack.c.b16 %v6270, %v6266
    %v6387 = vpack.c.b16 %v6271, %v6267
    %v6388 = vpack.c.b16 %v6276, %v6272
    %v6389 = vpack.c.b16 %v6277, %v6273
    %v6390 = vpack.c.b16 %v6278, %v6274
    %v6391 = vpack.c.b16 %v6279, %v6275
    %v6392 = vpack.c.b16 %v6284, %v6280
    %v6393 = vpack.c.b16 %v6285, %v6281
    %v6394 = vpack.c.b16 %v6286, %v6282
    %v6395 = vpack.c.b16 %v6287, %v6283
    %v6396 = vpack.c.b16 %v6292, %v6288
    %v6397 = vpack.c.b16 %v6293, %v6289
    %v6398 = vpack.c.b16 %v6294, %v6290
    %v6399 = vpack.c.b16 %v6295, %v6291
    %v6400 = vpack.c.b16 %v6300, %v6296
    %v6401 = vpack.c.b16 %v6301, %v6297
    %v6402 = vpack.c.b16 %v6302, %v6298
    %v6403 = vpack.c.b16 %v6303, %v6299
    %v6404 = vpack.c.b16 %v6308, %v6304
    %v6405 = vpack.c.b16 %v6309, %v6305
    %v6406 = vpack.c.b16 %v6310, %v6306
    %v6407 = vpack.c.b16 %v6311, %v6307
    %v6408 = vpack.c.b16 %v6316, %v6312
    %v6409 = vpack.c.b16 %v6317, %v6313
    %v6410 = vpack.c.b16 %v6318, %v6314
    %v6411 = vpack.c.b16 %v6319, %v6315
    %v6412 = vpack.c.b16 %v6324, %v6320
    %v6413 = vpack.c.b16 %v6325, %v6321
    %v6414 = vpack.c.b16 %v6326, %v6322
    %v6415 = vpack.c.b16 %v6327, %v6323
    %v6416 = vpack.c.b16 %v6332, %v6328
    %v6417 = vpack.c.b16 %v6333, %v6329
    %v6418 = vpack.c.b16 %v6334, %v6330
    %v6419 = vpack.c.b16 %v6335, %v6331
    %v6420 = vpack.c.b16 %v6340, %v6336
    %v6421 = vpack.c.b16 %v6341, %v6337
    %v6422 = vpack.c.b16 %v6342, %v6338
    %v6423 = vpack.c.b16 %v6343, %v6339
    %v6424 = vpack.c.b16 %v6348, %v6344
    %v6425 = vpack.c.b16 %v6349, %v6345
    %v6426 = vpack.c.b16 %v6350, %v6346
    %v6427 = vpack.c.b16 %v6351, %v6347
    %v6428 = vpack.c.b16 %v6356, %v6352
    %v6429 = vpack.c.b16 %v6357, %v6353
    %v6430 = vpack.c.b16 %v6358, %v6354
    %v6431 = vpack.c.b16 %v6359, %v6355
    %v6432 = vpack.c.b16 %v6364, %v6360
    %v6433 = vpack.c.b16 %v6365, %v6361
    %v6434 = vpack.c.b16 %v6366, %v6362
    %v6435 = vpack.c.b16 %v6367, %v6363
    %v6436 = vpack.c.b16 %v6372, %v6368
    %v6437 = vpack.c.b16 %v6373, %v6369
    %v6438 = vpack.c.b16 %v6374, %v6370
    %v6439 = vpack.c.b16 %v6375, %v6371
    %6504 = vmatprep.subr.bf16.mxu0 %v6377
    %6505 = vmatpush1.bf16.msra.mxu0 %v6376
    %6506 = vmatprep.subr.bf16.mxu0 %v6381
    %6507 = vmatpush1.bf16.msra.mxu0 %v6380
    %6508 = vmatprep.subr.bf16.mxu0 %v6385
    %6509 = vmatpush1.bf16.msra.mxu0 %v6384
    %6510 = vmatprep.subr.bf16.mxu0 %v6389
    %6511 = vmatpush1.bf16.msra.mxu0 %v6388
    %6512 = vmatprep.subr.bf16.mxu0 %v6393
    %6513 = vmatpush1.bf16.msra.mxu0 %v6392
    %6514 = vmatprep.subr.bf16.mxu0 %v6397
    %6515 = vmatpush1.bf16.msra.mxu0 %v6396
    %6516 = vmatprep.subr.bf16.mxu0 %v6401
    %6517 = vmatpush1.bf16.msra.mxu0 %v6400
    %6518 = vmatprep.subr.bf16.mxu0 %v6405
    %6519 = vmatpush1.bf16.msra.mxu0 %v6404
    %6520 = vmatprep.subr.bf16.mxu0 %v6409
    %6521 = vmatpush1.bf16.msra.mxu0 %v6408
    %6522 = vmatprep.subr.bf16.mxu0 %v6413
    %6523 = vmatpush1.bf16.msra.mxu0 %v6412
    %6524 = vmatprep.subr.bf16.mxu0 %v6417
    %6525 = vmatpush1.bf16.msra.mxu0 %v6416
    %6526 = vmatprep.subr.bf16.mxu0 %v6421
    %6527 = vmatpush1.bf16.msra.mxu0 %v6420
    %6528 = vmatprep.subr.bf16.mxu0 %v6425
    %6529 = vmatpush1.bf16.msra.mxu0 %v6424
    %6530 = vmatprep.subr.bf16.mxu0 %v6429
    %6531 = vmatpush1.bf16.msra.mxu0 %v6428
    %6532 = vmatprep.subr.bf16.mxu0 %v6433
    %6533 = vmatpush1.bf16.msra.mxu0 %v6432
    %6534 = vmatprep.subr.bf16.mxu0 %v6437
    %6535 = vmatpush1.bf16.msra.mxu0 %v6436
    %6536 = vmatprep.mubr.bf16.mxu0 %v5900
    %6537 = vmatmul.mubr.bf16.gmra.mrb[0].mxu0 %v5899
    %v6538 = vpop.f32.mrb[0].mxu0
    %v6539 = vadd.f32 %v6167, %v6538
    %v6540 = vpop.f32.mrb[0].mxu0
    %v6541 = vadd.f32 %v6171, %v6540
    %v6542 = vpop.f32.mrb[0].mxu0
    %v6543 = vadd.f32 %v6167, %v6542
    %v6544 = vpop.f32.mrb[0].mxu0
    %v6545 = vadd.f32 %v6171, %v6544
    %6546 = vmatprep.mubr.bf16.mxu0 %v5902
    %6547 = vmatmul.mubr.bf16.gmra.mrb[0].mxu0 %v5901
    %v6548 = vpop.f32.mrb[0].mxu0
    %v6549 = vadd.f32 %v6167, %v6548
    %v6550 = vpop.f32.mrb[0].mxu0
    %v6551 = vadd.f32 %v6171, %v6550
    %v6552 = vpop.f32.mrb[0].mxu0
    %v6553 = vadd.f32 %v6167, %v6552
    %v6554 = vpop.f32.mrb[0].mxu0
    %v6555 = vadd.f32 %v6171, %v6554
    %6556 = vmatprep.mubr.bf16.mxu0 %v5904
    %6557 = vmatmul.mubr.bf16.gmra.mrb[0].mxu0 %v5903
    %v6558 = vpop.f32.mrb[0].mxu0
    %v6559 = vadd.f32 %v6167, %v6558
    %v6560 = vpop.f32.mrb[0].mxu0
    %v6561 = vadd.f32 %v6171, %v6560
    %v6562 = vpop.f32.mrb[0].mxu0
    %v6563 = vadd.f32 %v6167, %v6562
    %v6564 = vpop.f32.mrb[0].mxu0
    %v6565 = vadd.f32 %v6171, %v6564
    %6566 = vmatprep.mubr.bf16.mxu0 %v5906
    %6567 = vmatmul.mubr.bf16.gmra.mrb[0].mxu0 %v5905
    %v6568 = vpop.f32.mrb[0].mxu0
    %v6569 = vadd.f32 %v6167, %v6568
    %v6570 = vpop.f32.mrb[0].mxu0
    %v6571 = vadd.f32 %v6171, %v6570
    %v6572 = vpop.f32.mrb[0].mxu0
    %v6573 = vadd.f32 %v6167, %v6572
    %v6574 = vpop.f32.mrb[0].mxu0
    %v6575 = vadd.f32 %v6171, %v6574
    %6576 = vmatprep.mubr.bf16.mxu0 %v5908
    %6577 = vmatmul.mubr.bf16.gmra.mrb[0].mxu0 %v5907
    %v6578 = vpop.f32.mrb[0].mxu0
    %v6579 = vadd.f32 %v6167, %v6578
    %v6580 = vpop.f32.mrb[0].mxu0
    %v6581 = vadd.f32 %v6171, %v6580
    %v6582 = vpop.f32.mrb[0].mxu0
    %v6583 = vadd.f32 %v6167, %v6582
    %v6584 = vpop.f32.mrb[0].mxu0
    %v6585 = vadd.f32 %v6171, %v6584
    %6586 = vdwg.mxu0
    %6587 = vmatprep.subr.bf16.mxu0 %v6379
    %6588 = vmatpush1.bf16.msra.mxu0 %v6378
    %6589 = vmatprep.subr.bf16.mxu0 %v6383
    %6590 = vmatpush1.bf16.msra.mxu0 %v6382
    %6591 = vmatprep.subr.bf16.mxu0 %v6387
    %6592 = vmatpush1.bf16.msra.mxu0 %v6386
    %6593 = vmatprep.subr.bf16.mxu0 %v6391
    %6594 = vmatpush1.bf16.msra.mxu0 %v6390
    %6595 = vmatprep.subr.bf16.mxu0 %v6395
    %6596 = vmatpush1.bf16.msra.mxu0 %v6394
    %6597 = vmatprep.subr.bf16.mxu0 %v6399
    %6598 = vmatpush1.bf16.msra.mxu0 %v6398
    %6599 = vmatprep.subr.bf16.mxu0 %v6403
    %6600 = vmatpush1.bf16.msra.mxu0 %v6402
    %6601 = vmatprep.subr.bf16.mxu0 %v6407
    %6602 = vmatpush1.bf16.msra.mxu0 %v6406
    %6603 = vmatprep.subr.bf16.mxu0 %v6411
    %6604 = vmatpush1.bf16.msra.mxu0 %v6410
    %6605 = vmatprep.subr.bf16.mxu0 %v6415
    %6606 = vmatpush1.bf16.msra.mxu0 %v6414
    %6607 = vmatprep.subr.bf16.mxu0 %v6419
    %6608 = vmatpush1.bf16.msra.mxu0 %v6418
    %6609 = vmatprep.subr.bf16.mxu0 %v6423
    %6610 = vmatpush1.bf16.msra.mxu0 %v6422
    %6611 = vmatprep.subr.bf16.mxu0 %v6427
    %6612 = vmatpush1.bf16.msra.mxu0 %v6426
    %6613 = vmatprep.subr.bf16.mxu0 %v6431
    %6614 = vmatpush1.bf16.msra.mxu0 %v6430
    %6615 = vmatprep.subr.bf16.mxu0 %v6435
    %6616 = vmatpush1.bf16.msra.mxu0 %v6434
    %6617 = vmatprep.subr.bf16.mxu0 %v6439
    %6618 = vmatpush1.bf16.msra.mxu0 %v6438
    %6619 = vmatprep.mubr.bf16.mxu0 %v5900
    %6620 = vmatmul.mubr.bf16.gmra.mrb[0].mxu0 %v5899
    %v6621 = vpop.f32.mrb[0].mxu0
    %v6622 = vadd.f32 %v6175, %v6621
    %v6623 = vpop.f32.mrb[0].mxu0
    %v6624 = vadd.f32 %v6179, %v6623
    %v6625 = vpop.f32.mrb[0].mxu0
    %v6626 = vadd.f32 %v6175, %v6625
    %v6627 = vpop.f32.mrb[0].mxu0
    %v6628 = vadd.f32 %v6179, %v6627
    %6629 = vmatprep.mubr.bf16.mxu0 %v5902
    %6630 = vmatmul.mubr.bf16.gmra.mrb[0].mxu0 %v5901
    %v6631 = vpop.f32.mrb[0].mxu0
    %v6632 = vadd.f32 %v6175, %v6631
    %v6633 = vpop.f32.mrb[0].mxu0
    %v6634 = vadd.f32 %v6179, %v6633
    %v6635 = vpop.f32.mrb[0].mxu0
    %v6636 = vadd.f32 %v6175, %v6635
    %v6637 = vpop.f32.mrb[0].mxu0
    %v6638 = vadd.f32 %v6179, %v6637
    %6639 = vmatprep.mubr.bf16.mxu0 %v5904
    %6640 = vmatmul.mubr.bf16.gmra.mrb[0].mxu0 %v5903
    %v6641 = vpop.f32.mrb[0].mxu0
    %v6642 = vadd.f32 %v6175, %v6641
    %v6643 = vpop.f32.mrb[0].mxu0
    %v6644 = vadd.f32 %v6179, %v6643
    %v6645 = vpop.f32.mrb[0].mxu0
    %v6646 = vadd.f32 %v6175, %v6645
    %v6647 = vpop.f32.mrb[0].mxu0
    %v6648 = vadd.f32 %v6179, %v6647
    %6649 = vmatprep.mubr.bf16.mxu0 %v5906
    %6650 = vmatmul.mubr.bf16.gmra.mrb[0].mxu0 %v5905
    %v6651 = vpop.f32.mrb[0].mxu0
    %v6652 = vadd.f32 %v6175, %v6651
    %v6653 = vpop.f32.mrb[0].mxu0
    %v6654 = vadd.f32 %v6179, %v6653
    %v6655 = vpop.f32.mrb[0].mxu0
    %v6656 = vadd.f32 %v6175, %v6655
    %v6657 = vpop.f32.mrb[0].mxu0
    %v6658 = vadd.f32 %v6179, %v6657
    %6659 = vmatprep.mubr.bf16.mxu0 %v5908
    %6660 = vmatmul.mubr.bf16.gmra.mrb[0].mxu0 %v5907
    %v6661 = vpop.f32.mrb[0].mxu0
    %v6662 = vadd.f32 %v6175, %v6661
    %v6663 = vpop.f32.mrb[0].mxu0
    %v6664 = vadd.f32 %v6179, %v6663
    %v6665 = vpop.f32.mrb[0].mxu0
    %v6666 = vadd.f32 %v6175, %v6665
    %v6667 = vpop.f32.mrb[0].mxu0
    %v6668 = vadd.f32 %v6179, %v6667
    %6669 = vdwg.mxu0
    %v6670 = vpack.c.bf16 %v6115, %v6115
    %v6671 = vpack.c.bf16 %v6119, %v6119
    %v6672 = vpack.c.bf16 %v6553, %v6549
    %v6673 = vpack.c.bf16 %v6563, %v6559
    %v6674 = vpack.c.bf16 %v6573, %v6569
    %v6675 = vpack.c.bf16 %v6583, %v6579
    %v6676 = vpack.c.bf16 %v6636, %v6632
    %v6677 = vpack.c.bf16 %v6646, %v6642
    %v6678 = vpack.c.bf16 %v6656, %v6652
    %v6679 = vpack.c.bf16 %v6666, %v6662
    %6680 = vmatprep.subr.bf16.mxu0 0
    %6681 = vmatpush1.bf16.xpose.msra.mxu0 %v6672
    %6682 = vmatprep.subr.bf16.mxu0 0
    %6683 = vmatpush1.bf16.xpose.msra.mxu0 %v6673
    %6684 = vmatprep.subr.bf16.mxu0 0
    %6685 = vmatpush1.bf16.xpose.msra.mxu0 0
    %6686 = vmatprep.subr.bf16.mxu0 0
    %6687 = vmatpush1.bf16.xpose.msra.mxu0 0
    %6688 = vmatprep.subr.bf16.mxu0 0
    %6689 = vmatpush1.bf16.xpose.msra.mxu0 0
    %6690 = vmatprep.subr.bf16.mxu0 0
    %6691 = vmatpush1.bf16.xpose.msra.mxu0 0
    %6692 = vmatprep.subr.bf16.mxu0 0
    %6693 = vmatpush1.bf16.xpose.msra.mxu0 0
    %6694 = vmatprep.subr.bf16.mxu0 0
    %6695 = vmatpush1.bf16.xpose.msra.mxu0 0
    %6696 = vmatprep.subr.bf16.mxu0 0
    %6697 = vmatpush1.bf16.xpose.msra.mxu0 0
    %6698 = vmatprep.subr.bf16.mxu0 0
    %6699 = vmatpush1.bf16.xpose.msra.mxu0 0
    %6700 = vmatprep.subr.bf16.mxu0 0
    %6701 = vmatpush1.bf16.xpose.msra.mxu0 0
    %6702 = vmatprep.subr.bf16.mxu0 0
    %6703 = vmatpush1.bf16.xpose.msra.mxu0 0
    %6704 = vmatprep.subr.bf16.mxu0 0
    %6705 = vmatpush1.bf16.xpose.msra.mxu0 0
    %6706 = vmatprep.subr.bf16.mxu0 0
    %6707 = vmatpush1.bf16.xpose.msra.mxu0 0
    %6708 = vmatprep.subr.bf16.mxu0 0
    %6709 = vmatpush1.bf16.xpose.msra.mxu0 0
    %6710 = vmatprep.subr.bf16.mxu0 0
    %6711 = vmatpush1.bf16.xpose.msra.mxu0 0
    %6712 = vmatprep.mubr.bf16.mxu0 0
    %6713 = vmatmul.mubr.bf16.gmra.mrb[0].mxu0 %v6670
    %v6714 = vpop.f32.mrb[0].mxu0
    %v6715 = vadd.f32 0.0, %v6714
    %v6716 = vpop.f32.mrb[0].mxu0
    %v6717 = vpop.f32.mrb[0].mxu0
    %v6718 = vpop.f32.mrb[0].mxu0
    %6719 = vdwg.mxu0
    %6720 = vmatprep.subr.bf16.mxu0 0
    %6721 = vmatpush1.bf16.xpose.msra.mxu0 %v6674
    %6722 = vmatprep.subr.bf16.mxu0 0
    %6723 = vmatpush1.bf16.xpose.msra.mxu0 %v6675
    %6724 = vmatprep.subr.bf16.mxu0 0
    %6725 = vmatpush1.bf16.xpose.msra.mxu0 0
    %6726 = vmatprep.subr.bf16.mxu0 0
    %6727 = vmatpush1.bf16.xpose.msra.mxu0 0
    %6728 = vmatprep.subr.bf16.mxu0 0
    %6729 = vmatpush1.bf16.xpose.msra.mxu0 0
    %6730 = vmatprep.subr.bf16.mxu0 0
    %6731 = vmatpush1.bf16.xpose.msra.mxu0 0
    %6732 = vmatprep.subr.bf16.mxu0 0
    %6733 = vmatpush1.bf16.xpose.msra.mxu0 0
    %6734 = vmatprep.subr.bf16.mxu0 0
    %6735 = vmatpush1.bf16.xpose.msra.mxu0 0
    %6736 = vmatprep.subr.bf16.mxu0 0
    %6737 = vmatpush1.bf16.xpose.msra.mxu0 0
    %6738 = vmatprep.subr.bf16.mxu0 0
    %6739 = vmatpush1.bf16.xpose.msra.mxu0 0
    %6740 = vmatprep.subr.bf16.mxu0 0
    %6741 = vmatpush1.bf16.xpose.msra.mxu0 0
    %6742 = vmatprep.subr.bf16.mxu0 0
    %6743 = vmatpush1.bf16.xpose.msra.mxu0 0
    %6744 = vmatprep.subr.bf16.mxu0 0
    %6745 = vmatpush1.bf16.xpose.msra.mxu0 0
    %6746 = vmatprep.subr.bf16.mxu0 0
    %6747 = vmatpush1.bf16.xpose.msra.mxu0 0
    %6748 = vmatprep.subr.bf16.mxu0 0
    %6749 = vmatpush1.bf16.xpose.msra.mxu0 0
    %6750 = vmatprep.subr.bf16.mxu0 0
    %6751 = vmatpush1.bf16.xpose.msra.mxu0 0
    %6752 = vmatprep.mubr.bf16.mxu0 0
    %6753 = vmatmul.mubr.bf16.gmra.mrb[0].mxu0 %v6671
    %v6754 = vpop.f32.mrb[0].mxu0
    %v6755 = vadd.f32 0.0, %v6754
    %v6756 = vpop.f32.mrb[0].mxu0
    %v6757 = vpop.f32.mrb[0].mxu0
    %v6758 = vpop.f32.mrb[0].mxu0
    %6759 = vdwg.mxu0
    %v6760 = vsel %vm1676, %v6715, -inf
    %6761 = vmax.xlane.f32.xlu0 %v6760
    %v6762 = vpop.xlane.xlu0 %6761
    %v6763 = vsel %vm1676, %v6755, -inf
    %6764 = vmax.xlane.f32.xlu0 %v6763
    %v6765 = vpop.xlane.xlu0 %6764
    %v6766 = vsub.f32 %v6715, %v6762
    %v6767 = vsub.f32 %v6755, %v6765
    %v6768 = vmul.f32 %v6766, 1.442695
    %v6769 = vpow.pop %v6768
    %v6770 = vmul.f32 %v6767, 1.442695
    %v6771 = vpow.pop %v6770
    %v6772 = vsel %vm1676, %v6769, 0.0
    %6773 = vadd.xlane.f32.xlu0 %v6772
    %v6774 = vpop.xlane.xlu0 %6773
    %v6775 = vsel %vm1676, %v6771, 0.0
    %6776 = vadd.xlane.f32.xlu0 %v6775
    %v6777 = vpop.xlane.xlu0 %6776
    %v6778 = vrcp.pop %v6774
    %v6779 = vrcp.pop %v6777
    %v6780 = vmul.f32 %v6769, %v6778
    %v6781 = vmul.f32 %v6771, %v6779
    %v6782 = vpack.c.bf16 %v6780, %v6780
    %v6783 = vpack.c.bf16 %v6781, %v6781
    %v6785 = vsel %vm1676, %v6782, 0
    %6787 = vmatprep.subr.bf16.mxu0 0
    %6788 = vmatpush1.bf16.msra.mxu0 %v6676
    %6789 = vmatprep.subr.bf16.mxu0 0
    %6790 = vmatpush1.bf16.msra.mxu0 %v6677
    %6791 = vmatprep.subr.bf16.mxu0 0
    %6792 = vmatpush1.bf16.msra.mxu0 0
    %6793 = vmatprep.subr.bf16.mxu0 0
    %6794 = vmatpush1.bf16.msra.mxu0 0
    %6795 = vmatprep.subr.bf16.mxu0 0
    %6796 = vmatpush1.bf16.msra.mxu0 0
    %6797 = vmatprep.subr.bf16.mxu0 0
    %6798 = vmatpush1.bf16.msra.mxu0 0
    %6799 = vmatprep.subr.bf16.mxu0 0
    %6800 = vmatpush1.bf16.msra.mxu0 0
    %6801 = vmatprep.subr.bf16.mxu0 0
    %6802 = vmatpush1.bf16.msra.mxu0 0
    %6803 = vmatprep.subr.bf16.mxu0 0
    %6804 = vmatpush1.bf16.msra.mxu0 0
    %6805 = vmatprep.subr.bf16.mxu0 0
    %6806 = vmatpush1.bf16.msra.mxu0 0
    %6807 = vmatprep.subr.bf16.mxu0 0
    %6808 = vmatpush1.bf16.msra.mxu0 0
    %6809 = vmatprep.subr.bf16.mxu0 0
    %6810 = vmatpush1.bf16.msra.mxu0 0
    %6811 = vmatprep.subr.bf16.mxu0 0
    %6812 = vmatpush1.bf16.msra.mxu0 0
    %6813 = vmatprep.subr.bf16.mxu0 0
    %6814 = vmatpush1.bf16.msra.mxu0 0
    %6815 = vmatprep.subr.bf16.mxu0 0
    %6816 = vmatpush1.bf16.msra.mxu0 0
    %6817 = vmatprep.subr.bf16.mxu0 0
    %6818 = vmatpush1.bf16.msra.mxu0 0
    %6819 = vmatprep.mubr.bf16.mxu0 0
    %6820 = vmatmul.mubr.bf16.gmra.mrb[0].mxu0 %v6785
    %v6821 = vpop.f32.mrb[0].mxu0
    %v6822 = vadd.f32 0.0, %v6821
    %v6823 = vpop.f32.mrb[0].mxu0
    %v6824 = vpop.f32.mrb[0].mxu0
    %v6825 = vpop.f32.mrb[0].mxu0
    %6826 = vdwg.mxu0
    %v6828 = vsel %vm1676, %v6783, 0
    %6830 = vmatprep.subr.bf16.mxu0 0
    %6831 = vmatpush1.bf16.msra.mxu0 %v6678
    %6832 = vmatprep.subr.bf16.mxu0 0
    %6833 = vmatpush1.bf16.msra.mxu0 %v6679
    %6834 = vmatprep.subr.bf16.mxu0 0
    %6835 = vmatpush1.bf16.msra.mxu0 0
    %6836 = vmatprep.subr.bf16.mxu0 0
    %6837 = vmatpush1.bf16.msra.mxu0 0
    %6838 = vmatprep.subr.bf16.mxu0 0
    %6839 = vmatpush1.bf16.msra.mxu0 0
    %6840 = vmatprep.subr.bf16.mxu0 0
    %6841 = vmatpush1.bf16.msra.mxu0 0
    %6842 = vmatprep.subr.bf16.mxu0 0
    %6843 = vmatpush1.bf16.msra.mxu0 0
    %6844 = vmatprep.subr.bf16.mxu0 0
    %6845 = vmatpush1.bf16.msra.mxu0 0
    %6846 = vmatprep.subr.bf16.mxu0 0
    %6847 = vmatpush1.bf16.msra.mxu0 0
    %6848 = vmatprep.subr.bf16.mxu0 0
    %6849 = vmatpush1.bf16.msra.mxu0 0
    %6850 = vmatprep.subr.bf16.mxu0 0
    %6851 = vmatpush1.bf16.msra.mxu0 0
    %6852 = vmatprep.subr.bf16.mxu0 0
    %6853 = vmatpush1.bf16.msra.mxu0 0
    %6854 = vmatprep.subr.bf16.mxu0 0
    %6855 = vmatpush1.bf16.msra.mxu0 0
    %6856 = vmatprep.subr.bf16.mxu0 0
    %6857 = vmatpush1.bf16.msra.mxu0 0
    %6858 = vmatprep.subr.bf16.mxu0 0
    %6859 = vmatpush1.bf16.msra.mxu0 0
    %6860 = vmatprep.subr.bf16.mxu0 0
    %6861 = vmatpush1.bf16.msra.mxu0 0
    %6862 = vmatprep.mubr.bf16.mxu0 0
    %6863 = vmatmul.mubr.bf16.gmra.mrb[0].mxu0 %v6828
    %v6864 = vpop.f32.mrb[0].mxu0
    %v6865 = vadd.f32 0.0, %v6864
    %v6866 = vpop.f32.mrb[0].mxu0
    %v6867 = vpop.f32.mrb[0].mxu0
    %v6868 = vpop.f32.mrb[0].mxu0
    %6869 = vdwg.mxu0
    %v6870 = vpack.c.bf16 %v6117, %v6117
    %v6871 = vpack.c.bf16 %v6121, %v6121
    %v6872 = vpack.c.bf16 %v6555, %v6551
    %v6873 = vpack.c.bf16 %v6565, %v6561
    %v6874 = vpack.c.bf16 %v6575, %v6571
    %v6875 = vpack.c.bf16 %v6585, %v6581
    %v6876 = vpack.c.bf16 %v6638, %v6634
    %v6877 = vpack.c.bf16 %v6648, %v6644
    %v6878 = vpack.c.bf16 %v6658, %v6654
    %v6879 = vpack.c.bf16 %v6668, %v6664
    %6880 = vmatprep.subr.bf16.mxu0 0
    %6881 = vmatpush1.bf16.xpose.msra.mxu0 %v6872
    %6882 = vmatprep.subr.bf16.mxu0 0
    %6883 = vmatpush1.bf16.xpose.msra.mxu0 %v6873
    %6884 = vmatprep.subr.bf16.mxu0 0
    %6885 = vmatpush1.bf16.xpose.msra.mxu0 0
    %6886 = vmatprep.subr.bf16.mxu0 0
    %6887 = vmatpush1.bf16.xpose.msra.mxu0 0
    %6888 = vmatprep.subr.bf16.mxu0 0
    %6889 = vmatpush1.bf16.xpose.msra.mxu0 0
    %6890 = vmatprep.subr.bf16.mxu0 0
    %6891 = vmatpush1.bf16.xpose.msra.mxu0 0
    %6892 = vmatprep.subr.bf16.mxu0 0
    %6893 = vmatpush1.bf16.xpose.msra.mxu0 0
    %6894 = vmatprep.subr.bf16.mxu0 0
    %6895 = vmatpush1.bf16.xpose.msra.mxu0 0
    %6896 = vmatprep.subr.bf16.mxu0 0
    %6897 = vmatpush1.bf16.xpose.msra.mxu0 0
    %6898 = vmatprep.subr.bf16.mxu0 0
    %6899 = vmatpush1.bf16.xpose.msra.mxu0 0
    %6900 = vmatprep.subr.bf16.mxu0 0
    %6901 = vmatpush1.bf16.xpose.msra.mxu0 0
    %6902 = vmatprep.subr.bf16.mxu0 0
    %6903 = vmatpush1.bf16.xpose.msra.mxu0 0
    %6904 = vmatprep.subr.bf16.mxu0 0
    %6905 = vmatpush1.bf16.xpose.msra.mxu0 0
    %6906 = vmatprep.subr.bf16.mxu0 0
    %6907 = vmatpush1.bf16.xpose.msra.mxu0 0
    %6908 = vmatprep.subr.bf16.mxu0 0
    %6909 = vmatpush1.bf16.xpose.msra.mxu0 0
    %6910 = vmatprep.subr.bf16.mxu0 0
    %6911 = vmatpush1.bf16.xpose.msra.mxu0 0
    %6912 = vmatprep.mubr.bf16.mxu0 0
    %6913 = vmatmul.mubr.bf16.gmra.mrb[0].mxu0 %v6870
    %v6914 = vpop.f32.mrb[0].mxu0
    %v6915 = vadd.f32 0.0, %v6914
    %v6916 = vpop.f32.mrb[0].mxu0
    %v6917 = vpop.f32.mrb[0].mxu0
    %v6918 = vpop.f32.mrb[0].mxu0
    %6919 = vdwg.mxu0
    %6920 = vmatprep.subr.bf16.mxu0 0
    %6921 = vmatpush1.bf16.xpose.msra.mxu0 %v6874
    %6922 = vmatprep.subr.bf16.mxu0 0
    %6923 = vmatpush1.bf16.xpose.msra.mxu0 %v6875
    %6924 = vmatprep.subr.bf16.mxu0 0
    %6925 = vmatpush1.bf16.xpose.msra.mxu0 0
    %6926 = vmatprep.subr.bf16.mxu0 0
    %6927 = vmatpush1.bf16.xpose.msra.mxu0 0
    %6928 = vmatprep.subr.bf16.mxu0 0
    %6929 = vmatpush1.bf16.xpose.msra.mxu0 0
    %6930 = vmatprep.subr.bf16.mxu0 0
    %6931 = vmatpush1.bf16.xpose.msra.mxu0 0
    %6932 = vmatprep.subr.bf16.mxu0 0
    %6933 = vmatpush1.bf16.xpose.msra.mxu0 0
    %6934 = vmatprep.subr.bf16.mxu0 0
    %6935 = vmatpush1.bf16.xpose.msra.mxu0 0
    %6936 = vmatprep.subr.bf16.mxu0 0
    %6937 = vmatpush1.bf16.xpose.msra.mxu0 0
    %6938 = vmatprep.subr.bf16.mxu0 0
    %6939 = vmatpush1.bf16.xpose.msra.mxu0 0
    %6940 = vmatprep.subr.bf16.mxu0 0
    %6941 = vmatpush1.bf16.xpose.msra.mxu0 0
    %6942 = vmatprep.subr.bf16.mxu0 0
    %6943 = vmatpush1.bf16.xpose.msra.mxu0 0
    %6944 = vmatprep.subr.bf16.mxu0 0
    %6945 = vmatpush1.bf16.xpose.msra.mxu0 0
    %6946 = vmatprep.subr.bf16.mxu0 0
    %6947 = vmatpush1.bf16.xpose.msra.mxu0 0
    %6948 = vmatprep.subr.bf16.mxu0 0
    %6949 = vmatpush1.bf16.xpose.msra.mxu0 0
    %6950 = vmatprep.subr.bf16.mxu0 0
    %6951 = vmatpush1.bf16.xpose.msra.mxu0 0
    %6952 = vmatprep.mubr.bf16.mxu0 0
    %6953 = vmatmul.mubr.bf16.gmra.mrb[0].mxu0 %v6871
    %v6954 = vpop.f32.mrb[0].mxu0
    %v6955 = vadd.f32 0.0, %v6954
    %v6956 = vpop.f32.mrb[0].mxu0
    %v6957 = vpop.f32.mrb[0].mxu0
    %v6958 = vpop.f32.mrb[0].mxu0
    %6959 = vdwg.mxu0
    %v6960 = vsel %vm1676, %v6915, -inf
    %6961 = vmax.xlane.f32.xlu0 %v6960
    %v6962 = vpop.xlane.xlu0 %6961
    %v6963 = vsel %vm1676, %v6955, -inf
    %6964 = vmax.xlane.f32.xlu0 %v6963
    %v6965 = vpop.xlane.xlu0 %6964
    %v6966 = vsub.f32 %v6915, %v6962
    %v6967 = vsub.f32 %v6955, %v6965
    %v6968 = vmul.f32 %v6966, 1.442695
    %v6969 = vpow.pop %v6968
    %v6970 = vmul.f32 %v6967, 1.442695
    %v6971 = vpow.pop %v6970
    %v6972 = vsel %vm1676, %v6969, 0.0
    %6973 = vadd.xlane.f32.xlu0 %v6972
    %v6974 = vpop.xlane.xlu0 %6973
    %v6975 = vsel %vm1676, %v6971, 0.0
    %6976 = vadd.xlane.f32.xlu0 %v6975
    %v6977 = vpop.xlane.xlu0 %6976
    %v6978 = vrcp.pop %v6974
    %v6979 = vrcp.pop %v6977
    %v6980 = vmul.f32 %v6969, %v6978
    %v6981 = vmul.f32 %v6971, %v6979
    %v6982 = vpack.c.bf16 %v6980, %v6980
    %v6983 = vpack.c.bf16 %v6981, %v6981
    %v6985 = vsel %vm1676, %v6982, 0
    %6987 = vmatprep.subr.bf16.mxu0 0
    %6988 = vmatpush1.bf16.msra.mxu0 %v6876
    %6989 = vmatprep.subr.bf16.mxu0 0
    %6990 = vmatpush1.bf16.msra.mxu0 %v6877
    %6991 = vmatprep.subr.bf16.mxu0 0
    %6992 = vmatpush1.bf16.msra.mxu0 0
    %6993 = vmatprep.subr.bf16.mxu0 0
    %6994 = vmatpush1.bf16.msra.mxu0 0
    %6995 = vmatprep.subr.bf16.mxu0 0
    %6996 = vmatpush1.bf16.msra.mxu0 0
    %6997 = vmatprep.subr.bf16.mxu0 0
    %6998 = vmatpush1.bf16.msra.mxu0 0
    %6999 = vmatprep.subr.bf16.mxu0 0
    %7000 = vmatpush1.bf16.msra.mxu0 0
    %7001 = vmatprep.subr.bf16.mxu0 0
    %7002 = vmatpush1.bf16.msra.mxu0 0
    %7003 = vmatprep.subr.bf16.mxu0 0
    %7004 = vmatpush1.bf16.msra.mxu0 0
    %7005 = vmatprep.subr.bf16.mxu0 0
    %7006 = vmatpush1.bf16.msra.mxu0 0
    %7007 = vmatprep.subr.bf16.mxu0 0
    %7008 = vmatpush1.bf16.msra.mxu0 0
    %7009 = vmatprep.subr.bf16.mxu0 0
    %7010 = vmatpush1.bf16.msra.mxu0 0
    %7011 = vmatprep.subr.bf16.mxu0 0
    %7012 = vmatpush1.bf16.msra.mxu0 0
    %7013 = vmatprep.subr.bf16.mxu0 0
    %7014 = vmatpush1.bf16.msra.mxu0 0
    %7015 = vmatprep.subr.bf16.mxu0 0
    %7016 = vmatpush1.bf16.msra.mxu0 0
    %7017 = vmatprep.subr.bf16.mxu0 0
    %7018 = vmatpush1.bf16.msra.mxu0 0
    %7019 = vmatprep.mubr.bf16.mxu0 0
    %7020 = vmatmul.mubr.bf16.gmra.mrb[0].mxu0 %v6985
    %v7021 = vpop.f32.mrb[0].mxu0
    %v7022 = vadd.f32 0.0, %v7021
    %v7023 = vpop.f32.mrb[0].mxu0
    %v7024 = vpop.f32.mrb[0].mxu0
    %v7025 = vpop.f32.mrb[0].mxu0
    %7026 = vdwg.mxu0
    %v7028 = vsel %vm1676, %v6983, 0
    %7030 = vmatprep.subr.bf16.mxu0 0
    %7031 = vmatpush1.bf16.msra.mxu0 %v6878
    %7032 = vmatprep.subr.bf16.mxu0 0
    %7033 = vmatpush1.bf16.msra.mxu0 %v6879
    %7034 = vmatprep.subr.bf16.mxu0 0
    %7035 = vmatpush1.bf16.msra.mxu0 0
    %7036 = vmatprep.subr.bf16.mxu0 0
    %7037 = vmatpush1.bf16.msra.mxu0 0
    %7038 = vmatprep.subr.bf16.mxu0 0
    %7039 = vmatpush1.bf16.msra.mxu0 0
    %7040 = vmatprep.subr.bf16.mxu0 0
    %7041 = vmatpush1.bf16.msra.mxu0 0
    %7042 = vmatprep.subr.bf16.mxu0 0
    %7043 = vmatpush1.bf16.msra.mxu0 0
    %7044 = vmatprep.subr.bf16.mxu0 0
    %7045 = vmatpush1.bf16.msra.mxu0 0
    %7046 = vmatprep.subr.bf16.mxu0 0
    %7047 = vmatpush1.bf16.msra.mxu0 0
    %7048 = vmatprep.subr.bf16.mxu0 0
    %7049 = vmatpush1.bf16.msra.mxu0 0
    %7050 = vmatprep.subr.bf16.mxu0 0
    %7051 = vmatpush1.bf16.msra.mxu0 0
    %7052 = vmatprep.subr.bf16.mxu0 0
    %7053 = vmatpush1.bf16.msra.mxu0 0
    %7054 = vmatprep.subr.bf16.mxu0 0
    %7055 = vmatpush1.bf16.msra.mxu0 0
    %7056 = vmatprep.subr.bf16.mxu0 0
    %7057 = vmatpush1.bf16.msra.mxu0 0
    %7058 = vmatprep.subr.bf16.mxu0 0
    %7059 = vmatpush1.bf16.msra.mxu0 0
    %7060 = vmatprep.subr.bf16.mxu0 0
    %7061 = vmatpush1.bf16.msra.mxu0 0
    %7062 = vmatprep.mubr.bf16.mxu0 0
    %7063 = vmatmul.mubr.bf16.gmra.mrb[0].mxu0 %v7028
    %v7064 = vpop.f32.mrb[0].mxu0
    %v7065 = vadd.f32 0.0, %v7064
    %v7066 = vpop.f32.mrb[0].mxu0
    %v7067 = vpop.f32.mrb[0].mxu0
    %v7068 = vpop.f32.mrb[0].mxu0
    %7069 = vdwg.mxu0
    %v7070 = vpack.c.bf16 %v6129, %v6125
    %v7071 = vpack.c.bf16 %v6139, %v6135
    %v7072 = vpack.c.bf16 %v6149, %v6145
    %v7073 = vpack.c.bf16 %v6159, %v6155
    %v7074 = vpack.c.bf16 %v6539, %v6539
    %v7075 = vpack.c.bf16 %v6543, %v6543
    %v7076 = vpack.c.bf16 %v6622, %v6622
    %v7077 = vpack.c.bf16 %v6626, %v6626
    %7078 = vmatprep.subr.bf16.mxu0 0
    %7079 = vmatpush1.bf16.xpose.msra.mxu0 %v7074
    %7080 = vmatprep.subr.bf16.mxu0 0
    %7081 = vmatpush1.bf16.xpose.msra.mxu0 0
    %7082 = vmatprep.subr.bf16.mxu0 0
    %7083 = vmatpush1.bf16.xpose.msra.mxu0 0
    %7084 = vmatprep.subr.bf16.mxu0 0
    %7085 = vmatpush1.bf16.xpose.msra.mxu0 0
    %7086 = vmatprep.subr.bf16.mxu0 0
    %7087 = vmatpush1.bf16.xpose.msra.mxu0 0
    %7088 = vmatprep.subr.bf16.mxu0 0
    %7089 = vmatpush1.bf16.xpose.msra.mxu0 0
    %7090 = vmatprep.subr.bf16.mxu0 0
    %7091 = vmatpush1.bf16.xpose.msra.mxu0 0
    %7092 = vmatprep.subr.bf16.mxu0 0
    %7093 = vmatpush1.bf16.xpose.msra.mxu0 0
    %7094 = vmatprep.subr.bf16.mxu0 0
    %7095 = vmatpush1.bf16.xpose.msra.mxu0 0
    %7096 = vmatprep.subr.bf16.mxu0 0
    %7097 = vmatpush1.bf16.xpose.msra.mxu0 0
    %7098 = vmatprep.subr.bf16.mxu0 0
    %7099 = vmatpush1.bf16.xpose.msra.mxu0 0
    %7100 = vmatprep.subr.bf16.mxu0 0
    %7101 = vmatpush1.bf16.xpose.msra.mxu0 0
    %7102 = vmatprep.subr.bf16.mxu0 0
    %7103 = vmatpush1.bf16.xpose.msra.mxu0 0
    %7104 = vmatprep.subr.bf16.mxu0 0
    %7105 = vmatpush1.bf16.xpose.msra.mxu0 0
    %7106 = vmatprep.subr.bf16.mxu0 0
    %7107 = vmatpush1.bf16.xpose.msra.mxu0 0
    %7108 = vmatprep.subr.bf16.mxu0 0
    %7109 = vmatpush1.bf16.xpose.msra.mxu0 0
    %7110 = vmatprep.mubr.bf16.mxu0 0
    %7111 = vmatmul.mubr.bf16.gmra.mrb[0].mxu0 %v7070
    %v7112 = vpop.f32.mrb[0].mxu0
    %v7113 = vadd.f32 0.0, %v7112
    %v7114 = vpop.f32.mrb[0].mxu0
    %v7115 = vpop.f32.mrb[0].mxu0
    %v7116 = vadd.f32 0.0, %v7115
    %v7117 = vpop.f32.mrb[0].mxu0
    %7118 = vmatprep.mubr.bf16.mxu0 0
    %7119 = vmatmul.mubr.bf16.gmra.mrb[0].mxu0 %v7071
    %v7120 = vpop.f32.mrb[0].mxu0
    %v7121 = vadd.f32 0.0, %v7120
    %v7122 = vpop.f32.mrb[0].mxu0
    %v7123 = vpop.f32.mrb[0].mxu0
    %v7124 = vadd.f32 0.0, %v7123
    %v7125 = vpop.f32.mrb[0].mxu0
    %7126 = vdwg.mxu0
    %7127 = vmatprep.subr.bf16.mxu0 0
    %7128 = vmatpush1.bf16.xpose.msra.mxu0 %v7075
    %7129 = vmatprep.subr.bf16.mxu0 0
    %7130 = vmatpush1.bf16.xpose.msra.mxu0 0
    %7131 = vmatprep.subr.bf16.mxu0 0
    %7132 = vmatpush1.bf16.xpose.msra.mxu0 0
    %7133 = vmatprep.subr.bf16.mxu0 0
    %7134 = vmatpush1.bf16.xpose.msra.mxu0 0
    %7135 = vmatprep.subr.bf16.mxu0 0
    %7136 = vmatpush1.bf16.xpose.msra.mxu0 0
    %7137 = vmatprep.subr.bf16.mxu0 0
    %7138 = vmatpush1.bf16.xpose.msra.mxu0 0
    %7139 = vmatprep.subr.bf16.mxu0 0
    %7140 = vmatpush1.bf16.xpose.msra.mxu0 0
    %7141 = vmatprep.subr.bf16.mxu0 0
    %7142 = vmatpush1.bf16.xpose.msra.mxu0 0
    %7143 = vmatprep.subr.bf16.mxu0 0
    %7144 = vmatpush1.bf16.xpose.msra.mxu0 0
    %7145 = vmatprep.subr.bf16.mxu0 0
    %7146 = vmatpush1.bf16.xpose.msra.mxu0 0
    %7147 = vmatprep.subr.bf16.mxu0 0
    %7148 = vmatpush1.bf16.xpose.msra.mxu0 0
    %7149 = vmatprep.subr.bf16.mxu0 0
    %7150 = vmatpush1.bf16.xpose.msra.mxu0 0
    %7151 = vmatprep.subr.bf16.mxu0 0
    %7152 = vmatpush1.bf16.xpose.msra.mxu0 0
    %7153 = vmatprep.subr.bf16.mxu0 0
    %7154 = vmatpush1.bf16.xpose.msra.mxu0 0
    %7155 = vmatprep.subr.bf16.mxu0 0
    %7156 = vmatpush1.bf16.xpose.msra.mxu0 0
    %7157 = vmatprep.subr.bf16.mxu0 0
    %7158 = vmatpush1.bf16.xpose.msra.mxu0 0
    %7159 = vmatprep.mubr.bf16.mxu0 0
    %7160 = vmatmul.mubr.bf16.gmra.mrb[0].mxu0 %v7072
    %v7161 = vpop.f32.mrb[0].mxu0
    %v7162 = vadd.f32 0.0, %v7161
    %v7163 = vpop.f32.mrb[0].mxu0
    %v7164 = vpop.f32.mrb[0].mxu0
    %v7165 = vadd.f32 0.0, %v7164
    %v7166 = vpop.f32.mrb[0].mxu0
    %7167 = vmatprep.mubr.bf16.mxu0 0
    %7168 = vmatmul.mubr.bf16.gmra.mrb[0].mxu0 %v7073
    %v7169 = vpop.f32.mrb[0].mxu0
    %v7170 = vadd.f32 0.0, %v7169
    %v7171 = vpop.f32.mrb[0].mxu0
    %v7172 = vpop.f32.mrb[0].mxu0
    %v7173 = vadd.f32 0.0, %v7172
    %v7174 = vpop.f32.mrb[0].mxu0
    %7175 = vdwg.mxu0
    %v7176 = vsel %vm2093, %v7113, -inf
    %7177 = vmax.xlane.f32.xlu0 %v7176
    %v7178 = vpop.xlane.xlu0 %7177
    %v7179 = vsel %vm2093, %v7116, -inf
    %7180 = vmax.xlane.f32.xlu0 %v7179
    %v7181 = vpop.xlane.xlu0 %7180
    %v7182 = vsel %vm2093, %v7121, -inf
    %7183 = vmax.xlane.f32.xlu0 %v7182
    %v7184 = vpop.xlane.xlu0 %7183
    %v7185 = vsel %vm2093, %v7124, -inf
    %7186 = vmax.xlane.f32.xlu0 %v7185
    %v7187 = vpop.xlane.xlu0 %7186
    %v7188 = vsel %vm2093, %v7162, -inf
    %7189 = vmax.xlane.f32.xlu0 %v7188
    %v7190 = vpop.xlane.xlu0 %7189
    %v7191 = vsel %vm2093, %v7165, -inf
    %7192 = vmax.xlane.f32.xlu0 %v7191
    %v7193 = vpop.xlane.xlu0 %7192
    %v7194 = vsel %vm2093, %v7170, -inf
    %7195 = vmax.xlane.f32.xlu0 %v7194
    %v7196 = vpop.xlane.xlu0 %7195
    %v7197 = vsel %vm2093, %v7173, -inf
    %7198 = vmax.xlane.f32.xlu0 %v7197
    %v7199 = vpop.xlane.xlu0 %7198
    %v7200 = vsub.f32 %v7113, %v7178
    %v7201 = vsub.f32 %v7116, %v7181
    %v7202 = vsub.f32 %v7121, %v7184
    %v7203 = vsub.f32 %v7124, %v7187
    %v7204 = vsub.f32 %v7162, %v7190
    %v7205 = vsub.f32 %v7165, %v7193
    %v7206 = vsub.f32 %v7170, %v7196
    %v7207 = vsub.f32 %v7173, %v7199
    %v7208 = vmul.f32 %v7200, 1.442695
    %v7209 = vpow.pop %v7208
    %v7210 = vmul.f32 %v7201, 1.442695
    %v7211 = vpow.pop %v7210
    %v7212 = vmul.f32 %v7202, 1.442695
    %v7213 = vpow.pop %v7212
    %v7214 = vmul.f32 %v7203, 1.442695
    %v7215 = vpow.pop %v7214
    %v7216 = vmul.f32 %v7204, 1.442695
    %v7217 = vpow.pop %v7216
    %v7218 = vmul.f32 %v7205, 1.442695
    %v7219 = vpow.pop %v7218
    %v7220 = vmul.f32 %v7206, 1.442695
    %v7221 = vpow.pop %v7220
    %v7222 = vmul.f32 %v7207, 1.442695
    %v7223 = vpow.pop %v7222
    %v7224 = vsel %vm2093, %v7209, 0.0
    %7225 = vadd.xlane.f32.xlu0 %v7224
    %v7226 = vpop.xlane.xlu0 %7225
    %v7227 = vsel %vm2093, %v7211, 0.0
    %7228 = vadd.xlane.f32.xlu0 %v7227
    %v7229 = vpop.xlane.xlu0 %7228
    %v7230 = vsel %vm2093, %v7213, 0.0
    %7231 = vadd.xlane.f32.xlu0 %v7230
    %v7232 = vpop.xlane.xlu0 %7231
    %v7233 = vsel %vm2093, %v7215, 0.0
    %7234 = vadd.xlane.f32.xlu0 %v7233
    %v7235 = vpop.xlane.xlu0 %7234
    %v7236 = vsel %vm2093, %v7217, 0.0
    %7237 = vadd.xlane.f32.xlu0 %v7236
    %v7238 = vpop.xlane.xlu0 %7237
    %v7239 = vsel %vm2093, %v7219, 0.0
    %7240 = vadd.xlane.f32.xlu0 %v7239
    %v7241 = vpop.xlane.xlu0 %7240
    %v7242 = vsel %vm2093, %v7221, 0.0
    %7243 = vadd.xlane.f32.xlu0 %v7242
    %v7244 = vpop.xlane.xlu0 %7243
    %v7245 = vsel %vm2093, %v7223, 0.0
    %7246 = vadd.xlane.f32.xlu0 %v7245
    %v7247 = vpop.xlane.xlu0 %7246
    %v7248 = vrcp.pop %v7226
    %v7249 = vrcp.pop %v7229
    %v7250 = vrcp.pop %v7232
    %v7251 = vrcp.pop %v7235
    %v7252 = vrcp.pop %v7238
    %v7253 = vrcp.pop %v7241
    %v7254 = vrcp.pop %v7244
    %v7255 = vrcp.pop %v7247
    %v7256 = vmul.f32 %v7209, %v7248
    %v7257 = vmul.f32 %v7211, %v7249
    %v7258 = vmul.f32 %v7213, %v7250
    %v7259 = vmul.f32 %v7215, %v7251
    %v7260 = vmul.f32 %v7217, %v7252
    %v7261 = vmul.f32 %v7219, %v7253
    %v7262 = vmul.f32 %v7221, %v7254
    %v7263 = vmul.f32 %v7223, %v7255
    %v7264 = vpack.c.bf16 %v7257, %v7256
    %v7265 = vpack.c.bf16 %v7259, %v7258
    %v7266 = vpack.c.bf16 %v7261, %v7260
    %v7267 = vpack.c.bf16 %v7263, %v7262
    %v7269 = vsel %vm2093, %v7264, 0
    %v7272 = vsel %vm2093, %v7265, 0
    %v7275 = vsel %vm2192, %v7076, 0
    %7277 = vmatprep.subr.bf16.mxu0 0
    %7278 = vmatpush1.bf16.msra.mxu0 %v7275
    %7279 = vmatprep.subr.bf16.mxu0 0
    %7280 = vmatpush1.bf16.msra.mxu0 0
    %7281 = vmatprep.subr.bf16.mxu0 0
    %7282 = vmatpush1.bf16.msra.mxu0 0
    %7283 = vmatprep.subr.bf16.mxu0 0
    %7284 = vmatpush1.bf16.msra.mxu0 0
    %7285 = vmatprep.subr.bf16.mxu0 0
    %7286 = vmatpush1.bf16.msra.mxu0 0
    %7287 = vmatprep.subr.bf16.mxu0 0
    %7288 = vmatpush1.bf16.msra.mxu0 0
    %7289 = vmatprep.subr.bf16.mxu0 0
    %7290 = vmatpush1.bf16.msra.mxu0 0
    %7291 = vmatprep.subr.bf16.mxu0 0
    %7292 = vmatpush1.bf16.msra.mxu0 0
    %7293 = vmatprep.subr.bf16.mxu0 0
    %7294 = vmatpush1.bf16.msra.mxu0 0
    %7295 = vmatprep.subr.bf16.mxu0 0
    %7296 = vmatpush1.bf16.msra.mxu0 0
    %7297 = vmatprep.subr.bf16.mxu0 0
    %7298 = vmatpush1.bf16.msra.mxu0 0
    %7299 = vmatprep.subr.bf16.mxu0 0
    %7300 = vmatpush1.bf16.msra.mxu0 0
    %7301 = vmatprep.subr.bf16.mxu0 0
    %7302 = vmatpush1.bf16.msra.mxu0 0
    %7303 = vmatprep.subr.bf16.mxu0 0
    %7304 = vmatpush1.bf16.msra.mxu0 0
    %7305 = vmatprep.subr.bf16.mxu0 0
    %7306 = vmatpush1.bf16.msra.mxu0 0
    %7307 = vmatprep.subr.bf16.mxu0 0
    %7308 = vmatpush1.bf16.msra.mxu0 0
    %7309 = vmatprep.mubr.bf16.mxu0 0
    %7310 = vmatmul.mubr.bf16.gmra.mrb[0].mxu0 %v7269
    %v7311 = vpop.f32.mrb[0].mxu0
    %v7312 = vadd.f32 0.0, %v7311
    %v7313 = vpop.f32.mrb[0].mxu0
    %v7314 = vpop.f32.mrb[0].mxu0
    %v7315 = vadd.f32 0.0, %v7314
    %v7316 = vpop.f32.mrb[0].mxu0
    %7317 = vmatprep.mubr.bf16.mxu0 0
    %7318 = vmatmul.mubr.bf16.gmra.mrb[0].mxu0 %v7272
    %v7319 = vpop.f32.mrb[0].mxu0
    %v7320 = vadd.f32 0.0, %v7319
    %v7321 = vpop.f32.mrb[0].mxu0
    %v7322 = vpop.f32.mrb[0].mxu0
    %v7323 = vadd.f32 0.0, %v7322
    %v7324 = vpop.f32.mrb[0].mxu0
    %7325 = vdwg.mxu0
    %v7327 = vsel %vm2093, %v7266, 0
    %v7330 = vsel %vm2093, %v7267, 0
    %v7333 = vsel %vm2192, %v7077, 0
    %7335 = vmatprep.subr.bf16.mxu0 0
    %7336 = vmatpush1.bf16.msra.mxu0 %v7333
    %7337 = vmatprep.subr.bf16.mxu0 0
    %7338 = vmatpush1.bf16.msra.mxu0 0
    %7339 = vmatprep.subr.bf16.mxu0 0
    %7340 = vmatpush1.bf16.msra.mxu0 0
    %7341 = vmatprep.subr.bf16.mxu0 0
    %7342 = vmatpush1.bf16.msra.mxu0 0
    %7343 = vmatprep.subr.bf16.mxu0 0
    %7344 = vmatpush1.bf16.msra.mxu0 0
    %7345 = vmatprep.subr.bf16.mxu0 0
    %7346 = vmatpush1.bf16.msra.mxu0 0
    %7347 = vmatprep.subr.bf16.mxu0 0
    %7348 = vmatpush1.bf16.msra.mxu0 0
    %7349 = vmatprep.subr.bf16.mxu0 0
    %7350 = vmatpush1.bf16.msra.mxu0 0
    %7351 = vmatprep.subr.bf16.mxu0 0
    %7352 = vmatpush1.bf16.msra.mxu0 0
    %7353 = vmatprep.subr.bf16.mxu0 0
    %7354 = vmatpush1.bf16.msra.mxu0 0
    %7355 = vmatprep.subr.bf16.mxu0 0
    %7356 = vmatpush1.bf16.msra.mxu0 0
    %7357 = vmatprep.subr.bf16.mxu0 0
    %7358 = vmatpush1.bf16.msra.mxu0 0
    %7359 = vmatprep.subr.bf16.mxu0 0
    %7360 = vmatpush1.bf16.msra.mxu0 0
    %7361 = vmatprep.subr.bf16.mxu0 0
    %7362 = vmatpush1.bf16.msra.mxu0 0
    %7363 = vmatprep.subr.bf16.mxu0 0
    %7364 = vmatpush1.bf16.msra.mxu0 0
    %7365 = vmatprep.subr.bf16.mxu0 0
    %7366 = vmatpush1.bf16.msra.mxu0 0
    %7367 = vmatprep.mubr.bf16.mxu0 0
    %7368 = vmatmul.mubr.bf16.gmra.mrb[0].mxu0 %v7327
    %v7369 = vpop.f32.mrb[0].mxu0
    %v7370 = vadd.f32 0.0, %v7369
    %v7371 = vpop.f32.mrb[0].mxu0
    %v7372 = vpop.f32.mrb[0].mxu0
    %v7373 = vadd.f32 0.0, %v7372
    %v7374 = vpop.f32.mrb[0].mxu0
    %7375 = vmatprep.mubr.bf16.mxu0 0
    %7376 = vmatmul.mubr.bf16.gmra.mrb[0].mxu0 %v7330
    %v7377 = vpop.f32.mrb[0].mxu0
    %v7378 = vadd.f32 0.0, %v7377
    %v7379 = vpop.f32.mrb[0].mxu0
    %v7380 = vpop.f32.mrb[0].mxu0
    %v7381 = vadd.f32 0.0, %v7380
    %v7382 = vpop.f32.mrb[0].mxu0
    %7383 = vdwg.mxu0
    %v7384 = vpack.c.bf16 %v6131, %v6127
    %v7385 = vpack.c.bf16 %v6141, %v6137
    %v7386 = vpack.c.bf16 %v6151, %v6147
    %v7387 = vpack.c.bf16 %v6161, %v6157
    %v7388 = vpack.c.bf16 %v6541, %v6541
    %v7389 = vpack.c.bf16 %v6545, %v6545
    %v7390 = vpack.c.bf16 %v6624, %v6624
    %v7391 = vpack.c.bf16 %v6628, %v6628
    %7392 = vmatprep.subr.bf16.mxu0 0
    %7393 = vmatpush1.bf16.xpose.msra.mxu0 %v7388
    %7394 = vmatprep.subr.bf16.mxu0 0
    %7395 = vmatpush1.bf16.xpose.msra.mxu0 0
    %7396 = vmatprep.subr.bf16.mxu0 0
    %7397 = vmatpush1.bf16.xpose.msra.mxu0 0
    %7398 = vmatprep.subr.bf16.mxu0 0
    %7399 = vmatpush1.bf16.xpose.msra.mxu0 0
    %7400 = vmatprep.subr.bf16.mxu0 0
    %7401 = vmatpush1.bf16.xpose.msra.mxu0 0
    %7402 = vmatprep.subr.bf16.mxu0 0
    %7403 = vmatpush1.bf16.xpose.msra.mxu0 0
    %7404 = vmatprep.subr.bf16.mxu0 0
    %7405 = vmatpush1.bf16.xpose.msra.mxu0 0
    %7406 = vmatprep.subr.bf16.mxu0 0
    %7407 = vmatpush1.bf16.xpose.msra.mxu0 0
    %7408 = vmatprep.subr.bf16.mxu0 0
    %7409 = vmatpush1.bf16.xpose.msra.mxu0 0
    %7410 = vmatprep.subr.bf16.mxu0 0
    %7411 = vmatpush1.bf16.xpose.msra.mxu0 0
    %7412 = vmatprep.subr.bf16.mxu0 0
    %7413 = vmatpush1.bf16.xpose.msra.mxu0 0
    %7414 = vmatprep.subr.bf16.mxu0 0
    %7415 = vmatpush1.bf16.xpose.msra.mxu0 0
    %7416 = vmatprep.subr.bf16.mxu0 0
    %7417 = vmatpush1.bf16.xpose.msra.mxu0 0
    %7418 = vmatprep.subr.bf16.mxu0 0
    %7419 = vmatpush1.bf16.xpose.msra.mxu0 0
    %7420 = vmatprep.subr.bf16.mxu0 0
    %7421 = vmatpush1.bf16.xpose.msra.mxu0 0
    %7422 = vmatprep.subr.bf16.mxu0 0
    %7423 = vmatpush1.bf16.xpose.msra.mxu0 0
    %7424 = vmatprep.mubr.bf16.mxu0 0
    %7425 = vmatmul.mubr.bf16.gmra.mrb[0].mxu0 %v7384
    %v7426 = vpop.f32.mrb[0].mxu0
    %v7427 = vadd.f32 0.0, %v7426
    %v7428 = vpop.f32.mrb[0].mxu0
    %v7429 = vpop.f32.mrb[0].mxu0
    %v7430 = vadd.f32 0.0, %v7429
    %v7431 = vpop.f32.mrb[0].mxu0
    %7432 = vmatprep.mubr.bf16.mxu0 0
    %7433 = vmatmul.mubr.bf16.gmra.mrb[0].mxu0 %v7385
    %v7434 = vpop.f32.mrb[0].mxu0
    %v7435 = vadd.f32 0.0, %v7434
    %v7436 = vpop.f32.mrb[0].mxu0
    %v7437 = vpop.f32.mrb[0].mxu0
    %v7438 = vadd.f32 0.0, %v7437
    %v7439 = vpop.f32.mrb[0].mxu0
    %7440 = vdwg.mxu0
    %7441 = vmatprep.subr.bf16.mxu0 0
    %7442 = vmatpush1.bf16.xpose.msra.mxu0 %v7389
    %7443 = vmatprep.subr.bf16.mxu0 0
    %7444 = vmatpush1.bf16.xpose.msra.mxu0 0
    %7445 = vmatprep.subr.bf16.mxu0 0
    %7446 = vmatpush1.bf16.xpose.msra.mxu0 0
    %7447 = vmatprep.subr.bf16.mxu0 0
    %7448 = vmatpush1.bf16.xpose.msra.mxu0 0
    %7449 = vmatprep.subr.bf16.mxu0 0
    %7450 = vmatpush1.bf16.xpose.msra.mxu0 0
    %7451 = vmatprep.subr.bf16.mxu0 0
    %7452 = vmatpush1.bf16.xpose.msra.mxu0 0
    %7453 = vmatprep.subr.bf16.mxu0 0
    %7454 = vmatpush1.bf16.xpose.msra.mxu0 0
    %7455 = vmatprep.subr.bf16.mxu0 0
    %7456 = vmatpush1.bf16.xpose.msra.mxu0 0
    %7457 = vmatprep.subr.bf16.mxu0 0
    %7458 = vmatpush1.bf16.xpose.msra.mxu0 0
    %7459 = vmatprep.subr.bf16.mxu0 0
    %7460 = vmatpush1.bf16.xpose.msra.mxu0 0
    %7461 = vmatprep.subr.bf16.mxu0 0
    %7462 = vmatpush1.bf16.xpose.msra.mxu0 0
    %7463 = vmatprep.subr.bf16.mxu0 0
    %7464 = vmatpush1.bf16.xpose.msra.mxu0 0
    %7465 = vmatprep.subr.bf16.mxu0 0
    %7466 = vmatpush1.bf16.xpose.msra.mxu0 0
    %7467 = vmatprep.subr.bf16.mxu0 0
    %7468 = vmatpush1.bf16.xpose.msra.mxu0 0
    %7469 = vmatprep.subr.bf16.mxu0 0
    %7470 = vmatpush1.bf16.xpose.msra.mxu0 0
    %7471 = vmatprep.subr.bf16.mxu0 0
    %7472 = vmatpush1.bf16.xpose.msra.mxu0 0
    %7473 = vmatprep.mubr.bf16.mxu0 0
    %7474 = vmatmul.mubr.bf16.gmra.mrb[0].mxu0 %v7386
    %v7475 = vpop.f32.mrb[0].mxu0
    %v7476 = vadd.f32 0.0, %v7475
    %v7477 = vpop.f32.mrb[0].mxu0
    %v7478 = vpop.f32.mrb[0].mxu0
    %v7479 = vadd.f32 0.0, %v7478
    %v7480 = vpop.f32.mrb[0].mxu0
    %7481 = vmatprep.mubr.bf16.mxu0 0
    %7482 = vmatmul.mubr.bf16.gmra.mrb[0].mxu0 %v7387
    %v7483 = vpop.f32.mrb[0].mxu0
    %v7484 = vadd.f32 0.0, %v7483
    %v7485 = vpop.f32.mrb[0].mxu0
    %v7486 = vpop.f32.mrb[0].mxu0
    %v7487 = vadd.f32 0.0, %v7486
    %v7488 = vpop.f32.mrb[0].mxu0
    %7489 = vdwg.mxu0
    %v7490 = vsel %vm2093, %v7427, -inf
    %7491 = vmax.xlane.f32.xlu0 %v7490
    %v7492 = vpop.xlane.xlu0 %7491
    %v7493 = vsel %vm2093, %v7430, -inf
    %7494 = vmax.xlane.f32.xlu0 %v7493
    %v7495 = vpop.xlane.xlu0 %7494
    %v7496 = vsel %vm2093, %v7435, -inf
    %7497 = vmax.xlane.f32.xlu0 %v7496
    %v7498 = vpop.xlane.xlu0 %7497
    %v7499 = vsel %vm2093, %v7438, -inf
    %7500 = vmax.xlane.f32.xlu0 %v7499
    %v7501 = vpop.xlane.xlu0 %7500
    %v7502 = vsel %vm2093, %v7476, -inf
    %7503 = vmax.xlane.f32.xlu0 %v7502
    %v7504 = vpop.xlane.xlu0 %7503
    %v7505 = vsel %vm2093, %v7479, -inf
    %7506 = vmax.xlane.f32.xlu0 %v7505
    %v7507 = vpop.xlane.xlu0 %7506
    %v7508 = vsel %vm2093, %v7484, -inf
    %7509 = vmax.xlane.f32.xlu0 %v7508
    %v7510 = vpop.xlane.xlu0 %7509
    %v7511 = vsel %vm2093, %v7487, -inf
    %7512 = vmax.xlane.f32.xlu0 %v7511
    %v7513 = vpop.xlane.xlu0 %7512
    %v7514 = vsub.f32 %v7427, %v7492
    %v7515 = vsub.f32 %v7430, %v7495
    %v7516 = vsub.f32 %v7435, %v7498
    %v7517 = vsub.f32 %v7438, %v7501
    %v7518 = vsub.f32 %v7476, %v7504
    %v7519 = vsub.f32 %v7479, %v7507
    %v7520 = vsub.f32 %v7484, %v7510
    %v7521 = vsub.f32 %v7487, %v7513
    %v7522 = vmul.f32 %v7514, 1.442695
    %v7523 = vpow.pop %v7522
    %v7524 = vmul.f32 %v7515, 1.442695
    %v7525 = vpow.pop %v7524
    %v7526 = vmul.f32 %v7516, 1.442695
    %v7527 = vpow.pop %v7526
    %v7528 = vmul.f32 %v7517, 1.442695
    %v7529 = vpow.pop %v7528
    %v7530 = vmul.f32 %v7518, 1.442695
    %v7531 = vpow.pop %v7530
    %v7532 = vmul.f32 %v7519, 1.442695
    %v7533 = vpow.pop %v7532
    %v7534 = vmul.f32 %v7520, 1.442695
    %v7535 = vpow.pop %v7534
    %v7536 = vmul.f32 %v7521, 1.442695
    %v7537 = vpow.pop %v7536
    %v7538 = vsel %vm2093, %v7523, 0.0
    %7539 = vadd.xlane.f32.xlu0 %v7538
    %v7540 = vpop.xlane.xlu0 %7539
    %v7541 = vsel %vm2093, %v7525, 0.0
    %7542 = vadd.xlane.f32.xlu0 %v7541
    %v7543 = vpop.xlane.xlu0 %7542
    %v7544 = vsel %vm2093, %v7527, 0.0
    %7545 = vadd.xlane.f32.xlu0 %v7544
    %v7546 = vpop.xlane.xlu0 %7545
    %v7547 = vsel %vm2093, %v7529, 0.0
    %7548 = vadd.xlane.f32.xlu0 %v7547
    %v7549 = vpop.xlane.xlu0 %7548
    %v7550 = vsel %vm2093, %v7531, 0.0
    %7551 = vadd.xlane.f32.xlu0 %v7550
    %v7552 = vpop.xlane.xlu0 %7551
    %v7553 = vsel %vm2093, %v7533, 0.0
    %7554 = vadd.xlane.f32.xlu0 %v7553
    %v7555 = vpop.xlane.xlu0 %7554
    %v7556 = vsel %vm2093, %v7535, 0.0
    %7557 = vadd.xlane.f32.xlu0 %v7556
    %v7558 = vpop.xlane.xlu0 %7557
    %v7559 = vsel %vm2093, %v7537, 0.0
    %7560 = vadd.xlane.f32.xlu0 %v7559
    %v7561 = vpop.xlane.xlu0 %7560
    %v7562 = vrcp.pop %v7540
    %v7563 = vrcp.pop %v7543
    %v7564 = vrcp.pop %v7546
    %v7565 = vrcp.pop %v7549
    %v7566 = vrcp.pop %v7552
    %v7567 = vrcp.pop %v7555
    %v7568 = vrcp.pop %v7558
    %v7569 = vrcp.pop %v7561
    %v7570 = vmul.f32 %v7523, %v7562
    %v7571 = vmul.f32 %v7525, %v7563
    %v7572 = vmul.f32 %v7527, %v7564
    %v7573 = vmul.f32 %v7529, %v7565
    %v7574 = vmul.f32 %v7531, %v7566
    %v7575 = vmul.f32 %v7533, %v7567
    %v7576 = vmul.f32 %v7535, %v7568
    %v7577 = vmul.f32 %v7537, %v7569
    %v7578 = vpack.c.bf16 %v7571, %v7570
    %v7579 = vpack.c.bf16 %v7573, %v7572
    %v7580 = vpack.c.bf16 %v7575, %v7574
    %v7581 = vpack.c.bf16 %v7577, %v7576
    %v7583 = vsel %vm2093, %v7578, 0
    %v7586 = vsel %vm2093, %v7579, 0
    %v7589 = vsel %vm2192, %v7390, 0
    %7591 = vmatprep.subr.bf16.mxu0 0
    %7592 = vmatpush1.bf16.msra.mxu0 %v7589
    %7593 = vmatprep.subr.bf16.mxu0 0
    %7594 = vmatpush1.bf16.msra.mxu0 0
    %7595 = vmatprep.subr.bf16.mxu0 0
    %7596 = vmatpush1.bf16.msra.mxu0 0
    %7597 = vmatprep.subr.bf16.mxu0 0
    %7598 = vmatpush1.bf16.msra.mxu0 0
    %7599 = vmatprep.subr.bf16.mxu0 0
    %7600 = vmatpush1.bf16.msra.mxu0 0
    %7601 = vmatprep.subr.bf16.mxu0 0
    %7602 = vmatpush1.bf16.msra.mxu0 0
    %7603 = vmatprep.subr.bf16.mxu0 0
    %7604 = vmatpush1.bf16.msra.mxu0 0
    %7605 = vmatprep.subr.bf16.mxu0 0
    %7606 = vmatpush1.bf16.msra.mxu0 0
    %7607 = vmatprep.subr.bf16.mxu0 0
    %7608 = vmatpush1.bf16.msra.mxu0 0
    %7609 = vmatprep.subr.bf16.mxu0 0
    %7610 = vmatpush1.bf16.msra.mxu0 0
    %7611 = vmatprep.subr.bf16.mxu0 0
    %7612 = vmatpush1.bf16.msra.mxu0 0
    %7613 = vmatprep.subr.bf16.mxu0 0
    %7614 = vmatpush1.bf16.msra.mxu0 0
    %7615 = vmatprep.subr.bf16.mxu0 0
    %7616 = vmatpush1.bf16.msra.mxu0 0
    %7617 = vmatprep.subr.bf16.mxu0 0
    %7618 = vmatpush1.bf16.msra.mxu0 0
    %7619 = vmatprep.subr.bf16.mxu0 0
    %7620 = vmatpush1.bf16.msra.mxu0 0
    %7621 = vmatprep.subr.bf16.mxu0 0
    %7622 = vmatpush1.bf16.msra.mxu0 0
    %7623 = vmatprep.mubr.bf16.mxu0 0
    %7624 = vmatmul.mubr.bf16.gmra.mrb[0].mxu0 %v7583
    %v7625 = vpop.f32.mrb[0].mxu0
    %v7626 = vadd.f32 0.0, %v7625
    %v7627 = vpop.f32.mrb[0].mxu0
    %v7628 = vpop.f32.mrb[0].mxu0
    %v7629 = vadd.f32 0.0, %v7628
    %v7630 = vpop.f32.mrb[0].mxu0
    %7631 = vmatprep.mubr.bf16.mxu0 0
    %7632 = vmatmul.mubr.bf16.gmra.mrb[0].mxu0 %v7586
    %v7633 = vpop.f32.mrb[0].mxu0
    %v7634 = vadd.f32 0.0, %v7633
    %v7635 = vpop.f32.mrb[0].mxu0
    %v7636 = vpop.f32.mrb[0].mxu0
    %v7637 = vadd.f32 0.0, %v7636
    %v7638 = vpop.f32.mrb[0].mxu0
    %7639 = vdwg.mxu0
    %v7641 = vsel %vm2093, %v7580, 0
    %v7644 = vsel %vm2093, %v7581, 0
    %v7647 = vsel %vm2192, %v7391, 0
    %7649 = vmatprep.subr.bf16.mxu0 0
    %7650 = vmatpush1.bf16.msra.mxu0 %v7647
    %7651 = vmatprep.subr.bf16.mxu0 0
    %7652 = vmatpush1.bf16.msra.mxu0 0
    %7653 = vmatprep.subr.bf16.mxu0 0
    %7654 = vmatpush1.bf16.msra.mxu0 0
    %7655 = vmatprep.subr.bf16.mxu0 0
    %7656 = vmatpush1.bf16.msra.mxu0 0
    %7657 = vmatprep.subr.bf16.mxu0 0
    %7658 = vmatpush1.bf16.msra.mxu0 0
    %7659 = vmatprep.subr.bf16.mxu0 0
    %7660 = vmatpush1.bf16.msra.mxu0 0
    %7661 = vmatprep.subr.bf16.mxu0 0
    %7662 = vmatpush1.bf16.msra.mxu0 0
    %7663 = vmatprep.subr.bf16.mxu0 0
    %7664 = vmatpush1.bf16.msra.mxu0 0
    %7665 = vmatprep.subr.bf16.mxu0 0
    %7666 = vmatpush1.bf16.msra.mxu0 0
    %7667 = vmatprep.subr.bf16.mxu0 0
    %7668 = vmatpush1.bf16.msra.mxu0 0
    %7669 = vmatprep.subr.bf16.mxu0 0
    %7670 = vmatpush1.bf16.msra.mxu0 0
    %7671 = vmatprep.subr.bf16.mxu0 0
    %7672 = vmatpush1.bf16.msra.mxu0 0
    %7673 = vmatprep.subr.bf16.mxu0 0
    %7674 = vmatpush1.bf16.msra.mxu0 0
    %7675 = vmatprep.subr.bf16.mxu0 0
    %7676 = vmatpush1.bf16.msra.mxu0 0
    %7677 = vmatprep.subr.bf16.mxu0 0
    %7678 = vmatpush1.bf16.msra.mxu0 0
    %7679 = vmatprep.subr.bf16.mxu0 0
    %7680 = vmatpush1.bf16.msra.mxu0 0
    %7681 = vmatprep.mubr.bf16.mxu0 0
    %7682 = vmatmul.mubr.bf16.gmra.mrb[0].mxu0 %v7641
    %v7683 = vpop.f32.mrb[0].mxu0
    %v7684 = vadd.f32 0.0, %v7683
    %v7685 = vpop.f32.mrb[0].mxu0
    %v7686 = vpop.f32.mrb[0].mxu0
    %v7687 = vadd.f32 0.0, %v7686
    %v7688 = vpop.f32.mrb[0].mxu0
    %7689 = vmatprep.mubr.bf16.mxu0 0
    %7690 = vmatmul.mubr.bf16.gmra.mrb[0].mxu0 %v7644
    %v7691 = vpop.f32.mrb[0].mxu0
    %v7692 = vadd.f32 0.0, %v7691
    %v7693 = vpop.f32.mrb[0].mxu0
    %v7694 = vpop.f32.mrb[0].mxu0
    %v7695 = vadd.f32 0.0, %v7694
    %v7696 = vpop.f32.mrb[0].mxu0
    %7697 = vdwg.mxu0
    %v7698 = vpack.c.bf16 %v6865, %v6822
    %v7699 = vpack.c.bf16 %v7065, %v7022
    %v7700 = vpack.c.bf16 %v7315, %v7312
    %v7701 = vpack.c.bf16 %v7629, %v7626
    %v7702 = vpack.c.bf16 %v7323, %v7320
    %v7703 = vpack.c.bf16 %v7637, %v7634
    %v7704 = vpack.c.bf16 %v7373, %v7370
    %v7705 = vpack.c.bf16 %v7687, %v7684
    %v7706 = vpack.c.bf16 %v7381, %v7378
    %v7707 = vpack.c.bf16 %v7695, %v7692
    %v7709 = vlaneseq
    %v7710 = vshrl.u32 %v7709, 7
    %v7711 = vsub.s32 0, %v7710
    %v7712 = vrot.slane %v5628, %v7711
    %v7713 = vlaneseq
    %v7714 = vshrl.u32 %v7713, 7
    %v7715 = vsub.s32 1, %v7714
    %v7716 = vrot.slane %v5628, %v7715
    %v7751 = vunpack.c.l.b16 %v5595
    %v7752 = vunpack.c.h.b16 %v5595
    %v7753 = vunpack.c.l.b16 %v5596
    %v7754 = vunpack.c.h.b16 %v5596
    %v7755 = vunpack.c.l.b16 %v5597
    %v7756 = vunpack.c.h.b16 %v5597
    %v7757 = vunpack.c.l.b16 %v5598
    %v7758 = vunpack.c.h.b16 %v5598
    %v7759 = vunpack.c.l.b16 %v5599
    %v7760 = vunpack.c.h.b16 %v5599
    %v7761 = vunpack.c.l.b16 %v5600
    %v7762 = vunpack.c.h.b16 %v5600
    %v7763 = vunpack.c.l.b16 %v5601
    %v7764 = vunpack.c.h.b16 %v5601
    %v7765 = vunpack.c.l.b16 %v5602
    %v7766 = vunpack.c.h.b16 %v5602
    %v7767 = vunpack.c.l.b16 %v5603
    %v7768 = vunpack.c.h.b16 %v5603
    %v7769 = vunpack.c.l.b16 %v5604
    %v7770 = vunpack.c.h.b16 %v5604
    %v7771 = vunpack.c.l.b16 %v5605
    %v7772 = vunpack.c.h.b16 %v5605
    %v7773 = vunpack.c.l.b16 %v5606
    %v7774 = vunpack.c.h.b16 %v5606
    %v7775 = vunpack.c.l.b16 %v5607
    %v7776 = vunpack.c.h.b16 %v5607
    %v7777 = vunpack.c.l.b16 %v5608
    %v7778 = vunpack.c.h.b16 %v5608
    %v7779 = vunpack.c.l.b16 %v5609
    %v7780 = vunpack.c.h.b16 %v5609
    %v7781 = vunpack.c.l.b16 %v5610
    %v7782 = vunpack.c.h.b16 %v5610
    %v7783 = vunpack.c.l.b16 %v5611
    %v7784 = vunpack.c.h.b16 %v5611
    %v7785 = vunpack.c.l.b16 %v5612
    %v7786 = vunpack.c.h.b16 %v5612
    %v7787 = vunpack.c.l.b16 %v5613
    %v7788 = vunpack.c.h.b16 %v5613
    %v7789 = vunpack.c.l.b16 %v5614
    %v7790 = vunpack.c.h.b16 %v5614
    %v7791 = vunpack.c.l.b16 %v5615
    %v7792 = vunpack.c.h.b16 %v5615
    %v7793 = vunpack.c.l.b16 %v5616
    %v7794 = vunpack.c.h.b16 %v5616
    %v7795 = vunpack.c.l.b16 %v5617
    %v7796 = vunpack.c.h.b16 %v5617
    %v7797 = vunpack.c.l.b16 %v5618
    %v7798 = vunpack.c.h.b16 %v5618
    %v7799 = vunpack.c.l.b16 %v5619
    %v7800 = vunpack.c.h.b16 %v5619
    %v7801 = vunpack.c.l.b16 %v5620
    %v7802 = vunpack.c.h.b16 %v5620
    %v7803 = vunpack.c.l.b16 %v5621
    %v7804 = vunpack.c.h.b16 %v5621
    %v7805 = vunpack.c.l.b16 %v5622
    %v7806 = vunpack.c.h.b16 %v5622
    %v7807 = vunpack.c.l.b16 %v5623
    %v7808 = vunpack.c.h.b16 %v5623
    %v7809 = vunpack.c.l.b16 %v5624
    %v7810 = vunpack.c.h.b16 %v5624
    %v7811 = vunpack.c.l.b16 %v5625
    %v7812 = vunpack.c.h.b16 %v5625
    %v7813 = vunpack.c.l.b16 %v5626
    %v7814 = vunpack.c.h.b16 %v5626
    %v7815 = vpack.c.b16 %v7753, %v7751
    %v7816 = vpack.c.b16 %v7754, %v7752
    %v7817 = vpack.c.b16 %v7757, %v7755
    %v7818 = vpack.c.b16 %v7758, %v7756
    %v7819 = vpack.c.b16 %v7761, %v7759
    %v7820 = vpack.c.b16 %v7762, %v7760
    %v7821 = vpack.c.b16 %v7765, %v7763
    %v7822 = vpack.c.b16 %v7766, %v7764
    %v7823 = vpack.c.b16 %v7769, %v7767
    %v7824 = vpack.c.b16 %v7770, %v7768
    %v7825 = vpack.c.b16 %v7773, %v7771
    %v7826 = vpack.c.b16 %v7774, %v7772
    %v7827 = vpack.c.b16 %v7777, %v7775
    %v7828 = vpack.c.b16 %v7778, %v7776
    %v7829 = vpack.c.b16 %v7781, %v7779
    %v7830 = vpack.c.b16 %v7782, %v7780
    %v7831 = vpack.c.b16 %v7785, %v7783
    %v7832 = vpack.c.b16 %v7786, %v7784
    %v7833 = vpack.c.b16 %v7789, %v7787
    %v7834 = vpack.c.b16 %v7790, %v7788
    %v7835 = vpack.c.b16 %v7793, %v7791
    %v7836 = vpack.c.b16 %v7794, %v7792
    %v7837 = vpack.c.b16 %v7797, %v7795
    %v7838 = vpack.c.b16 %v7798, %v7796
    %v7839 = vpack.c.b16 %v7801, %v7799
    %v7840 = vpack.c.b16 %v7802, %v7800
    %v7841 = vpack.c.b16 %v7805, %v7803
    %v7842 = vpack.c.b16 %v7806, %v7804
    %v7843 = vpack.c.b16 %v7809, %v7807
    %v7844 = vpack.c.b16 %v7810, %v7808
    %v7845 = vpack.c.b16 %v7813, %v7811
    %v7846 = vpack.c.b16 %v7814, %v7812
    %7879 = vmatprep.subr.bf16.mxu0 %v7816
    %7880 = vmatpush1.bf16.msra.mxu0 %v7815
    %7881 = vmatprep.subr.bf16.mxu0 %v7818
    %7882 = vmatpush1.bf16.msra.mxu0 %v7817
    %7883 = vmatprep.subr.bf16.mxu0 %v7820
    %7884 = vmatpush1.bf16.msra.mxu0 %v7819
    %7885 = vmatprep.subr.bf16.mxu0 %v7822
    %7886 = vmatpush1.bf16.msra.mxu0 %v7821
    %7887 = vmatprep.subr.bf16.mxu0 %v7824
    %7888 = vmatpush1.bf16.msra.mxu0 %v7823
    %7889 = vmatprep.subr.bf16.mxu0 %v7826
    %7890 = vmatpush1.bf16.msra.mxu0 %v7825
    %7891 = vmatprep.subr.bf16.mxu0 %v7828
    %7892 = vmatpush1.bf16.msra.mxu0 %v7827
    %7893 = vmatprep.subr.bf16.mxu0 %v7830
    %7894 = vmatpush1.bf16.msra.mxu0 %v7829
    %7895 = vmatprep.subr.bf16.mxu0 %v7832
    %7896 = vmatpush1.bf16.msra.mxu0 %v7831
    %7897 = vmatprep.subr.bf16.mxu0 %v7834
    %7898 = vmatpush1.bf16.msra.mxu0 %v7833
    %7899 = vmatprep.subr.bf16.mxu0 %v7836
    %7900 = vmatpush1.bf16.msra.mxu0 %v7835
    %7901 = vmatprep.subr.bf16.mxu0 %v7838
    %7902 = vmatpush1.bf16.msra.mxu0 %v7837
    %7903 = vmatprep.subr.bf16.mxu0 %v7840
    %7904 = vmatpush1.bf16.msra.mxu0 %v7839
    %7905 = vmatprep.subr.bf16.mxu0 %v7842
    %7906 = vmatpush1.bf16.msra.mxu0 %v7841
    %7907 = vmatprep.subr.bf16.mxu0 %v7844
    %7908 = vmatpush1.bf16.msra.mxu0 %v7843
    %7909 = vmatprep.subr.bf16.mxu0 %v7846
    %7910 = vmatpush1.bf16.msra.mxu0 %v7845
    %7911 = vmatprep.mubr.bf16.mxu0 %v7699
    %7912 = vmatmul.mubr.bf16.gmra.mrb[0].mxu0 %v7698
    %v7913 = vpop.f32.mrb[0].mxu0
    %v7914 = vadd.f32 %v7712, %v7913
    %v7915 = vpop.f32.mrb[0].mxu0
    %v7916 = vadd.f32 %v7716, %v7915
    %v7917 = vpop.f32.mrb[0].mxu0
    %v7918 = vadd.f32 %v7712, %v7917
    %v7919 = vpop.f32.mrb[0].mxu0
    %v7920 = vadd.f32 %v7716, %v7919
    %7921 = vmatprep.mubr.bf16.mxu0 %v7701
    %7922 = vmatmul.mubr.bf16.gmra.mrb[0].mxu0 %v7700
    %v7923 = vpop.f32.mrb[0].mxu0
    %v7924 = vadd.f32 %v7712, %v7923
    %v7925 = vpop.f32.mrb[0].mxu0
    %v7926 = vadd.f32 %v7716, %v7925
    %v7927 = vpop.f32.mrb[0].mxu0
    %v7928 = vadd.f32 %v7712, %v7927
    %v7929 = vpop.f32.mrb[0].mxu0
    %v7930 = vadd.f32 %v7716, %v7929
    %7931 = vmatprep.mubr.bf16.mxu0 %v7703
    %7932 = vmatmul.mubr.bf16.gmra.mrb[0].mxu0 %v7702
    %v7933 = vpop.f32.mrb[0].mxu0
    %v7934 = vadd.f32 %v7712, %v7933
    %v7935 = vpop.f32.mrb[0].mxu0
    %v7936 = vadd.f32 %v7716, %v7935
    %v7937 = vpop.f32.mrb[0].mxu0
    %v7938 = vadd.f32 %v7712, %v7937
    %v7939 = vpop.f32.mrb[0].mxu0
    %v7940 = vadd.f32 %v7716, %v7939
    %7941 = vmatprep.mubr.bf16.mxu0 %v7705
    %7942 = vmatmul.mubr.bf16.gmra.mrb[0].mxu0 %v7704
    %v7943 = vpop.f32.mrb[0].mxu0
    %v7944 = vadd.f32 %v7712, %v7943
    %v7945 = vpop.f32.mrb[0].mxu0
    %v7946 = vadd.f32 %v7716, %v7945
    %v7947 = vpop.f32.mrb[0].mxu0
    %v7948 = vadd.f32 %v7712, %v7947
    %v7949 = vpop.f32.mrb[0].mxu0
    %v7950 = vadd.f32 %v7716, %v7949
    %7951 = vmatprep.mubr.bf16.mxu0 %v7707
    %7952 = vmatmul.mubr.bf16.gmra.mrb[0].mxu0 %v7706
    %v7953 = vpop.f32.mrb[0].mxu0
    %v7954 = vadd.f32 %v7712, %v7953
    %v7955 = vpop.f32.mrb[0].mxu0
    %v7956 = vadd.f32 %v7716, %v7955
    %v7957 = vpop.f32.mrb[0].mxu0
    %v7958 = vadd.f32 %v7712, %v7957
    %v7959 = vpop.f32.mrb[0].mxu0
    %v7960 = vadd.f32 %v7716, %v7959
    %7961 = vdwg.mxu0
    %v7962 = vadd.f32 %v5472, %v7914
    %v7963 = vadd.f32 %v5473, %v7916
    %v7964 = vadd.f32 %v5474, %v7918
    %v7965 = vadd.f32 %v5475, %v7920
    %v7966 = vadd.f32 %v5476, %v7924
    %v7967 = vadd.f32 %v5477, %v7926
    %v7968 = vadd.f32 %v5478, %v7928
    %v7969 = vadd.f32 %v5479, %v7930
    %v7970 = vadd.f32 %v5480, %v7934
    %v7971 = vadd.f32 %v5481, %v7936
    %v7972 = vadd.f32 %v5482, %v7938
    %v7973 = vadd.f32 %v5483, %v7940
    %v7974 = vadd.f32 %v5484, %v7944
    %v7975 = vadd.f32 %v5485, %v7946
    %v7976 = vadd.f32 %v5486, %v7948
    %v7977 = vadd.f32 %v5487, %v7950
    %v7978 = vadd.f32 %v5488, %v7954
    %v7979 = vadd.f32 %v5489, %v7956
    %v7980 = vadd.f32 %v5490, %v7958
    %v7981 = vadd.f32 %v5491, %v7960
    %v7982 = vadd.f32 %v7962, %v7963
    %7983 = vadd.xlane.f32.xlu0 %v7982
    %v7984 = vpop.xlane.xlu0 %7983
    %v7985 = vadd.f32 %v7964, %v7965
    %7986 = vadd.xlane.f32.xlu0 %v7985
    %v7987 = vpop.xlane.xlu0 %7986
    %v7988 = vadd.f32 %v7966, %v7967
    %7989 = vadd.xlane.f32.xlu0 %v7988
    %v7990 = vpop.xlane.xlu0 %7989
    %v7991 = vadd.f32 %v7968, %v7969
    %7992 = vadd.xlane.f32.xlu0 %v7991
    %v7993 = vpop.xlane.xlu0 %7992
    %v7994 = vadd.f32 %v7970, %v7971
    %7995 = vadd.xlane.f32.xlu0 %v7994
    %v7996 = vpop.xlane.xlu0 %7995
    %v7997 = vadd.f32 %v7972, %v7973
    %7998 = vadd.xlane.f32.xlu0 %v7997
    %v7999 = vpop.xlane.xlu0 %7998
    %v8000 = vadd.f32 %v7974, %v7975
    %8001 = vadd.xlane.f32.xlu0 %v8000
    %v8002 = vpop.xlane.xlu0 %8001
    %v8003 = vadd.f32 %v7976, %v7977
    %8004 = vadd.xlane.f32.xlu0 %v8003
    %v8005 = vpop.xlane.xlu0 %8004
    %v8006 = vadd.f32 %v7978, %v7979
    %8007 = vadd.xlane.f32.xlu0 %v8006
    %v8008 = vpop.xlane.xlu0 %8007
    %v8009 = vadd.f32 %v7980, %v7981
    %8010 = vadd.xlane.f32.xlu0 %v8009
    %v8011 = vpop.xlane.xlu0 %8010
    %v8012 = vmul.f32 %v7984, %v2931
    %v8013 = vmul.f32 %v7987, %v2931
    %v8014 = vmul.f32 %v7990, %v2931
    %v8015 = vmul.f32 %v7993, %v2931
    %v8016 = vmul.f32 %v7996, %v2931
    %v8017 = vmul.f32 %v7999, %v2931
    %v8018 = vmul.f32 %v8002, %v2931
    %v8019 = vmul.f32 %v8005, %v2931
    %v8020 = vmul.f32 %v8008, %v2931
    %v8021 = vmul.f32 %v8011, %v2931
    %v8022 = vsub.f32 %v7962, %v8012
    %v8023 = vsub.f32 %v7963, %v8012
    %v8024 = vsub.f32 %v7964, %v8013
    %v8025 = vsub.f32 %v7965, %v8013
    %v8026 = vsub.f32 %v7966, %v8014
    %v8027 = vsub.f32 %v7967, %v8014
    %v8028 = vsub.f32 %v7968, %v8015
    %v8029 = vsub.f32 %v7969, %v8015
    %v8030 = vsub.f32 %v7970, %v8016
    %v8031 = vsub.f32 %v7971, %v8016
    %v8032 = vsub.f32 %v7972, %v8017
    %v8033 = vsub.f32 %v7973, %v8017
    %v8034 = vsub.f32 %v7974, %v8018
    %v8035 = vsub.f32 %v7975, %v8018
    %v8036 = vsub.f32 %v7976, %v8019
    %v8037 = vsub.f32 %v7977, %v8019
    %v8038 = vsub.f32 %v7978, %v8020
    %v8039 = vsub.f32 %v7979, %v8020
    %v8040 = vsub.f32 %v7980, %v8021
    %v8041 = vsub.f32 %v7981, %v8021
    %v8042 = vmul.f32 %v8022, %v8022
    %v8043 = vmul.f32 %v8023, %v8023
    %v8044 = vmul.f32 %v8024, %v8024
    %v8045 = vmul.f32 %v8025, %v8025
    %v8046 = vmul.f32 %v8026, %v8026
    %v8047 = vmul.f32 %v8027, %v8027
    %v8048 = vmul.f32 %v8028, %v8028
    %v8049 = vmul.f32 %v8029, %v8029
    %v8050 = vmul.f32 %v8030, %v8030
    %v8051 = vmul.f32 %v8031, %v8031
    %v8052 = vmul.f32 %v8032, %v8032
    %v8053 = vmul.f32 %v8033, %v8033
    %v8054 = vmul.f32 %v8034, %v8034
    %v8055 = vmul.f32 %v8035, %v8035
    %v8056 = vmul.f32 %v8036, %v8036
    %v8057 = vmul.f32 %v8037, %v8037
    %v8058 = vmul.f32 %v8038, %v8038
    %v8059 = vmul.f32 %v8039, %v8039
    %v8060 = vmul.f32 %v8040, %v8040
    %v8061 = vmul.f32 %v8041, %v8041
    %v8062 = vadd.f32 %v8042, %v8043
    %8063 = vadd.xlane.f32.xlu0 %v8062
    %v8064 = vpop.xlane.xlu0 %8063
    %v8065 = vadd.f32 %v8044, %v8045
    %8066 = vadd.xlane.f32.xlu0 %v8065
    %v8067 = vpop.xlane.xlu0 %8066
    %v8068 = vadd.f32 %v8046, %v8047
    %8069 = vadd.xlane.f32.xlu0 %v8068
    %v8070 = vpop.xlane.xlu0 %8069
    %v8071 = vadd.f32 %v8048, %v8049
    %8072 = vadd.xlane.f32.xlu0 %v8071
    %v8073 = vpop.xlane.xlu0 %8072
    %v8074 = vadd.f32 %v8050, %v8051
    %8075 = vadd.xlane.f32.xlu0 %v8074
    %v8076 = vpop.xlane.xlu0 %8075
    %v8077 = vadd.f32 %v8052, %v8053
    %8078 = vadd.xlane.f32.xlu0 %v8077
    %v8079 = vpop.xlane.xlu0 %8078
    %v8080 = vadd.f32 %v8054, %v8055
    %8081 = vadd.xlane.f32.xlu0 %v8080
    %v8082 = vpop.xlane.xlu0 %8081
    %v8083 = vadd.f32 %v8056, %v8057
    %8084 = vadd.xlane.f32.xlu0 %v8083
    %v8085 = vpop.xlane.xlu0 %8084
    %v8086 = vadd.f32 %v8058, %v8059
    %8087 = vadd.xlane.f32.xlu0 %v8086
    %v8088 = vpop.xlane.xlu0 %8087
    %v8089 = vadd.f32 %v8060, %v8061
    %8090 = vadd.xlane.f32.xlu0 %v8089
    %v8091 = vpop.xlane.xlu0 %8090
    %v8092 = vmul.f32 %v8064, %v2931
    %v8093 = vmul.f32 %v8067, %v2931
    %v8094 = vmul.f32 %v8070, %v2931
    %v8095 = vmul.f32 %v8073, %v2931
    %v8096 = vmul.f32 %v8076, %v2931
    %v8097 = vmul.f32 %v8079, %v2931
    %v8098 = vmul.f32 %v8082, %v2931
    %v8099 = vmul.f32 %v8085, %v2931
    %v8100 = vmul.f32 %v8088, %v2931
    %v8101 = vmul.f32 %v8091, %v2931
    %v8102 = vadd.f32 %v8092, 1e-05
    %v8103 = vadd.f32 %v8093, 1e-05
    %v8104 = vadd.f32 %v8094, 1e-05
    %v8105 = vadd.f32 %v8095, 1e-05
    %v8106 = vadd.f32 %v8096, 1e-05
    %v8107 = vadd.f32 %v8097, 1e-05
    %v8108 = vadd.f32 %v8098, 1e-05
    %v8109 = vadd.f32 %v8099, 1e-05
    %v8110 = vadd.f32 %v8100, 1e-05
    %v8111 = vadd.f32 %v8101, 1e-05
    %v8112 = vrsqrt.pop %v8102
    %v8113 = vrsqrt.pop %v8103
    %v8114 = vrsqrt.pop %v8104
    %v8115 = vrsqrt.pop %v8105
    %v8116 = vrsqrt.pop %v8106
    %v8117 = vrsqrt.pop %v8107
    %v8118 = vrsqrt.pop %v8108
    %v8119 = vrsqrt.pop %v8109
    %v8120 = vrsqrt.pop %v8110
    %v8121 = vrsqrt.pop %v8111
    %v8122 = vmul.f32 %v8022, %v8112
    %v8123 = vmul.f32 %v8023, %v8112
    %v8124 = vmul.f32 %v8024, %v8113
    %v8125 = vmul.f32 %v8025, %v8113
    %v8126 = vmul.f32 %v8026, %v8114
    %v8127 = vmul.f32 %v8027, %v8114
    %v8128 = vmul.f32 %v8028, %v8115
    %v8129 = vmul.f32 %v8029, %v8115
    %v8130 = vmul.f32 %v8030, %v8116
    %v8131 = vmul.f32 %v8031, %v8116
    %v8132 = vmul.f32 %v8032, %v8117
    %v8133 = vmul.f32 %v8033, %v8117
    %v8134 = vmul.f32 %v8034, %v8118
    %v8135 = vmul.f32 %v8035, %v8118
    %v8136 = vmul.f32 %v8036, %v8119
    %v8137 = vmul.f32 %v8037, %v8119
    %v8138 = vmul.f32 %v8038, %v8120
    %v8139 = vmul.f32 %v8039, %v8120
    %v8140 = vmul.f32 %v8040, %v8121
    %v8141 = vmul.f32 %v8041, %v8121
    %v8143 = vlaneseq
    %v8144 = vshrl.u32 %v8143, 7
    %v8145 = vsub.s32 0, %v8144
    %v8146 = vrot.slane %v5630, %v8145
    %v8147 = vlaneseq
    %v8148 = vshrl.u32 %v8147, 7
    %v8149 = vsub.s32 1, %v8148
    %v8150 = vrot.slane %v5630, %v8149
    %v8153 = vmul.f32 %v8122, %v8146
    %v8154 = vmul.f32 %v8123, %v8150
    %v8155 = vmul.f32 %v8124, %v8146
    %v8156 = vmul.f32 %v8125, %v8150
    %v8157 = vmul.f32 %v8126, %v8146
    %v8158 = vmul.f32 %v8127, %v8150
    %v8159 = vmul.f32 %v8128, %v8146
    %v8160 = vmul.f32 %v8129, %v8150
    %v8161 = vmul.f32 %v8130, %v8146
    %v8162 = vmul.f32 %v8131, %v8150
    %v8163 = vmul.f32 %v8132, %v8146
    %v8164 = vmul.f32 %v8133, %v8150
    %v8165 = vmul.f32 %v8134, %v8146
    %v8166 = vmul.f32 %v8135, %v8150
    %v8167 = vmul.f32 %v8136, %v8146
    %v8168 = vmul.f32 %v8137, %v8150
    %v8169 = vmul.f32 %v8138, %v8146
    %v8170 = vmul.f32 %v8139, %v8150
    %v8171 = vmul.f32 %v8140, %v8146
    %v8172 = vmul.f32 %v8141, %v8150
    %v8174 = vlaneseq
    %v8175 = vshrl.u32 %v8174, 7
    %v8176 = vsub.s32 0, %v8175
    %v8177 = vrot.slane %v5632, %v8176
    %v8178 = vlaneseq
    %v8179 = vshrl.u32 %v8178, 7
    %v8180 = vsub.s32 1, %v8179
    %v8181 = vrot.slane %v5632, %v8180
    %v8184 = vadd.f32 %v8153, %v8177
    %v8185 = vadd.f32 %v8154, %v8181
    %v8186 = vadd.f32 %v8155, %v8177
    %v8187 = vadd.f32 %v8156, %v8181
    %v8188 = vadd.f32 %v8157, %v8177
    %v8189 = vadd.f32 %v8158, %v8181
    %v8190 = vadd.f32 %v8159, %v8177
    %v8191 = vadd.f32 %v8160, %v8181
    %v8192 = vadd.f32 %v8161, %v8177
    %v8193 = vadd.f32 %v8162, %v8181
    %v8194 = vadd.f32 %v8163, %v8177
    %v8195 = vadd.f32 %v8164, %v8181
    %v8196 = vadd.f32 %v8165, %v8177
    %v8197 = vadd.f32 %v8166, %v8181
    %v8198 = vadd.f32 %v8167, %v8177
    %v8199 = vadd.f32 %v8168, %v8181
    %v8200 = vadd.f32 %v8169, %v8177
    %v8201 = vadd.f32 %v8170, %v8181
    %v8202 = vadd.f32 %v8171, %v8177
    %v8203 = vadd.f32 %v8172, %v8181
    %v8204 = vpack.c.bf16 %v8186, %v8184
    %v8205 = vpack.c.bf16 %v8187, %v8185
    %v8206 = vpack.c.bf16 %v8190, %v8188
    %v8207 = vpack.c.bf16 %v8191, %v8189
    %v8208 = vpack.c.bf16 %v8194, %v8192
    %v8209 = vpack.c.bf16 %v8195, %v8193
    %v8210 = vpack.c.bf16 %v8198, %v8196
    %v8211 = vpack.c.bf16 %v8199, %v8197
    %v8212 = vpack.c.bf16 %v8202, %v8200
    %v8213 = vpack.c.bf16 %v8203, %v8201
    %v8215 = vlaneseq
    %v8216 = vshrl.u32 %v8215, 7
    %v8217 = vsub.s32 0, %v8216
    %v8218 = vrot.slane %v5763, %v8217
    %v8219 = vlaneseq
    %v8220 = vshrl.u32 %v8219, 7
    %v8221 = vsub.s32 1, %v8220
    %v8222 = vrot.slane %v5763, %v8221
    %v8223 = vlaneseq
    %v8224 = vshrl.u32 %v8223, 7
    %v8225 = vsub.s32 2, %v8224
    %v8226 = vrot.slane %v5763, %v8225
    %v8227 = vlaneseq
    %v8228 = vshrl.u32 %v8227, 7
    %v8229 = vsub.s32 3, %v8228
    %v8230 = vrot.slane %v5763, %v8229
    %v8231 = vlaneseq
    %v8232 = vshrl.u32 %v8231, 7
    %v8233 = vsub.s32 4, %v8232
    %v8234 = vrot.slane %v5763, %v8233
    %v8235 = vlaneseq
    %v8236 = vshrl.u32 %v8235, 7
    %v8237 = vsub.s32 5, %v8236
    %v8238 = vrot.slane %v5763, %v8237
    %v8239 = vlaneseq
    %v8240 = vshrl.u32 %v8239, 7
    %v8241 = vsub.s32 6, %v8240
    %v8242 = vrot.slane %v5763, %v8241
    %v8243 = vlaneseq
    %v8244 = vshrl.u32 %v8243, 7
    %v8245 = vsub.s32 7, %v8244
    %v8246 = vrot.slane %v5763, %v8245
    %v8383 = vunpack.c.l.b16 %v5634
    %v8384 = vunpack.c.h.b16 %v5634
    %v8385 = vunpack.c.l.b16 %v5635
    %v8386 = vunpack.c.h.b16 %v5635
    %v8387 = vunpack.c.l.b16 %v5636
    %v8388 = vunpack.c.h.b16 %v5636
    %v8389 = vunpack.c.l.b16 %v5637
    %v8390 = vunpack.c.h.b16 %v5637
    %v8391 = vunpack.c.l.b16 %v5638
    %v8392 = vunpack.c.h.b16 %v5638
    %v8393 = vunpack.c.l.b16 %v5639
    %v8394 = vunpack.c.h.b16 %v5639
    %v8395 = vunpack.c.l.b16 %v5640
    %v8396 = vunpack.c.h.b16 %v5640
    %v8397 = vunpack.c.l.b16 %v5641
    %v8398 = vunpack.c.h.b16 %v5641
    %v8399 = vunpack.c.l.b16 %v5642
    %v8400 = vunpack.c.h.b16 %v5642
    %v8401 = vunpack.c.l.b16 %v5643
    %v8402 = vunpack.c.h.b16 %v5643
    %v8403 = vunpack.c.l.b16 %v5644
    %v8404 = vunpack.c.h.b16 %v5644
    %v8405 = vunpack.c.l.b16 %v5645
    %v8406 = vunpack.c.h.b16 %v5645
    %v8407 = vunpack.c.l.b16 %v5646
    %v8408 = vunpack.c.h.b16 %v5646
    %v8409 = vunpack.c.l.b16 %v5647
    %v8410 = vunpack.c.h.b16 %v5647
    %v8411 = vunpack.c.l.b16 %v5648
    %v8412 = vunpack.c.h.b16 %v5648
    %v8413 = vunpack.c.l.b16 %v5649
    %v8414 = vunpack.c.h.b16 %v5649
    %v8415 = vunpack.c.l.b16 %v5650
    %v8416 = vunpack.c.h.b16 %v5650
    %v8417 = vunpack.c.l.b16 %v5651
    %v8418 = vunpack.c.h.b16 %v5651
    %v8419 = vunpack.c.l.b16 %v5652
    %v8420 = vunpack.c.h.b16 %v5652
    %v8421 = vunpack.c.l.b16 %v5653
    %v8422 = vunpack.c.h.b16 %v5653
    %v8423 = vunpack.c.l.b16 %v5654
    %v8424 = vunpack.c.h.b16 %v5654
    %v8425 = vunpack.c.l.b16 %v5655
    %v8426 = vunpack.c.h.b16 %v5655
    %v8427 = vunpack.c.l.b16 %v5656
    %v8428 = vunpack.c.h.b16 %v5656
    %v8429 = vunpack.c.l.b16 %v5657
    %v8430 = vunpack.c.h.b16 %v5657
    %v8431 = vunpack.c.l.b16 %v5658
    %v8432 = vunpack.c.h.b16 %v5658
    %v8433 = vunpack.c.l.b16 %v5659
    %v8434 = vunpack.c.h.b16 %v5659
    %v8435 = vunpack.c.l.b16 %v5660
    %v8436 = vunpack.c.h.b16 %v5660
    %v8437 = vunpack.c.l.b16 %v5661
    %v8438 = vunpack.c.h.b16 %v5661
    %v8439 = vunpack.c.l.b16 %v5662
    %v8440 = vunpack.c.h.b16 %v5662
    %v8441 = vunpack.c.l.b16 %v5663
    %v8442 = vunpack.c.h.b16 %v5663
    %v8443 = vunpack.c.l.b16 %v5664
    %v8444 = vunpack.c.h.b16 %v5664
    %v8445 = vunpack.c.l.b16 %v5665
    %v8446 = vunpack.c.h.b16 %v5665
    %v8447 = vunpack.c.l.b16 %v5666
    %v8448 = vunpack.c.h.b16 %v5666
    %v8449 = vunpack.c.l.b16 %v5667
    %v8450 = vunpack.c.h.b16 %v5667
    %v8451 = vunpack.c.l.b16 %v5668
    %v8452 = vunpack.c.h.b16 %v5668
    %v8453 = vunpack.c.l.b16 %v5669
    %v8454 = vunpack.c.h.b16 %v5669
    %v8455 = vunpack.c.l.b16 %v5670
    %v8456 = vunpack.c.h.b16 %v5670
    %v8457 = vunpack.c.l.b16 %v5671
    %v8458 = vunpack.c.h.b16 %v5671
    %v8459 = vunpack.c.l.b16 %v5672
    %v8460 = vunpack.c.h.b16 %v5672
    %v8461 = vunpack.c.l.b16 %v5673
    %v8462 = vunpack.c.h.b16 %v5673
    %v8463 = vunpack.c.l.b16 %v5674
    %v8464 = vunpack.c.h.b16 %v5674
    %v8465 = vunpack.c.l.b16 %v5675
    %v8466 = vunpack.c.h.b16 %v5675
    %v8467 = vunpack.c.l.b16 %v5676
    %v8468 = vunpack.c.h.b16 %v5676
    %v8469 = vunpack.c.l.b16 %v5677
    %v8470 = vunpack.c.h.b16 %v5677
    %v8471 = vunpack.c.l.b16 %v5678
    %v8472 = vunpack.c.h.b16 %v5678
    %v8473 = vunpack.c.l.b16 %v5679
    %v8474 = vunpack.c.h.b16 %v5679
    %v8475 = vunpack.c.l.b16 %v5680
    %v8476 = vunpack.c.h.b16 %v5680
    %v8477 = vunpack.c.l.b16 %v5681
    %v8478 = vunpack.c.h.b16 %v5681
    %v8479 = vunpack.c.l.b16 %v5682
    %v8480 = vunpack.c.h.b16 %v5682
    %v8481 = vunpack.c.l.b16 %v5683
    %v8482 = vunpack.c.h.b16 %v5683
    %v8483 = vunpack.c.l.b16 %v5684
    %v8484 = vunpack.c.h.b16 %v5684
    %v8485 = vunpack.c.l.b16 %v5685
    %v8486 = vunpack.c.h.b16 %v5685
    %v8487 = vunpack.c.l.b16 %v5686
    %v8488 = vunpack.c.h.b16 %v5686
    %v8489 = vunpack.c.l.b16 %v5687
    %v8490 = vunpack.c.h.b16 %v5687
    %v8491 = vunpack.c.l.b16 %v5688
    %v8492 = vunpack.c.h.b16 %v5688
    %v8493 = vunpack.c.l.b16 %v5689
    %v8494 = vunpack.c.h.b16 %v5689
    %v8495 = vunpack.c.l.b16 %v5690
    %v8496 = vunpack.c.h.b16 %v5690
    %v8497 = vunpack.c.l.b16 %v5691
    %v8498 = vunpack.c.h.b16 %v5691
    %v8499 = vunpack.c.l.b16 %v5692
    %v8500 = vunpack.c.h.b16 %v5692
    %v8501 = vunpack.c.l.b16 %v5693
    %v8502 = vunpack.c.h.b16 %v5693
    %v8503 = vunpack.c.l.b16 %v5694
    %v8504 = vunpack.c.h.b16 %v5694
    %v8505 = vunpack.c.l.b16 %v5695
    %v8506 = vunpack.c.h.b16 %v5695
    %v8507 = vunpack.c.l.b16 %v5696
    %v8508 = vunpack.c.h.b16 %v5696
    %v8509 = vunpack.c.l.b16 %v5697
    %v8510 = vunpack.c.h.b16 %v5697
    %v8511 = vunpack.c.l.b16 %v5698
    %v8512 = vunpack.c.h.b16 %v5698
    %v8513 = vunpack.c.l.b16 %v5699
    %v8514 = vunpack.c.h.b16 %v5699
    %v8515 = vunpack.c.l.b16 %v5700
    %v8516 = vunpack.c.h.b16 %v5700
    %v8517 = vunpack.c.l.b16 %v5701
    %v8518 = vunpack.c.h.b16 %v5701
    %v8519 = vunpack.c.l.b16 %v5702
    %v8520 = vunpack.c.h.b16 %v5702
    %v8521 = vunpack.c.l.b16 %v5703
    %v8522 = vunpack.c.h.b16 %v5703
    %v8523 = vunpack.c.l.b16 %v5704
    %v8524 = vunpack.c.h.b16 %v5704
    %v8525 = vunpack.c.l.b16 %v5705
    %v8526 = vunpack.c.h.b16 %v5705
    %v8527 = vunpack.c.l.b16 %v5706
    %v8528 = vunpack.c.h.b16 %v5706
    %v8529 = vunpack.c.l.b16 %v5707
    %v8530 = vunpack.c.h.b16 %v5707
    %v8531 = vunpack.c.l.b16 %v5708
    %v8532 = vunpack.c.h.b16 %v5708
    %v8533 = vunpack.c.l.b16 %v5709
    %v8534 = vunpack.c.h.b16 %v5709
    %v8535 = vunpack.c.l.b16 %v5710
    %v8536 = vunpack.c.h.b16 %v5710
    %v8537 = vunpack.c.l.b16 %v5711
    %v8538 = vunpack.c.h.b16 %v5711
    %v8539 = vunpack.c.l.b16 %v5712
    %v8540 = vunpack.c.h.b16 %v5712
    %v8541 = vunpack.c.l.b16 %v5713
    %v8542 = vunpack.c.h.b16 %v5713
    %v8543 = vunpack.c.l.b16 %v5714
    %v8544 = vunpack.c.h.b16 %v5714
    %v8545 = vunpack.c.l.b16 %v5715
    %v8546 = vunpack.c.h.b16 %v5715
    %v8547 = vunpack.c.l.b16 %v5716
    %v8548 = vunpack.c.h.b16 %v5716
    %v8549 = vunpack.c.l.b16 %v5717
    %v8550 = vunpack.c.h.b16 %v5717
    %v8551 = vunpack.c.l.b16 %v5718
    %v8552 = vunpack.c.h.b16 %v5718
    %v8553 = vunpack.c.l.b16 %v5719
    %v8554 = vunpack.c.h.b16 %v5719
    %v8555 = vunpack.c.l.b16 %v5720
    %v8556 = vunpack.c.h.b16 %v5720
    %v8557 = vunpack.c.l.b16 %v5721
    %v8558 = vunpack.c.h.b16 %v5721
    %v8559 = vunpack.c.l.b16 %v5722
    %v8560 = vunpack.c.h.b16 %v5722
    %v8561 = vunpack.c.l.b16 %v5723
    %v8562 = vunpack.c.h.b16 %v5723
    %v8563 = vunpack.c.l.b16 %v5724
    %v8564 = vunpack.c.h.b16 %v5724
    %v8565 = vunpack.c.l.b16 %v5725
    %v8566 = vunpack.c.h.b16 %v5725
    %v8567 = vunpack.c.l.b16 %v5726
    %v8568 = vunpack.c.h.b16 %v5726
    %v8569 = vunpack.c.l.b16 %v5727
    %v8570 = vunpack.c.h.b16 %v5727
    %v8571 = vunpack.c.l.b16 %v5728
    %v8572 = vunpack.c.h.b16 %v5728
    %v8573 = vunpack.c.l.b16 %v5729
    %v8574 = vunpack.c.h.b16 %v5729
    %v8575 = vunpack.c.l.b16 %v5730
    %v8576 = vunpack.c.h.b16 %v5730
    %v8577 = vunpack.c.l.b16 %v5731
    %v8578 = vunpack.c.h.b16 %v5731
    %v8579 = vunpack.c.l.b16 %v5732
    %v8580 = vunpack.c.h.b16 %v5732
    %v8581 = vunpack.c.l.b16 %v5733
    %v8582 = vunpack.c.h.b16 %v5733
    %v8583 = vunpack.c.l.b16 %v5734
    %v8584 = vunpack.c.h.b16 %v5734
    %v8585 = vunpack.c.l.b16 %v5735
    %v8586 = vunpack.c.h.b16 %v5735
    %v8587 = vunpack.c.l.b16 %v5736
    %v8588 = vunpack.c.h.b16 %v5736
    %v8589 = vunpack.c.l.b16 %v5737
    %v8590 = vunpack.c.h.b16 %v5737
    %v8591 = vunpack.c.l.b16 %v5738
    %v8592 = vunpack.c.h.b16 %v5738
    %v8593 = vunpack.c.l.b16 %v5739
    %v8594 = vunpack.c.h.b16 %v5739
    %v8595 = vunpack.c.l.b16 %v5740
    %v8596 = vunpack.c.h.b16 %v5740
    %v8597 = vunpack.c.l.b16 %v5741
    %v8598 = vunpack.c.h.b16 %v5741
    %v8599 = vunpack.c.l.b16 %v5742
    %v8600 = vunpack.c.h.b16 %v5742
    %v8601 = vunpack.c.l.b16 %v5743
    %v8602 = vunpack.c.h.b16 %v5743
    %v8603 = vunpack.c.l.b16 %v5744
    %v8604 = vunpack.c.h.b16 %v5744
    %v8605 = vunpack.c.l.b16 %v5745
    %v8606 = vunpack.c.h.b16 %v5745
    %v8607 = vunpack.c.l.b16 %v5746
    %v8608 = vunpack.c.h.b16 %v5746
    %v8609 = vunpack.c.l.b16 %v5747
    %v8610 = vunpack.c.h.b16 %v5747
    %v8611 = vunpack.c.l.b16 %v5748
    %v8612 = vunpack.c.h.b16 %v5748
    %v8613 = vunpack.c.l.b16 %v5749
    %v8614 = vunpack.c.h.b16 %v5749
    %v8615 = vunpack.c.l.b16 %v5750
    %v8616 = vunpack.c.h.b16 %v5750
    %v8617 = vunpack.c.l.b16 %v5751
    %v8618 = vunpack.c.h.b16 %v5751
    %v8619 = vunpack.c.l.b16 %v5752
    %v8620 = vunpack.c.h.b16 %v5752
    %v8621 = vunpack.c.l.b16 %v5753
    %v8622 = vunpack.c.h.b16 %v5753
    %v8623 = vunpack.c.l.b16 %v5754
    %v8624 = vunpack.c.h.b16 %v5754
    %v8625 = vunpack.c.l.b16 %v5755
    %v8626 = vunpack.c.h.b16 %v5755
    %v8627 = vunpack.c.l.b16 %v5756
    %v8628 = vunpack.c.h.b16 %v5756
    %v8629 = vunpack.c.l.b16 %v5757
    %v8630 = vunpack.c.h.b16 %v5757
    %v8631 = vunpack.c.l.b16 %v5758
    %v8632 = vunpack.c.h.b16 %v5758
    %v8633 = vunpack.c.l.b16 %v5759
    %v8634 = vunpack.c.h.b16 %v5759
    %v8635 = vunpack.c.l.b16 %v5760
    %v8636 = vunpack.c.h.b16 %v5760
    %v8637 = vunpack.c.l.b16 %v5761
    %v8638 = vunpack.c.h.b16 %v5761
    %v8639 = vpack.c.b16 %v8391, %v8383
    %v8640 = vpack.c.b16 %v8392, %v8384
    %v8641 = vpack.c.b16 %v8393, %v8385
    %v8642 = vpack.c.b16 %v8394, %v8386
    %v8643 = vpack.c.b16 %v8395, %v8387
    %v8644 = vpack.c.b16 %v8396, %v8388
    %v8645 = vpack.c.b16 %v8397, %v8389
    %v8646 = vpack.c.b16 %v8398, %v8390
    %v8647 = vpack.c.b16 %v8407, %v8399
    %v8648 = vpack.c.b16 %v8408, %v8400
    %v8649 = vpack.c.b16 %v8409, %v8401
    %v8650 = vpack.c.b16 %v8410, %v8402
    %v8651 = vpack.c.b16 %v8411, %v8403
    %v8652 = vpack.c.b16 %v8412, %v8404
    %v8653 = vpack.c.b16 %v8413, %v8405
    %v8654 = vpack.c.b16 %v8414, %v8406
    %v8655 = vpack.c.b16 %v8423, %v8415
    %v8656 = vpack.c.b16 %v8424, %v8416
    %v8657 = vpack.c.b16 %v8425, %v8417
    %v8658 = vpack.c.b16 %v8426, %v8418
    %v8659 = vpack.c.b16 %v8427, %v8419
    %v8660 = vpack.c.b16 %v8428, %v8420
    %v8661 = vpack.c.b16 %v8429, %v8421
    %v8662 = vpack.c.b16 %v8430, %v8422
    %v8663 = vpack.c.b16 %v8439, %v8431
    %v8664 = vpack.c.b16 %v8440, %v8432
    %v8665 = vpack.c.b16 %v8441, %v8433
    %v8666 = vpack.c.b16 %v8442, %v8434
    %v8667 = vpack.c.b16 %v8443, %v8435
    %v8668 = vpack.c.b16 %v8444, %v8436
    %v8669 = vpack.c.b16 %v8445, %v8437
    %v8670 = vpack.c.b16 %v8446, %v8438
    %v8671 = vpack.c.b16 %v8455, %v8447
    %v8672 = vpack.c.b16 %v8456, %v8448
    %v8673 = vpack.c.b16 %v8457, %v8449
    %v8674 = vpack.c.b16 %v8458, %v8450
    %v8675 = vpack.c.b16 %v8459, %v8451
    %v8676 = vpack.c.b16 %v8460, %v8452
    %v8677 = vpack.c.b16 %v8461, %v8453
    %v8678 = vpack.c.b16 %v8462, %v8454
    %v8679 = vpack.c.b16 %v8471, %v8463
    %v8680 = vpack.c.b16 %v8472, %v8464
    %v8681 = vpack.c.b16 %v8473, %v8465
    %v8682 = vpack.c.b16 %v8474, %v8466
    %v8683 = vpack.c.b16 %v8475, %v8467
    %v8684 = vpack.c.b16 %v8476, %v8468
    %v8685 = vpack.c.b16 %v8477, %v8469
    %v8686 = vpack.c.b16 %v8478, %v8470
    %v8687 = vpack.c.b16 %v8487, %v8479
    %v8688 = vpack.c.b16 %v8488, %v8480
    %v8689 = vpack.c.b16 %v8489, %v8481
    %v8690 = vpack.c.b16 %v8490, %v8482
    %v8691 = vpack.c.b16 %v8491, %v8483
    %v8692 = vpack.c.b16 %v8492, %v8484
    %v8693 = vpack.c.b16 %v8493, %v8485
    %v8694 = vpack.c.b16 %v8494, %v8486
    %v8695 = vpack.c.b16 %v8503, %v8495
    %v8696 = vpack.c.b16 %v8504, %v8496
    %v8697 = vpack.c.b16 %v8505, %v8497
    %v8698 = vpack.c.b16 %v8506, %v8498
    %v8699 = vpack.c.b16 %v8507, %v8499
    %v8700 = vpack.c.b16 %v8508, %v8500
    %v8701 = vpack.c.b16 %v8509, %v8501
    %v8702 = vpack.c.b16 %v8510, %v8502
    %v8703 = vpack.c.b16 %v8519, %v8511
    %v8704 = vpack.c.b16 %v8520, %v8512
    %v8705 = vpack.c.b16 %v8521, %v8513
    %v8706 = vpack.c.b16 %v8522, %v8514
    %v8707 = vpack.c.b16 %v8523, %v8515
    %v8708 = vpack.c.b16 %v8524, %v8516
    %v8709 = vpack.c.b16 %v8525, %v8517
    %v8710 = vpack.c.b16 %v8526, %v8518
    %v8711 = vpack.c.b16 %v8535, %v8527
    %v8712 = vpack.c.b16 %v8536, %v8528
    %v8713 = vpack.c.b16 %v8537, %v8529
    %v8714 = vpack.c.b16 %v8538, %v8530
    %v8715 = vpack.c.b16 %v8539, %v8531
    %v8716 = vpack.c.b16 %v8540, %v8532
    %v8717 = vpack.c.b16 %v8541, %v8533
    %v8718 = vpack.c.b16 %v8542, %v8534
    %v8719 = vpack.c.b16 %v8551, %v8543
    %v8720 = vpack.c.b16 %v8552, %v8544
    %v8721 = vpack.c.b16 %v8553, %v8545
    %v8722 = vpack.c.b16 %v8554, %v8546
    %v8723 = vpack.c.b16 %v8555, %v8547
    %v8724 = vpack.c.b16 %v8556, %v8548
    %v8725 = vpack.c.b16 %v8557, %v8549
    %v8726 = vpack.c.b16 %v8558, %v8550
    %v8727 = vpack.c.b16 %v8567, %v8559
    %v8728 = vpack.c.b16 %v8568, %v8560
    %v8729 = vpack.c.b16 %v8569, %v8561
    %v8730 = vpack.c.b16 %v8570, %v8562
    %v8731 = vpack.c.b16 %v8571, %v8563
    %v8732 = vpack.c.b16 %v8572, %v8564
    %v8733 = vpack.c.b16 %v8573, %v8565
    %v8734 = vpack.c.b16 %v8574, %v8566
    %v8735 = vpack.c.b16 %v8583, %v8575
    %v8736 = vpack.c.b16 %v8584, %v8576
    %v8737 = vpack.c.b16 %v8585, %v8577
    %v8738 = vpack.c.b16 %v8586, %v8578
    %v8739 = vpack.c.b16 %v8587, %v8579
    %v8740 = vpack.c.b16 %v8588, %v8580
    %v8741 = vpack.c.b16 %v8589, %v8581
    %v8742 = vpack.c.b16 %v8590, %v8582
    %v8743 = vpack.c.b16 %v8599, %v8591
    %v8744 = vpack.c.b16 %v8600, %v8592
    %v8745 = vpack.c.b16 %v8601, %v8593
    %v8746 = vpack.c.b16 %v8602, %v8594
    %v8747 = vpack.c.b16 %v8603, %v8595
    %v8748 = vpack.c.b16 %v8604, %v8596
    %v8749 = vpack.c.b16 %v8605, %v8597
    %v8750 = vpack.c.b16 %v8606, %v8598
    %v8751 = vpack.c.b16 %v8615, %v8607
    %v8752 = vpack.c.b16 %v8616, %v8608
    %v8753 = vpack.c.b16 %v8617, %v8609
    %v8754 = vpack.c.b16 %v8618, %v8610
    %v8755 = vpack.c.b16 %v8619, %v8611
    %v8756 = vpack.c.b16 %v8620, %v8612
    %v8757 = vpack.c.b16 %v8621, %v8613
    %v8758 = vpack.c.b16 %v8622, %v8614
    %v8759 = vpack.c.b16 %v8631, %v8623
    %v8760 = vpack.c.b16 %v8632, %v8624
    %v8761 = vpack.c.b16 %v8633, %v8625
    %v8762 = vpack.c.b16 %v8634, %v8626
    %v8763 = vpack.c.b16 %v8635, %v8627
    %v8764 = vpack.c.b16 %v8636, %v8628
    %v8765 = vpack.c.b16 %v8637, %v8629
    %v8766 = vpack.c.b16 %v8638, %v8630
    %8895 = vmatprep.subr.bf16.mxu0 %v8640
    %8896 = vmatpush1.bf16.msra.mxu0 %v8639
    %8897 = vmatprep.subr.bf16.mxu0 %v8648
    %8898 = vmatpush1.bf16.msra.mxu0 %v8647
    %8899 = vmatprep.subr.bf16.mxu0 %v8656
    %8900 = vmatpush1.bf16.msra.mxu0 %v8655
    %8901 = vmatprep.subr.bf16.mxu0 %v8664
    %8902 = vmatpush1.bf16.msra.mxu0 %v8663
    %8903 = vmatprep.subr.bf16.mxu0 %v8672
    %8904 = vmatpush1.bf16.msra.mxu0 %v8671
    %8905 = vmatprep.subr.bf16.mxu0 %v8680
    %8906 = vmatpush1.bf16.msra.mxu0 %v8679
    %8907 = vmatprep.subr.bf16.mxu0 %v8688
    %8908 = vmatpush1.bf16.msra.mxu0 %v8687
    %8909 = vmatprep.subr.bf16.mxu0 %v8696
    %8910 = vmatpush1.bf16.msra.mxu0 %v8695
    %8911 = vmatprep.subr.bf16.mxu0 %v8704
    %8912 = vmatpush1.bf16.msra.mxu0 %v8703
    %8913 = vmatprep.subr.bf16.mxu0 %v8712
    %8914 = vmatpush1.bf16.msra.mxu0 %v8711
    %8915 = vmatprep.subr.bf16.mxu0 %v8720
    %8916 = vmatpush1.bf16.msra.mxu0 %v8719
    %8917 = vmatprep.subr.bf16.mxu0 %v8728
    %8918 = vmatpush1.bf16.msra.mxu0 %v8727
    %8919 = vmatprep.subr.bf16.mxu0 %v8736
    %8920 = vmatpush1.bf16.msra.mxu0 %v8735
    %8921 = vmatprep.subr.bf16.mxu0 %v8744
    %8922 = vmatpush1.bf16.msra.mxu0 %v8743
    %8923 = vmatprep.subr.bf16.mxu0 %v8752
    %8924 = vmatpush1.bf16.msra.mxu0 %v8751
    %8925 = vmatprep.subr.bf16.mxu0 %v8760
    %8926 = vmatpush1.bf16.msra.mxu0 %v8759
    %8927 = vmatprep.mubr.bf16.mxu0 %v8205
    %8928 = vmatmul.mubr.bf16.gmra.mrb[0].mxu0 %v8204
    %v8929 = vpop.f32.mrb[0].mxu0
    %v8930 = vadd.f32 %v8218, %v8929
    %v8931 = vpop.f32.mrb[0].mxu0
    %v8932 = vadd.f32 %v8222, %v8931
    %v8933 = vpop.f32.mrb[0].mxu0
    %v8934 = vadd.f32 %v8218, %v8933
    %v8935 = vpop.f32.mrb[0].mxu0
    %v8936 = vadd.f32 %v8222, %v8935
    %8937 = vmatprep.mubr.bf16.mxu0 %v8207
    %8938 = vmatmul.mubr.bf16.gmra.mrb[0].mxu0 %v8206
    %v8939 = vpop.f32.mrb[0].mxu0
    %v8940 = vadd.f32 %v8218, %v8939
    %v8941 = vpop.f32.mrb[0].mxu0
    %v8942 = vadd.f32 %v8222, %v8941
    %v8943 = vpop.f32.mrb[0].mxu0
    %v8944 = vadd.f32 %v8218, %v8943
    %v8945 = vpop.f32.mrb[0].mxu0
    %v8946 = vadd.f32 %v8222, %v8945
    %8947 = vmatprep.mubr.bf16.mxu0 %v8209
    %8948 = vmatmul.mubr.bf16.gmra.mrb[0].mxu0 %v8208
    %v8949 = vpop.f32.mrb[0].mxu0
    %v8950 = vadd.f32 %v8218, %v8949
    %v8951 = vpop.f32.mrb[0].mxu0
    %v8952 = vadd.f32 %v8222, %v8951
    %v8953 = vpop.f32.mrb[0].mxu0
    %v8954 = vadd.f32 %v8218, %v8953
    %v8955 = vpop.f32.mrb[0].mxu0
    %v8956 = vadd.f32 %v8222, %v8955
    %8957 = vmatprep.mubr.bf16.mxu0 %v8211
    %8958 = vmatmul.mubr.bf16.gmra.mrb[0].mxu0 %v8210
    %v8959 = vpop.f32.mrb[0].mxu0
    %v8960 = vadd.f32 %v8218, %v8959
    %v8961 = vpop.f32.mrb[0].mxu0
    %v8962 = vadd.f32 %v8222, %v8961
    %v8963 = vpop.f32.mrb[0].mxu0
    %v8964 = vadd.f32 %v8218, %v8963
    %v8965 = vpop.f32.mrb[0].mxu0
    %v8966 = vadd.f32 %v8222, %v8965
    %8967 = vmatprep.mubr.bf16.mxu0 %v8213
    %8968 = vmatmul.mubr.bf16.gmra.mrb[0].mxu0 %v8212
    %v8969 = vpop.f32.mrb[0].mxu0
    %v8970 = vadd.f32 %v8218, %v8969
    %v8971 = vpop.f32.mrb[0].mxu0
    %v8972 = vadd.f32 %v8222, %v8971
    %v8973 = vpop.f32.mrb[0].mxu0
    %v8974 = vadd.f32 %v8218, %v8973
    %v8975 = vpop.f32.mrb[0].mxu0
    %v8976 = vadd.f32 %v8222, %v8975
    %8977 = vdwg.mxu0
    %8978 = vmatprep.subr.bf16.mxu0 %v8642
    %8979 = vmatpush1.bf16.msra.mxu0 %v8641
    %8980 = vmatprep.subr.bf16.mxu0 %v8650
    %8981 = vmatpush1.bf16.msra.mxu0 %v8649
    %8982 = vmatprep.subr.bf16.mxu0 %v8658
    %8983 = vmatpush1.bf16.msra.mxu0 %v8657
    %8984 = vmatprep.subr.bf16.mxu0 %v8666
    %8985 = vmatpush1.bf16.msra.mxu0 %v8665
    %8986 = vmatprep.subr.bf16.mxu0 %v8674
    %8987 = vmatpush1.bf16.msra.mxu0 %v8673
    %8988 = vmatprep.subr.bf16.mxu0 %v8682
    %8989 = vmatpush1.bf16.msra.mxu0 %v8681
    %8990 = vmatprep.subr.bf16.mxu0 %v8690
    %8991 = vmatpush1.bf16.msra.mxu0 %v8689
    %8992 = vmatprep.subr.bf16.mxu0 %v8698
    %8993 = vmatpush1.bf16.msra.mxu0 %v8697
    %8994 = vmatprep.subr.bf16.mxu0 %v8706
    %8995 = vmatpush1.bf16.msra.mxu0 %v8705
    %8996 = vmatprep.subr.bf16.mxu0 %v8714
    %8997 = vmatpush1.bf16.msra.mxu0 %v8713
    %8998 = vmatprep.subr.bf16.mxu0 %v8722
    %8999 = vmatpush1.bf16.msra.mxu0 %v8721
    %9000 = vmatprep.subr.bf16.mxu0 %v8730
    %9001 = vmatpush1.bf16.msra.mxu0 %v8729
    %9002 = vmatprep.subr.bf16.mxu0 %v8738
    %9003 = vmatpush1.bf16.msra.mxu0 %v8737
    %9004 = vmatprep.subr.bf16.mxu0 %v8746
    %9005 = vmatpush1.bf16.msra.mxu0 %v8745
    %9006 = vmatprep.subr.bf16.mxu0 %v8754
    %9007 = vmatpush1.bf16.msra.mxu0 %v8753
    %9008 = vmatprep.subr.bf16.mxu0 %v8762
    %9009 = vmatpush1.bf16.msra.mxu0 %v8761
    %9010 = vmatprep.mubr.bf16.mxu0 %v8205
    %9011 = vmatmul.mubr.bf16.gmra.mrb[0].mxu0 %v8204
    %v9012 = vpop.f32.mrb[0].mxu0
    %v9013 = vadd.f32 %v8226, %v9012
    %v9014 = vpop.f32.mrb[0].mxu0
    %v9015 = vadd.f32 %v8230, %v9014
    %v9016 = vpop.f32.mrb[0].mxu0
    %v9017 = vadd.f32 %v8226, %v9016
    %v9018 = vpop.f32.mrb[0].mxu0
    %v9019 = vadd.f32 %v8230, %v9018
    %9020 = vmatprep.mubr.bf16.mxu0 %v8207
    %9021 = vmatmul.mubr.bf16.gmra.mrb[0].mxu0 %v8206
    %v9022 = vpop.f32.mrb[0].mxu0
    %v9023 = vadd.f32 %v8226, %v9022
    %v9024 = vpop.f32.mrb[0].mxu0
    %v9025 = vadd.f32 %v8230, %v9024
    %v9026 = vpop.f32.mrb[0].mxu0
    %v9027 = vadd.f32 %v8226, %v9026
    %v9028 = vpop.f32.mrb[0].mxu0
    %v9029 = vadd.f32 %v8230, %v9028
    %9030 = vmatprep.mubr.bf16.mxu0 %v8209
    %9031 = vmatmul.mubr.bf16.gmra.mrb[0].mxu0 %v8208
    %v9032 = vpop.f32.mrb[0].mxu0
    %v9033 = vadd.f32 %v8226, %v9032
    %v9034 = vpop.f32.mrb[0].mxu0
    %v9035 = vadd.f32 %v8230, %v9034
    %v9036 = vpop.f32.mrb[0].mxu0
    %v9037 = vadd.f32 %v8226, %v9036
    %v9038 = vpop.f32.mrb[0].mxu0
    %v9039 = vadd.f32 %v8230, %v9038
    %9040 = vmatprep.mubr.bf16.mxu0 %v8211
    %9041 = vmatmul.mubr.bf16.gmra.mrb[0].mxu0 %v8210
    %v9042 = vpop.f32.mrb[0].mxu0
    %v9043 = vadd.f32 %v8226, %v9042
    %v9044 = vpop.f32.mrb[0].mxu0
    %v9045 = vadd.f32 %v8230, %v9044
    %v9046 = vpop.f32.mrb[0].mxu0
    %v9047 = vadd.f32 %v8226, %v9046
    %v9048 = vpop.f32.mrb[0].mxu0
    %v9049 = vadd.f32 %v8230, %v9048
    %9050 = vmatprep.mubr.bf16.mxu0 %v8213
    %9051 = vmatmul.mubr.bf16.gmra.mrb[0].mxu0 %v8212
    %v9052 = vpop.f32.mrb[0].mxu0
    %v9053 = vadd.f32 %v8226, %v9052
    %v9054 = vpop.f32.mrb[0].mxu0
    %v9055 = vadd.f32 %v8230, %v9054
    %v9056 = vpop.f32.mrb[0].mxu0
    %v9057 = vadd.f32 %v8226, %v9056
    %v9058 = vpop.f32.mrb[0].mxu0
    %v9059 = vadd.f32 %v8230, %v9058
    %9060 = vdwg.mxu0
    %9061 = vmatprep.subr.bf16.mxu0 %v8644
    %9062 = vmatpush1.bf16.msra.mxu0 %v8643
    %9063 = vmatprep.subr.bf16.mxu0 %v8652
    %9064 = vmatpush1.bf16.msra.mxu0 %v8651
    %9065 = vmatprep.subr.bf16.mxu0 %v8660
    %9066 = vmatpush1.bf16.msra.mxu0 %v8659
    %9067 = vmatprep.subr.bf16.mxu0 %v8668
    %9068 = vmatpush1.bf16.msra.mxu0 %v8667
    %9069 = vmatprep.subr.bf16.mxu0 %v8676
    %9070 = vmatpush1.bf16.msra.mxu0 %v8675
    %9071 = vmatprep.subr.bf16.mxu0 %v8684
    %9072 = vmatpush1.bf16.msra.mxu0 %v8683
    %9073 = vmatprep.subr.bf16.mxu0 %v8692
    %9074 = vmatpush1.bf16.msra.mxu0 %v8691
    %9075 = vmatprep.subr.bf16.mxu0 %v8700
    %9076 = vmatpush1.bf16.msra.mxu0 %v8699
    %9077 = vmatprep.subr.bf16.mxu0 %v8708
    %9078 = vmatpush1.bf16.msra.mxu0 %v8707
    %9079 = vmatprep.subr.bf16.mxu0 %v8716
    %9080 = vmatpush1.bf16.msra.mxu0 %v8715
    %9081 = vmatprep.subr.bf16.mxu0 %v8724
    %9082 = vmatpush1.bf16.msra.mxu0 %v8723
    %9083 = vmatprep.subr.bf16.mxu0 %v8732
    %9084 = vmatpush1.bf16.msra.mxu0 %v8731
    %9085 = vmatprep.subr.bf16.mxu0 %v8740
    %9086 = vmatpush1.bf16.msra.mxu0 %v8739
    %9087 = vmatprep.subr.bf16.mxu0 %v8748
    %9088 = vmatpush1.bf16.msra.mxu0 %v8747
    %9089 = vmatprep.subr.bf16.mxu0 %v8756
    %9090 = vmatpush1.bf16.msra.mxu0 %v8755
    %9091 = vmatprep.subr.bf16.mxu0 %v8764
    %9092 = vmatpush1.bf16.msra.mxu0 %v8763
    %9093 = vmatprep.mubr.bf16.mxu0 %v8205
    %9094 = vmatmul.mubr.bf16.gmra.mrb[0].mxu0 %v8204
    %v9095 = vpop.f32.mrb[0].mxu0
    %v9096 = vadd.f32 %v8234, %v9095
    %v9097 = vpop.f32.mrb[0].mxu0
    %v9098 = vadd.f32 %v8238, %v9097
    %v9099 = vpop.f32.mrb[0].mxu0
    %v9100 = vadd.f32 %v8234, %v9099
    %v9101 = vpop.f32.mrb[0].mxu0
    %v9102 = vadd.f32 %v8238, %v9101
    %9103 = vmatprep.mubr.bf16.mxu0 %v8207
    %9104 = vmatmul.mubr.bf16.gmra.mrb[0].mxu0 %v8206
    %v9105 = vpop.f32.mrb[0].mxu0
    %v9106 = vadd.f32 %v8234, %v9105
    %v9107 = vpop.f32.mrb[0].mxu0
    %v9108 = vadd.f32 %v8238, %v9107
    %v9109 = vpop.f32.mrb[0].mxu0
    %v9110 = vadd.f32 %v8234, %v9109
    %v9111 = vpop.f32.mrb[0].mxu0
    %v9112 = vadd.f32 %v8238, %v9111
    %9113 = vmatprep.mubr.bf16.mxu0 %v8209
    %9114 = vmatmul.mubr.bf16.gmra.mrb[0].mxu0 %v8208
    %v9115 = vpop.f32.mrb[0].mxu0
    %v9116 = vadd.f32 %v8234, %v9115
    %v9117 = vpop.f32.mrb[0].mxu0
    %v9118 = vadd.f32 %v8238, %v9117
    %v9119 = vpop.f32.mrb[0].mxu0
    %v9120 = vadd.f32 %v8234, %v9119
    %v9121 = vpop.f32.mrb[0].mxu0
    %v9122 = vadd.f32 %v8238, %v9121
    %9123 = vmatprep.mubr.bf16.mxu0 %v8211
    %9124 = vmatmul.mubr.bf16.gmra.mrb[0].mxu0 %v8210
    %v9125 = vpop.f32.mrb[0].mxu0
    %v9126 = vadd.f32 %v8234, %v9125
    %v9127 = vpop.f32.mrb[0].mxu0
    %v9128 = vadd.f32 %v8238, %v9127
    %v9129 = vpop.f32.mrb[0].mxu0
    %v9130 = vadd.f32 %v8234, %v9129
    %v9131 = vpop.f32.mrb[0].mxu0
    %v9132 = vadd.f32 %v8238, %v9131
    %9133 = vmatprep.mubr.bf16.mxu0 %v8213
    %9134 = vmatmul.mubr.bf16.gmra.mrb[0].mxu0 %v8212
    %v9135 = vpop.f32.mrb[0].mxu0
    %v9136 = vadd.f32 %v8234, %v9135
    %v9137 = vpop.f32.mrb[0].mxu0
    %v9138 = vadd.f32 %v8238, %v9137
    %v9139 = vpop.f32.mrb[0].mxu0
    %v9140 = vadd.f32 %v8234, %v9139
    %v9141 = vpop.f32.mrb[0].mxu0
    %v9142 = vadd.f32 %v8238, %v9141
    %9143 = vdwg.mxu0
    %9144 = vmatprep.subr.bf16.mxu0 %v8646
    %9145 = vmatpush1.bf16.msra.mxu0 %v8645
    %9146 = vmatprep.subr.bf16.mxu0 %v8654
    %9147 = vmatpush1.bf16.msra.mxu0 %v8653
    %9148 = vmatprep.subr.bf16.mxu0 %v8662
    %9149 = vmatpush1.bf16.msra.mxu0 %v8661
    %9150 = vmatprep.subr.bf16.mxu0 %v8670
    %9151 = vmatpush1.bf16.msra.mxu0 %v8669
    %9152 = vmatprep.subr.bf16.mxu0 %v8678
    %9153 = vmatpush1.bf16.msra.mxu0 %v8677
    %9154 = vmatprep.subr.bf16.mxu0 %v8686
    %9155 = vmatpush1.bf16.msra.mxu0 %v8685
    %9156 = vmatprep.subr.bf16.mxu0 %v8694
    %9157 = vmatpush1.bf16.msra.mxu0 %v8693
    %9158 = vmatprep.subr.bf16.mxu0 %v8702
    %9159 = vmatpush1.bf16.msra.mxu0 %v8701
    %9160 = vmatprep.subr.bf16.mxu0 %v8710
    %9161 = vmatpush1.bf16.msra.mxu0 %v8709
    %9162 = vmatprep.subr.bf16.mxu0 %v8718
    %9163 = vmatpush1.bf16.msra.mxu0 %v8717
    %9164 = vmatprep.subr.bf16.mxu0 %v8726
    %9165 = vmatpush1.bf16.msra.mxu0 %v8725
    %9166 = vmatprep.subr.bf16.mxu0 %v8734
    %9167 = vmatpush1.bf16.msra.mxu0 %v8733
    %9168 = vmatprep.subr.bf16.mxu0 %v8742
    %9169 = vmatpush1.bf16.msra.mxu0 %v8741
    %9170 = vmatprep.subr.bf16.mxu0 %v8750
    %9171 = vmatpush1.bf16.msra.mxu0 %v8749
    %9172 = vmatprep.subr.bf16.mxu0 %v8758
    %9173 = vmatpush1.bf16.msra.mxu0 %v8757
    %9174 = vmatprep.subr.bf16.mxu0 %v8766
    %9175 = vmatpush1.bf16.msra.mxu0 %v8765
    %9176 = vmatprep.mubr.bf16.mxu0 %v8205
    %9177 = vmatmul.mubr.bf16.gmra.mrb[0].mxu0 %v8204
    %v9178 = vpop.f32.mrb[0].mxu0
    %v9179 = vadd.f32 %v8242, %v9178
    %v9180 = vpop.f32.mrb[0].mxu0
    %v9181 = vadd.f32 %v8246, %v9180
    %v9182 = vpop.f32.mrb[0].mxu0
    %v9183 = vadd.f32 %v8242, %v9182
    %v9184 = vpop.f32.mrb[0].mxu0
    %v9185 = vadd.f32 %v8246, %v9184
    %9186 = vmatprep.mubr.bf16.mxu0 %v8207
    %9187 = vmatmul.mubr.bf16.gmra.mrb[0].mxu0 %v8206
    %v9188 = vpop.f32.mrb[0].mxu0
    %v9189 = vadd.f32 %v8242, %v9188
    %v9190 = vpop.f32.mrb[0].mxu0
    %v9191 = vadd.f32 %v8246, %v9190
    %v9192 = vpop.f32.mrb[0].mxu0
    %v9193 = vadd.f32 %v8242, %v9192
    %v9194 = vpop.f32.mrb[0].mxu0
    %v9195 = vadd.f32 %v8246, %v9194
    %9196 = vmatprep.mubr.bf16.mxu0 %v8209
    %9197 = vmatmul.mubr.bf16.gmra.mrb[0].mxu0 %v8208
    %v9198 = vpop.f32.mrb[0].mxu0
    %v9199 = vadd.f32 %v8242, %v9198
    %v9200 = vpop.f32.mrb[0].mxu0
    %v9201 = vadd.f32 %v8246, %v9200
    %v9202 = vpop.f32.mrb[0].mxu0
    %v9203 = vadd.f32 %v8242, %v9202
    %v9204 = vpop.f32.mrb[0].mxu0
    %v9205 = vadd.f32 %v8246, %v9204
    %9206 = vmatprep.mubr.bf16.mxu0 %v8211
    %9207 = vmatmul.mubr.bf16.gmra.mrb[0].mxu0 %v8210
    %v9208 = vpop.f32.mrb[0].mxu0
    %v9209 = vadd.f32 %v8242, %v9208
    %v9210 = vpop.f32.mrb[0].mxu0
    %v9211 = vadd.f32 %v8246, %v9210
    %v9212 = vpop.f32.mrb[0].mxu0
    %v9213 = vadd.f32 %v8242, %v9212
    %v9214 = vpop.f32.mrb[0].mxu0
    %v9215 = vadd.f32 %v8246, %v9214
    %9216 = vmatprep.mubr.bf16.mxu0 %v8213
    %9217 = vmatmul.mubr.bf16.gmra.mrb[0].mxu0 %v8212
    %v9218 = vpop.f32.mrb[0].mxu0
    %v9219 = vadd.f32 %v8242, %v9218
    %v9220 = vpop.f32.mrb[0].mxu0
    %v9221 = vadd.f32 %v8246, %v9220
    %v9222 = vpop.f32.mrb[0].mxu0
    %v9223 = vadd.f32 %v8242, %v9222
    %v9224 = vpop.f32.mrb[0].mxu0
    %v9225 = vadd.f32 %v8246, %v9224
    %9226 = vdwg.mxu0
    %v9227 = vmax.f32 %v8930, 0.0
    %v9228 = vmax.f32 %v8932, 0.0
    %v9229 = vmax.f32 %v9013, 0.0
    %v9230 = vmax.f32 %v9015, 0.0
    %v9231 = vmax.f32 %v9096, 0.0
    %v9232 = vmax.f32 %v9098, 0.0
    %v9233 = vmax.f32 %v9179, 0.0
    %v9234 = vmax.f32 %v9181, 0.0
    %v9235 = vmax.f32 %v8934, 0.0
    %v9236 = vmax.f32 %v8936, 0.0
    %v9237 = vmax.f32 %v9017, 0.0
    %v9238 = vmax.f32 %v9019, 0.0
    %v9239 = vmax.f32 %v9100, 0.0
    %v9240 = vmax.f32 %v9102, 0.0
    %v9241 = vmax.f32 %v9183, 0.0
    %v9242 = vmax.f32 %v9185, 0.0
    %v9243 = vmax.f32 %v8940, 0.0
    %v9244 = vmax.f32 %v8942, 0.0
    %v9245 = vmax.f32 %v9023, 0.0
    %v9246 = vmax.f32 %v9025, 0.0
    %v9247 = vmax.f32 %v9106, 0.0
    %v9248 = vmax.f32 %v9108, 0.0
    %v9249 = vmax.f32 %v9189, 0.0
    %v9250 = vmax.f32 %v9191, 0.0
    %v9251 = vmax.f32 %v8944, 0.0
    %v9252 = vmax.f32 %v8946, 0.0
    %v9253 = vmax.f32 %v9027, 0.0
    %v9254 = vmax.f32 %v9029, 0.0
    %v9255 = vmax.f32 %v9110, 0.0
    %v9256 = vmax.f32 %v9112, 0.0
    %v9257 = vmax.f32 %v9193, 0.0
    %v9258 = vmax.f32 %v9195, 0.0
    %v9259 = vmax.f32 %v8950, 0.0
    %v9260 = vmax.f32 %v8952, 0.0
    %v9261 = vmax.f32 %v9033, 0.0
    %v9262 = vmax.f32 %v9035, 0.0
    %v9263 = vmax.f32 %v9116, 0.0
    %v9264 = vmax.f32 %v9118, 0.0
    %v9265 = vmax.f32 %v9199, 0.0
    %v9266 = vmax.f32 %v9201, 0.0
    %v9267 = vmax.f32 %v8954, 0.0
    %v9268 = vmax.f32 %v8956, 0.0
    %v9269 = vmax.f32 %v9037, 0.0
    %v9270 = vmax.f32 %v9039, 0.0
    %v9271 = vmax.f32 %v9120, 0.0
    %v9272 = vmax.f32 %v9122, 0.0
    %v9273 = vmax.f32 %v9203, 0.0
    %v9274 = vmax.f32 %v9205, 0.0
    %v9275 = vmax.f32 %v8960, 0.0
    %v9276 = vmax.f32 %v8962, 0.0
    %v9277 = vmax.f32 %v9043, 0.0
    %v9278 = vmax.f32 %v9045, 0.0
    %v9279 = vmax.f32 %v9126, 0.0
    %v9280 = vmax.f32 %v9128, 0.0
    %v9281 = vmax.f32 %v9209, 0.0
    %v9282 = vmax.f32 %v9211, 0.0
    %v9283 = vmax.f32 %v8964, 0.0
    %v9284 = vmax.f32 %v8966, 0.0
    %v9285 = vmax.f32 %v9047, 0.0
    %v9286 = vmax.f32 %v9049, 0.0
    %v9287 = vmax.f32 %v9130, 0.0
    %v9288 = vmax.f32 %v9132, 0.0
    %v9289 = vmax.f32 %v9213, 0.0
    %v9290 = vmax.f32 %v9215, 0.0
    %v9291 = vmax.f32 %v8970, 0.0
    %v9292 = vmax.f32 %v8972, 0.0
    %v9293 = vmax.f32 %v9053, 0.0
    %v9294 = vmax.f32 %v9055, 0.0
    %v9295 = vmax.f32 %v9136, 0.0
    %v9296 = vmax.f32 %v9138, 0.0
    %v9297 = vmax.f32 %v9219, 0.0
    %v9298 = vmax.f32 %v9221, 0.0
    %v9299 = vmax.f32 %v8974, 0.0
    %v9300 = vmax.f32 %v8976, 0.0
    %v9301 = vmax.f32 %v9057, 0.0
    %v9302 = vmax.f32 %v9059, 0.0
    %v9303 = vmax.f32 %v9140, 0.0
    %v9304 = vmax.f32 %v9142, 0.0
    %v9305 = vmax.f32 %v9223, 0.0
    %v9306 = vmax.f32 %v9225, 0.0
    %v9307 = vpack.c.bf16 %v9235, %v9227
    %v9308 = vpack.c.bf16 %v9236, %v9228
    %v9309 = vpack.c.bf16 %v9237, %v9229
    %v9310 = vpack.c.bf16 %v9238, %v9230
    %v9311 = vpack.c.bf16 %v9239, %v9231
    %v9312 = vpack.c.bf16 %v9240, %v9232
    %v9313 = vpack.c.bf16 %v9241, %v9233
    %v9314 = vpack.c.bf16 %v9242, %v9234
    %v9315 = vpack.c.bf16 %v9251, %v9243
    %v9316 = vpack.c.bf16 %v9252, %v9244
    %v9317 = vpack.c.bf16 %v9253, %v9245
    %v9318 = vpack.c.bf16 %v9254, %v9246
    %v9319 = vpack.c.bf16 %v9255, %v9247
    %v9320 = vpack.c.bf16 %v9256, %v9248
    %v9321 = vpack.c.bf16 %v9257, %v9249
    %v9322 = vpack.c.bf16 %v9258, %v9250
    %v9323 = vpack.c.bf16 %v9267, %v9259
    %v9324 = vpack.c.bf16 %v9268, %v9260
    %v9325 = vpack.c.bf16 %v9269, %v9261
    %v9326 = vpack.c.bf16 %v9270, %v9262
    %v9327 = vpack.c.bf16 %v9271, %v9263
    %v9328 = vpack.c.bf16 %v9272, %v9264
    %v9329 = vpack.c.bf16 %v9273, %v9265
    %v9330 = vpack.c.bf16 %v9274, %v9266
    %v9331 = vpack.c.bf16 %v9283, %v9275
    %v9332 = vpack.c.bf16 %v9284, %v9276
    %v9333 = vpack.c.bf16 %v9285, %v9277
    %v9334 = vpack.c.bf16 %v9286, %v9278
    %v9335 = vpack.c.bf16 %v9287, %v9279
    %v9336 = vpack.c.bf16 %v9288, %v9280
    %v9337 = vpack.c.bf16 %v9289, %v9281
    %v9338 = vpack.c.bf16 %v9290, %v9282
    %v9339 = vpack.c.bf16 %v9299, %v9291
    %v9340 = vpack.c.bf16 %v9300, %v9292
    %v9341 = vpack.c.bf16 %v9301, %v9293
    %v9342 = vpack.c.bf16 %v9302, %v9294
    %v9343 = vpack.c.bf16 %v9303, %v9295
    %v9344 = vpack.c.bf16 %v9304, %v9296
    %v9345 = vpack.c.bf16 %v9305, %v9297
    %v9346 = vpack.c.bf16 %v9306, %v9298
    %v9348 = vlaneseq
    %v9349 = vshrl.u32 %v9348, 7
    %v9350 = vsub.s32 0, %v9349
    %v9351 = vrot.slane %v5894, %v9350
    %v9352 = vlaneseq
    %v9353 = vshrl.u32 %v9352, 7
    %v9354 = vsub.s32 1, %v9353
    %v9355 = vrot.slane %v5894, %v9354
    %v9486 = vunpack.c.l.b16 %v5765
    %v9487 = vunpack.c.h.b16 %v5765
    %v9488 = vunpack.c.l.b16 %v5766
    %v9489 = vunpack.c.h.b16 %v5766
    %v9490 = vunpack.c.l.b16 %v5767
    %v9491 = vunpack.c.h.b16 %v5767
    %v9492 = vunpack.c.l.b16 %v5768
    %v9493 = vunpack.c.h.b16 %v5768
    %v9494 = vunpack.c.l.b16 %v5769
    %v9495 = vunpack.c.h.b16 %v5769
    %v9496 = vunpack.c.l.b16 %v5770
    %v9497 = vunpack.c.h.b16 %v5770
    %v9498 = vunpack.c.l.b16 %v5771
    %v9499 = vunpack.c.h.b16 %v5771
    %v9500 = vunpack.c.l.b16 %v5772
    %v9501 = vunpack.c.h.b16 %v5772
    %v9502 = vunpack.c.l.b16 %v5773
    %v9503 = vunpack.c.h.b16 %v5773
    %v9504 = vunpack.c.l.b16 %v5774
    %v9505 = vunpack.c.h.b16 %v5774
    %v9506 = vunpack.c.l.b16 %v5775
    %v9507 = vunpack.c.h.b16 %v5775
    %v9508 = vunpack.c.l.b16 %v5776
    %v9509 = vunpack.c.h.b16 %v5776
    %v9510 = vunpack.c.l.b16 %v5777
    %v9511 = vunpack.c.h.b16 %v5777
    %v9512 = vunpack.c.l.b16 %v5778
    %v9513 = vunpack.c.h.b16 %v5778
    %v9514 = vunpack.c.l.b16 %v5779
    %v9515 = vunpack.c.h.b16 %v5779
    %v9516 = vunpack.c.l.b16 %v5780
    %v9517 = vunpack.c.h.b16 %v5780
    %v9518 = vunpack.c.l.b16 %v5781
    %v9519 = vunpack.c.h.b16 %v5781
    %v9520 = vunpack.c.l.b16 %v5782
    %v9521 = vunpack.c.h.b16 %v5782
    %v9522 = vunpack.c.l.b16 %v5783
    %v9523 = vunpack.c.h.b16 %v5783
    %v9524 = vunpack.c.l.b16 %v5784
    %v9525 = vunpack.c.h.b16 %v5784
    %v9526 = vunpack.c.l.b16 %v5785
    %v9527 = vunpack.c.h.b16 %v5785
    %v9528 = vunpack.c.l.b16 %v5786
    %v9529 = vunpack.c.h.b16 %v5786
    %v9530 = vunpack.c.l.b16 %v5787
    %v9531 = vunpack.c.h.b16 %v5787
    %v9532 = vunpack.c.l.b16 %v5788
    %v9533 = vunpack.c.h.b16 %v5788
    %v9534 = vunpack.c.l.b16 %v5789
    %v9535 = vunpack.c.h.b16 %v5789
    %v9536 = vunpack.c.l.b16 %v5790
    %v9537 = vunpack.c.h.b16 %v5790
    %v9538 = vunpack.c.l.b16 %v5791
    %v9539 = vunpack.c.h.b16 %v5791
    %v9540 = vunpack.c.l.b16 %v5792
    %v9541 = vunpack.c.h.b16 %v5792
    %v9542 = vunpack.c.l.b16 %v5793
    %v9543 = vunpack.c.h.b16 %v5793
    %v9544 = vunpack.c.l.b16 %v5794
    %v9545 = vunpack.c.h.b16 %v5794
    %v9546 = vunpack.c.l.b16 %v5795
    %v9547 = vunpack.c.h.b16 %v5795
    %v9548 = vunpack.c.l.b16 %v5796
    %v9549 = vunpack.c.h.b16 %v5796
    %v9550 = vunpack.c.l.b16 %v5797
    %v9551 = vunpack.c.h.b16 %v5797
    %v9552 = vunpack.c.l.b16 %v5798
    %v9553 = vunpack.c.h.b16 %v5798
    %v9554 = vunpack.c.l.b16 %v5799
    %v9555 = vunpack.c.h.b16 %v5799
    %v9556 = vunpack.c.l.b16 %v5800
    %v9557 = vunpack.c.h.b16 %v5800
    %v9558 = vunpack.c.l.b16 %v5801
    %v9559 = vunpack.c.h.b16 %v5801
    %v9560 = vunpack.c.l.b16 %v5802
    %v9561 = vunpack.c.h.b16 %v5802
    %v9562 = vunpack.c.l.b16 %v5803
    %v9563 = vunpack.c.h.b16 %v5803
    %v9564 = vunpack.c.l.b16 %v5804
    %v9565 = vunpack.c.h.b16 %v5804
    %v9566 = vunpack.c.l.b16 %v5805
    %v9567 = vunpack.c.h.b16 %v5805
    %v9568 = vunpack.c.l.b16 %v5806
    %v9569 = vunpack.c.h.b16 %v5806
    %v9570 = vunpack.c.l.b16 %v5807
    %v9571 = vunpack.c.h.b16 %v5807
    %v9572 = vunpack.c.l.b16 %v5808
    %v9573 = vunpack.c.h.b16 %v5808
    %v9574 = vunpack.c.l.b16 %v5809
    %v9575 = vunpack.c.h.b16 %v5809
    %v9576 = vunpack.c.l.b16 %v5810
    %v9577 = vunpack.c.h.b16 %v5810
    %v9578 = vunpack.c.l.b16 %v5811
    %v9579 = vunpack.c.h.b16 %v5811
    %v9580 = vunpack.c.l.b16 %v5812
    %v9581 = vunpack.c.h.b16 %v5812
    %v9582 = vunpack.c.l.b16 %v5813
    %v9583 = vunpack.c.h.b16 %v5813
    %v9584 = vunpack.c.l.b16 %v5814
    %v9585 = vunpack.c.h.b16 %v5814
    %v9586 = vunpack.c.l.b16 %v5815
    %v9587 = vunpack.c.h.b16 %v5815
    %v9588 = vunpack.c.l.b16 %v5816
    %v9589 = vunpack.c.h.b16 %v5816
    %v9590 = vunpack.c.l.b16 %v5817
    %v9591 = vunpack.c.h.b16 %v5817
    %v9592 = vunpack.c.l.b16 %v5818
    %v9593 = vunpack.c.h.b16 %v5818
    %v9594 = vunpack.c.l.b16 %v5819
    %v9595 = vunpack.c.h.b16 %v5819
    %v9596 = vunpack.c.l.b16 %v5820
    %v9597 = vunpack.c.h.b16 %v5820
    %v9598 = vunpack.c.l.b16 %v5821
    %v9599 = vunpack.c.h.b16 %v5821
    %v9600 = vunpack.c.l.b16 %v5822
    %v9601 = vunpack.c.h.b16 %v5822
    %v9602 = vunpack.c.l.b16 %v5823
    %v9603 = vunpack.c.h.b16 %v5823
    %v9604 = vunpack.c.l.b16 %v5824
    %v9605 = vunpack.c.h.b16 %v5824
    %v9606 = vunpack.c.l.b16 %v5825
    %v9607 = vunpack.c.h.b16 %v5825
    %v9608 = vunpack.c.l.b16 %v5826
    %v9609 = vunpack.c.h.b16 %v5826
    %v9610 = vunpack.c.l.b16 %v5827
    %v9611 = vunpack.c.h.b16 %v5827
    %v9612 = vunpack.c.l.b16 %v5828
    %v9613 = vunpack.c.h.b16 %v5828
    %v9614 = vunpack.c.l.b16 %v5829
    %v9615 = vunpack.c.h.b16 %v5829
    %v9616 = vunpack.c.l.b16 %v5830
    %v9617 = vunpack.c.h.b16 %v5830
    %v9618 = vunpack.c.l.b16 %v5831
    %v9619 = vunpack.c.h.b16 %v5831
    %v9620 = vunpack.c.l.b16 %v5832
    %v9621 = vunpack.c.h.b16 %v5832
    %v9622 = vunpack.c.l.b16 %v5833
    %v9623 = vunpack.c.h.b16 %v5833
    %v9624 = vunpack.c.l.b16 %v5834
    %v9625 = vunpack.c.h.b16 %v5834
    %v9626 = vunpack.c.l.b16 %v5835
    %v9627 = vunpack.c.h.b16 %v5835
    %v9628 = vunpack.c.l.b16 %v5836
    %v9629 = vunpack.c.h.b16 %v5836
    %v9630 = vunpack.c.l.b16 %v5837
    %v9631 = vunpack.c.h.b16 %v5837
    %v9632 = vunpack.c.l.b16 %v5838
    %v9633 = vunpack.c.h.b16 %v5838
    %v9634 = vunpack.c.l.b16 %v5839
    %v9635 = vunpack.c.h.b16 %v5839
    %v9636 = vunpack.c.l.b16 %v5840
    %v9637 = vunpack.c.h.b16 %v5840
    %v9638 = vunpack.c.l.b16 %v5841
    %v9639 = vunpack.c.h.b16 %v5841
    %v9640 = vunpack.c.l.b16 %v5842
    %v9641 = vunpack.c.h.b16 %v5842
    %v9642 = vunpack.c.l.b16 %v5843
    %v9643 = vunpack.c.h.b16 %v5843
    %v9644 = vunpack.c.l.b16 %v5844
    %v9645 = vunpack.c.h.b16 %v5844
    %v9646 = vunpack.c.l.b16 %v5845
    %v9647 = vunpack.c.h.b16 %v5845
    %v9648 = vunpack.c.l.b16 %v5846
    %v9649 = vunpack.c.h.b16 %v5846
    %v9650 = vunpack.c.l.b16 %v5847
    %v9651 = vunpack.c.h.b16 %v5847
    %v9652 = vunpack.c.l.b16 %v5848
    %v9653 = vunpack.c.h.b16 %v5848
    %v9654 = vunpack.c.l.b16 %v5849
    %v9655 = vunpack.c.h.b16 %v5849
    %v9656 = vunpack.c.l.b16 %v5850
    %v9657 = vunpack.c.h.b16 %v5850
    %v9658 = vunpack.c.l.b16 %v5851
    %v9659 = vunpack.c.h.b16 %v5851
    %v9660 = vunpack.c.l.b16 %v5852
    %v9661 = vunpack.c.h.b16 %v5852
    %v9662 = vunpack.c.l.b16 %v5853
    %v9663 = vunpack.c.h.b16 %v5853
    %v9664 = vunpack.c.l.b16 %v5854
    %v9665 = vunpack.c.h.b16 %v5854
    %v9666 = vunpack.c.l.b16 %v5855
    %v9667 = vunpack.c.h.b16 %v5855
    %v9668 = vunpack.c.l.b16 %v5856
    %v9669 = vunpack.c.h.b16 %v5856
    %v9670 = vunpack.c.l.b16 %v5857
    %v9671 = vunpack.c.h.b16 %v5857
    %v9672 = vunpack.c.l.b16 %v5858
    %v9673 = vunpack.c.h.b16 %v5858
    %v9674 = vunpack.c.l.b16 %v5859
    %v9675 = vunpack.c.h.b16 %v5859
    %v9676 = vunpack.c.l.b16 %v5860
    %v9677 = vunpack.c.h.b16 %v5860
    %v9678 = vunpack.c.l.b16 %v5861
    %v9679 = vunpack.c.h.b16 %v5861
    %v9680 = vunpack.c.l.b16 %v5862
    %v9681 = vunpack.c.h.b16 %v5862
    %v9682 = vunpack.c.l.b16 %v5863
    %v9683 = vunpack.c.h.b16 %v5863
    %v9684 = vunpack.c.l.b16 %v5864
    %v9685 = vunpack.c.h.b16 %v5864
    %v9686 = vunpack.c.l.b16 %v5865
    %v9687 = vunpack.c.h.b16 %v5865
    %v9688 = vunpack.c.l.b16 %v5866
    %v9689 = vunpack.c.h.b16 %v5866
    %v9690 = vunpack.c.l.b16 %v5867
    %v9691 = vunpack.c.h.b16 %v5867
    %v9692 = vunpack.c.l.b16 %v5868
    %v9693 = vunpack.c.h.b16 %v5868
    %v9694 = vunpack.c.l.b16 %v5869
    %v9695 = vunpack.c.h.b16 %v5869
    %v9696 = vunpack.c.l.b16 %v5870
    %v9697 = vunpack.c.h.b16 %v5870
    %v9698 = vunpack.c.l.b16 %v5871
    %v9699 = vunpack.c.h.b16 %v5871
    %v9700 = vunpack.c.l.b16 %v5872
    %v9701 = vunpack.c.h.b16 %v5872
    %v9702 = vunpack.c.l.b16 %v5873
    %v9703 = vunpack.c.h.b16 %v5873
    %v9704 = vunpack.c.l.b16 %v5874
    %v9705 = vunpack.c.h.b16 %v5874
    %v9706 = vunpack.c.l.b16 %v5875
    %v9707 = vunpack.c.h.b16 %v5875
    %v9708 = vunpack.c.l.b16 %v5876
    %v9709 = vunpack.c.h.b16 %v5876
    %v9710 = vunpack.c.l.b16 %v5877
    %v9711 = vunpack.c.h.b16 %v5877
    %v9712 = vunpack.c.l.b16 %v5878
    %v9713 = vunpack.c.h.b16 %v5878
    %v9714 = vunpack.c.l.b16 %v5879
    %v9715 = vunpack.c.h.b16 %v5879
    %v9716 = vunpack.c.l.b16 %v5880
    %v9717 = vunpack.c.h.b16 %v5880
    %v9718 = vunpack.c.l.b16 %v5881
    %v9719 = vunpack.c.h.b16 %v5881
    %v9720 = vunpack.c.l.b16 %v5882
    %v9721 = vunpack.c.h.b16 %v5882
    %v9722 = vunpack.c.l.b16 %v5883
    %v9723 = vunpack.c.h.b16 %v5883
    %v9724 = vunpack.c.l.b16 %v5884
    %v9725 = vunpack.c.h.b16 %v5884
    %v9726 = vunpack.c.l.b16 %v5885
    %v9727 = vunpack.c.h.b16 %v5885
    %v9728 = vunpack.c.l.b16 %v5886
    %v9729 = vunpack.c.h.b16 %v5886
    %v9730 = vunpack.c.l.b16 %v5887
    %v9731 = vunpack.c.h.b16 %v5887
    %v9732 = vunpack.c.l.b16 %v5888
    %v9733 = vunpack.c.h.b16 %v5888
    %v9734 = vunpack.c.l.b16 %v5889
    %v9735 = vunpack.c.h.b16 %v5889
    %v9736 = vunpack.c.l.b16 %v5890
    %v9737 = vunpack.c.h.b16 %v5890
    %v9738 = vunpack.c.l.b16 %v5891
    %v9739 = vunpack.c.h.b16 %v5891
    %v9740 = vunpack.c.l.b16 %v5892
    %v9741 = vunpack.c.h.b16 %v5892
    %v9742 = vpack.c.b16 %v9488, %v9486
    %v9743 = vpack.c.b16 %v9489, %v9487
    %v9744 = vpack.c.b16 %v9492, %v9490
    %v9745 = vpack.c.b16 %v9493, %v9491
    %v9746 = vpack.c.b16 %v9496, %v9494
    %v9747 = vpack.c.b16 %v9497, %v9495
    %v9748 = vpack.c.b16 %v9500, %v9498
    %v9749 = vpack.c.b16 %v9501, %v9499
    %v9750 = vpack.c.b16 %v9504, %v9502
    %v9751 = vpack.c.b16 %v9505, %v9503
    %v9752 = vpack.c.b16 %v9508, %v9506
    %v9753 = vpack.c.b16 %v9509, %v9507
    %v9754 = vpack.c.b16 %v9512, %v9510
    %v9755 = vpack.c.b16 %v9513, %v9511
    %v9756 = vpack.c.b16 %v9516, %v9514
    %v9757 = vpack.c.b16 %v9517, %v9515
    %v9758 = vpack.c.b16 %v9520, %v9518
    %v9759 = vpack.c.b16 %v9521, %v9519
    %v9760 = vpack.c.b16 %v9524, %v9522
    %v9761 = vpack.c.b16 %v9525, %v9523
    %v9762 = vpack.c.b16 %v9528, %v9526
    %v9763 = vpack.c.b16 %v9529, %v9527
    %v9764 = vpack.c.b16 %v9532, %v9530
    %v9765 = vpack.c.b16 %v9533, %v9531
    %v9766 = vpack.c.b16 %v9536, %v9534
    %v9767 = vpack.c.b16 %v9537, %v9535
    %v9768 = vpack.c.b16 %v9540, %v9538
    %v9769 = vpack.c.b16 %v9541, %v9539
    %v9770 = vpack.c.b16 %v9544, %v9542
    %v9771 = vpack.c.b16 %v9545, %v9543
    %v9772 = vpack.c.b16 %v9548, %v9546
    %v9773 = vpack.c.b16 %v9549, %v9547
    %v9774 = vpack.c.b16 %v9552, %v9550
    %v9775 = vpack.c.b16 %v9553, %v9551
    %v9776 = vpack.c.b16 %v9556, %v9554
    %v9777 = vpack.c.b16 %v9557, %v9555
    %v9778 = vpack.c.b16 %v9560, %v9558
    %v9779 = vpack.c.b16 %v9561, %v9559
    %v9780 = vpack.c.b16 %v9564, %v9562
    %v9781 = vpack.c.b16 %v9565, %v9563
    %v9782 = vpack.c.b16 %v9568, %v9566
    %v9783 = vpack.c.b16 %v9569, %v9567
    %v9784 = vpack.c.b16 %v9572, %v9570
    %v9785 = vpack.c.b16 %v9573, %v9571
    %v9786 = vpack.c.b16 %v9576, %v9574
    %v9787 = vpack.c.b16 %v9577, %v9575
    %v9788 = vpack.c.b16 %v9580, %v9578
    %v9789 = vpack.c.b16 %v9581, %v9579
    %v9790 = vpack.c.b16 %v9584, %v9582
    %v9791 = vpack.c.b16 %v9585, %v9583
    %v9792 = vpack.c.b16 %v9588, %v9586
    %v9793 = vpack.c.b16 %v9589, %v9587
    %v9794 = vpack.c.b16 %v9592, %v9590
    %v9795 = vpack.c.b16 %v9593, %v9591
    %v9796 = vpack.c.b16 %v9596, %v9594
    %v9797 = vpack.c.b16 %v9597, %v9595
    %v9798 = vpack.c.b16 %v9600, %v9598
    %v9799 = vpack.c.b16 %v9601, %v9599
    %v9800 = vpack.c.b16 %v9604, %v9602
    %v9801 = vpack.c.b16 %v9605, %v9603
    %v9802 = vpack.c.b16 %v9608, %v9606
    %v9803 = vpack.c.b16 %v9609, %v9607
    %v9804 = vpack.c.b16 %v9612, %v9610
    %v9805 = vpack.c.b16 %v9613, %v9611
    %v9806 = vpack.c.b16 %v9616, %v9614
    %v9807 = vpack.c.b16 %v9617, %v9615
    %v9808 = vpack.c.b16 %v9620, %v9618
    %v9809 = vpack.c.b16 %v9621, %v9619
    %v9810 = vpack.c.b16 %v9624, %v9622
    %v9811 = vpack.c.b16 %v9625, %v9623
    %v9812 = vpack.c.b16 %v9628, %v9626
    %v9813 = vpack.c.b16 %v9629, %v9627
    %v9814 = vpack.c.b16 %v9632, %v9630
    %v9815 = vpack.c.b16 %v9633, %v9631
    %v9816 = vpack.c.b16 %v9636, %v9634
    %v9817 = vpack.c.b16 %v9637, %v9635
    %v9818 = vpack.c.b16 %v9640, %v9638
    %v9819 = vpack.c.b16 %v9641, %v9639
    %v9820 = vpack.c.b16 %v9644, %v9642
    %v9821 = vpack.c.b16 %v9645, %v9643
    %v9822 = vpack.c.b16 %v9648, %v9646
    %v9823 = vpack.c.b16 %v9649, %v9647
    %v9824 = vpack.c.b16 %v9652, %v9650
    %v9825 = vpack.c.b16 %v9653, %v9651
    %v9826 = vpack.c.b16 %v9656, %v9654
    %v9827 = vpack.c.b16 %v9657, %v9655
    %v9828 = vpack.c.b16 %v9660, %v9658
    %v9829 = vpack.c.b16 %v9661, %v9659
    %v9830 = vpack.c.b16 %v9664, %v9662
    %v9831 = vpack.c.b16 %v9665, %v9663
    %v9832 = vpack.c.b16 %v9668, %v9666
    %v9833 = vpack.c.b16 %v9669, %v9667
    %v9834 = vpack.c.b16 %v9672, %v9670
    %v9835 = vpack.c.b16 %v9673, %v9671
    %v9836 = vpack.c.b16 %v9676, %v9674
    %v9837 = vpack.c.b16 %v9677, %v9675
    %v9838 = vpack.c.b16 %v9680, %v9678
    %v9839 = vpack.c.b16 %v9681, %v9679
    %v9840 = vpack.c.b16 %v9684, %v9682
    %v9841 = vpack.c.b16 %v9685, %v9683
    %v9842 = vpack.c.b16 %v9688, %v9686
    %v9843 = vpack.c.b16 %v9689, %v9687
    %v9844 = vpack.c.b16 %v9692, %v9690
    %v9845 = vpack.c.b16 %v9693, %v9691
    %v9846 = vpack.c.b16 %v9696, %v9694
    %v9847 = vpack.c.b16 %v9697, %v9695
    %v9848 = vpack.c.b16 %v9700, %v9698
    %v9849 = vpack.c.b16 %v9701, %v9699
    %v9850 = vpack.c.b16 %v9704, %v9702
    %v9851 = vpack.c.b16 %v9705, %v9703
    %v9852 = vpack.c.b16 %v9708, %v9706
    %v9853 = vpack.c.b16 %v9709, %v9707
    %v9854 = vpack.c.b16 %v9712, %v9710
    %v9855 = vpack.c.b16 %v9713, %v9711
    %v9856 = vpack.c.b16 %v9716, %v9714
    %v9857 = vpack.c.b16 %v9717, %v9715
    %v9858 = vpack.c.b16 %v9720, %v9718
    %v9859 = vpack.c.b16 %v9721, %v9719
    %v9860 = vpack.c.b16 %v9724, %v9722
    %v9861 = vpack.c.b16 %v9725, %v9723
    %v9862 = vpack.c.b16 %v9728, %v9726
    %v9863 = vpack.c.b16 %v9729, %v9727
    %v9864 = vpack.c.b16 %v9732, %v9730
    %v9865 = vpack.c.b16 %v9733, %v9731
    %v9866 = vpack.c.b16 %v9736, %v9734
    %v9867 = vpack.c.b16 %v9737, %v9735
    %v9868 = vpack.c.b16 %v9740, %v9738
    %v9869 = vpack.c.b16 %v9741, %v9739
    %9998 = vmatprep.subr.bf16.mxu0 %v9743
    %9999 = vmatpush1.bf16.msra.mxu0 %v9742
    %10000 = vmatprep.subr.bf16.mxu0 %v9745
    %10001 = vmatpush1.bf16.msra.mxu0 %v9744
    %10002 = vmatprep.subr.bf16.mxu0 %v9747
    %10003 = vmatpush1.bf16.msra.mxu0 %v9746
    %10004 = vmatprep.subr.bf16.mxu0 %v9749
    %10005 = vmatpush1.bf16.msra.mxu0 %v9748
    %10006 = vmatprep.subr.bf16.mxu0 %v9751
    %10007 = vmatpush1.bf16.msra.mxu0 %v9750
    %10008 = vmatprep.subr.bf16.mxu0 %v9753
    %10009 = vmatpush1.bf16.msra.mxu0 %v9752
    %10010 = vmatprep.subr.bf16.mxu0 %v9755
    %10011 = vmatpush1.bf16.msra.mxu0 %v9754
    %10012 = vmatprep.subr.bf16.mxu0 %v9757
    %10013 = vmatpush1.bf16.msra.mxu0 %v9756
    %10014 = vmatprep.subr.bf16.mxu0 %v9759
    %10015 = vmatpush1.bf16.msra.mxu0 %v9758
    %10016 = vmatprep.subr.bf16.mxu0 %v9761
    %10017 = vmatpush1.bf16.msra.mxu0 %v9760
    %10018 = vmatprep.subr.bf16.mxu0 %v9763
    %10019 = vmatpush1.bf16.msra.mxu0 %v9762
    %10020 = vmatprep.subr.bf16.mxu0 %v9765
    %10021 = vmatpush1.bf16.msra.mxu0 %v9764
    %10022 = vmatprep.subr.bf16.mxu0 %v9767
    %10023 = vmatpush1.bf16.msra.mxu0 %v9766
    %10024 = vmatprep.subr.bf16.mxu0 %v9769
    %10025 = vmatpush1.bf16.msra.mxu0 %v9768
    %10026 = vmatprep.subr.bf16.mxu0 %v9771
    %10027 = vmatpush1.bf16.msra.mxu0 %v9770
    %10028 = vmatprep.subr.bf16.mxu0 %v9773
    %10029 = vmatpush1.bf16.msra.mxu0 %v9772
    %10030 = vmatprep.mubr.bf16.mxu0 %v9308
    %10031 = vmatmul.mubr.bf16.gmra.mrb[0].mxu0 %v9307
    %v10032 = vpop.f32.mrb[0].mxu0
    %v10033 = vpop.f32.mrb[0].mxu0
    %v10034 = vpop.f32.mrb[0].mxu0
    %v10035 = vpop.f32.mrb[0].mxu0
    %10036 = vmatprep.mubr.bf16.mxu0 %v9316
    %10037 = vmatmul.mubr.bf16.gmra.mrb[0].mxu0 %v9315
    %v10038 = vpop.f32.mrb[0].mxu0
    %v10039 = vadd.f32 %v9351, %v10038
    %v10040 = vpop.f32.mrb[0].mxu0
    %v10041 = vadd.f32 %v9355, %v10040
    %v10042 = vpop.f32.mrb[0].mxu0
    %v10043 = vadd.f32 %v9351, %v10042
    %v10044 = vpop.f32.mrb[0].mxu0
    %v10045 = vadd.f32 %v9355, %v10044
    %10046 = vmatprep.mubr.bf16.mxu0 %v9324
    %10047 = vmatmul.mubr.bf16.gmra.mrb[0].mxu0 %v9323
    %v10048 = vpop.f32.mrb[0].mxu0
    %v10049 = vadd.f32 %v9351, %v10048
    %v10050 = vpop.f32.mrb[0].mxu0
    %v10051 = vadd.f32 %v9355, %v10050
    %v10052 = vpop.f32.mrb[0].mxu0
    %v10053 = vadd.f32 %v9351, %v10052
    %v10054 = vpop.f32.mrb[0].mxu0
    %v10055 = vadd.f32 %v9355, %v10054
    %10056 = vmatprep.mubr.bf16.mxu0 %v9332
    %10057 = vmatmul.mubr.bf16.gmra.mrb[0].mxu0 %v9331
    %v10058 = vpop.f32.mrb[0].mxu0
    %v10059 = vadd.f32 %v9351, %v10058
    %v10060 = vpop.f32.mrb[0].mxu0
    %v10061 = vadd.f32 %v9355, %v10060
    %v10062 = vpop.f32.mrb[0].mxu0
    %v10063 = vadd.f32 %v9351, %v10062
    %v10064 = vpop.f32.mrb[0].mxu0
    %v10065 = vadd.f32 %v9355, %v10064
    %10066 = vmatprep.mubr.bf16.mxu0 %v9340
    %10067 = vmatmul.mubr.bf16.gmra.mrb[0].mxu0 %v9339
    %v10068 = vpop.f32.mrb[0].mxu0
    %v10069 = vadd.f32 %v9351, %v10068
    %v10070 = vpop.f32.mrb[0].mxu0
    %v10071 = vadd.f32 %v9355, %v10070
    %v10072 = vpop.f32.mrb[0].mxu0
    %v10073 = vadd.f32 %v9351, %v10072
    %v10074 = vpop.f32.mrb[0].mxu0
    %v10075 = vadd.f32 %v9355, %v10074
    %10076 = vdwg.mxu0
    %10077 = vmatprep.subr.bf16.mxu0 %v9775
    %10078 = vmatpush1.bf16.msra.mxu0 %v9774
    %10079 = vmatprep.subr.bf16.mxu0 %v9777
    %10080 = vmatpush1.bf16.msra.mxu0 %v9776
    %10081 = vmatprep.subr.bf16.mxu0 %v9779
    %10082 = vmatpush1.bf16.msra.mxu0 %v9778
    %10083 = vmatprep.subr.bf16.mxu0 %v9781
    %10084 = vmatpush1.bf16.msra.mxu0 %v9780
    %10085 = vmatprep.subr.bf16.mxu0 %v9783
    %10086 = vmatpush1.bf16.msra.mxu0 %v9782
    %10087 = vmatprep.subr.bf16.mxu0 %v9785
    %10088 = vmatpush1.bf16.msra.mxu0 %v9784
    %10089 = vmatprep.subr.bf16.mxu0 %v9787
    %10090 = vmatpush1.bf16.msra.mxu0 %v9786
    %10091 = vmatprep.subr.bf16.mxu0 %v9789
    %10092 = vmatpush1.bf16.msra.mxu0 %v9788
    %10093 = vmatprep.subr.bf16.mxu0 %v9791
    %10094 = vmatpush1.bf16.msra.mxu0 %v9790
    %10095 = vmatprep.subr.bf16.mxu0 %v9793
    %10096 = vmatpush1.bf16.msra.mxu0 %v9792
    %10097 = vmatprep.subr.bf16.mxu0 %v9795
    %10098 = vmatpush1.bf16.msra.mxu0 %v9794
    %10099 = vmatprep.subr.bf16.mxu0 %v9797
    %10100 = vmatpush1.bf16.msra.mxu0 %v9796
    %10101 = vmatprep.subr.bf16.mxu0 %v9799
    %10102 = vmatpush1.bf16.msra.mxu0 %v9798
    %10103 = vmatprep.subr.bf16.mxu0 %v9801
    %10104 = vmatpush1.bf16.msra.mxu0 %v9800
    %10105 = vmatprep.subr.bf16.mxu0 %v9803
    %10106 = vmatpush1.bf16.msra.mxu0 %v9802
    %10107 = vmatprep.subr.bf16.mxu0 %v9805
    %10108 = vmatpush1.bf16.msra.mxu0 %v9804
    %10109 = vmatprep.mubr.bf16.mxu0 %v9310
    %10110 = vmatmul.mubr.bf16.gmra.mrb[0].mxu0 %v9309
    %v10111 = vpop.f32.mrb[0].mxu0
    %v10112 = vpop.f32.mrb[0].mxu0
    %v10113 = vpop.f32.mrb[0].mxu0
    %v10114 = vpop.f32.mrb[0].mxu0
    %10115 = vmatprep.mubr.bf16.mxu0 %v9318
    %10116 = vmatmul.mubr.bf16.gmra.mrb[0].mxu0 %v9317
    %v10117 = vpop.f32.mrb[0].mxu0
    %v10118 = vadd.f32 %v10039, %v10117
    %v10119 = vpop.f32.mrb[0].mxu0
    %v10120 = vadd.f32 %v10041, %v10119
    %v10121 = vpop.f32.mrb[0].mxu0
    %v10122 = vadd.f32 %v10043, %v10121
    %v10123 = vpop.f32.mrb[0].mxu0
    %v10124 = vadd.f32 %v10045, %v10123
    %10125 = vmatprep.mubr.bf16.mxu0 %v9326
    %10126 = vmatmul.mubr.bf16.gmra.mrb[0].mxu0 %v9325
    %v10127 = vpop.f32.mrb[0].mxu0
    %v10128 = vadd.f32 %v10049, %v10127
    %v10129 = vpop.f32.mrb[0].mxu0
    %v10130 = vadd.f32 %v10051, %v10129
    %v10131 = vpop.f32.mrb[0].mxu0
    %v10132 = vadd.f32 %v10053, %v10131
    %v10133 = vpop.f32.mrb[0].mxu0
    %v10134 = vadd.f32 %v10055, %v10133
    %10135 = vmatprep.mubr.bf16.mxu0 %v9334
    %10136 = vmatmul.mubr.bf16.gmra.mrb[0].mxu0 %v9333
    %v10137 = vpop.f32.mrb[0].mxu0
    %v10138 = vadd.f32 %v10059, %v10137
    %v10139 = vpop.f32.mrb[0].mxu0
    %v10140 = vadd.f32 %v10061, %v10139
    %v10141 = vpop.f32.mrb[0].mxu0
    %v10142 = vadd.f32 %v10063, %v10141
    %v10143 = vpop.f32.mrb[0].mxu0
    %v10144 = vadd.f32 %v10065, %v10143
    %10145 = vmatprep.mubr.bf16.mxu0 %v9342
    %10146 = vmatmul.mubr.bf16.gmra.mrb[0].mxu0 %v9341
    %v10147 = vpop.f32.mrb[0].mxu0
    %v10148 = vadd.f32 %v10069, %v10147
    %v10149 = vpop.f32.mrb[0].mxu0
    %v10150 = vadd.f32 %v10071, %v10149
    %v10151 = vpop.f32.mrb[0].mxu0
    %v10152 = vadd.f32 %v10073, %v10151
    %v10153 = vpop.f32.mrb[0].mxu0
    %v10154 = vadd.f32 %v10075, %v10153
    %10155 = vdwg.mxu0
    %10156 = vmatprep.subr.bf16.mxu0 %v9807
    %10157 = vmatpush1.bf16.msra.mxu0 %v9806
    %10158 = vmatprep.subr.bf16.mxu0 %v9809
    %10159 = vmatpush1.bf16.msra.mxu0 %v9808
    %10160 = vmatprep.subr.bf16.mxu0 %v9811
    %10161 = vmatpush1.bf16.msra.mxu0 %v9810
    %10162 = vmatprep.subr.bf16.mxu0 %v9813
    %10163 = vmatpush1.bf16.msra.mxu0 %v9812
    %10164 = vmatprep.subr.bf16.mxu0 %v9815
    %10165 = vmatpush1.bf16.msra.mxu0 %v9814
    %10166 = vmatprep.subr.bf16.mxu0 %v9817
    %10167 = vmatpush1.bf16.msra.mxu0 %v9816
    %10168 = vmatprep.subr.bf16.mxu0 %v9819
    %10169 = vmatpush1.bf16.msra.mxu0 %v9818
    %10170 = vmatprep.subr.bf16.mxu0 %v9821
    %10171 = vmatpush1.bf16.msra.mxu0 %v9820
    %10172 = vmatprep.subr.bf16.mxu0 %v9823
    %10173 = vmatpush1.bf16.msra.mxu0 %v9822
    %10174 = vmatprep.subr.bf16.mxu0 %v9825
    %10175 = vmatpush1.bf16.msra.mxu0 %v9824
    %10176 = vmatprep.subr.bf16.mxu0 %v9827
    %10177 = vmatpush1.bf16.msra.mxu0 %v9826
    %10178 = vmatprep.subr.bf16.mxu0 %v9829
    %10179 = vmatpush1.bf16.msra.mxu0 %v9828
    %10180 = vmatprep.subr.bf16.mxu0 %v9831
    %10181 = vmatpush1.bf16.msra.mxu0 %v9830
    %10182 = vmatprep.subr.bf16.mxu0 %v9833
    %10183 = vmatpush1.bf16.msra.mxu0 %v9832
    %10184 = vmatprep.subr.bf16.mxu0 %v9835
    %10185 = vmatpush1.bf16.msra.mxu0 %v9834
    %10186 = vmatprep.subr.bf16.mxu0 %v9837
    %10187 = vmatpush1.bf16.msra.mxu0 %v9836
    %10188 = vmatprep.mubr.bf16.mxu0 %v9312
    %10189 = vmatmul.mubr.bf16.gmra.mrb[0].mxu0 %v9311
    %v10190 = vpop.f32.mrb[0].mxu0
    %v10191 = vpop.f32.mrb[0].mxu0
    %v10192 = vpop.f32.mrb[0].mxu0
    %v10193 = vpop.f32.mrb[0].mxu0
    %10194 = vmatprep.mubr.bf16.mxu0 %v9320
    %10195 = vmatmul.mubr.bf16.gmra.mrb[0].mxu0 %v9319
    %v10196 = vpop.f32.mrb[0].mxu0
    %v10197 = vadd.f32 %v10118, %v10196
    %v10198 = vpop.f32.mrb[0].mxu0
    %v10199 = vadd.f32 %v10120, %v10198
    %v10200 = vpop.f32.mrb[0].mxu0
    %v10201 = vadd.f32 %v10122, %v10200
    %v10202 = vpop.f32.mrb[0].mxu0
    %v10203 = vadd.f32 %v10124, %v10202
    %10204 = vmatprep.mubr.bf16.mxu0 %v9328
    %10205 = vmatmul.mubr.bf16.gmra.mrb[0].mxu0 %v9327
    %v10206 = vpop.f32.mrb[0].mxu0
    %v10207 = vadd.f32 %v10128, %v10206
    %v10208 = vpop.f32.mrb[0].mxu0
    %v10209 = vadd.f32 %v10130, %v10208
    %v10210 = vpop.f32.mrb[0].mxu0
    %v10211 = vadd.f32 %v10132, %v10210
    %v10212 = vpop.f32.mrb[0].mxu0
    %v10213 = vadd.f32 %v10134, %v10212
    %10214 = vmatprep.mubr.bf16.mxu0 %v9336
    %10215 = vmatmul.mubr.bf16.gmra.mrb[0].mxu0 %v9335
    %v10216 = vpop.f32.mrb[0].mxu0
    %v10217 = vadd.f32 %v10138, %v10216
    %v10218 = vpop.f32.mrb[0].mxu0
    %v10219 = vadd.f32 %v10140, %v10218
    %v10220 = vpop.f32.mrb[0].mxu0
    %v10221 = vadd.f32 %v10142, %v10220
    %v10222 = vpop.f32.mrb[0].mxu0
    %v10223 = vadd.f32 %v10144, %v10222
    %10224 = vmatprep.mubr.bf16.mxu0 %v9344
    %10225 = vmatmul.mubr.bf16.gmra.mrb[0].mxu0 %v9343
    %v10226 = vpop.f32.mrb[0].mxu0
    %v10227 = vadd.f32 %v10148, %v10226
    %v10228 = vpop.f32.mrb[0].mxu0
    %v10229 = vadd.f32 %v10150, %v10228
    %v10230 = vpop.f32.mrb[0].mxu0
    %v10231 = vadd.f32 %v10152, %v10230
    %v10232 = vpop.f32.mrb[0].mxu0
    %v10233 = vadd.f32 %v10154, %v10232
    %10234 = vdwg.mxu0
    %10235 = vmatprep.subr.bf16.mxu0 %v9839
    %10236 = vmatpush1.bf16.msra.mxu0 %v9838
    %10237 = vmatprep.subr.bf16.mxu0 %v9841
    %10238 = vmatpush1.bf16.msra.mxu0 %v9840
    %10239 = vmatprep.subr.bf16.mxu0 %v9843
    %10240 = vmatpush1.bf16.msra.mxu0 %v9842
    %10241 = vmatprep.subr.bf16.mxu0 %v9845
    %10242 = vmatpush1.bf16.msra.mxu0 %v9844
    %10243 = vmatprep.subr.bf16.mxu0 %v9847
    %10244 = vmatpush1.bf16.msra.mxu0 %v9846
    %10245 = vmatprep.subr.bf16.mxu0 %v9849
    %10246 = vmatpush1.bf16.msra.mxu0 %v9848
    %10247 = vmatprep.subr.bf16.mxu0 %v9851
    %10248 = vmatpush1.bf16.msra.mxu0 %v9850
    %10249 = vmatprep.subr.bf16.mxu0 %v9853
    %10250 = vmatpush1.bf16.msra.mxu0 %v9852
    %10251 = vmatprep.subr.bf16.mxu0 %v9855
    %10252 = vmatpush1.bf16.msra.mxu0 %v9854
    %10253 = vmatprep.subr.bf16.mxu0 %v9857
    %10254 = vmatpush1.bf16.msra.mxu0 %v9856
    %10255 = vmatprep.subr.bf16.mxu0 %v9859
    %10256 = vmatpush1.bf16.msra.mxu0 %v9858
    %10257 = vmatprep.subr.bf16.mxu0 %v9861
    %10258 = vmatpush1.bf16.msra.mxu0 %v9860
    %10259 = vmatprep.subr.bf16.mxu0 %v9863
    %10260 = vmatpush1.bf16.msra.mxu0 %v9862
    %10261 = vmatprep.subr.bf16.mxu0 %v9865
    %10262 = vmatpush1.bf16.msra.mxu0 %v9864
    %10263 = vmatprep.subr.bf16.mxu0 %v9867
    %10264 = vmatpush1.bf16.msra.mxu0 %v9866
    %10265 = vmatprep.subr.bf16.mxu0 %v9869
    %10266 = vmatpush1.bf16.msra.mxu0 %v9868
    %10267 = vmatprep.mubr.bf16.mxu0 %v9314
    %10268 = vmatmul.mubr.bf16.gmra.mrb[0].mxu0 %v9313
    %v10269 = vpop.f32.mrb[0].mxu0
    %v10270 = vpop.f32.mrb[0].mxu0
    %v10271 = vpop.f32.mrb[0].mxu0
    %v10272 = vpop.f32.mrb[0].mxu0
    %10273 = vmatprep.mubr.bf16.mxu0 %v9322
    %10274 = vmatmul.mubr.bf16.gmra.mrb[0].mxu0 %v9321
    %v10275 = vpop.f32.mrb[0].mxu0
    %v10276 = vadd.f32 %v10197, %v10275
    %v10277 = vpop.f32.mrb[0].mxu0
    %v10278 = vadd.f32 %v10199, %v10277
    %v10279 = vpop.f32.mrb[0].mxu0
    %v10280 = vadd.f32 %v10201, %v10279
    %v10281 = vpop.f32.mrb[0].mxu0
    %v10282 = vadd.f32 %v10203, %v10281
    %10283 = vmatprep.mubr.bf16.mxu0 %v9330
    %10284 = vmatmul.mubr.bf16.gmra.mrb[0].mxu0 %v9329
    %v10285 = vpop.f32.mrb[0].mxu0
    %v10286 = vadd.f32 %v10207, %v10285
    %v10287 = vpop.f32.mrb[0].mxu0
    %v10288 = vadd.f32 %v10209, %v10287
    %v10289 = vpop.f32.mrb[0].mxu0
    %v10290 = vadd.f32 %v10211, %v10289
    %v10291 = vpop.f32.mrb[0].mxu0
    %v10292 = vadd.f32 %v10213, %v10291
    %10293 = vmatprep.mubr.bf16.mxu0 %v9338
    %10294 = vmatmul.mubr.bf16.gmra.mrb[0].mxu0 %v9337
    %v10295 = vpop.f32.mrb[0].mxu0
    %v10296 = vadd.f32 %v10217, %v10295
    %v10297 = vpop.f32.mrb[0].mxu0
    %v10298 = vadd.f32 %v10219, %v10297
    %v10299 = vpop.f32.mrb[0].mxu0
    %v10300 = vadd.f32 %v10221, %v10299
    %v10301 = vpop.f32.mrb[0].mxu0
    %v10302 = vadd.f32 %v10223, %v10301
    %10303 = vmatprep.mubr.bf16.mxu0 %v9346
    %10304 = vmatmul.mubr.bf16.gmra.mrb[0].mxu0 %v9345
    %v10305 = vpop.f32.mrb[0].mxu0
    %v10306 = vadd.f32 %v10227, %v10305
    %v10307 = vpop.f32.mrb[0].mxu0
    %v10308 = vadd.f32 %v10229, %v10307
    %v10309 = vpop.f32.mrb[0].mxu0
    %v10310 = vadd.f32 %v10231, %v10309
    %v10311 = vpop.f32.mrb[0].mxu0
    %v10312 = vadd.f32 %v10233, %v10311
    %10313 = vdwg.mxu0
    %v10314 = vadd.f32 %v8188, %v10276
    %v10315 = vadd.f32 %v8189, %v10278
    %v10316 = vadd.f32 %v8190, %v10280
    %v10317 = vadd.f32 %v8191, %v10282
    %v10318 = vadd.f32 %v8192, %v10286
    %v10319 = vadd.f32 %v8193, %v10288
    %v10320 = vadd.f32 %v8194, %v10290
    %v10321 = vadd.f32 %v8195, %v10292
    %v10322 = vadd.f32 %v8196, %v10296
    %v10323 = vadd.f32 %v8197, %v10298
    %v10324 = vadd.f32 %v8198, %v10300
    %v10325 = vadd.f32 %v8199, %v10302
    %v10326 = vadd.f32 %v8200, %v10306
    %v10327 = vadd.f32 %v8201, %v10308
    %v10328 = vadd.f32 %v8202, %v10310
    %v10329 = vadd.f32 %v8203, %v10312
    %v10330 = vadd.f32 %v10314, %v10315
    %10331 = vadd.xlane.f32.xlu0 %v10330
    %v10332 = vpop.xlane.xlu0 %10331
    %v10333 = vadd.f32 %v10316, %v10317
    %10334 = vadd.xlane.f32.xlu0 %v10333
    %v10335 = vpop.xlane.xlu0 %10334
    %v10336 = vadd.f32 %v10318, %v10319
    %10337 = vadd.xlane.f32.xlu0 %v10336
    %v10338 = vpop.xlane.xlu0 %10337
    %v10339 = vadd.f32 %v10320, %v10321
    %10340 = vadd.xlane.f32.xlu0 %v10339
    %v10341 = vpop.xlane.xlu0 %10340
    %v10342 = vadd.f32 %v10322, %v10323
    %10343 = vadd.xlane.f32.xlu0 %v10342
    %v10344 = vpop.xlane.xlu0 %10343
    %v10345 = vadd.f32 %v10324, %v10325
    %10346 = vadd.xlane.f32.xlu0 %v10345
    %v10347 = vpop.xlane.xlu0 %10346
    %v10348 = vadd.f32 %v10326, %v10327
    %10349 = vadd.xlane.f32.xlu0 %v10348
    %v10350 = vpop.xlane.xlu0 %10349
    %v10351 = vadd.f32 %v10328, %v10329
    %10352 = vadd.xlane.f32.xlu0 %v10351
    %v10353 = vpop.xlane.xlu0 %10352
    %v10354 = vmul.f32 %v10332, %v2931
    %v10355 = vmul.f32 %v10335, %v2931
    %v10356 = vmul.f32 %v10338, %v2931
    %v10357 = vmul.f32 %v10341, %v2931
    %v10358 = vmul.f32 %v10344, %v2931
    %v10359 = vmul.f32 %v10347, %v2931
    %v10360 = vmul.f32 %v10350, %v2931
    %v10361 = vmul.f32 %v10353, %v2931
    %v10362 = vsub.f32 %v10314, %v10354
    %v10363 = vsub.f32 %v10315, %v10354
    %v10364 = vsub.f32 %v10316, %v10355
    %v10365 = vsub.f32 %v10317, %v10355
    %v10366 = vsub.f32 %v10318, %v10356
    %v10367 = vsub.f32 %v10319, %v10356
    %v10368 = vsub.f32 %v10320, %v10357
    %v10369 = vsub.f32 %v10321, %v10357
    %v10370 = vsub.f32 %v10322, %v10358
    %v10371 = vsub.f32 %v10323, %v10358
    %v10372 = vsub.f32 %v10324, %v10359
    %v10373 = vsub.f32 %v10325, %v10359
    %v10374 = vsub.f32 %v10326, %v10360
    %v10375 = vsub.f32 %v10327, %v10360
    %v10376 = vsub.f32 %v10328, %v10361
    %v10377 = vsub.f32 %v10329, %v10361
    %v10378 = vmul.f32 %v10362, %v10362
    %v10379 = vmul.f32 %v10363, %v10363
    %v10380 = vmul.f32 %v10364, %v10364
    %v10381 = vmul.f32 %v10365, %v10365
    %v10382 = vmul.f32 %v10366, %v10366
    %v10383 = vmul.f32 %v10367, %v10367
    %v10384 = vmul.f32 %v10368, %v10368
    %v10385 = vmul.f32 %v10369, %v10369
    %v10386 = vmul.f32 %v10370, %v10370
    %v10387 = vmul.f32 %v10371, %v10371
    %v10388 = vmul.f32 %v10372, %v10372
    %v10389 = vmul.f32 %v10373, %v10373
    %v10390 = vmul.f32 %v10374, %v10374
    %v10391 = vmul.f32 %v10375, %v10375
    %v10392 = vmul.f32 %v10376, %v10376
    %v10393 = vmul.f32 %v10377, %v10377
    %v10394 = vadd.f32 %v10378, %v10379
    %10395 = vadd.xlane.f32.xlu0 %v10394
    %v10396 = vpop.xlane.xlu0 %10395
    %v10397 = vadd.f32 %v10380, %v10381
    %10398 = vadd.xlane.f32.xlu0 %v10397
    %v10399 = vpop.xlane.xlu0 %10398
    %v10400 = vadd.f32 %v10382, %v10383
    %10401 = vadd.xlane.f32.xlu0 %v10400
    %v10402 = vpop.xlane.xlu0 %10401
    %v10403 = vadd.f32 %v10384, %v10385
    %10404 = vadd.xlane.f32.xlu0 %v10403
    %v10405 = vpop.xlane.xlu0 %10404
    %v10406 = vadd.f32 %v10386, %v10387
    %10407 = vadd.xlane.f32.xlu0 %v10406
    %v10408 = vpop.xlane.xlu0 %10407
    %v10409 = vadd.f32 %v10388, %v10389
    %10410 = vadd.xlane.f32.xlu0 %v10409
    %v10411 = vpop.xlane.xlu0 %10410
    %v10412 = vadd.f32 %v10390, %v10391
    %10413 = vadd.xlane.f32.xlu0 %v10412
    %v10414 = vpop.xlane.xlu0 %10413
    %v10415 = vadd.f32 %v10392, %v10393
    %10416 = vadd.xlane.f32.xlu0 %v10415
    %v10417 = vpop.xlane.xlu0 %10416
    %v10418 = vmul.f32 %v10396, %v2931
    %v10419 = vmul.f32 %v10399, %v2931
    %v10420 = vmul.f32 %v10402, %v2931
    %v10421 = vmul.f32 %v10405, %v2931
    %v10422 = vmul.f32 %v10408, %v2931
    %v10423 = vmul.f32 %v10411, %v2931
    %v10424 = vmul.f32 %v10414, %v2931
    %v10425 = vmul.f32 %v10417, %v2931
    %v10426 = vadd.f32 %v10418, 1e-05
    %v10427 = vadd.f32 %v10419, 1e-05
    %v10428 = vadd.f32 %v10420, 1e-05
    %v10429 = vadd.f32 %v10421, 1e-05
    %v10430 = vadd.f32 %v10422, 1e-05
    %v10431 = vadd.f32 %v10423, 1e-05
    %v10432 = vadd.f32 %v10424, 1e-05
    %v10433 = vadd.f32 %v10425, 1e-05
    %v10434 = vrsqrt.pop %v10426
    %v10435 = vrsqrt.pop %v10427
    %v10436 = vrsqrt.pop %v10428
    %v10437 = vrsqrt.pop %v10429
    %v10438 = vrsqrt.pop %v10430
    %v10439 = vrsqrt.pop %v10431
    %v10440 = vrsqrt.pop %v10432
    %v10441 = vrsqrt.pop %v10433
    %v10442 = vmul.f32 %v10362, %v10434
    %v10443 = vmul.f32 %v10363, %v10434
    %v10444 = vmul.f32 %v10364, %v10435
    %v10445 = vmul.f32 %v10365, %v10435
    %v10446 = vmul.f32 %v10366, %v10436
    %v10447 = vmul.f32 %v10367, %v10436
    %v10448 = vmul.f32 %v10368, %v10437
    %v10449 = vmul.f32 %v10369, %v10437
    %v10450 = vmul.f32 %v10370, %v10438
    %v10451 = vmul.f32 %v10371, %v10438
    %v10452 = vmul.f32 %v10372, %v10439
    %v10453 = vmul.f32 %v10373, %v10439
    %v10454 = vmul.f32 %v10374, %v10440
    %v10455 = vmul.f32 %v10375, %v10440
    %v10456 = vmul.f32 %v10376, %v10441
    %v10457 = vmul.f32 %v10377, %v10441
    %v10459 = vlaneseq
    %v10460 = vshrl.u32 %v10459, 7
    %v10461 = vsub.s32 0, %v10460
    %v10462 = vrot.slane %v5896, %v10461
    %v10463 = vlaneseq
    %v10464 = vshrl.u32 %v10463, 7
    %v10465 = vsub.s32 1, %v10464
    %v10466 = vrot.slane %v5896, %v10465
    %v10469 = vmul.f32 %v10442, %v10462
    %v10470 = vmul.f32 %v10443, %v10466
    %v10471 = vmul.f32 %v10444, %v10462
    %v10472 = vmul.f32 %v10445, %v10466
    %v10473 = vmul.f32 %v10446, %v10462
    %v10474 = vmul.f32 %v10447, %v10466
    %v10475 = vmul.f32 %v10448, %v10462
    %v10476 = vmul.f32 %v10449, %v10466
    %v10477 = vmul.f32 %v10450, %v10462
    %v10478 = vmul.f32 %v10451, %v10466
    %v10479 = vmul.f32 %v10452, %v10462
    %v10480 = vmul.f32 %v10453, %v10466
    %v10481 = vmul.f32 %v10454, %v10462
    %v10482 = vmul.f32 %v10455, %v10466
    %v10483 = vmul.f32 %v10456, %v10462
    %v10484 = vmul.f32 %v10457, %v10466
    %v10486 = vlaneseq
    %v10487 = vshrl.u32 %v10486, 7
    %v10488 = vsub.s32 0, %v10487
    %v10489 = vrot.slane %v5898, %v10488
    %v10490 = vlaneseq
    %v10491 = vshrl.u32 %v10490, 7
    %v10492 = vsub.s32 1, %v10491
    %v10493 = vrot.slane %v5898, %v10492
    %v10496 = vadd.f32 %v10469, %v10489
    %v10497 = vadd.f32 %v10470, %v10493
    %v10498 = vadd.f32 %v10471, %v10489
    %v10499 = vadd.f32 %v10472, %v10493
    %v10500 = vadd.f32 %v10473, %v10489
    %v10501 = vadd.f32 %v10474, %v10493
    %v10502 = vadd.f32 %v10475, %v10489
    %v10503 = vadd.f32 %v10476, %v10493
    %v10504 = vadd.f32 %v10477, %v10489
    %v10505 = vadd.f32 %v10478, %v10493
    %v10506 = vadd.f32 %v10479, %v10489
    %v10507 = vadd.f32 %v10480, %v10493
    %v10508 = vadd.f32 %v10481, %v10489
    %v10509 = vadd.f32 %v10482, %v10493
    %v10510 = vadd.f32 %v10483, %v10489
    %v10511 = vadd.f32 %v10484, %v10493
    %v10512 = vadd.f32 %v10496, %v406
    %v10513 = vadd.f32 %v10497, %v407
    %v10514 = vadd.f32 %v10498, %v408
    %v10515 = vadd.f32 %v10499, %v409
    %v10516 = vadd.f32 %v10500, %v410
    %v10517 = vadd.f32 %v10501, %v411
    %v10518 = vadd.f32 %v10502, %v412
    %v10519 = vadd.f32 %v10503, %v413
    %v10520 = vadd.f32 %v10504, %v414
    %v10521 = vadd.f32 %v10505, %v415
    %v10522 = vadd.f32 %v10506, %v416
    %v10523 = vadd.f32 %v10507, %v417
    %v10524 = vadd.f32 %v10508, %v418
    %v10525 = vadd.f32 %v10509, %v419
    %v10526 = vadd.f32 %v10510, %v420
    %v10527 = vadd.f32 %v10511, %v421
    %10528 = vst [vmem:[%s18] sm:$0xff] %v10512
    %10529 = vst [vmem:[%s18 + $0x8] sm:$0xff] %v10513
    %10530 = vst [vmem:[%s18 + $0x10] sm:$0xff] %v10514
    %10531 = vst [vmem:[%s18 + $0x18] sm:$0xff] %v10515
    %10532 = vst [vmem:[%s18 + $0x20] sm:$0xff] %v10516
    %10533 = vst [vmem:[%s18 + $0x28] sm:$0xff] %v10517
    %10534 = vst [vmem:[%s18 + $0x30] sm:$0xff] %v10518
    %10535 = vst [vmem:[%s18 + $0x38] sm:$0xff] %v10519
    %10536 = vst [vmem:[%s18 + $0x40] sm:$0xff] %v10520
    %10537 = vst [vmem:[%s18 + $0x48] sm:$0xff] %v10521
    %10538 = vst [vmem:[%s18 + $0x50] sm:$0xff] %v10522
    %10539 = vst [vmem:[%s18 + $0x58] sm:$0xff] %v10523
    %10540 = vst [vmem:[%s18 + $0x60] sm:$0xff] %v10524
    %10541 = vst [vmem:[%s18 + $0x68] sm:$0xff] %v10525
    %10542 = vst [vmem:[%s18 + $0x70] sm:$0xff] %v10526
    %10543 = vst [vmem:[%s18 + $0x78] sm:$0xff] %v10527
    // Predicated region
    $region102: #{pcdre_forward.1} parent=1 // pred_check
      _
    $region103: #{pcdre_forward.1} parent=1 // pred_check_branch
      %10545 = sbr.rel (0) target = $region105
    $region104: #{pcdre_forward.1} parent=1 // pred_region
      _
    $region105: #{pcdre_forward.1} parent=1 // pred_fallthru
      _
    // Predicated region
    $region106: #{pcdre_forward.1} parent=1 // pred_check
      _
    $region107: #{pcdre_forward.1} parent=1 // pred_check_branch
      %10547 = sbr.rel (0) target = $region109
    $region108: #{pcdre_forward.1} parent=1 // pred_region
      _
    $region109: #{pcdre_forward.1} parent=1 // pred_fallthru
      _
    %10548 = vsyncpa [#allocation3], 1
    %10549 = vsyncpa [#allocation5], 1
    %10550 = vsyncpa [#allocation8], 1
    %10551 = vsyncpa [#allocation11], 1

</llo_original>
